<compile_context>
chip_gen: v5e
topology: v5e:2x2
jax: 0.10.0
libtpu: 0.0.40
codegen_flags: <defaults>
</compile_context>

<pallas_src>
import functools

import jax
import jax.numpy as jnp
import numpy as np
from jax.experimental import pallas as pl
from jax.experimental.pallas import tpu as pltpu

# ----------------------------- synthetic "args" -----------------------------
TOKEN_DIM = 16      # args.token_dim
EMB = 32            # args.emb
FF = 64             # transformer feed-forward width (2 * emb)
ACTION_SPACE = 8    # args.action_space_size
TASK_ALLY = 8       # task_ally_num  (== args.max_ally_num, so no dummies)
TASK_ENEMY = 8      # task_enemy_num (== args.max_enemy_num, so no dummies)
BATCH = 64
TB = 32             # batch items per grid step

N_ENC = TASK_ALLY                   # encoder entity tokens
N_DEC = TASK_ENEMY                  # decoder entity tokens
ENC_LEN = N_ENC + 1                 # encoder rows incl. hidden token (= 9)
ENC_PAD = 16                        # padded, sublane-aligned encoder rows
N_OUT = ACTION_SPACE + TASK_ENEMY   # decoder rows fed to action_embedding (16)
SCALE = 1.0 / float(np.sqrt(EMB))
NEG_INF = -1e30

# ------------------------- packed parameter layout ---------------------------
# Weight slab (bf16): each matrix occupies rows [off, off+k), lanes [0, n).
_W_ENTRIES = [
    ("we_e", TOKEN_DIM, EMB),
    ("we_d", TOKEN_DIM, EMB),
    ("wqkv", EMB, 3 * EMB),    # concat(wq, wk, wv) along output dim
    ("wo",   EMB, EMB),
    ("f1",   EMB, FF),
    ("f2",   FF,  EMB),
    ("wq2",  EMB, EMB),
    ("wkv2", EMB, 2 * EMB),    # concat(wk2, wv2) along output dim
    ("wo2",  EMB, EMB),
    ("f3",   EMB, FF),
    ("f4",   FF,  EMB),
    ("wa1",  EMB, EMB),
]
W_OFFSETS = {}
_off = 0
for _name, _k, _n in _W_ENTRIES:
    W_OFFSETS[_name] = (_off, _k, _n)
    _off += _k
W_ROWS = _off                        # 416 (multiple of 16 -> bf16-tile aligned)
W_LANES = 128

# Bias slab (f32): one row per bias vector (wa2 stored as a row for the
# final VPU reduction; ba2 is a scalar in lane 0).
_B_ENTRIES = [
    ("be_e", EMB), ("be_d", EMB), ("b1", FF), ("b2", EMB),
    ("b3", FF), ("b4", EMB), ("ba1", EMB), ("wa2", EMB), ("ba2", 1),
]
B_OFFSETS = {name: (i, n) for i, (name, n) in enumerate(_B_ENTRIES)}
B_ROWS = 16                          # padded to a sublane multiple
B_LANES = 128


# --------------------------------- kernel ------------------------------------
def fuseformer_kernel(enc_ref, dec_ref, hid_ref, baq_ref, w_ref, b_ref,
                      q_out_ref, hid_out_ref, *, tb):
    f32 = jnp.float32
    bf16 = jnp.bfloat16

    def wmat(name):                                  # bf16 (k, n) weight tile
        off, k, n = W_OFFSETS[name]
        return w_ref[off:off + k, :n]

    def brow(name):                                  # f32 (1, n) bias row
        row, n = B_OFFSETS[name]
        return b_ref[row:row + 1, :n]

    def mm(a, name):                                 # bf16 MXU matmul, f32 acc
        return jnp.dot(a.astype(bf16), wmat(name), preferred_element_type=f32)

    def bmm_qk(q, k):                                # (b,q,d),(b,k,d)->(b,q,k)
        return jnp.einsum("bqd,bkd->bqk", q.astype(bf16), k.astype(bf16),
                          preferred_element_type=f32)

    def bmm_av(a, v):                                # (b,q,k),(b,k,d)->(b,q,d)
        return jnp.einsum("bqk,bkd->bqd", a.astype(bf16), v.astype(bf16),
                          preferred_element_type=f32)

    def softmax(x):                                  # f32 VPU + EUP reciprocal
        m = jnp.max(x, axis=-1, keepdims=True)
        e = jnp.exp(x - m)
        return e * pl.reciprocal(jnp.sum(e, axis=-1, keepdims=True),
                                 approx=True)

    # key-column mask: encoder rows >= ENC_LEN are padding
    kid = jax.lax.broadcasted_iota(jnp.int32, (1, 1, ENC_PAD), 2)
    enc_mask = jnp.where(kid < ENC_LEN, 0.0, NEG_INF).astype(f32)

    enc = enc_ref[...]                               # (tb*N_ENC, TOKEN_DIM)
    dec = dec_ref[...]                               # (tb*N_DEC, TOKEN_DIM)
    hid = hid_ref[...]                               # (tb, EMB)
    baq = baq_ref[...]                               # (ACTION_SPACE, EMB)

    # ---- encoder: token embedding + hidden token + padded self-attention ----
    enc_tok = (mm(enc, "we_e") + brow("be_e")).reshape(tb, N_ENC, EMB)
    x = jnp.concatenate(
        [enc_tok,
         hid.reshape(tb, 1, EMB),
         jnp.zeros((tb, ENC_PAD - ENC_LEN, EMB), f32)], axis=1)  # (tb,16,EMB)

    qkv = mm(x.reshape(tb * ENC_PAD, EMB), "wqkv").reshape(tb, ENC_PAD, 3 * EMB)
    q = qkv[:, :, :EMB]
    k = qkv[:, :, EMB:2 * EMB]
    v = qkv[:, :, 2 * EMB:]
    attn = softmax(bmm_qk(q, k) * SCALE + enc_mask)              # (tb,16,16)
    ctx = bmm_av(attn, v).reshape(tb * ENC_PAD, EMB)
    x = x + mm(ctx, "wo").reshape(tb, ENC_PAD, EMB)

    x2d = x.reshape(tb * ENC_PAD, EMB)
    hmid = jnp.maximum(mm(x2d, "f1") + brow("b1"), 0.0)
    x2d = x2d + mm(hmid, "f2") + brow("b2")                      # enc_out (2-D)
    enc_out = x2d.reshape(tb, ENC_PAD, EMB)

    # recurrent hidden state = encoder row N_ENC (the hidden token)
    hid_out_ref[...] = enc_out[:, N_ENC:N_ENC + 1, :].reshape(tb, EMB)

    # ---- decoder: [action queries ; enemy tokens] cross-attention over enc --
    dec_tok = (mm(dec, "we_d") + brow("be_d")).reshape(tb, N_DEC, EMB)
    baq_b = jnp.broadcast_to(baq[None], (tb, ACTION_SPACE, EMB))
    y = jnp.concatenate([baq_b, dec_tok], axis=1)                # (tb,16,EMB)

    q2 = mm(y.reshape(tb * N_OUT, EMB), "wq2").reshape(tb, N_OUT, EMB)
    kv2 = mm(x2d, "wkv2").reshape(tb, ENC_PAD, 2 * EMB)
    k2 = kv2[:, :, :EMB]
    v2 = kv2[:, :, EMB:]
    attn2 = softmax(bmm_qk(q2, k2) * SCALE + enc_mask)           # (tb,16,16)
    ctx2 = bmm_av(attn2, v2).reshape(tb * N_OUT, EMB)
    y = y + mm(ctx2, "wo2").reshape(tb, N_OUT, EMB)

    y2d = y.reshape(tb * N_OUT, EMB)
    h2 = jnp.maximum(mm(y2d, "f3") + brow("b3"), 0.0)
    y2d = y2d + mm(h2, "f4") + brow("b4")                        # (tb*16, EMB)

    # ---- action_embedding: Linear(emb,emb)->ReLU, then Linear(emb,1) as a
    # ---- lane reduction (avoids an N=1 MXU matmul and a last-dim-1 store) ---
    h3 = jnp.maximum(mm(y2d, "wa1") + brow("ba1"), 0.0).reshape(tb, N_OUT, EMB)
    qv = jnp.sum(h3 * brow("wa2")[None], axis=-1) + brow("ba2")  # (tb, N_OUT)
    q_out_ref[...] = qv


# ------------------------------ parameter init --------------------------------
def init_params(key):
    names_shapes = [
        ("we_e", (TOKEN_DIM, EMB)), ("be_e", (1, EMB)),
        ("we_d", (TOKEN_DIM, EMB)), ("be_d", (1, EMB)),
        ("wq", (EMB, EMB)), ("wk", (EMB, EMB)), ("wv", (EMB, EMB)), ("wo", (EMB, EMB)),
        ("f1", (EMB, FF)), ("b1", (1, FF)), ("f2", (FF, EMB)), ("b2", (1, EMB)),
        ("wq2", (EMB, EMB)), ("wk2", (EMB, EMB)), ("wv2", (EMB, EMB)), ("wo2", (EMB, EMB)),
        ("f3", (EMB, FF)), ("b3", (1, FF)), ("f4", (FF, EMB)), ("b4", (1, EMB)),
        ("wa1", (EMB, EMB)), ("ba1", (1, EMB)), ("wa2", (EMB, 1)), ("ba2", (1, 1)),
    ]
    keys = jax.random.split(key, len(names_shapes) + 1)
    params = {}
    for (name, shape), k in zip(names_shapes, keys[:-1]):
        params[name] = (0.1 * jax.random.normal(k, shape)).astype(jnp.float32)
    # basic_action_query = torch.rand(action_space, emb)[None] -> uniform [0,1)
    params["baq"] = jax.random.uniform(
        keys[-1], (1, ACTION_SPACE, EMB), dtype=jnp.float32)
    return params


def pack_params(params):
    """Pack all weights into one bf16 slab and all biases into one f32 slab."""
    fused = {
        "we_e": params["we_e"], "we_d": params["we_d"],
        "wqkv": jnp.concatenate([params["wq"], params["wk"], params["wv"]], axis=1),
        "wo": params["wo"], "f1": params["f1"], "f2": params["f2"],
        "wq2": params["wq2"],
        "wkv2": jnp.concatenate([params["wk2"], params["wv2"]], axis=1),
        "wo2": params["wo2"], "f3": params["f3"], "f4": params["f4"],
        "wa1": params["wa1"],
    }
    w_slab = jnp.zeros((W_ROWS, W_LANES), jnp.float32)
    for name, (off, k, n) in W_OFFSETS.items():
        w_slab = w_slab.at[off:off + k, :n].set(fused[name])
    w_slab = w_slab.astype(jnp.bfloat16)

    brows = {
        "be_e": params["be_e"], "be_d": params["be_d"],
        "b1": params["b1"], "b2": params["b2"],
        "b3": params["b3"], "b4": params["b4"], "ba1": params["ba1"],
        "wa2": params["wa2"].reshape(1, EMB),
        "ba2": params["ba2"].reshape(1, 1),
    }
    b_slab = jnp.zeros((B_ROWS, B_LANES), jnp.float32)
    for name, (row, n) in B_OFFSETS.items():
        b_slab = b_slab.at[row:row + 1, :n].set(brows[name])
    return w_slab, b_slab


# --------------------------------- wrapper ------------------------------------
def fouseformer_agent_forward(inputs, hidden_state, params,
                              task_ally_num=TASK_ALLY, task_enemy_num=TASK_ENEMY,
                              tb=TB):
    b = inputs.shape[0]
    tb = min(tb, b)
    while b % tb:            # largest batch tile that divides the batch
        tb -= 1

    # TODO(synk): args.dummy_entity padding (DummyGenerator random / average
    # entities) is not implemented; this config uses task_*_num == max_*_num so
    # the dummy branch is a no-op.
    enc_flat = inputs[:, :task_ally_num, :].reshape(b * N_ENC, TOKEN_DIM)
    dec_flat = inputs[:, task_ally_num:, :].reshape(b * N_DEC, TOKEN_DIM)
    hid2 = hidden_state.reshape(b, EMB)
    baq = params["baq"][0]                                  # (ACTION_SPACE, EMB)
    w_slab, b_slab = pack_params(params)

    in_specs = [
        pl.BlockSpec((tb * N_ENC, TOKEN_DIM), lambda i: (i, 0)),
        pl.BlockSpec((tb * N_DEC, TOKEN_DIM), lambda i: (i, 0)),
        pl.BlockSpec((tb, EMB), lambda i: (i, 0)),
        pl.BlockSpec(baq.shape, lambda i: (0, 0)),
        pl.BlockSpec(w_slab.shape, lambda i: (0, 0)),
        pl.BlockSpec(b_slab.shape, lambda i: (0, 0)),
    ]
    out_shapes = (
        jax.ShapeDtypeStruct((b, N_OUT), jnp.float32),      # q (lane-dense)
        jax.ShapeDtypeStruct((b, EMB), jnp.float32),        # hidden
    )
    out_specs = [
        pl.BlockSpec((tb, N_OUT), lambda i: (i, 0)),
        pl.BlockSpec((tb, EMB), lambda i: (i, 0)),
    ]

    q2d, hid2d = pl.pallas_call(
        functools.partial(fuseformer_kernel, tb=tb),
        out_shape=out_shapes,
        grid_spec=pltpu.PrefetchScalarGridSpec(
            num_scalar_prefetch=0,
            grid=(b // tb,),
            in_specs=in_specs,
            out_specs=out_specs,
        ),
        compiler_params=pltpu.CompilerParams(
            dimension_semantics=("parallel",)),
    )(enc_flat, dec_flat, hid2, baq, w_slab, b_slab)

    # Wrapper-side reshape to the module's return shapes (free layout plumbing).
    return q2d.reshape(b, N_OUT, 1), hid2d.reshape(b, 1, EMB)


# ----------------------------- pure-JAX reference ------------------------------
def reference_forward(inputs, hidden_state, params,
                      task_ally_num=TASK_ALLY, task_enemy_num=TASK_ENEMY):
    b = inputs.shape[0]
    enc_in = inputs[:, :task_ally_num, :]
    dec_in = inputs[:, task_ally_num:, :]
    hid = hidden_state.reshape(b, 1, EMB)
    p = params
    scale = 1.0 / jnp.sqrt(jnp.float32(EMB))

    def sm(x):
        m = jnp.max(x, -1, keepdims=True)
        e = jnp.exp(x - m)
        return e / jnp.sum(e, -1, keepdims=True)

    def one(enc, dec, h):
        enc_tok = enc @ p["we_e"] + p["be_e"]
        x = jnp.concatenate([enc_tok, h], 0)
        attn = sm((x @ p["wq"]) @ (x @ p["wk"]).T * scale)
        x = x + (attn @ (x @ p["wv"])) @ p["wo"]
        hh = jnp.maximum(x @ p["f1"] + p["b1"], 0.0)
        x = x + hh @ p["f2"] + p["b2"]
        hid_out = x[TASK_ALLY:TASK_ALLY + 1]
        dec_tok = dec @ p["we_d"] + p["be_d"]
        y = jnp.concatenate([p["baq"][0], dec_tok], 0)
        attn2 = sm((y @ p["wq2"]) @ (x @ p["wk2"]).T * scale)
        y = y + (attn2 @ (x @ p["wv2"])) @ p["wo2"]
        h2 = jnp.maximum(y @ p["f3"] + p["b3"], 0.0)
        y = y + h2 @ p["f4"] + p["b4"]
        h3 = jnp.maximum(y @ p["wa1"] + p["ba1"], 0.0)
        return h3 @ p["wa2"] + p["ba2"], hid_out

    q, hid_out = jax.vmap(one)(enc_in, dec_in, hid)
    return q, hid_out


# ----------------------------------- main --------------------------------------
if __name__ == "__main__":
    key = jax.random.PRNGKey(0)
    pkey, ikey = jax.random.split(key)
    params = init_params(pkey)

    # inputs: (batch, task_ally_num + task_enemy_num, token_dim)
    inputs = jax.random.uniform(
        ikey, (BATCH, TASK_ALLY + TASK_ENEMY, TOKEN_DIM), dtype=jnp.float32)
    # init_hidden() -> zeros(1, emb), expanded over the batch
    hidden_state = jnp.zeros((BATCH, 1, EMB), jnp.float32)

    q, hidden = fouseformer_agent_forward(inputs, hidden_state, params)
    q = jax.block_until_ready(q)
    hidden = jax.block_until_ready(hidden)

    q_ref, hid_ref = reference_forward(inputs, hidden_state, params)
    np.testing.assert_allclose(np.asarray(q), np.asarray(q_ref),
                               rtol=2e-2, atol=2e-2)
    np.testing.assert_allclose(np.asarray(hidden), np.asarray(hid_ref),
                               rtol=2e-2, atol=2e-2)
    assert q.shape == (BATCH, ACTION_SPACE + TASK_ENEMY, 1)
    assert hidden.shape == (BATCH, 1, EMB)
    print("KERNEL_OK")
</pallas_src>

<mosaic_0001>
module attributes {stable_mosaic.version = 11 : i64} {
  func.func @fuseformer_kernel(%arg0: i32, %arg1: memref<256x16xf32, #tpu.memory_space<vmem>>, %arg2: memref<256x16xf32, #tpu.memory_space<vmem>>, %arg3: memref<32x32xf32, #tpu.memory_space<vmem>>, %arg4: memref<8x32xf32, #tpu.memory_space<vmem>>, %arg5: memref<416x128xbf16, #tpu.memory_space<vmem>>, %arg6: memref<16x128xf32, #tpu.memory_space<vmem>>, %arg7: memref<32x16xf32, #tpu.memory_space<vmem>>, %arg8: memref<32x32xf32, #tpu.memory_space<vmem>>) attributes {dimension_semantics = [#tpu.dimension_semantics<parallel>], iteration_bounds = array<i64: 2>, scalar_prefetch = 0 : i64, scratch_operands = 0 : i64, tpu.core_type = #tpu.core_type<tc>, window_params = [{transform_indices = @transform_0, window_bounds = array<i64: 256, 16>}, {transform_indices = @transform_1, window_bounds = array<i64: 256, 16>}, {transform_indices = @transform_2, window_bounds = array<i64: 32, 32>}, {pipeline_mode = #tpu.pipeline_mode<synchronous>, transform_indices = @transform_3, window_bounds = array<i64: 8, 32>}, {pipeline_mode = #tpu.pipeline_mode<synchronous>, transform_indices = @transform_4, window_bounds = array<i64: 416, 128>}, {pipeline_mode = #tpu.pipeline_mode<synchronous>, transform_indices = @transform_5, window_bounds = array<i64: 16, 128>}, {transform_indices = @transform_6, window_bounds = array<i64: 32, 16>}, {transform_indices = @transform_7, window_bounds = array<i64: 32, 32>}]} {
    %0 = tpu.iota {dimensions = array<i32: 2>} : vector<1x1x16xi32>
    %c9_i32 = arith.constant 9 : i32
    %1 = vector.broadcast %c9_i32 : i32 to vector<1x1x16xi32>
    %2 = arith.cmpi slt, %0, %1 : vector<1x1x16xi32>
    %cst = arith.constant 0.000000e+00 : f32
    %cst_0 = arith.constant -1.000000e+30 : f32
    %3 = vector.broadcast %cst : f32 to vector<1x1x16xf32>
    %4 = vector.broadcast %cst_0 : f32 to vector<1x1x16xf32>
    %5 = arith.select %2, %3, %4 : vector<1x1x16xi1>, vector<1x1x16xf32>
    %c0 = arith.constant 0 : index
    %c0_1 = arith.constant 0 : index
    %6 = vector.load %arg1[%c0, %c0_1] : memref<256x16xf32, #tpu.memory_space<vmem>>, vector<256x16xf32>
    %c0_2 = arith.constant 0 : index
    %c0_3 = arith.constant 0 : index
    %7 = vector.load %arg2[%c0_2, %c0_3] : memref<256x16xf32, #tpu.memory_space<vmem>>, vector<256x16xf32>
    %c0_4 = arith.constant 0 : index
    %c0_5 = arith.constant 0 : index
    %8 = vector.load %arg3[%c0_4, %c0_5] : memref<32x32xf32, #tpu.memory_space<vmem>>, vector<32x32xf32>
    %c0_6 = arith.constant 0 : index
    %c0_7 = arith.constant 0 : index
    %9 = vector.load %arg4[%c0_6, %c0_7] : memref<8x32xf32, #tpu.memory_space<vmem>>, vector<8x32xf32>
    %10 = arith.truncf %6 : vector<256x16xf32> to vector<256x16xbf16>
    %c0_8 = arith.constant 0 : index
    %c0_9 = arith.constant 0 : index
    %11 = vector.load %arg5[%c0_8, %c0_9] : memref<416x128xbf16, #tpu.memory_space<vmem>>, vector<16x32xbf16>
    %cst_10 = arith.constant dense<0.000000e+00> : vector<256x32xf32>
    %12 = tpu.matmul %10, %11, %cst_10 {dimension_numbers = #tpu.dot_dimension_numbers<[1], [0], [0], [1], [0, 0, 1, 1], [], []>} : vector<256x16xbf16>, vector<16x32xbf16>, vector<256x32xf32> -> vector<256x32xf32>
    %c0_11 = arith.constant 0 : index
    %c0_12 = arith.constant 0 : index
    %13 = vector.load %arg6[%c0_11, %c0_12] : memref<16x128xf32, #tpu.memory_space<vmem>>, vector<1x32xf32>
    %14 = vector.broadcast %13 : vector<1x32xf32> to vector<256x32xf32>
    %15 = arith.addf %12, %14 : vector<256x32xf32>
    %16 = vector.shape_cast %15 : vector<256x32xf32> to vector<32x8x32xf32>
    %17 = vector.shape_cast %8 : vector<32x32xf32> to vector<32x1x32xf32>
    %cst_13 = arith.constant 0.000000e+00 : f32
    %18 = vector.broadcast %cst_13 : f32 to vector<32x7x32xf32>
    %19 = tpu.concatenate %16, %17, %18 in 1 : vector<32x8x32xf32>, vector<32x1x32xf32>, vector<32x7x32xf32> -> vector<32x16x32xf32>
    %20 = vector.shape_cast %19 : vector<32x16x32xf32> to vector<512x32xf32>
    %21 = arith.truncf %20 : vector<512x32xf32> to vector<512x32xbf16>
    %c32 = arith.constant 32 : index
    %c0_14 = arith.constant 0 : index
    %22 = vector.load %arg5[%c32, %c0_14] : memref<416x128xbf16, #tpu.memory_space<vmem>>, vector<32x96xbf16>
    %cst_15 = arith.constant dense<0.000000e+00> : vector<512x96xf32>
    %23 = tpu.matmul %21, %22, %cst_15 {dimension_numbers = #tpu.dot_dimension_numbers<[1], [0], [0], [1], [0, 0, 1, 1], [], []>} : vector<512x32xbf16>, vector<32x96xbf16>, vector<512x96xf32> -> vector<512x96xf32>
    %24 = vector.shape_cast %23 : vector<512x96xf32> to vector<32x16x96xf32>
    %25 = vector.extract_strided_slice %24 {offsets = [0, 0, 0], sizes = [32, 16, 32], strides = [1, 1, 1]} : vector<32x16x96xf32> to vector<32x16x32xf32>
    %26 = vector.extract_strided_slice %24 {offsets = [0, 0, 32], sizes = [32, 16, 32], strides = [1, 1, 1]} : vector<32x16x96xf32> to vector<32x16x32xf32>
    %27 = vector.extract_strided_slice %24 {offsets = [0, 0, 64], sizes = [32, 16, 32], strides = [1, 1, 1]} : vector<32x16x96xf32> to vector<32x16x32xf32>
    %28 = arith.truncf %25 : vector<32x16x32xf32> to vector<32x16x32xbf16>
    %29 = arith.truncf %26 : vector<32x16x32xf32> to vector<32x16x32xbf16>
    "tpu.trace_start"() <{level = 10 : i32, message = "bqd,bkd->bqk"}> : () -> ()
    %cst_16 = arith.constant dense<0.000000e+00> : vector<32x16x16xf32>
    %30 = tpu.matmul %28, %29, %cst_16 {dimension_numbers = #tpu.dot_dimension_numbers<[2], [2], [1], [1], [0, 0, 0, 1, 1, 1], [0], [0]>} : vector<32x16x32xbf16>, vector<32x16x32xbf16>, vector<32x16x16xf32> -> vector<32x16x16xf32>
    "tpu.trace_stop"() : () -> ()
    %cst_17 = arith.constant 0.176776692 : f32
    %31 = vector.broadcast %cst_17 : f32 to vector<32x16x16xf32>
    %32 = arith.mulf %30, %31 : vector<32x16x16xf32>
    %33 = vector.broadcast %5 : vector<1x1x16xf32> to vector<32x16x16xf32>
    %34 = arith.addf %32, %33 : vector<32x16x16xf32>
    %cst_18 = arith.constant dense<0xFF800000> : vector<32x16xf32>
    %35 = vector.multi_reduction <maximumf>, %34, %cst_18 [2] : vector<32x16x16xf32> to vector<32x16xf32>
    %36 = vector.shape_cast %35 : vector<32x16xf32> to vector<32x16x1xf32>
    %37 = vector.broadcast %36 : vector<32x16x1xf32> to vector<32x16x16xf32>
    %38 = arith.subf %34, %37 : vector<32x16x16xf32>
    %39 = math.exp %38 : vector<32x16x16xf32>
    %cst_19 = arith.constant dense<0.000000e+00> : vector<32x16xf32>
    %40 = vector.multi_reduction <add>, %39, %cst_19 [2] : vector<32x16x16xf32> to vector<32x16xf32>
    %41 = vector.shape_cast %40 : vector<32x16xf32> to vector<32x16x1xf32>
    %42 = tpu.reciprocal %41 {approx = true} : vector<32x16x1xf32> -> vector<32x16x1xf32>
    %43 = vector.broadcast %42 : vector<32x16x1xf32> to vector<32x16x16xf32>
    %44 = arith.mulf %39, %43 : vector<32x16x16xf32>
    %45 = arith.truncf %44 : vector<32x16x16xf32> to vector<32x16x16xbf16>
    %46 = arith.truncf %27 : vector<32x16x32xf32> to vector<32x16x32xbf16>
    "tpu.trace_start"() <{level = 10 : i32, message = "bqk,bkd->bqd"}> : () -> ()
    %cst_20 = arith.constant dense<0.000000e+00> : vector<32x16x32xf32>
    %47 = tpu.matmul %45, %46, %cst_20 {dimension_numbers = #tpu.dot_dimension_numbers<[2], [1], [1], [2], [0, 0, 0, 1, 1, 2], [0], [0]>} : vector<32x16x16xbf16>, vector<32x16x32xbf16>, vector<32x16x32xf32> -> vector<32x16x32xf32>
    "tpu.trace_stop"() : () -> ()
    %48 = vector.shape_cast %47 : vector<32x16x32xf32> to vector<512x32xf32>
    %49 = arith.truncf %48 : vector<512x32xf32> to vector<512x32xbf16>
    %c64 = arith.constant 64 : index
    %c0_21 = arith.constant 0 : index
    %50 = vector.load %arg5[%c64, %c0_21] : memref<416x128xbf16, #tpu.memory_space<vmem>>, vector<32x32xbf16>
    %cst_22 = arith.constant dense<0.000000e+00> : vector<512x32xf32>
    %51 = tpu.matmul %49, %50, %cst_22 {dimension_numbers = #tpu.dot_dimension_numbers<[1], [0], [0], [1], [0, 0, 1, 1], [], []>} : vector<512x32xbf16>, vector<32x32xbf16>, vector<512x32xf32> -> vector<512x32xf32>
    %52 = vector.shape_cast %51 : vector<512x32xf32> to vector<32x16x32xf32>
    %53 = arith.addf %19, %52 : vector<32x16x32xf32>
    %54 = vector.shape_cast %53 : vector<32x16x32xf32> to vector<512x32xf32>
    %55 = arith.truncf %54 : vector<512x32xf32> to vector<512x32xbf16>
    %c96 = arith.constant 96 : index
    %c0_23 = arith.constant 0 : index
    %56 = vector.load %arg5[%c96, %c0_23] : memref<416x128xbf16, #tpu.memory_space<vmem>>, vector<32x64xbf16>
    %cst_24 = arith.constant dense<0.000000e+00> : vector<512x64xf32>
    %57 = tpu.matmul %55, %56, %cst_24 {dimension_numbers = #tpu.dot_dimension_numbers<[1], [0], [0], [1], [0, 0, 1, 1], [], []>} : vector<512x32xbf16>, vector<32x64xbf16>, vector<512x64xf32> -> vector<512x64xf32>
    %c2 = arith.constant 2 : index
    %c0_25 = arith.constant 0 : index
    %58 = vector.load %arg6[%c2, %c0_25] : memref<16x128xf32, #tpu.memory_space<vmem>>, vector<1x64xf32>
    %59 = vector.broadcast %58 : vector<1x64xf32> to vector<512x64xf32>
    %60 = arith.addf %57, %59 : vector<512x64xf32>
    %cst_26 = arith.constant 0.000000e+00 : f32
    %61 = vector.broadcast %cst_26 : f32 to vector<512x64xf32>
    %62 = arith.maximumf %60, %61 : vector<512x64xf32>
    %63 = arith.truncf %62 : vector<512x64xf32> to vector<512x64xbf16>
    %c128 = arith.constant 128 : index
    %c0_27 = arith.constant 0 : index
    %64 = vector.load %arg5[%c128, %c0_27] : memref<416x128xbf16, #tpu.memory_space<vmem>>, vector<64x32xbf16>
    %cst_28 = arith.constant dense<0.000000e+00> : vector<512x32xf32>
    %65 = tpu.matmul %63, %64, %cst_28 {dimension_numbers = #tpu.dot_dimension_numbers<[1], [0], [0], [1], [0, 0, 1, 1], [], []>} : vector<512x64xbf16>, vector<64x32xbf16>, vector<512x32xf32> -> vector<512x32xf32>
    %66 = arith.addf %54, %65 : vector<512x32xf32>
    %c3 = arith.constant 3 : index
    %c0_29 = arith.constant 0 : index
    %67 = vector.load %arg6[%c3, %c0_29] : memref<16x128xf32, #tpu.memory_space<vmem>>, vector<1x32xf32>
    %68 = vector.broadcast %67 : vector<1x32xf32> to vector<512x32xf32>
    %69 = arith.addf %66, %68 : vector<512x32xf32>
    %70 = vector.shape_cast %69 : vector<512x32xf32> to vector<32x16x32xf32>
    %71 = vector.extract_strided_slice %70 {offsets = [0, 8, 0], sizes = [32, 1, 32], strides = [1, 1, 1]} : vector<32x16x32xf32> to vector<32x1x32xf32>
    %72 = vector.shape_cast %71 : vector<32x1x32xf32> to vector<32x32xf32>
    %c0_30 = arith.constant 0 : index
    %c0_31 = arith.constant 0 : index
    %73 = vector.load %arg8[%c0_30, %c0_31] : memref<32x32xf32, #tpu.memory_space<vmem>>, vector<32x32xf32>
    tpu.vector_store %arg8[%c0_30, %c0_31], %72 {strides = array<i32>} : memref<32x32xf32, #tpu.memory_space<vmem>>, vector<32x32xf32>,
    %74 = arith.truncf %7 : vector<256x16xf32> to vector<256x16xbf16>
    %c16 = arith.constant 16 : index
    %c0_32 = arith.constant 0 : index
    %75 = vector.load %arg5[%c16, %c0_32] : memref<416x128xbf16, #tpu.memory_space<vmem>>, vector<16x32xbf16>
    %cst_33 = arith.constant dense<0.000000e+00> : vector<256x32xf32>
    %76 = tpu.matmul %74, %75, %cst_33 {dimension_numbers = #tpu.dot_dimension_numbers<[1], [0], [0], [1], [0, 0, 1, 1], [], []>} : vector<256x16xbf16>, vector<16x32xbf16>, vector<256x32xf32> -> vector<256x32xf32>
    %c1 = arith.constant 1 : index
    %c0_34 = arith.constant 0 : index
    %77 = vector.load %arg6[%c1, %c0_34] : memref<16x128xf32, #tpu.memory_space<vmem>>, vector<1x32xf32>
    %78 = vector.broadcast %77 : vector<1x32xf32> to vector<256x32xf32>
    %79 = arith.addf %76, %78 : vector<256x32xf32>
    %80 = vector.shape_cast %79 : vector<256x32xf32> to vector<32x8x32xf32>
    %81 = vector.shape_cast %9 : vector<8x32xf32> to vector<1x8x32xf32>
    %82 = vector.shape_cast %81 : vector<1x8x32xf32> to vector<1x8x32xf32>
    %83 = vector.broadcast %82 : vector<1x8x32xf32> to vector<32x8x32xf32>
    %84 = tpu.concatenate %83, %80 in 1 : vector<32x8x32xf32>, vector<32x8x32xf32> -> vector<32x16x32xf32>
    %85 = vector.shape_cast %84 : vector<32x16x32xf32> to vector<512x32xf32>
    %86 = arith.truncf %85 : vector<512x32xf32> to vector<512x32xbf16>
    %c192 = arith.constant 192 : index
    %c0_35 = arith.constant 0 : index
    %87 = vector.load %arg5[%c192, %c0_35] : memref<416x128xbf16, #tpu.memory_space<vmem>>, vector<32x32xbf16>
    %cst_36 = arith.constant dense<0.000000e+00> : vector<512x32xf32>
    %88 = tpu.matmul %86, %87, %cst_36 {dimension_numbers = #tpu.dot_dimension_numbers<[1], [0], [0], [1], [0, 0, 1, 1], [], []>} : vector<512x32xbf16>, vector<32x32xbf16>, vector<512x32xf32> -> vector<512x32xf32>
    %89 = vector.shape_cast %88 : vector<512x32xf32> to vector<32x16x32xf32>
    %90 = arith.truncf %69 : vector<512x32xf32> to vector<512x32xbf16>
    %c224 = arith.constant 224 : index
    %c0_37 = arith.constant 0 : index
    %91 = vector.load %arg5[%c224, %c0_37] : memref<416x128xbf16, #tpu.memory_space<vmem>>, vector<32x64xbf16>
    %cst_38 = arith.constant dense<0.000000e+00> : vector<512x64xf32>
    %92 = tpu.matmul %90, %91, %cst_38 {dimension_numbers = #tpu.dot_dimension_numbers<[1], [0], [0], [1], [0, 0, 1, 1], [], []>} : vector<512x32xbf16>, vector<32x64xbf16>, vector<512x64xf32> -> vector<512x64xf32>
    %93 = vector.shape_cast %92 : vector<512x64xf32> to vector<32x16x64xf32>
    %94 = vector.extract_strided_slice %93 {offsets = [0, 0, 0], sizes = [32, 16, 32], strides = [1, 1, 1]} : vector<32x16x64xf32> to vector<32x16x32xf32>
    %95 = vector.extract_strided_slice %93 {offsets = [0, 0, 32], sizes = [32, 16, 32], strides = [1, 1, 1]} : vector<32x16x64xf32> to vector<32x16x32xf32>
    %96 = arith.truncf %89 : vector<32x16x32xf32> to vector<32x16x32xbf16>
    %97 = arith.truncf %94 : vector<32x16x32xf32> to vector<32x16x32xbf16>
    "tpu.trace_start"() <{level = 10 : i32, message = "bqd,bkd->bqk"}> : () -> ()
    %cst_39 = arith.constant dense<0.000000e+00> : vector<32x16x16xf32>
    %98 = tpu.matmul %96, %97, %cst_39 {dimension_numbers = #tpu.dot_dimension_numbers<[2], [2], [1], [1], [0, 0, 0, 1, 1, 1], [0], [0]>} : vector<32x16x32xbf16>, vector<32x16x32xbf16>, vector<32x16x16xf32> -> vector<32x16x16xf32>
    "tpu.trace_stop"() : () -> ()
    %cst_40 = arith.constant 0.176776692 : f32
    %99 = vector.broadcast %cst_40 : f32 to vector<32x16x16xf32>
    %100 = arith.mulf %98, %99 : vector<32x16x16xf32>
    %101 = vector.broadcast %5 : vector<1x1x16xf32> to vector<32x16x16xf32>
    %102 = arith.addf %100, %101 : vector<32x16x16xf32>
    %cst_41 = arith.constant dense<0xFF800000> : vector<32x16xf32>
    %103 = vector.multi_reduction <maximumf>, %102, %cst_41 [2] : vector<32x16x16xf32> to vector<32x16xf32>
    %104 = vector.shape_cast %103 : vector<32x16xf32> to vector<32x16x1xf32>
    %105 = vector.broadcast %104 : vector<32x16x1xf32> to vector<32x16x16xf32>
    %106 = arith.subf %102, %105 : vector<32x16x16xf32>
    %107 = math.exp %106 : vector<32x16x16xf32>
    %cst_42 = arith.constant dense<0.000000e+00> : vector<32x16xf32>
    %108 = vector.multi_reduction <add>, %107, %cst_42 [2] : vector<32x16x16xf32> to vector<32x16xf32>
    %109 = vector.shape_cast %108 : vector<32x16xf32> to vector<32x16x1xf32>
    %110 = tpu.reciprocal %109 {approx = true} : vector<32x16x1xf32> -> vector<32x16x1xf32>
    %111 = vector.broadcast %110 : vector<32x16x1xf32> to vector<32x16x16xf32>
    %112 = arith.mulf %107, %111 : vector<32x16x16xf32>
    %113 = arith.truncf %112 : vector<32x16x16xf32> to vector<32x16x16xbf16>
    %114 = arith.truncf %95 : vector<32x16x32xf32> to vector<32x16x32xbf16>
    "tpu.trace_start"() <{level = 10 : i32, message = "bqk,bkd->bqd"}> : () -> ()
    %cst_43 = arith.constant dense<0.000000e+00> : vector<32x16x32xf32>
    %115 = tpu.matmul %113, %114, %cst_43 {dimension_numbers = #tpu.dot_dimension_numbers<[2], [1], [1], [2], [0, 0, 0, 1, 1, 2], [0], [0]>} : vector<32x16x16xbf16>, vector<32x16x32xbf16>, vector<32x16x32xf32> -> vector<32x16x32xf32>
    "tpu.trace_stop"() : () -> ()
    %116 = vector.shape_cast %115 : vector<32x16x32xf32> to vector<512x32xf32>
    %117 = arith.truncf %116 : vector<512x32xf32> to vector<512x32xbf16>
    %c256 = arith.constant 256 : index
    %c0_44 = arith.constant 0 : index
    %118 = vector.load %arg5[%c256, %c0_44] : memref<416x128xbf16, #tpu.memory_space<vmem>>, vector<32x32xbf16>
    %cst_45 = arith.constant dense<0.000000e+00> : vector<512x32xf32>
    %119 = tpu.matmul %117, %118, %cst_45 {dimension_numbers = #tpu.dot_dimension_numbers<[1], [0], [0], [1], [0, 0, 1, 1], [], []>} : vector<512x32xbf16>, vector<32x32xbf16>, vector<512x32xf32> -> vector<512x32xf32>
    %120 = vector.shape_cast %119 : vector<512x32xf32> to vector<32x16x32xf32>
    %121 = arith.addf %84, %120 : vector<32x16x32xf32>
    %122 = vector.shape_cast %121 : vector<32x16x32xf32> to vector<512x32xf32>
    %123 = arith.truncf %122 : vector<512x32xf32> to vector<512x32xbf16>
    %c288 = arith.constant 288 : index
    %c0_46 = arith.constant 0 : index
    %124 = vector.load %arg5[%c288, %c0_46] : memref<416x128xbf16, #tpu.memory_space<vmem>>, vector<32x64xbf16>
    %cst_47 = arith.constant dense<0.000000e+00> : vector<512x64xf32>
    %125 = tpu.matmul %123, %124, %cst_47 {dimension_numbers = #tpu.dot_dimension_numbers<[1], [0], [0], [1], [0, 0, 1, 1], [], []>} : vector<512x32xbf16>, vector<32x64xbf16>, vector<512x64xf32> -> vector<512x64xf32>
    %c4 = arith.constant 4 : index
    %c0_48 = arith.constant 0 : index
    %126 = vector.load %arg6[%c4, %c0_48] : memref<16x128xf32, #tpu.memory_space<vmem>>, vector<1x64xf32>
    %127 = vector.broadcast %126 : vector<1x64xf32> to vector<512x64xf32>
    %128 = arith.addf %125, %127 : vector<512x64xf32>
    %cst_49 = arith.constant 0.000000e+00 : f32
    %129 = vector.broadcast %cst_49 : f32 to vector<512x64xf32>
    %130 = arith.maximumf %128, %129 : vector<512x64xf32>
    %131 = arith.truncf %130 : vector<512x64xf32> to vector<512x64xbf16>
    %c320 = arith.constant 320 : index
    %c0_50 = arith.constant 0 : index
    %132 = vector.load %arg5[%c320, %c0_50] : memref<416x128xbf16, #tpu.memory_space<vmem>>, vector<64x32xbf16>
    %cst_51 = arith.constant dense<0.000000e+00> : vector<512x32xf32>
    %133 = tpu.matmul %131, %132, %cst_51 {dimension_numbers = #tpu.dot_dimension_numbers<[1], [0], [0], [1], [0, 0, 1, 1], [], []>} : vector<512x64xbf16>, vector<64x32xbf16>, vector<512x32xf32> -> vector<512x32xf32>
    %134 = arith.addf %122, %133 : vector<512x32xf32>
    %c5 = arith.constant 5 : index
    %c0_52 = arith.constant 0 : index
    %135 = vector.load %arg6[%c5, %c0_52] : memref<16x128xf32, #tpu.memory_space<vmem>>, vector<1x32xf32>
    %136 = vector.broadcast %135 : vector<1x32xf32> to vector<512x32xf32>
    %137 = arith.addf %134, %136 : vector<512x32xf32>
    %138 = arith.truncf %137 : vector<512x32xf32> to vector<512x32xbf16>
    %c384 = arith.constant 384 : index
    %c0_53 = arith.constant 0 : index
    %139 = vector.load %arg5[%c384, %c0_53] : memref<416x128xbf16, #tpu.memory_space<vmem>>, vector<32x32xbf16>
    %cst_54 = arith.constant dense<0.000000e+00> : vector<512x32xf32>
    %140 = tpu.matmul %138, %139, %cst_54 {dimension_numbers = #tpu.dot_dimension_numbers<[1], [0], [0], [1], [0, 0, 1, 1], [], []>} : vector<512x32xbf16>, vector<32x32xbf16>, vector<512x32xf32> -> vector<512x32xf32>
    %c6 = arith.constant 6 : index
    %c0_55 = arith.constant 0 : index
    %141 = vector.load %arg6[%c6, %c0_55] : memref<16x128xf32, #tpu.memory_space<vmem>>, vector<1x32xf32>
    %142 = vector.broadcast %141 : vector<1x32xf32> to vector<512x32xf32>
    %143 = arith.addf %140, %142 : vector<512x32xf32>
    %cst_56 = arith.constant 0.000000e+00 : f32
    %144 = vector.broadcast %cst_56 : f32 to vector<512x32xf32>
    %145 = arith.maximumf %143, %144 : vector<512x32xf32>
    %146 = vector.shape_cast %145 : vector<512x32xf32> to vector<32x16x32xf32>
    %c7 = arith.constant 7 : index
    %c0_57 = arith.constant 0 : index
    %147 = vector.load %arg6[%c7, %c0_57] : memref<16x128xf32, #tpu.memory_space<vmem>>, vector<1x32xf32>
    %148 = vector.shape_cast %147 : vector<1x32xf32> to vector<1x1x32xf32>
    %149 = vector.broadcast %148 : vector<1x1x32xf32> to vector<32x16x32xf32>
    %150 = arith.mulf %146, %149 : vector<32x16x32xf32>
    %cst_58 = arith.constant dense<0.000000e+00> : vector<32x16xf32>
    %151 = vector.multi_reduction <add>, %150, %cst_58 [2] : vector<32x16x32xf32> to vector<32x16xf32>
    %c8 = arith.constant 8 : index
    %c0_59 = arith.constant 0 : index
    %152 = vector.load %arg6[%c8, %c0_59] : memref<16x128xf32, #tpu.memory_space<vmem>>, vector<1x1xf32>
    %153 = vector.broadcast %152 : vector<1x1xf32> to vector<32x16xf32>
    %154 = arith.addf %151, %153 : vector<32x16xf32>
    %c0_60 = arith.constant 0 : index
    %c0_61 = arith.constant 0 : index
    %155 = vector.load %arg7[%c0_60, %c0_61] : memref<32x16xf32, #tpu.memory_space<vmem>>, vector<32x16xf32>
    tpu.vector_store %arg7[%c0_60, %c0_61], %154 {strides = array<i32>} : memref<32x16xf32, #tpu.memory_space<vmem>>, vector<32x16xf32>,
    return
  }
  func.func @transform_0(%arg0: i32) -> (i32, i32) {
    %c0_i32 = arith.constant 0 : i32
    %c0_i32_0 = arith.constant 0 : i32
    return %arg0, %c0_i32 : i32, i32
  }
  func.func @transform_1(%arg0: i32) -> (i32, i32) {
    %c0_i32 = arith.constant 0 : i32
    %c0_i32_0 = arith.constant 0 : i32
    return %arg0, %c0_i32 : i32, i32
  }
  func.func @transform_2(%arg0: i32) -> (i32, i32) {
    %c0_i32 = arith.constant 0 : i32
    %c0_i32_0 = arith.constant 0 : i32
    return %arg0, %c0_i32 : i32, i32
  }
  func.func @transform_3(%arg0: i32) -> (i32, i32) {
    %c0_i32 = arith.constant 0 : i32
    %c0_i32_0 = arith.constant 0 : i32
    %c0_i32_1 = arith.constant 0 : i32
    return %c0_i32, %c0_i32_0 : i32, i32
  }
  func.func @transform_4(%arg0: i32) -> (i32, i32) {
    %c0_i32 = arith.constant 0 : i32
    %c0_i32_0 = arith.constant 0 : i32
    %c0_i32_1 = arith.constant 0 : i32
    return %c0_i32, %c0_i32_0 : i32, i32
  }
  func.func @transform_5(%arg0: i32) -> (i32, i32) {
    %c0_i32 = arith.constant 0 : i32
    %c0_i32_0 = arith.constant 0 : i32
    %c0_i32_1 = arith.constant 0 : i32
    return %c0_i32, %c0_i32_0 : i32, i32
  }
  func.func @transform_6(%arg0: i32) -> (i32, i32) {
    %c0_i32 = arith.constant 0 : i32
    %c0_i32_0 = arith.constant 0 : i32
    return %arg0, %c0_i32 : i32, i32
  }
  func.func @transform_7(%arg0: i32) -> (i32, i32) {
    %c0_i32 = arith.constant 0 : i32
    %c0_i32_0 = arith.constant 0 : i32
    return %arg0, %c0_i32 : i32, i32
  }
}

</mosaic_0001>

<llo_original>
// kernel: tpu_custom_call.1
$region0: #{tpu_custom_call.1}
  #allocation0 [shape = 'u32[]', space=smem, size = 0x4, offset = 0x4, fixed_abs, tag = 'smem constant byte address 0x4 - core index']
  #allocation1 [shape = 'u32[72,128]{1,0:T(1,128)}', space=vmem, size = 0x9000, scoped, tag = 'internal scratch']
  %s0 = inlined_call_operand.vmem [shape: f32[512,16], index: 0, kind: input, shape index: {}]
  %s1 = inlined_call_operand.vmem [shape: f32[512,16], index: 1, kind: input, shape index: {}]
  %s2 = inlined_call_operand.vmem [shape: f32[64,32], index: 2, kind: input, shape index: {}]
  %s3 = inlined_call_operand.vmem [shape: f32[8,32], index: 3, kind: input, shape index: {}]
  %s4 = inlined_call_operand.vmem [shape: bf16[416,128], index: 4, kind: input, shape index: {}]
  %s5 = inlined_call_operand.vmem [shape: f32[16,128], index: 5, kind: input, shape index: {}]
  %s6 = inlined_call_operand.vmem [shape: f32[64,16], index: 6, kind: output, shape index: {0}]
  %s7 = inlined_call_operand.vmem [shape: f32[64,32], index: 7, kind: output, shape index: {1}]
  %8 = xla_tuple %s6, %s7
  %s9 = sld [smem:[#allocation0]]
  $region65: #{tpu_custom_call.1} parent=0
    _
  %s11 = ssub.s32 1, %s9
  %s12 = scalar_select 0, %s11, %s9
  loop: start=0, step=1, limit=4
  $region2: #{tpu_custom_call.1} parent=0 // loop_pre_header
    _
  $region3: #{tpu_custom_call.1} parent=0 // loop_header
    %s14 = sphi 0, %s18
    %p15 = scmp.ge.s32.totalorder %s14, 4
    %s24 = sphi 0, %s26
    %s27 = sphi 0, %s24
    %s28 = sphi 0, %s27
    %s44 = sphi 0, %s28
    %s50 = sphi 0, %s52
    %s53 = sphi 0, %s50
    %s54 = sphi 0, %s53
    %s70 = sphi 0, %s54
    %s76 = sphi 0, %s78
    %s79 = sphi 0, %s76
    %s80 = sphi 0, %s79
    %s96 = sphi 0, %s80
    %s100 = sphi 0, %s100
    %s102 = sphi 0, %s100
    %s103 = sphi 0, %s102
    %s117 = sphi 0, %s103
    %s121 = sphi 0, %s121
    %s123 = sphi 0, %s121
    %s124 = sphi 0, %s123
    %s138 = sphi 0, %s124
    %s142 = sphi 0, %s142
    %s144 = sphi 0, %s142
    %s145 = sphi 0, %s144
    %s159 = sphi 0, %s145
    %s165 = sphi 0, %s167
    %s168 = sphi 0, %s165
    %s169 = sphi 0, %s168
    %s185 = sphi 0, %s169
    %s191 = sphi 0, %s193
    %s194 = sphi 0, %s191
    %s195 = sphi 0, %s194
    %s211 = sphi 0, %s195
  $region4: #{tpu_custom_call.1} parent=0 // loop_header_branch
    %17 = sbr.rel (%p15) target = $region8
  $region5: #{tpu_custom_call.1} parent=0 // loop_body
    %s19 = ssub.s32 %s14, 1
    %s20 = ssub.s32 %s14, 2
    %s21 = sadd.s32 %s14, 1
    %s22 = ssub.s32 %s14, %s21
    %p23 = scmp.eq.s32.totalorder %s22, 0
    %s25 = sadd.s32 %s24, 1
    %s26 = scalar_select %p23, %s24, %s25
    %p29 = pneg %p23
    %p30 = scmp.eq.s32.totalorder %s14, 1
    %p31 = por %p29, %p30
    %p32 = scmp.ne.s32.totalorder %s24, %s27
    %p33 = scmp.eq.s32.totalorder %s14, 0
    %p34 = por %p32, %p33
    %p35 = scmp.ne.s32.totalorder %s24, %s27
    %p36 = scmp.eq.s32.totalorder %s19, 1
    %p37 = por %p35, %p36
    %p38 = scmp.ne.s32.totalorder %s27, %s28
    %p39 = scmp.eq.s32.totalorder %s19, 0
    %p40 = por %p38, %p39
    %p41 = scmp.ne.s32.totalorder %s27, %s28
    %p42 = scmp.eq.s32.totalorder %s20, 1
    %p43 = por %p41, %p42
    %p45 = scmp.ne.s32.totalorder %s28, %s44
    %p46 = scmp.eq.s32.totalorder %s20, 0
    %p47 = por %p45, %p46
    %s48 = ssub.s32 %s14, %s21
    %p49 = scmp.eq.s32.totalorder %s48, 0
    %s51 = sadd.s32 %s50, 1
    %s52 = scalar_select %p49, %s50, %s51
    %p55 = pneg %p49
    %p56 = scmp.eq.s32.totalorder %s14, 1
    %p57 = por %p55, %p56
    %p58 = scmp.ne.s32.totalorder %s50, %s53
    %p59 = scmp.eq.s32.totalorder %s14, 0
    %p60 = por %p58, %p59
    %p61 = scmp.ne.s32.totalorder %s50, %s53
    %p62 = scmp.eq.s32.totalorder %s19, 1
    %p63 = por %p61, %p62
    %p64 = scmp.ne.s32.totalorder %s53, %s54
    %p65 = scmp.eq.s32.totalorder %s19, 0
    %p66 = por %p64, %p65
    %p67 = scmp.ne.s32.totalorder %s53, %s54
    %p68 = scmp.eq.s32.totalorder %s20, 1
    %p69 = por %p67, %p68
    %p71 = scmp.ne.s32.totalorder %s54, %s70
    %p72 = scmp.eq.s32.totalorder %s20, 0
    %p73 = por %p71, %p72
    %s74 = ssub.s32 %s14, %s21
    %p75 = scmp.eq.s32.totalorder %s74, 0
    %s77 = sadd.s32 %s76, 1
    %s78 = scalar_select %p75, %s76, %s77
    %p81 = pneg %p75
    %p82 = scmp.eq.s32.totalorder %s14, 1
    %p83 = por %p81, %p82
    %p84 = scmp.ne.s32.totalorder %s76, %s79
    %p85 = scmp.eq.s32.totalorder %s14, 0
    %p86 = por %p84, %p85
    %p87 = scmp.ne.s32.totalorder %s76, %s79
    %p88 = scmp.eq.s32.totalorder %s19, 1
    %p89 = por %p87, %p88
    %p90 = scmp.ne.s32.totalorder %s79, %s80
    %p91 = scmp.eq.s32.totalorder %s19, 0
    %p92 = por %p90, %p91
    %p93 = scmp.ne.s32.totalorder %s79, %s80
    %p94 = scmp.eq.s32.totalorder %s20, 1
    %p95 = por %p93, %p94
    %p97 = scmp.ne.s32.totalorder %s80, %s96
    %p98 = scmp.eq.s32.totalorder %s20, 0
    %p99 = por %p97, %p98
    %s101 = sadd.s32 %s100, 1
    %p104 = scmp.eq.s32.totalorder %s14, 1
    %p105 = scmp.ne.s32.totalorder %s100, %s102
    %p106 = scmp.eq.s32.totalorder %s14, 0
    %p107 = por %p105, %p106
    %p108 = scmp.ne.s32.totalorder %s100, %s102
    %p109 = scmp.eq.s32.totalorder %s19, 1
    %p110 = por %p108, %p109
    %p111 = scmp.ne.s32.totalorder %s102, %s103
    %p112 = scmp.eq.s32.totalorder %s19, 0
    %p113 = por %p111, %p112
    %p114 = scmp.ne.s32.totalorder %s102, %s103
    %p115 = scmp.eq.s32.totalorder %s20, 1
    %p116 = por %p114, %p115
    %p118 = scmp.ne.s32.totalorder %s103, %s117
    %p119 = scmp.eq.s32.totalorder %s20, 0
    %p120 = por %p118, %p119
    %s122 = sadd.s32 %s121, 1
    %p125 = scmp.eq.s32.totalorder %s14, 1
    %p126 = scmp.ne.s32.totalorder %s121, %s123
    %p127 = scmp.eq.s32.totalorder %s14, 0
    %p128 = por %p126, %p127
    %p129 = scmp.ne.s32.totalorder %s121, %s123
    %p130 = scmp.eq.s32.totalorder %s19, 1
    %p131 = por %p129, %p130
    %p132 = scmp.ne.s32.totalorder %s123, %s124
    %p133 = scmp.eq.s32.totalorder %s19, 0
    %p134 = por %p132, %p133
    %p135 = scmp.ne.s32.totalorder %s123, %s124
    %p136 = scmp.eq.s32.totalorder %s20, 1
    %p137 = por %p135, %p136
    %p139 = scmp.ne.s32.totalorder %s124, %s138
    %p140 = scmp.eq.s32.totalorder %s20, 0
    %p141 = por %p139, %p140
    %s143 = sadd.s32 %s142, 1
    %p146 = scmp.eq.s32.totalorder %s14, 1
    %p147 = scmp.ne.s32.totalorder %s142, %s144
    %p148 = scmp.eq.s32.totalorder %s14, 0
    %p149 = por %p147, %p148
    %p150 = scmp.ne.s32.totalorder %s142, %s144
    %p151 = scmp.eq.s32.totalorder %s19, 1
    %p152 = por %p150, %p151
    %p153 = scmp.ne.s32.totalorder %s144, %s145
    %p154 = scmp.eq.s32.totalorder %s19, 0
    %p155 = por %p153, %p154
    %p156 = scmp.ne.s32.totalorder %s144, %s145
    %p157 = scmp.eq.s32.totalorder %s20, 1
    %p158 = por %p156, %p157
    %p160 = scmp.ne.s32.totalorder %s145, %s159
    %p161 = scmp.eq.s32.totalorder %s20, 0
    %p162 = por %p160, %p161
    %s163 = ssub.s32 %s14, %s21
    %p164 = scmp.eq.s32.totalorder %s163, 0
    %s166 = sadd.s32 %s165, 1
    %s167 = scalar_select %p164, %s165, %s166
    %p170 = pneg %p164
    %p171 = scmp.eq.s32.totalorder %s14, 1
    %p172 = por %p170, %p171
    %p173 = scmp.ne.s32.totalorder %s165, %s168
    %p174 = scmp.eq.s32.totalorder %s14, 0
    %p175 = por %p173, %p174
    %p176 = scmp.ne.s32.totalorder %s165, %s168
    %p177 = scmp.eq.s32.totalorder %s19, 1
    %p178 = por %p176, %p177
    %p179 = scmp.ne.s32.totalorder %s168, %s169
    %p180 = scmp.eq.s32.totalorder %s19, 0
    %p181 = por %p179, %p180
    %p182 = scmp.ne.s32.totalorder %s168, %s169
    %p183 = scmp.eq.s32.totalorder %s20, 1
    %p184 = por %p182, %p183
    %p186 = scmp.ne.s32.totalorder %s169, %s185
    %p187 = scmp.eq.s32.totalorder %s20, 0
    %p188 = por %p186, %p187
    %s189 = ssub.s32 %s14, %s21
    %p190 = scmp.eq.s32.totalorder %s189, 0
    %s192 = sadd.s32 %s191, 1
    %s193 = scalar_select %p190, %s191, %s192
    %p196 = pneg %p190
    %p197 = scmp.eq.s32.totalorder %s14, 1
    %p198 = por %p196, %p197
    %p199 = scmp.ne.s32.totalorder %s191, %s194
    %p200 = scmp.eq.s32.totalorder %s14, 0
    %p201 = por %p199, %p200
    %p202 = scmp.ne.s32.totalorder %s191, %s194
    %p203 = scmp.eq.s32.totalorder %s19, 1
    %p204 = por %p202, %p203
    %p205 = scmp.ne.s32.totalorder %s194, %s195
    %p206 = scmp.eq.s32.totalorder %s19, 0
    %p207 = por %p205, %p206
    %p208 = scmp.ne.s32.totalorder %s194, %s195
    %p209 = scmp.eq.s32.totalorder %s20, 1
    %p210 = por %p208, %p209
    %p212 = scmp.ne.s32.totalorder %s195, %s211
    %p213 = scmp.eq.s32.totalorder %s20, 0
    %p214 = por %p212, %p213
    %p215 = scmp.le.s32.totalorder 1, %s14
    %p216 = scmp.lt.s32.totalorder %s14, 3
    %p217 = pnand %p215, %p216
    %p218 = pneg %p217
    // Predicated region
    $region9: #{tpu_custom_call.1} parent=5 // pred_check
      _
    $region10: #{tpu_custom_call.1} parent=5 // pred_check_branch
      %220 = sbr.rel (%p217) target = $region12
    $region11: #{tpu_custom_call.1} parent=5 // pred_region
      %s221 = ssub.s32 %s14, 1
      // Predicated region
      $region13: #{tpu_custom_call.1} parent=11 // pred_check
        %p222 = pneg %p113
      $region14: #{tpu_custom_call.1} parent=11 // pred_check_branch
        %224 = sbr.rel (%p222) target = $region16
      $region15: #{tpu_custom_call.1} parent=11 // pred_region
        _
      $region16: #{tpu_custom_call.1} parent=11 // pred_fallthru
        _
      // Predicated region
      $region17: #{tpu_custom_call.1} parent=11 // pred_check
        %p225 = pneg %p134
      $region18: #{tpu_custom_call.1} parent=11 // pred_check_branch
        %227 = sbr.rel (%p225) target = $region20
      $region19: #{tpu_custom_call.1} parent=11 // pred_region
        _
      $region20: #{tpu_custom_call.1} parent=11 // pred_fallthru
        _
      // Predicated region
      $region21: #{tpu_custom_call.1} parent=11 // pred_check
        %p228 = pneg %p155
      $region22: #{tpu_custom_call.1} parent=11 // pred_check_branch
        %230 = sbr.rel (%p228) target = $region24
      $region23: #{tpu_custom_call.1} parent=11 // pred_region
        _
      $region24: #{tpu_custom_call.1} parent=11 // pred_fallthru
        _
    $region12: #{tpu_custom_call.1} parent=5 // pred_fallthru
      _
    %p231 = scmp.lt.s32.totalorder %s14, 2
    // Predicated region
    $region25: #{tpu_custom_call.1} parent=5 // pred_check
      %p232 = pneg %p231
    $region26: #{tpu_custom_call.1} parent=5 // pred_check_branch
      %234 = sbr.rel (%p232) target = $region28
    $region27: #{tpu_custom_call.1} parent=5 // pred_region
      // Predicated region
      $region29: #{tpu_custom_call.1} parent=27 // pred_check
        %p235 = pneg %p34
      $region30: #{tpu_custom_call.1} parent=27 // pred_check_branch
        %237 = sbr.rel (%p235) target = $region32
      $region31: #{tpu_custom_call.1} parent=27 // pred_region
        %s238 = smul.u32 32, %s14
        %p239 = scmp.lt.s32.totalorder %s238, 63
        %s240 = scalar_select %p239, %s238, 63
        %s241 = smul.addr %s240, 8
        %s242 = scalar_lea.vmem %s0, %s241
        %s243 = smul.u32 32, %s14
      $region32: #{tpu_custom_call.1} parent=27 // pred_fallthru
        _
      // Predicated region
      $region33: #{tpu_custom_call.1} parent=27 // pred_check
        %p244 = pneg %p60
      $region34: #{tpu_custom_call.1} parent=27 // pred_check_branch
        %246 = sbr.rel (%p244) target = $region36
      $region35: #{tpu_custom_call.1} parent=27 // pred_region
        %s247 = smul.u32 32, %s14
        %p248 = scmp.lt.s32.totalorder %s247, 63
        %s249 = scalar_select %p248, %s247, 63
        %s250 = smul.addr %s249, 8
        %s251 = scalar_lea.vmem %s1, %s250
        %s252 = smul.u32 32, %s14
      $region36: #{tpu_custom_call.1} parent=27 // pred_fallthru
        _
      // Predicated region
      $region37: #{tpu_custom_call.1} parent=27 // pred_check
        %p253 = pneg %p86
      $region38: #{tpu_custom_call.1} parent=27 // pred_check_branch
        %255 = sbr.rel (%p253) target = $region40
      $region39: #{tpu_custom_call.1} parent=27 // pred_region
        %s256 = smul.u32 4, %s14
        %p257 = scmp.lt.s32.totalorder %s256, 7
        %s258 = scalar_select %p257, %s256, 7
        %s259 = smul.addr %s258, 8
        %s260 = scalar_lea.vmem %s2, %s259
        %s261 = smul.u32 4, %s14
      $region40: #{tpu_custom_call.1} parent=27 // pred_fallthru
        _
    $region28: #{tpu_custom_call.1} parent=5 // pred_fallthru
      _
    %p262 = scmp.le.s32.totalorder 1, %s14
    %p263 = scmp.lt.s32.totalorder %s14, 3
    %p264 = pnand %p262, %p263
    %p265 = pneg %p264
    // Predicated region
    $region41: #{tpu_custom_call.1} parent=5 // pred_check
      _
    $region42: #{tpu_custom_call.1} parent=5 // pred_check_branch
      %267 = sbr.rel (%p264) target = $region44
    $region43: #{tpu_custom_call.1} parent=5 // pred_region
      %s268 = ssub.s32 %s14, 1
      %s269 = smul.u32 32, %s19
      %p270 = scmp.lt.s32.totalorder %s269, 63
      %s271 = scalar_select %p270, %s269, 63
      %s272 = smul.addr %s271, 8
      %s273 = scalar_lea.vmem %s0, %s272
      %p274 = pneg %p40
      %p275 = pneg %p37
      %s276 = smul.u32 32, %s19
      %p277 = scmp.lt.s32.totalorder %s276, 63
      %s278 = scalar_select %p277, %s276, 63
      %s279 = smul.addr %s278, 8
      %s280 = scalar_lea.vmem %s1, %s279
      %p281 = pneg %p66
      %p282 = pneg %p63
      %s283 = smul.u32 4, %s19
      %p284 = scmp.lt.s32.totalorder %s283, 7
      %s285 = scalar_select %p284, %s283, 7
      %s286 = smul.addr %s285, 8
      %s287 = scalar_lea.vmem %s2, %s286
      %p288 = pneg %p92
      %p289 = pneg %p89
      %p290 = pneg %p113
      %p291 = pneg %p110
      %p292 = pneg %p134
      %p293 = pneg %p131
      %p294 = pneg %p155
      %p295 = pneg %p152
      %p296 = pneg %p181
      %p297 = pneg %p178
      %s298 = smul.u32 4, %s19
      %p299 = scmp.lt.s32.totalorder %s298, 7
      %s300 = scalar_select %p299, %s298, 7
      %s301 = smul.addr %s300, 8
      %s302 = scalar_lea.vmem %s6, %s301
      %p303 = pneg %p207
      %p304 = pneg %p204
      %s305 = smul.u32 4, %s19
      %p306 = scmp.lt.s32.totalorder %s305, 7
      %s307 = scalar_select %p306, %s305, 7
      %s308 = smul.addr %s307, 8
      %s309 = scalar_lea.vmem %s7, %s308
      %s310 = smul.u32 32, %s19
      %p311 = scmp.lt.s32.totalorder %s310, 63
      %s312 = scalar_select %p311, %s310, 63
      %s313 = smul.addr %s312, 8
      %s314 = scalar_lea.vmem %s0, %s313
      %s315 = smul.u32 32, %s19
      %s316 = smul.u32 32, %s19
      %p317 = scmp.lt.s32.totalorder %s316, 63
      %s318 = scalar_select %p317, %s316, 63
      %s319 = smul.addr %s318, 8
      %s320 = scalar_lea.vmem %s1, %s319
      %s321 = smul.u32 32, %s19
      %s322 = smul.u32 4, %s19
      %p323 = scmp.lt.s32.totalorder %s322, 7
      %s324 = scalar_select %p323, %s322, 7
      %s325 = smul.addr %s324, 8
      %s326 = scalar_lea.vmem %s2, %s325
      %s327 = smul.u32 4, %s19
      %s328 = smul.u32 4, %s19
      %p329 = scmp.lt.s32.totalorder %s328, 7
      %s330 = scalar_select %p329, %s328, 7
      %s331 = smul.addr %s330, 8
      %s332 = scalar_lea.vmem %s6, %s331
      %s333 = smul.u32 4, %s19
      %s334 = smul.u32 4, %s19
      %p335 = scmp.lt.s32.totalorder %s334, 7
      %s336 = scalar_select %p335, %s334, 7
      %s337 = smul.addr %s336, 8
      %s338 = scalar_lea.vmem %s7, %s337
      %s339 = smul.u32 4, %s19
      %v341 = vlaneseq
      %v342 = vand.u32 %v341, 127
      %vm343 = vcmp.lt.s32.totalorder %v342, 9
      %v344 = vsel %vm343, 0.0, -1e+30
      %v345 = vld [vmem:[%s314] sm:$0xff]
      %v346 = vld [vmem:[%s314 + $0x8] sm:$0xff]
      %v347 = vld [vmem:[%s314 + $0x10] sm:$0xff]
      %v348 = vld [vmem:[%s314 + $0x18] sm:$0xff]
      %v349 = vld [vmem:[%s314 + $0x20] sm:$0xff]
      %v350 = vld [vmem:[%s314 + $0x28] sm:$0xff]
      %v351 = vld [vmem:[%s314 + $0x30] sm:$0xff]
      %v352 = vld [vmem:[%s314 + $0x38] sm:$0xff]
      %v353 = vld [vmem:[%s314 + $0x40] sm:$0xff]
      %v354 = vld [vmem:[%s314 + $0x48] sm:$0xff]
      %v355 = vld [vmem:[%s314 + $0x50] sm:$0xff]
      %v356 = vld [vmem:[%s314 + $0x58] sm:$0xff]
      %v357 = vld [vmem:[%s314 + $0x60] sm:$0xff]
      %v358 = vld [vmem:[%s314 + $0x68] sm:$0xff]
      %v359 = vld [vmem:[%s314 + $0x70] sm:$0xff]
      %v360 = vld [vmem:[%s314 + $0x78] sm:$0xff]
      %v361 = vld [vmem:[%s314 + $0x80] sm:$0xff]
      %v362 = vld [vmem:[%s314 + $0x88] sm:$0xff]
      %v363 = vld [vmem:[%s314 + $0x90] sm:$0xff]
      %v364 = vld [vmem:[%s314 + $0x98] sm:$0xff]
      %v365 = vld [vmem:[%s314 + $0xa0] sm:$0xff]
      %v366 = vld [vmem:[%s314 + $0xa8] sm:$0xff]
      %v367 = vld [vmem:[%s314 + $0xb0] sm:$0xff]
      %v368 = vld [vmem:[%s314 + $0xb8] sm:$0xff]
      %v369 = vld [vmem:[%s314 + $0xc0] sm:$0xff]
      %v370 = vld [vmem:[%s314 + $0xc8] sm:$0xff]
      %v371 = vld [vmem:[%s314 + $0xd0] sm:$0xff]
      %v372 = vld [vmem:[%s314 + $0xd8] sm:$0xff]
      %v373 = vld [vmem:[%s314 + $0xe0] sm:$0xff]
      %v374 = vld [vmem:[%s314 + $0xe8] sm:$0xff]
      %v375 = vld [vmem:[%s314 + $0xf0] sm:$0xff]
      %v376 = vld [vmem:[%s314 + $0xf8] sm:$0xff]
      %v377 = vld [vmem:[%s320] sm:$0xff]
      %v378 = vld [vmem:[%s320 + $0x8] sm:$0xff]
      %v379 = vld [vmem:[%s320 + $0x10] sm:$0xff]
      %v380 = vld [vmem:[%s320 + $0x18] sm:$0xff]
      %v381 = vld [vmem:[%s320 + $0x20] sm:$0xff]
      %v382 = vld [vmem:[%s320 + $0x28] sm:$0xff]
      %v383 = vld [vmem:[%s320 + $0x30] sm:$0xff]
      %v384 = vld [vmem:[%s320 + $0x38] sm:$0xff]
      %v385 = vld [vmem:[%s320 + $0x40] sm:$0xff]
      %v386 = vld [vmem:[%s320 + $0x48] sm:$0xff]
      %v387 = vld [vmem:[%s320 + $0x50] sm:$0xff]
      %v388 = vld [vmem:[%s320 + $0x58] sm:$0xff]
      %v389 = vld [vmem:[%s320 + $0x60] sm:$0xff]
      %v390 = vld [vmem:[%s320 + $0x68] sm:$0xff]
      %v391 = vld [vmem:[%s320 + $0x70] sm:$0xff]
      %v392 = vld [vmem:[%s320 + $0x78] sm:$0xff]
      %v393 = vld [vmem:[%s320 + $0x80] sm:$0xff]
      %v394 = vld [vmem:[%s320 + $0x88] sm:$0xff]
      %v395 = vld [vmem:[%s320 + $0x90] sm:$0xff]
      %v396 = vld [vmem:[%s320 + $0x98] sm:$0xff]
      %v397 = vld [vmem:[%s320 + $0xa0] sm:$0xff]
      %v398 = vld [vmem:[%s320 + $0xa8] sm:$0xff]
      %v399 = vld [vmem:[%s320 + $0xb0] sm:$0xff]
      %v400 = vld [vmem:[%s320 + $0xb8] sm:$0xff]
      %v401 = vld [vmem:[%s320 + $0xc0] sm:$0xff]
      %v402 = vld [vmem:[%s320 + $0xc8] sm:$0xff]
      %v403 = vld [vmem:[%s320 + $0xd0] sm:$0xff]
      %v404 = vld [vmem:[%s320 + $0xd8] sm:$0xff]
      %v405 = vld [vmem:[%s320 + $0xe0] sm:$0xff]
      %v406 = vld [vmem:[%s320 + $0xe8] sm:$0xff]
      %v407 = vld [vmem:[%s320 + $0xf0] sm:$0xff]
      %v408 = vld [vmem:[%s320 + $0xf8] sm:$0xff]
      %v409 = vld [vmem:[%s326] sm:$0xff]
      %v410 = vld [vmem:[%s326 + $0x8] sm:$0xff]
      %v411 = vld [vmem:[%s326 + $0x10] sm:$0xff]
      %v412 = vld [vmem:[%s326 + $0x18] sm:$0xff]
      %v413 = vld [vmem:[%s3] sm:$0xff]
      %v414 = vpack.c.bf16 %v346, %v345
      %v415 = vpack.c.bf16 %v348, %v347
      %v416 = vpack.c.bf16 %v350, %v349
      %v417 = vpack.c.bf16 %v352, %v351
      %v418 = vpack.c.bf16 %v354, %v353
      %v419 = vpack.c.bf16 %v356, %v355
      %v420 = vpack.c.bf16 %v358, %v357
      %v421 = vpack.c.bf16 %v360, %v359
      %v422 = vpack.c.bf16 %v362, %v361
      %v423 = vpack.c.bf16 %v364, %v363
      %v424 = vpack.c.bf16 %v366, %v365
      %v425 = vpack.c.bf16 %v368, %v367
      %v426 = vpack.c.bf16 %v370, %v369
      %v427 = vpack.c.bf16 %v372, %v371
      %v428 = vpack.c.bf16 %v374, %v373
      %v429 = vpack.c.bf16 %v376, %v375
      %v430 = vld [vmem:[%s4] sm:$0xf]
      %v431 = vld [vmem:[%s4 + $0x4] sm:$0xf]
      %v432 = vld [vmem:[%s5] sm:$0x1]
      %v433 = vperm.slane %v432, 0
      %v436 = vunpack.c.l.b16 %v430
      %v437 = vunpack.c.l.b16 %v431
      %v438 = vpack.c.b16 %v437, %v436
      %vm440 = vcmask 130048
      %v442 = vsel %vm440, %v414, 0
      %v445 = vsel %vm440, %v415, 0
      %v448 = vsel %vm440, %v416, 0
      %v451 = vsel %vm440, %v417, 0
      %v454 = vsel %vm440, %v418, 0
      %v457 = vsel %vm440, %v419, 0
      %v460 = vsel %vm440, %v420, 0
      %v463 = vsel %vm440, %v421, 0
      %v466 = vsel %vm440, %v422, 0
      %v469 = vsel %vm440, %v423, 0
      %v472 = vsel %vm440, %v424, 0
      %v475 = vsel %vm440, %v425, 0
      %v478 = vsel %vm440, %v426, 0
      %v481 = vsel %vm440, %v427, 0
      %v484 = vsel %vm440, %v428, 0
      %v487 = vsel %vm440, %v429, 0
      %489 = vmatpush.bf16.msra.mxu0 0
      %490 = vmatpush.bf16.msra.mxu0 0
      %491 = vmatpush.bf16.msra.mxu0 0
      %492 = vmatpush.bf16.msra.mxu0 0
      %493 = vmatpush.bf16.msra.mxu0 0
      %494 = vmatpush.bf16.msra.mxu0 0
      %495 = vmatpush.bf16.msra.mxu0 0
      %496 = vmatpush.bf16.msra.mxu0 %v438
      %497 = vmatmul.bf16.gmra.mxu0 %v442
      %v498 = vpop.f32.mrf.mxu0
      %v499 = vadd.f32 %v433, %v498
      %v500 = vpop.f32.mrf.mxu0
      %v501 = vadd.f32 %v433, %v500
      %502 = vmatmul.bf16.gmra.mxu0 %v445
      %v503 = vpop.f32.mrf.mxu0
      %v504 = vadd.f32 %v433, %v503
      %v505 = vpop.f32.mrf.mxu0
      %v506 = vadd.f32 %v433, %v505
      %507 = vmatmul.bf16.gmra.mxu0 %v448
      %v508 = vpop.f32.mrf.mxu0
      %v509 = vadd.f32 %v433, %v508
      %v510 = vpop.f32.mrf.mxu0
      %v511 = vadd.f32 %v433, %v510
      %512 = vmatmul.bf16.gmra.mxu0 %v451
      %v513 = vpop.f32.mrf.mxu0
      %v514 = vadd.f32 %v433, %v513
      %v515 = vpop.f32.mrf.mxu0
      %v516 = vadd.f32 %v433, %v515
      %517 = vmatmul.bf16.gmra.mxu0 %v454
      %v518 = vpop.f32.mrf.mxu0
      %v519 = vadd.f32 %v433, %v518
      %v520 = vpop.f32.mrf.mxu0
      %v521 = vadd.f32 %v433, %v520
      %522 = vmatmul.bf16.gmra.mxu0 %v457
      %v523 = vpop.f32.mrf.mxu0
      %v524 = vadd.f32 %v433, %v523
      %v525 = vpop.f32.mrf.mxu0
      %v526 = vadd.f32 %v433, %v525
      %527 = vmatmul.bf16.gmra.mxu0 %v460
      %v528 = vpop.f32.mrf.mxu0
      %v529 = vadd.f32 %v433, %v528
      %v530 = vpop.f32.mrf.mxu0
      %v531 = vadd.f32 %v433, %v530
      %532 = vmatmul.bf16.gmra.mxu0 %v463
      %v533 = vpop.f32.mrf.mxu0
      %v534 = vadd.f32 %v433, %v533
      %v535 = vpop.f32.mrf.mxu0
      %v536 = vadd.f32 %v433, %v535
      %537 = vmatmul.bf16.gmra.mxu0 %v466
      %v538 = vpop.f32.mrf.mxu0
      %v539 = vadd.f32 %v433, %v538
      %v540 = vpop.f32.mrf.mxu0
      %v541 = vadd.f32 %v433, %v540
      %542 = vmatmul.bf16.gmra.mxu0 %v469
      %v543 = vpop.f32.mrf.mxu0
      %v544 = vadd.f32 %v433, %v543
      %v545 = vpop.f32.mrf.mxu0
      %v546 = vadd.f32 %v433, %v545
      %547 = vmatmul.bf16.gmra.mxu0 %v472
      %v548 = vpop.f32.mrf.mxu0
      %v549 = vadd.f32 %v433, %v548
      %v550 = vpop.f32.mrf.mxu0
      %v551 = vadd.f32 %v433, %v550
      %552 = vmatmul.bf16.gmra.mxu0 %v475
      %v553 = vpop.f32.mrf.mxu0
      %v554 = vadd.f32 %v433, %v553
      %v555 = vpop.f32.mrf.mxu0
      %v556 = vadd.f32 %v433, %v555
      %557 = vmatmul.bf16.gmra.mxu0 %v478
      %v558 = vpop.f32.mrf.mxu0
      %v559 = vadd.f32 %v433, %v558
      %v560 = vpop.f32.mrf.mxu0
      %v561 = vadd.f32 %v433, %v560
      %562 = vmatmul.bf16.gmra.mxu0 %v481
      %v563 = vpop.f32.mrf.mxu0
      %v564 = vadd.f32 %v433, %v563
      %v565 = vpop.f32.mrf.mxu0
      %v566 = vadd.f32 %v433, %v565
      %567 = vmatmul.bf16.gmra.mxu0 %v484
      %v568 = vpop.f32.mrf.mxu0
      %v569 = vadd.f32 %v433, %v568
      %v570 = vpop.f32.mrf.mxu0
      %v571 = vadd.f32 %v433, %v570
      %572 = vmatmul.bf16.gmra.mxu0 %v487
      %v573 = vpop.f32.mrf.mxu0
      %v574 = vadd.f32 %v433, %v573
      %v575 = vpop.f32.mrf.mxu0
      %v576 = vadd.f32 %v433, %v575
      %577 = vdwg.mxu0
      %v582 = vrot.slane %v409, 1
      %v583 = vrot.slane %v409, 2
      %v584 = vrot.slane %v409, 3
      %v585 = vrot.slane %v409, 4
      %v586 = vrot.slane %v409, 5
      %v587 = vrot.slane %v409, 6
      %v588 = vrot.slane %v409, 7
      %v589 = vrot.slane %v410, 1
      %v590 = vrot.slane %v410, 2
      %v591 = vrot.slane %v410, 3
      %v592 = vrot.slane %v410, 4
      %v593 = vrot.slane %v410, 5
      %v594 = vrot.slane %v410, 6
      %v595 = vrot.slane %v410, 7
      %v596 = vrot.slane %v411, 1
      %v597 = vrot.slane %v411, 2
      %v598 = vrot.slane %v411, 3
      %v599 = vrot.slane %v411, 4
      %v600 = vrot.slane %v411, 5
      %v601 = vrot.slane %v411, 6
      %v602 = vrot.slane %v411, 7
      %v603 = vrot.slane %v412, 1
      %v604 = vrot.slane %v412, 2
      %v605 = vrot.slane %v412, 3
      %v606 = vrot.slane %v412, 4
      %v607 = vrot.slane %v412, 5
      %v608 = vrot.slane %v412, 6
      %v609 = vrot.slane %v412, 7
      %vm638 = vcmask 1040384
      %v639 = vsel %vm638, %v409, 0.0
      %v640 = vsel %vm638, %v582, 0.0
      %v641 = vsel %vm638, %v583, 0.0
      %v642 = vsel %vm638, %v584, 0.0
      %v643 = vsel %vm638, %v585, 0.0
      %v644 = vsel %vm638, %v586, 0.0
      %v645 = vsel %vm638, %v587, 0.0
      %v646 = vsel %vm638, %v588, 0.0
      %v647 = vsel %vm638, %v410, 0.0
      %v648 = vsel %vm638, %v589, 0.0
      %v649 = vsel %vm638, %v590, 0.0
      %v650 = vsel %vm638, %v591, 0.0
      %v651 = vsel %vm638, %v592, 0.0
      %v652 = vsel %vm638, %v593, 0.0
      %v653 = vsel %vm638, %v594, 0.0
      %v654 = vsel %vm638, %v595, 0.0
      %v655 = vsel %vm638, %v411, 0.0
      %v656 = vsel %vm638, %v596, 0.0
      %v657 = vsel %vm638, %v597, 0.0
      %v658 = vsel %vm638, %v598, 0.0
      %v659 = vsel %vm638, %v599, 0.0
      %v660 = vsel %vm638, %v600, 0.0
      %v661 = vsel %vm638, %v601, 0.0
      %v662 = vsel %vm638, %v602, 0.0
      %v663 = vsel %vm638, %v412, 0.0
      %v664 = vsel %vm638, %v603, 0.0
      %v665 = vsel %vm638, %v604, 0.0
      %v666 = vsel %vm638, %v605, 0.0
      %v667 = vsel %vm638, %v606, 0.0
      %v668 = vsel %vm638, %v607, 0.0
      %v669 = vsel %vm638, %v608, 0.0
      %v670 = vsel %vm638, %v609, 0.0
      %v671 = vpack.c.bf16 %v639, %v499
      %v672 = vpack.c.bf16 %v640, %v501
      %v673 = vpack.c.bf16 %v641, %v504
      %v674 = vpack.c.bf16 %v642, %v506
      %v675 = vpack.c.bf16 %v643, %v509
      %v676 = vpack.c.bf16 %v644, %v511
      %v677 = vpack.c.bf16 %v645, %v514
      %v678 = vpack.c.bf16 %v646, %v516
      %v679 = vpack.c.bf16 %v647, %v519
      %v680 = vpack.c.bf16 %v648, %v521
      %v681 = vpack.c.bf16 %v649, %v524
      %v682 = vpack.c.bf16 %v650, %v526
      %v683 = vpack.c.bf16 %v651, %v529
      %v684 = vpack.c.bf16 %v652, %v531
      %v685 = vpack.c.bf16 %v653, %v534
      %v686 = vpack.c.bf16 %v654, %v536
      %v687 = vpack.c.bf16 %v655, %v539
      %v688 = vpack.c.bf16 %v656, %v541
      %v689 = vpack.c.bf16 %v657, %v544
      %v690 = vpack.c.bf16 %v658, %v546
      %v691 = vpack.c.bf16 %v659, %v549
      %v692 = vpack.c.bf16 %v660, %v551
      %v693 = vpack.c.bf16 %v661, %v554
      %v694 = vpack.c.bf16 %v662, %v556
      %v695 = vpack.c.bf16 %v663, %v559
      %v696 = vpack.c.bf16 %v664, %v561
      %v697 = vpack.c.bf16 %v665, %v564
      %v698 = vpack.c.bf16 %v666, %v566
      %v699 = vpack.c.bf16 %v667, %v569
      %v700 = vpack.c.bf16 %v668, %v571
      %v701 = vpack.c.bf16 %v669, %v574
      %v702 = vpack.c.bf16 %v670, %v576
      %v703 = vld [vmem:[%s4 + $0x10] sm:$0xf]
      %v704 = vld [vmem:[%s4 + $0x14] sm:$0xf]
      %v705 = vld [vmem:[%s4 + $0x18] sm:$0xf]
      %v706 = vld [vmem:[%s4 + $0x1c] sm:$0xf]
      %v711 = vunpack.c.l.b16 %v703
      %v712 = vunpack.c.l.b16 %v704
      %v713 = vunpack.c.l.b16 %v705
      %v714 = vunpack.c.l.b16 %v706
      %v715 = vpack.c.b16 %v712, %v711
      %v716 = vpack.c.b16 %v714, %v713
      %vm719 = vcmask 261120
      %v721 = vsel %vm719, %v671, 0
      %v724 = vsel %vm719, %v672, 0
      %v727 = vsel %vm719, %v673, 0
      %v730 = vsel %vm719, %v674, 0
      %v733 = vsel %vm719, %v675, 0
      %v736 = vsel %vm719, %v676, 0
      %v739 = vsel %vm719, %v677, 0
      %v742 = vsel %vm719, %v678, 0
      %v745 = vsel %vm719, %v679, 0
      %v748 = vsel %vm719, %v680, 0
      %v751 = vsel %vm719, %v681, 0
      %v754 = vsel %vm719, %v682, 0
      %v757 = vsel %vm719, %v683, 0
      %v760 = vsel %vm719, %v684, 0
      %v763 = vsel %vm719, %v685, 0
      %v766 = vsel %vm719, %v686, 0
      %v769 = vsel %vm719, %v687, 0
      %v772 = vsel %vm719, %v688, 0
      %v775 = vsel %vm719, %v689, 0
      %v778 = vsel %vm719, %v690, 0
      %v781 = vsel %vm719, %v691, 0
      %v784 = vsel %vm719, %v692, 0
      %v787 = vsel %vm719, %v693, 0
      %v790 = vsel %vm719, %v694, 0
      %v793 = vsel %vm719, %v695, 0
      %v796 = vsel %vm719, %v696, 0
      %v799 = vsel %vm719, %v697, 0
      %v802 = vsel %vm719, %v698, 0
      %v805 = vsel %vm719, %v699, 0
      %v808 = vsel %vm719, %v700, 0
      %v811 = vsel %vm719, %v701, 0
      %v814 = vsel %vm719, %v702, 0
      %816 = vmatpush.bf16.msra.mxu0 0
      %817 = vmatpush.bf16.msra.mxu0 0
      %818 = vmatpush.bf16.msra.mxu0 0
      %819 = vmatpush.bf16.msra.mxu0 0
      %820 = vmatpush.bf16.msra.mxu0 0
      %821 = vmatpush.bf16.msra.mxu0 0
      %822 = vmatpush.bf16.msra.mxu0 %v716
      %823 = vmatpush.bf16.msra.mxu0 %v715
      %824 = vmatmul.bf16.gmra.mxu0 %v721
      %v825 = vpop.f32.mrf.mxu0
      %v826 = vadd.f32 0.0, %v825
      %v827 = vpop.f32.mrf.mxu0
      %v828 = vadd.f32 0.0, %v827
      %829 = vmatmul.bf16.gmra.mxu0 %v724
      %v830 = vpop.f32.mrf.mxu0
      %v831 = vadd.f32 0.0, %v830
      %v832 = vpop.f32.mrf.mxu0
      %v833 = vadd.f32 0.0, %v832
      %834 = vmatmul.bf16.gmra.mxu0 %v727
      %v835 = vpop.f32.mrf.mxu0
      %v836 = vadd.f32 0.0, %v835
      %v837 = vpop.f32.mrf.mxu0
      %v838 = vadd.f32 0.0, %v837
      %839 = vmatmul.bf16.gmra.mxu0 %v730
      %v840 = vpop.f32.mrf.mxu0
      %v841 = vadd.f32 0.0, %v840
      %v842 = vpop.f32.mrf.mxu0
      %v843 = vadd.f32 0.0, %v842
      %844 = vmatmul.bf16.gmra.mxu0 %v733
      %v845 = vpop.f32.mrf.mxu0
      %v846 = vadd.f32 0.0, %v845
      %v847 = vpop.f32.mrf.mxu0
      %v848 = vadd.f32 0.0, %v847
      %849 = vmatmul.bf16.gmra.mxu0 %v736
      %v850 = vpop.f32.mrf.mxu0
      %v851 = vadd.f32 0.0, %v850
      %v852 = vpop.f32.mrf.mxu0
      %v853 = vadd.f32 0.0, %v852
      %854 = vmatmul.bf16.gmra.mxu0 %v739
      %v855 = vpop.f32.mrf.mxu0
      %v856 = vadd.f32 0.0, %v855
      %v857 = vpop.f32.mrf.mxu0
      %v858 = vadd.f32 0.0, %v857
      %859 = vmatmul.bf16.gmra.mxu0 %v742
      %v860 = vpop.f32.mrf.mxu0
      %v861 = vadd.f32 0.0, %v860
      %v862 = vpop.f32.mrf.mxu0
      %v863 = vadd.f32 0.0, %v862
      %864 = vmatmul.bf16.gmra.mxu0 %v745
      %v865 = vpop.f32.mrf.mxu0
      %v866 = vadd.f32 0.0, %v865
      %v867 = vpop.f32.mrf.mxu0
      %v868 = vadd.f32 0.0, %v867
      %869 = vmatmul.bf16.gmra.mxu0 %v748
      %v870 = vpop.f32.mrf.mxu0
      %v871 = vadd.f32 0.0, %v870
      %v872 = vpop.f32.mrf.mxu0
      %v873 = vadd.f32 0.0, %v872
      %874 = vmatmul.bf16.gmra.mxu0 %v751
      %v875 = vpop.f32.mrf.mxu0
      %v876 = vadd.f32 0.0, %v875
      %v877 = vpop.f32.mrf.mxu0
      %v878 = vadd.f32 0.0, %v877
      %879 = vmatmul.bf16.gmra.mxu0 %v754
      %v880 = vpop.f32.mrf.mxu0
      %v881 = vadd.f32 0.0, %v880
      %v882 = vpop.f32.mrf.mxu0
      %v883 = vadd.f32 0.0, %v882
      %884 = vmatmul.bf16.gmra.mxu0 %v757
      %v885 = vpop.f32.mrf.mxu0
      %v886 = vadd.f32 0.0, %v885
      %v887 = vpop.f32.mrf.mxu0
      %v888 = vadd.f32 0.0, %v887
      %889 = vmatmul.bf16.gmra.mxu0 %v760
      %v890 = vpop.f32.mrf.mxu0
      %v891 = vadd.f32 0.0, %v890
      %v892 = vpop.f32.mrf.mxu0
      %v893 = vadd.f32 0.0, %v892
      %894 = vmatmul.bf16.gmra.mxu0 %v763
      %v895 = vpop.f32.mrf.mxu0
      %v896 = vadd.f32 0.0, %v895
      %v897 = vpop.f32.mrf.mxu0
      %v898 = vadd.f32 0.0, %v897
      %899 = vmatmul.bf16.gmra.mxu0 %v766
      %v900 = vpop.f32.mrf.mxu0
      %v901 = vadd.f32 0.0, %v900
      %v902 = vpop.f32.mrf.mxu0
      %v903 = vadd.f32 0.0, %v902
      %904 = vmatmul.bf16.gmra.mxu0 %v769
      %v905 = vpop.f32.mrf.mxu0
      %v906 = vadd.f32 0.0, %v905
      %v907 = vpop.f32.mrf.mxu0
      %v908 = vadd.f32 0.0, %v907
      %909 = vmatmul.bf16.gmra.mxu0 %v772
      %v910 = vpop.f32.mrf.mxu0
      %v911 = vadd.f32 0.0, %v910
      %v912 = vpop.f32.mrf.mxu0
      %v913 = vadd.f32 0.0, %v912
      %914 = vmatmul.bf16.gmra.mxu0 %v775
      %v915 = vpop.f32.mrf.mxu0
      %v916 = vadd.f32 0.0, %v915
      %v917 = vpop.f32.mrf.mxu0
      %v918 = vadd.f32 0.0, %v917
      %919 = vmatmul.bf16.gmra.mxu0 %v778
      %v920 = vpop.f32.mrf.mxu0
      %v921 = vadd.f32 0.0, %v920
      %v922 = vpop.f32.mrf.mxu0
      %v923 = vadd.f32 0.0, %v922
      %924 = vmatmul.bf16.gmra.mxu0 %v781
      %v925 = vpop.f32.mrf.mxu0
      %v926 = vadd.f32 0.0, %v925
      %v927 = vpop.f32.mrf.mxu0
      %v928 = vadd.f32 0.0, %v927
      %929 = vmatmul.bf16.gmra.mxu0 %v784
      %v930 = vpop.f32.mrf.mxu0
      %v931 = vadd.f32 0.0, %v930
      %v932 = vpop.f32.mrf.mxu0
      %v933 = vadd.f32 0.0, %v932
      %934 = vmatmul.bf16.gmra.mxu0 %v787
      %v935 = vpop.f32.mrf.mxu0
      %v936 = vadd.f32 0.0, %v935
      %v937 = vpop.f32.mrf.mxu0
      %v938 = vadd.f32 0.0, %v937
      %939 = vmatmul.bf16.gmra.mxu0 %v790
      %v940 = vpop.f32.mrf.mxu0
      %v941 = vadd.f32 0.0, %v940
      %v942 = vpop.f32.mrf.mxu0
      %v943 = vadd.f32 0.0, %v942
      %944 = vmatmul.bf16.gmra.mxu0 %v793
      %v945 = vpop.f32.mrf.mxu0
      %v946 = vadd.f32 0.0, %v945
      %v947 = vpop.f32.mrf.mxu0
      %v948 = vadd.f32 0.0, %v947
      %949 = vmatmul.bf16.gmra.mxu0 %v796
      %v950 = vpop.f32.mrf.mxu0
      %v951 = vadd.f32 0.0, %v950
      %v952 = vpop.f32.mrf.mxu0
      %v953 = vadd.f32 0.0, %v952
      %954 = vmatmul.bf16.gmra.mxu0 %v799
      %v955 = vpop.f32.mrf.mxu0
      %v956 = vadd.f32 0.0, %v955
      %v957 = vpop.f32.mrf.mxu0
      %v958 = vadd.f32 0.0, %v957
      %959 = vmatmul.bf16.gmra.mxu0 %v802
      %v960 = vpop.f32.mrf.mxu0
      %v961 = vadd.f32 0.0, %v960
      %v962 = vpop.f32.mrf.mxu0
      %v963 = vadd.f32 0.0, %v962
      %964 = vmatmul.bf16.gmra.mxu0 %v805
      %v965 = vpop.f32.mrf.mxu0
      %v966 = vadd.f32 0.0, %v965
      %v967 = vpop.f32.mrf.mxu0
      %v968 = vadd.f32 0.0, %v967
      %969 = vmatmul.bf16.gmra.mxu0 %v808
      %v970 = vpop.f32.mrf.mxu0
      %v971 = vadd.f32 0.0, %v970
      %v972 = vpop.f32.mrf.mxu0
      %v973 = vadd.f32 0.0, %v972
      %974 = vmatmul.bf16.gmra.mxu0 %v811
      %v975 = vpop.f32.mrf.mxu0
      %v976 = vadd.f32 0.0, %v975
      %v977 = vpop.f32.mrf.mxu0
      %v978 = vadd.f32 0.0, %v977
      %979 = vmatmul.bf16.gmra.mxu0 %v814
      %v980 = vpop.f32.mrf.mxu0
      %v981 = vadd.f32 0.0, %v980
      %v982 = vpop.f32.mrf.mxu0
      %v983 = vadd.f32 0.0, %v982
      %984 = vdwg.mxu0
      %v985 = vpack.c.bf16 %v826, %v826
      %v986 = vpack.c.bf16 %v828, %v828
      %v987 = vpack.c.bf16 %v831, %v831
      %v988 = vpack.c.bf16 %v833, %v833
      %v989 = vpack.c.bf16 %v836, %v836
      %v990 = vpack.c.bf16 %v838, %v838
      %v991 = vpack.c.bf16 %v841, %v841
      %v992 = vpack.c.bf16 %v843, %v843
      %v993 = vpack.c.bf16 %v846, %v846
      %v994 = vpack.c.bf16 %v848, %v848
      %v995 = vpack.c.bf16 %v851, %v851
      %v996 = vpack.c.bf16 %v853, %v853
      %v997 = vpack.c.bf16 %v856, %v856
      %v998 = vpack.c.bf16 %v858, %v858
      %v999 = vpack.c.bf16 %v861, %v861
      %v1000 = vpack.c.bf16 %v863, %v863
      %v1001 = vpack.c.bf16 %v866, %v866
      %v1002 = vpack.c.bf16 %v868, %v868
      %v1003 = vpack.c.bf16 %v871, %v871
      %v1004 = vpack.c.bf16 %v873, %v873
      %v1005 = vpack.c.bf16 %v876, %v876
      %v1006 = vpack.c.bf16 %v878, %v878
      %v1007 = vpack.c.bf16 %v881, %v881
      %v1008 = vpack.c.bf16 %v883, %v883
      %v1009 = vpack.c.bf16 %v886, %v886
      %v1010 = vpack.c.bf16 %v888, %v888
      %v1011 = vpack.c.bf16 %v891, %v891
      %v1012 = vpack.c.bf16 %v893, %v893
      %v1013 = vpack.c.bf16 %v896, %v896
      %v1014 = vpack.c.bf16 %v898, %v898
      %v1015 = vpack.c.bf16 %v901, %v901
      %v1016 = vpack.c.bf16 %v903, %v903
      %v1017 = vpack.c.bf16 %v906, %v906
      %v1018 = vpack.c.bf16 %v908, %v908
      %v1019 = vpack.c.bf16 %v911, %v911
      %v1020 = vpack.c.bf16 %v913, %v913
      %v1021 = vpack.c.bf16 %v916, %v916
      %v1022 = vpack.c.bf16 %v918, %v918
      %v1023 = vpack.c.bf16 %v921, %v921
      %v1024 = vpack.c.bf16 %v923, %v923
      %v1025 = vpack.c.bf16 %v926, %v926
      %v1026 = vpack.c.bf16 %v928, %v928
      %v1027 = vpack.c.bf16 %v931, %v931
      %v1028 = vpack.c.bf16 %v933, %v933
      %v1029 = vpack.c.bf16 %v936, %v936
      %v1030 = vpack.c.bf16 %v938, %v938
      %v1031 = vpack.c.bf16 %v941, %v941
      %v1032 = vpack.c.bf16 %v943, %v943
      %v1033 = vpack.c.bf16 %v946, %v946
      %v1034 = vpack.c.bf16 %v948, %v948
      %v1035 = vpack.c.bf16 %v951, %v951
      %v1036 = vpack.c.bf16 %v953, %v953
      %v1037 = vpack.c.bf16 %v956, %v956
      %v1038 = vpack.c.bf16 %v958, %v958
      %v1039 = vpack.c.bf16 %v961, %v961
      %v1040 = vpack.c.bf16 %v963, %v963
      %v1041 = vpack.c.bf16 %v966, %v966
      %v1042 = vpack.c.bf16 %v968, %v968
      %v1043 = vpack.c.bf16 %v971, %v971
      %v1044 = vpack.c.bf16 %v973, %v973
      %v1045 = vpack.c.bf16 %v976, %v976
      %v1046 = vpack.c.bf16 %v978, %v978
      %v1047 = vpack.c.bf16 %v981, %v981
      %v1048 = vpack.c.bf16 %v983, %v983
      %v1051 = vunpack.c.l.b16 %v985
      %v1052 = vunpack.c.l.b16 %v986
      %v1053 = vpack.c.b16 %v1052, %v1051
      %1054 = vrot.lane.b32.xlu0 %v1053, 96
      %v1055 = vpop.permute.xlu0 %1054
      %v1057 = vsel %vm719, %v1053, 0
      %v1060 = vsel %vm719, %v1055, 0
      %1062 = vmatpush.bf16.xpose.msra.mxu0 0
      %1063 = vmatpush.bf16.xpose.msra.mxu0 0
      %1064 = vmatpush.bf16.xpose.msra.mxu0 0
      %1065 = vmatpush.bf16.xpose.msra.mxu0 0
      %1066 = vmatpush.bf16.xpose.msra.mxu0 0
      %1067 = vmatpush.bf16.xpose.msra.mxu0 0
      %1068 = vmatpush.bf16.xpose.msra.mxu0 0
      %1069 = vmatpush.bf16.xpose.msra.mxu0 %v1060
      %1070 = vmatmul.bf16.gmra.mxu0 %v1057
      %v1071 = vpop.f32.mrf.mxu0
      %v1072 = vadd.f32 0.0, %v1071
      %v1073 = vpop.f32.mrf.mxu0
      %v1074 = vadd.f32 0.0, %v1073
      %1075 = vdwg.mxu0
      %v1078 = vunpack.c.l.b16 %v987
      %v1079 = vunpack.c.l.b16 %v988
      %v1080 = vpack.c.b16 %v1079, %v1078
      %1081 = vrot.lane.b32.xlu0 %v1080, 96
      %v1082 = vpop.permute.xlu0 %1081
      %v1084 = vsel %vm719, %v1080, 0
      %v1087 = vsel %vm719, %v1082, 0
      %1089 = vmatpush.bf16.xpose.msra.mxu0 0
      %1090 = vmatpush.bf16.xpose.msra.mxu0 0
      %1091 = vmatpush.bf16.xpose.msra.mxu0 0
      %1092 = vmatpush.bf16.xpose.msra.mxu0 0
      %1093 = vmatpush.bf16.xpose.msra.mxu0 0
      %1094 = vmatpush.bf16.xpose.msra.mxu0 0
      %1095 = vmatpush.bf16.xpose.msra.mxu0 0
      %1096 = vmatpush.bf16.xpose.msra.mxu0 %v1087
      %1097 = vmatmul.bf16.gmra.mxu0 %v1084
      %v1098 = vpop.f32.mrf.mxu0
      %v1099 = vadd.f32 0.0, %v1098
      %v1100 = vpop.f32.mrf.mxu0
      %v1101 = vadd.f32 0.0, %v1100
      %1102 = vdwg.mxu0
      %v1105 = vunpack.c.l.b16 %v989
      %v1106 = vunpack.c.l.b16 %v990
      %v1107 = vpack.c.b16 %v1106, %v1105
      %1108 = vrot.lane.b32.xlu0 %v1107, 96
      %v1109 = vpop.permute.xlu0 %1108
      %v1111 = vsel %vm719, %v1107, 0
      %v1114 = vsel %vm719, %v1109, 0
      %1116 = vmatpush.bf16.xpose.msra.mxu0 0
      %1117 = vmatpush.bf16.xpose.msra.mxu0 0
      %1118 = vmatpush.bf16.xpose.msra.mxu0 0
      %1119 = vmatpush.bf16.xpose.msra.mxu0 0
      %1120 = vmatpush.bf16.xpose.msra.mxu0 0
      %1121 = vmatpush.bf16.xpose.msra.mxu0 0
      %1122 = vmatpush.bf16.xpose.msra.mxu0 0
      %1123 = vmatpush.bf16.xpose.msra.mxu0 %v1114
      %1124 = vmatmul.bf16.gmra.mxu0 %v1111
      %v1125 = vpop.f32.mrf.mxu0
      %v1126 = vadd.f32 0.0, %v1125
      %v1127 = vpop.f32.mrf.mxu0
      %v1128 = vadd.f32 0.0, %v1127
      %1129 = vdwg.mxu0
      %v1132 = vunpack.c.l.b16 %v991
      %v1133 = vunpack.c.l.b16 %v992
      %v1134 = vpack.c.b16 %v1133, %v1132
      %1135 = vrot.lane.b32.xlu0 %v1134, 96
      %v1136 = vpop.permute.xlu0 %1135
      %v1138 = vsel %vm719, %v1134, 0
      %v1141 = vsel %vm719, %v1136, 0
      %1143 = vmatpush.bf16.xpose.msra.mxu0 0
      %1144 = vmatpush.bf16.xpose.msra.mxu0 0
      %1145 = vmatpush.bf16.xpose.msra.mxu0 0
      %1146 = vmatpush.bf16.xpose.msra.mxu0 0
      %1147 = vmatpush.bf16.xpose.msra.mxu0 0
      %1148 = vmatpush.bf16.xpose.msra.mxu0 0
      %1149 = vmatpush.bf16.xpose.msra.mxu0 0
      %1150 = vmatpush.bf16.xpose.msra.mxu0 %v1141
      %1151 = vmatmul.bf16.gmra.mxu0 %v1138
      %v1152 = vpop.f32.mrf.mxu0
      %v1153 = vadd.f32 0.0, %v1152
      %v1154 = vpop.f32.mrf.mxu0
      %v1155 = vadd.f32 0.0, %v1154
      %1156 = vdwg.mxu0
      %v1159 = vunpack.c.l.b16 %v993
      %v1160 = vunpack.c.l.b16 %v994
      %v1161 = vpack.c.b16 %v1160, %v1159
      %1162 = vrot.lane.b32.xlu0 %v1161, 96
      %v1163 = vpop.permute.xlu0 %1162
      %v1165 = vsel %vm719, %v1161, 0
      %v1168 = vsel %vm719, %v1163, 0
      %1170 = vmatpush.bf16.xpose.msra.mxu0 0
      %1171 = vmatpush.bf16.xpose.msra.mxu0 0
      %1172 = vmatpush.bf16.xpose.msra.mxu0 0
      %1173 = vmatpush.bf16.xpose.msra.mxu0 0
      %1174 = vmatpush.bf16.xpose.msra.mxu0 0
      %1175 = vmatpush.bf16.xpose.msra.mxu0 0
      %1176 = vmatpush.bf16.xpose.msra.mxu0 0
      %1177 = vmatpush.bf16.xpose.msra.mxu0 %v1168
      %1178 = vmatmul.bf16.gmra.mxu0 %v1165
      %v1179 = vpop.f32.mrf.mxu0
      %v1180 = vadd.f32 0.0, %v1179
      %v1181 = vpop.f32.mrf.mxu0
      %v1182 = vadd.f32 0.0, %v1181
      %1183 = vdwg.mxu0
      %v1186 = vunpack.c.l.b16 %v995
      %v1187 = vunpack.c.l.b16 %v996
      %v1188 = vpack.c.b16 %v1187, %v1186
      %1189 = vrot.lane.b32.xlu0 %v1188, 96
      %v1190 = vpop.permute.xlu0 %1189
      %v1192 = vsel %vm719, %v1188, 0
      %v1195 = vsel %vm719, %v1190, 0
      %1197 = vmatpush.bf16.xpose.msra.mxu0 0
      %1198 = vmatpush.bf16.xpose.msra.mxu0 0
      %1199 = vmatpush.bf16.xpose.msra.mxu0 0
      %1200 = vmatpush.bf16.xpose.msra.mxu0 0
      %1201 = vmatpush.bf16.xpose.msra.mxu0 0
      %1202 = vmatpush.bf16.xpose.msra.mxu0 0
      %1203 = vmatpush.bf16.xpose.msra.mxu0 0
      %1204 = vmatpush.bf16.xpose.msra.mxu0 %v1195
      %1205 = vmatmul.bf16.gmra.mxu0 %v1192
      %v1206 = vpop.f32.mrf.mxu0
      %v1207 = vadd.f32 0.0, %v1206
      %v1208 = vpop.f32.mrf.mxu0
      %v1209 = vadd.f32 0.0, %v1208
      %1210 = vdwg.mxu0
      %v1213 = vunpack.c.l.b16 %v997
      %v1214 = vunpack.c.l.b16 %v998
      %v1215 = vpack.c.b16 %v1214, %v1213
      %1216 = vrot.lane.b32.xlu0 %v1215, 96
      %v1217 = vpop.permute.xlu0 %1216
      %v1219 = vsel %vm719, %v1215, 0
      %v1222 = vsel %vm719, %v1217, 0
      %1224 = vmatpush.bf16.xpose.msra.mxu0 0
      %1225 = vmatpush.bf16.xpose.msra.mxu0 0
      %1226 = vmatpush.bf16.xpose.msra.mxu0 0
      %1227 = vmatpush.bf16.xpose.msra.mxu0 0
      %1228 = vmatpush.bf16.xpose.msra.mxu0 0
      %1229 = vmatpush.bf16.xpose.msra.mxu0 0
      %1230 = vmatpush.bf16.xpose.msra.mxu0 0
      %1231 = vmatpush.bf16.xpose.msra.mxu0 %v1222
      %1232 = vmatmul.bf16.gmra.mxu0 %v1219
      %v1233 = vpop.f32.mrf.mxu0
      %v1234 = vadd.f32 0.0, %v1233
      %v1235 = vpop.f32.mrf.mxu0
      %v1236 = vadd.f32 0.0, %v1235
      %1237 = vdwg.mxu0
      %v1240 = vunpack.c.l.b16 %v999
      %v1241 = vunpack.c.l.b16 %v1000
      %v1242 = vpack.c.b16 %v1241, %v1240
      %1243 = vrot.lane.b32.xlu0 %v1242, 96
      %v1244 = vpop.permute.xlu0 %1243
      %v1246 = vsel %vm719, %v1242, 0
      %v1249 = vsel %vm719, %v1244, 0
      %1251 = vmatpush.bf16.xpose.msra.mxu0 0
      %1252 = vmatpush.bf16.xpose.msra.mxu0 0
      %1253 = vmatpush.bf16.xpose.msra.mxu0 0
      %1254 = vmatpush.bf16.xpose.msra.mxu0 0
      %1255 = vmatpush.bf16.xpose.msra.mxu0 0
      %1256 = vmatpush.bf16.xpose.msra.mxu0 0
      %1257 = vmatpush.bf16.xpose.msra.mxu0 0
      %1258 = vmatpush.bf16.xpose.msra.mxu0 %v1249
      %1259 = vmatmul.bf16.gmra.mxu0 %v1246
      %v1260 = vpop.f32.mrf.mxu0
      %v1261 = vadd.f32 0.0, %v1260
      %v1262 = vpop.f32.mrf.mxu0
      %v1263 = vadd.f32 0.0, %v1262
      %1264 = vdwg.mxu0
      %v1267 = vunpack.c.l.b16 %v1001
      %v1268 = vunpack.c.l.b16 %v1002
      %v1269 = vpack.c.b16 %v1268, %v1267
      %1270 = vrot.lane.b32.xlu0 %v1269, 96
      %v1271 = vpop.permute.xlu0 %1270
      %v1273 = vsel %vm719, %v1269, 0
      %v1276 = vsel %vm719, %v1271, 0
      %1278 = vmatpush.bf16.xpose.msra.mxu0 0
      %1279 = vmatpush.bf16.xpose.msra.mxu0 0
      %1280 = vmatpush.bf16.xpose.msra.mxu0 0
      %1281 = vmatpush.bf16.xpose.msra.mxu0 0
      %1282 = vmatpush.bf16.xpose.msra.mxu0 0
      %1283 = vmatpush.bf16.xpose.msra.mxu0 0
      %1284 = vmatpush.bf16.xpose.msra.mxu0 0
      %1285 = vmatpush.bf16.xpose.msra.mxu0 %v1276
      %1286 = vmatmul.bf16.gmra.mxu0 %v1273
      %v1287 = vpop.f32.mrf.mxu0
      %v1288 = vadd.f32 0.0, %v1287
      %v1289 = vpop.f32.mrf.mxu0
      %v1290 = vadd.f32 0.0, %v1289
      %1291 = vdwg.mxu0
      %v1294 = vunpack.c.l.b16 %v1003
      %v1295 = vunpack.c.l.b16 %v1004
      %v1296 = vpack.c.b16 %v1295, %v1294
      %1297 = vrot.lane.b32.xlu0 %v1296, 96
      %v1298 = vpop.permute.xlu0 %1297
      %v1300 = vsel %vm719, %v1296, 0
      %v1303 = vsel %vm719, %v1298, 0
      %1305 = vmatpush.bf16.xpose.msra.mxu0 0
      %1306 = vmatpush.bf16.xpose.msra.mxu0 0
      %1307 = vmatpush.bf16.xpose.msra.mxu0 0
      %1308 = vmatpush.bf16.xpose.msra.mxu0 0
      %1309 = vmatpush.bf16.xpose.msra.mxu0 0
      %1310 = vmatpush.bf16.xpose.msra.mxu0 0
      %1311 = vmatpush.bf16.xpose.msra.mxu0 0
      %1312 = vmatpush.bf16.xpose.msra.mxu0 %v1303
      %1313 = vmatmul.bf16.gmra.mxu0 %v1300
      %v1314 = vpop.f32.mrf.mxu0
      %v1315 = vadd.f32 0.0, %v1314
      %v1316 = vpop.f32.mrf.mxu0
      %v1317 = vadd.f32 0.0, %v1316
      %1318 = vdwg.mxu0
      %v1321 = vunpack.c.l.b16 %v1005
      %v1322 = vunpack.c.l.b16 %v1006
      %v1323 = vpack.c.b16 %v1322, %v1321
      %1324 = vrot.lane.b32.xlu0 %v1323, 96
      %v1325 = vpop.permute.xlu0 %1324
      %v1327 = vsel %vm719, %v1323, 0
      %v1330 = vsel %vm719, %v1325, 0
      %1332 = vmatpush.bf16.xpose.msra.mxu0 0
      %1333 = vmatpush.bf16.xpose.msra.mxu0 0
      %1334 = vmatpush.bf16.xpose.msra.mxu0 0
      %1335 = vmatpush.bf16.xpose.msra.mxu0 0
      %1336 = vmatpush.bf16.xpose.msra.mxu0 0
      %1337 = vmatpush.bf16.xpose.msra.mxu0 0
      %1338 = vmatpush.bf16.xpose.msra.mxu0 0
      %1339 = vmatpush.bf16.xpose.msra.mxu0 %v1330
      %1340 = vmatmul.bf16.gmra.mxu0 %v1327
      %v1341 = vpop.f32.mrf.mxu0
      %v1342 = vadd.f32 0.0, %v1341
      %v1343 = vpop.f32.mrf.mxu0
      %v1344 = vadd.f32 0.0, %v1343
      %1345 = vdwg.mxu0
      %v1348 = vunpack.c.l.b16 %v1007
      %v1349 = vunpack.c.l.b16 %v1008
      %v1350 = vpack.c.b16 %v1349, %v1348
      %1351 = vrot.lane.b32.xlu0 %v1350, 96
      %v1352 = vpop.permute.xlu0 %1351
      %v1354 = vsel %vm719, %v1350, 0
      %v1357 = vsel %vm719, %v1352, 0
      %1359 = vmatpush.bf16.xpose.msra.mxu0 0
      %1360 = vmatpush.bf16.xpose.msra.mxu0 0
      %1361 = vmatpush.bf16.xpose.msra.mxu0 0
      %1362 = vmatpush.bf16.xpose.msra.mxu0 0
      %1363 = vmatpush.bf16.xpose.msra.mxu0 0
      %1364 = vmatpush.bf16.xpose.msra.mxu0 0
      %1365 = vmatpush.bf16.xpose.msra.mxu0 0
      %1366 = vmatpush.bf16.xpose.msra.mxu0 %v1357
      %1367 = vmatmul.bf16.gmra.mxu0 %v1354
      %v1368 = vpop.f32.mrf.mxu0
      %v1369 = vadd.f32 0.0, %v1368
      %v1370 = vpop.f32.mrf.mxu0
      %v1371 = vadd.f32 0.0, %v1370
      %1372 = vdwg.mxu0
      %v1375 = vunpack.c.l.b16 %v1009
      %v1376 = vunpack.c.l.b16 %v1010
      %v1377 = vpack.c.b16 %v1376, %v1375
      %1378 = vrot.lane.b32.xlu0 %v1377, 96
      %v1379 = vpop.permute.xlu0 %1378
      %v1381 = vsel %vm719, %v1377, 0
      %v1384 = vsel %vm719, %v1379, 0
      %1386 = vmatpush.bf16.xpose.msra.mxu0 0
      %1387 = vmatpush.bf16.xpose.msra.mxu0 0
      %1388 = vmatpush.bf16.xpose.msra.mxu0 0
      %1389 = vmatpush.bf16.xpose.msra.mxu0 0
      %1390 = vmatpush.bf16.xpose.msra.mxu0 0
      %1391 = vmatpush.bf16.xpose.msra.mxu0 0
      %1392 = vmatpush.bf16.xpose.msra.mxu0 0
      %1393 = vmatpush.bf16.xpose.msra.mxu0 %v1384
      %1394 = vmatmul.bf16.gmra.mxu0 %v1381
      %v1395 = vpop.f32.mrf.mxu0
      %v1396 = vadd.f32 0.0, %v1395
      %v1397 = vpop.f32.mrf.mxu0
      %v1398 = vadd.f32 0.0, %v1397
      %1399 = vdwg.mxu0
      %v1402 = vunpack.c.l.b16 %v1011
      %v1403 = vunpack.c.l.b16 %v1012
      %v1404 = vpack.c.b16 %v1403, %v1402
      %1405 = vrot.lane.b32.xlu0 %v1404, 96
      %v1406 = vpop.permute.xlu0 %1405
      %v1408 = vsel %vm719, %v1404, 0
      %v1411 = vsel %vm719, %v1406, 0
      %1413 = vmatpush.bf16.xpose.msra.mxu0 0
      %1414 = vmatpush.bf16.xpose.msra.mxu0 0
      %1415 = vmatpush.bf16.xpose.msra.mxu0 0
      %1416 = vmatpush.bf16.xpose.msra.mxu0 0
      %1417 = vmatpush.bf16.xpose.msra.mxu0 0
      %1418 = vmatpush.bf16.xpose.msra.mxu0 0
      %1419 = vmatpush.bf16.xpose.msra.mxu0 0
      %1420 = vmatpush.bf16.xpose.msra.mxu0 %v1411
      %1421 = vmatmul.bf16.gmra.mxu0 %v1408
      %v1422 = vpop.f32.mrf.mxu0
      %v1423 = vadd.f32 0.0, %v1422
      %v1424 = vpop.f32.mrf.mxu0
      %v1425 = vadd.f32 0.0, %v1424
      %1426 = vdwg.mxu0
      %v1429 = vunpack.c.l.b16 %v1013
      %v1430 = vunpack.c.l.b16 %v1014
      %v1431 = vpack.c.b16 %v1430, %v1429
      %1432 = vrot.lane.b32.xlu0 %v1431, 96
      %v1433 = vpop.permute.xlu0 %1432
      %v1435 = vsel %vm719, %v1431, 0
      %v1438 = vsel %vm719, %v1433, 0
      %1440 = vmatpush.bf16.xpose.msra.mxu0 0
      %1441 = vmatpush.bf16.xpose.msra.mxu0 0
      %1442 = vmatpush.bf16.xpose.msra.mxu0 0
      %1443 = vmatpush.bf16.xpose.msra.mxu0 0
      %1444 = vmatpush.bf16.xpose.msra.mxu0 0
      %1445 = vmatpush.bf16.xpose.msra.mxu0 0
      %1446 = vmatpush.bf16.xpose.msra.mxu0 0
      %1447 = vmatpush.bf16.xpose.msra.mxu0 %v1438
      %1448 = vmatmul.bf16.gmra.mxu0 %v1435
      %v1449 = vpop.f32.mrf.mxu0
      %v1450 = vadd.f32 0.0, %v1449
      %v1451 = vpop.f32.mrf.mxu0
      %v1452 = vadd.f32 0.0, %v1451
      %1453 = vdwg.mxu0
      %v1456 = vunpack.c.l.b16 %v1015
      %v1457 = vunpack.c.l.b16 %v1016
      %v1458 = vpack.c.b16 %v1457, %v1456
      %1459 = vrot.lane.b32.xlu0 %v1458, 96
      %v1460 = vpop.permute.xlu0 %1459
      %v1462 = vsel %vm719, %v1458, 0
      %v1465 = vsel %vm719, %v1460, 0
      %1467 = vmatpush.bf16.xpose.msra.mxu0 0
      %1468 = vmatpush.bf16.xpose.msra.mxu0 0
      %1469 = vmatpush.bf16.xpose.msra.mxu0 0
      %1470 = vmatpush.bf16.xpose.msra.mxu0 0
      %1471 = vmatpush.bf16.xpose.msra.mxu0 0
      %1472 = vmatpush.bf16.xpose.msra.mxu0 0
      %1473 = vmatpush.bf16.xpose.msra.mxu0 0
      %1474 = vmatpush.bf16.xpose.msra.mxu0 %v1465
      %1475 = vmatmul.bf16.gmra.mxu0 %v1462
      %v1476 = vpop.f32.mrf.mxu0
      %v1477 = vadd.f32 0.0, %v1476
      %v1478 = vpop.f32.mrf.mxu0
      %v1479 = vadd.f32 0.0, %v1478
      %1480 = vdwg.mxu0
      %v1483 = vunpack.c.l.b16 %v1017
      %v1484 = vunpack.c.l.b16 %v1018
      %v1485 = vpack.c.b16 %v1484, %v1483
      %1486 = vrot.lane.b32.xlu0 %v1485, 96
      %v1487 = vpop.permute.xlu0 %1486
      %v1489 = vsel %vm719, %v1485, 0
      %v1492 = vsel %vm719, %v1487, 0
      %1494 = vmatpush.bf16.xpose.msra.mxu0 0
      %1495 = vmatpush.bf16.xpose.msra.mxu0 0
      %1496 = vmatpush.bf16.xpose.msra.mxu0 0
      %1497 = vmatpush.bf16.xpose.msra.mxu0 0
      %1498 = vmatpush.bf16.xpose.msra.mxu0 0
      %1499 = vmatpush.bf16.xpose.msra.mxu0 0
      %1500 = vmatpush.bf16.xpose.msra.mxu0 0
      %1501 = vmatpush.bf16.xpose.msra.mxu0 %v1492
      %1502 = vmatmul.bf16.gmra.mxu0 %v1489
      %v1503 = vpop.f32.mrf.mxu0
      %v1504 = vadd.f32 0.0, %v1503
      %v1505 = vpop.f32.mrf.mxu0
      %v1506 = vadd.f32 0.0, %v1505
      %1507 = vdwg.mxu0
      %v1510 = vunpack.c.l.b16 %v1019
      %v1511 = vunpack.c.l.b16 %v1020
      %v1512 = vpack.c.b16 %v1511, %v1510
      %1513 = vrot.lane.b32.xlu0 %v1512, 96
      %v1514 = vpop.permute.xlu0 %1513
      %v1516 = vsel %vm719, %v1512, 0
      %v1519 = vsel %vm719, %v1514, 0
      %1521 = vmatpush.bf16.xpose.msra.mxu0 0
      %1522 = vmatpush.bf16.xpose.msra.mxu0 0
      %1523 = vmatpush.bf16.xpose.msra.mxu0 0
      %1524 = vmatpush.bf16.xpose.msra.mxu0 0
      %1525 = vmatpush.bf16.xpose.msra.mxu0 0
      %1526 = vmatpush.bf16.xpose.msra.mxu0 0
      %1527 = vmatpush.bf16.xpose.msra.mxu0 0
      %1528 = vmatpush.bf16.xpose.msra.mxu0 %v1519
      %1529 = vmatmul.bf16.gmra.mxu0 %v1516
      %v1530 = vpop.f32.mrf.mxu0
      %v1531 = vadd.f32 0.0, %v1530
      %v1532 = vpop.f32.mrf.mxu0
      %v1533 = vadd.f32 0.0, %v1532
      %1534 = vdwg.mxu0
      %v1537 = vunpack.c.l.b16 %v1021
      %v1538 = vunpack.c.l.b16 %v1022
      %v1539 = vpack.c.b16 %v1538, %v1537
      %1540 = vrot.lane.b32.xlu0 %v1539, 96
      %v1541 = vpop.permute.xlu0 %1540
      %v1543 = vsel %vm719, %v1539, 0
      %v1546 = vsel %vm719, %v1541, 0
      %1548 = vmatpush.bf16.xpose.msra.mxu0 0
      %1549 = vmatpush.bf16.xpose.msra.mxu0 0
      %1550 = vmatpush.bf16.xpose.msra.mxu0 0
      %1551 = vmatpush.bf16.xpose.msra.mxu0 0
      %1552 = vmatpush.bf16.xpose.msra.mxu0 0
      %1553 = vmatpush.bf16.xpose.msra.mxu0 0
      %1554 = vmatpush.bf16.xpose.msra.mxu0 0
      %1555 = vmatpush.bf16.xpose.msra.mxu0 %v1546
      %1556 = vmatmul.bf16.gmra.mxu0 %v1543
      %v1557 = vpop.f32.mrf.mxu0
      %v1558 = vadd.f32 0.0, %v1557
      %v1559 = vpop.f32.mrf.mxu0
      %v1560 = vadd.f32 0.0, %v1559
      %1561 = vdwg.mxu0
      %v1564 = vunpack.c.l.b16 %v1023
      %v1565 = vunpack.c.l.b16 %v1024
      %v1566 = vpack.c.b16 %v1565, %v1564
      %1567 = vrot.lane.b32.xlu0 %v1566, 96
      %v1568 = vpop.permute.xlu0 %1567
      %v1570 = vsel %vm719, %v1566, 0
      %v1573 = vsel %vm719, %v1568, 0
      %1575 = vmatpush.bf16.xpose.msra.mxu0 0
      %1576 = vmatpush.bf16.xpose.msra.mxu0 0
      %1577 = vmatpush.bf16.xpose.msra.mxu0 0
      %1578 = vmatpush.bf16.xpose.msra.mxu0 0
      %1579 = vmatpush.bf16.xpose.msra.mxu0 0
      %1580 = vmatpush.bf16.xpose.msra.mxu0 0
      %1581 = vmatpush.bf16.xpose.msra.mxu0 0
      %1582 = vmatpush.bf16.xpose.msra.mxu0 %v1573
      %1583 = vmatmul.bf16.gmra.mxu0 %v1570
      %v1584 = vpop.f32.mrf.mxu0
      %v1585 = vadd.f32 0.0, %v1584
      %v1586 = vpop.f32.mrf.mxu0
      %v1587 = vadd.f32 0.0, %v1586
      %1588 = vdwg.mxu0
      %v1591 = vunpack.c.l.b16 %v1025
      %v1592 = vunpack.c.l.b16 %v1026
      %v1593 = vpack.c.b16 %v1592, %v1591
      %1594 = vrot.lane.b32.xlu0 %v1593, 96
      %v1595 = vpop.permute.xlu0 %1594
      %v1597 = vsel %vm719, %v1593, 0
      %v1600 = vsel %vm719, %v1595, 0
      %1602 = vmatpush.bf16.xpose.msra.mxu0 0
      %1603 = vmatpush.bf16.xpose.msra.mxu0 0
      %1604 = vmatpush.bf16.xpose.msra.mxu0 0
      %1605 = vmatpush.bf16.xpose.msra.mxu0 0
      %1606 = vmatpush.bf16.xpose.msra.mxu0 0
      %1607 = vmatpush.bf16.xpose.msra.mxu0 0
      %1608 = vmatpush.bf16.xpose.msra.mxu0 0
      %1609 = vmatpush.bf16.xpose.msra.mxu0 %v1600
      %1610 = vmatmul.bf16.gmra.mxu0 %v1597
      %v1611 = vpop.f32.mrf.mxu0
      %v1612 = vadd.f32 0.0, %v1611
      %v1613 = vpop.f32.mrf.mxu0
      %v1614 = vadd.f32 0.0, %v1613
      %1615 = vdwg.mxu0
      %v1618 = vunpack.c.l.b16 %v1027
      %v1619 = vunpack.c.l.b16 %v1028
      %v1620 = vpack.c.b16 %v1619, %v1618
      %1621 = vrot.lane.b32.xlu0 %v1620, 96
      %v1622 = vpop.permute.xlu0 %1621
      %v1624 = vsel %vm719, %v1620, 0
      %v1627 = vsel %vm719, %v1622, 0
      %1629 = vmatpush.bf16.xpose.msra.mxu0 0
      %1630 = vmatpush.bf16.xpose.msra.mxu0 0
      %1631 = vmatpush.bf16.xpose.msra.mxu0 0
      %1632 = vmatpush.bf16.xpose.msra.mxu0 0
      %1633 = vmatpush.bf16.xpose.msra.mxu0 0
      %1634 = vmatpush.bf16.xpose.msra.mxu0 0
      %1635 = vmatpush.bf16.xpose.msra.mxu0 0
      %1636 = vmatpush.bf16.xpose.msra.mxu0 %v1627
      %1637 = vmatmul.bf16.gmra.mxu0 %v1624
      %v1638 = vpop.f32.mrf.mxu0
      %v1639 = vadd.f32 0.0, %v1638
      %v1640 = vpop.f32.mrf.mxu0
      %v1641 = vadd.f32 0.0, %v1640
      %1642 = vdwg.mxu0
      %v1645 = vunpack.c.l.b16 %v1029
      %v1646 = vunpack.c.l.b16 %v1030
      %v1647 = vpack.c.b16 %v1646, %v1645
      %1648 = vrot.lane.b32.xlu0 %v1647, 96
      %v1649 = vpop.permute.xlu0 %1648
      %v1651 = vsel %vm719, %v1647, 0
      %v1654 = vsel %vm719, %v1649, 0
      %1656 = vmatpush.bf16.xpose.msra.mxu0 0
      %1657 = vmatpush.bf16.xpose.msra.mxu0 0
      %1658 = vmatpush.bf16.xpose.msra.mxu0 0
      %1659 = vmatpush.bf16.xpose.msra.mxu0 0
      %1660 = vmatpush.bf16.xpose.msra.mxu0 0
      %1661 = vmatpush.bf16.xpose.msra.mxu0 0
      %1662 = vmatpush.bf16.xpose.msra.mxu0 0
      %1663 = vmatpush.bf16.xpose.msra.mxu0 %v1654
      %1664 = vmatmul.bf16.gmra.mxu0 %v1651
      %v1665 = vpop.f32.mrf.mxu0
      %v1666 = vadd.f32 0.0, %v1665
      %v1667 = vpop.f32.mrf.mxu0
      %v1668 = vadd.f32 0.0, %v1667
      %1669 = vdwg.mxu0
      %v1672 = vunpack.c.l.b16 %v1031
      %v1673 = vunpack.c.l.b16 %v1032
      %v1674 = vpack.c.b16 %v1673, %v1672
      %1675 = vrot.lane.b32.xlu0 %v1674, 96
      %v1676 = vpop.permute.xlu0 %1675
      %v1678 = vsel %vm719, %v1674, 0
      %v1681 = vsel %vm719, %v1676, 0
      %1683 = vmatpush.bf16.xpose.msra.mxu0 0
      %1684 = vmatpush.bf16.xpose.msra.mxu0 0
      %1685 = vmatpush.bf16.xpose.msra.mxu0 0
      %1686 = vmatpush.bf16.xpose.msra.mxu0 0
      %1687 = vmatpush.bf16.xpose.msra.mxu0 0
      %1688 = vmatpush.bf16.xpose.msra.mxu0 0
      %1689 = vmatpush.bf16.xpose.msra.mxu0 0
      %1690 = vmatpush.bf16.xpose.msra.mxu0 %v1681
      %1691 = vmatmul.bf16.gmra.mxu0 %v1678
      %v1692 = vpop.f32.mrf.mxu0
      %v1693 = vadd.f32 0.0, %v1692
      %v1694 = vpop.f32.mrf.mxu0
      %v1695 = vadd.f32 0.0, %v1694
      %1696 = vdwg.mxu0
      %v1699 = vunpack.c.l.b16 %v1033
      %v1700 = vunpack.c.l.b16 %v1034
      %v1701 = vpack.c.b16 %v1700, %v1699
      %1702 = vrot.lane.b32.xlu0 %v1701, 96
      %v1703 = vpop.permute.xlu0 %1702
      %v1705 = vsel %vm719, %v1701, 0
      %v1708 = vsel %vm719, %v1703, 0
      %1710 = vmatpush.bf16.xpose.msra.mxu0 0
      %1711 = vmatpush.bf16.xpose.msra.mxu0 0
      %1712 = vmatpush.bf16.xpose.msra.mxu0 0
      %1713 = vmatpush.bf16.xpose.msra.mxu0 0
      %1714 = vmatpush.bf16.xpose.msra.mxu0 0
      %1715 = vmatpush.bf16.xpose.msra.mxu0 0
      %1716 = vmatpush.bf16.xpose.msra.mxu0 0
      %1717 = vmatpush.bf16.xpose.msra.mxu0 %v1708
      %1718 = vmatmul.bf16.gmra.mxu0 %v1705
      %v1719 = vpop.f32.mrf.mxu0
      %v1720 = vadd.f32 0.0, %v1719
      %v1721 = vpop.f32.mrf.mxu0
      %v1722 = vadd.f32 0.0, %v1721
      %1723 = vdwg.mxu0
      %v1726 = vunpack.c.l.b16 %v1035
      %v1727 = vunpack.c.l.b16 %v1036
      %v1728 = vpack.c.b16 %v1727, %v1726
      %1729 = vrot.lane.b32.xlu0 %v1728, 96
      %v1730 = vpop.permute.xlu0 %1729
      %v1732 = vsel %vm719, %v1728, 0
      %v1735 = vsel %vm719, %v1730, 0
      %1737 = vmatpush.bf16.xpose.msra.mxu0 0
      %1738 = vmatpush.bf16.xpose.msra.mxu0 0
      %1739 = vmatpush.bf16.xpose.msra.mxu0 0
      %1740 = vmatpush.bf16.xpose.msra.mxu0 0
      %1741 = vmatpush.bf16.xpose.msra.mxu0 0
      %1742 = vmatpush.bf16.xpose.msra.mxu0 0
      %1743 = vmatpush.bf16.xpose.msra.mxu0 0
      %1744 = vmatpush.bf16.xpose.msra.mxu0 %v1735
      %1745 = vmatmul.bf16.gmra.mxu0 %v1732
      %v1746 = vpop.f32.mrf.mxu0
      %v1747 = vadd.f32 0.0, %v1746
      %v1748 = vpop.f32.mrf.mxu0
      %v1749 = vadd.f32 0.0, %v1748
      %1750 = vdwg.mxu0
      %v1753 = vunpack.c.l.b16 %v1037
      %v1754 = vunpack.c.l.b16 %v1038
      %v1755 = vpack.c.b16 %v1754, %v1753
      %1756 = vrot.lane.b32.xlu0 %v1755, 96
      %v1757 = vpop.permute.xlu0 %1756
      %v1759 = vsel %vm719, %v1755, 0
      %v1762 = vsel %vm719, %v1757, 0
      %1764 = vmatpush.bf16.xpose.msra.mxu0 0
      %1765 = vmatpush.bf16.xpose.msra.mxu0 0
      %1766 = vmatpush.bf16.xpose.msra.mxu0 0
      %1767 = vmatpush.bf16.xpose.msra.mxu0 0
      %1768 = vmatpush.bf16.xpose.msra.mxu0 0
      %1769 = vmatpush.bf16.xpose.msra.mxu0 0
      %1770 = vmatpush.bf16.xpose.msra.mxu0 0
      %1771 = vmatpush.bf16.xpose.msra.mxu0 %v1762
      %1772 = vmatmul.bf16.gmra.mxu0 %v1759
      %v1773 = vpop.f32.mrf.mxu0
      %v1774 = vadd.f32 0.0, %v1773
      %v1775 = vpop.f32.mrf.mxu0
      %v1776 = vadd.f32 0.0, %v1775
      %1777 = vdwg.mxu0
      %v1780 = vunpack.c.l.b16 %v1039
      %v1781 = vunpack.c.l.b16 %v1040
      %v1782 = vpack.c.b16 %v1781, %v1780
      %1783 = vrot.lane.b32.xlu0 %v1782, 96
      %v1784 = vpop.permute.xlu0 %1783
      %v1786 = vsel %vm719, %v1782, 0
      %v1789 = vsel %vm719, %v1784, 0
      %1791 = vmatpush.bf16.xpose.msra.mxu0 0
      %1792 = vmatpush.bf16.xpose.msra.mxu0 0
      %1793 = vmatpush.bf16.xpose.msra.mxu0 0
      %1794 = vmatpush.bf16.xpose.msra.mxu0 0
      %1795 = vmatpush.bf16.xpose.msra.mxu0 0
      %1796 = vmatpush.bf16.xpose.msra.mxu0 0
      %1797 = vmatpush.bf16.xpose.msra.mxu0 0
      %1798 = vmatpush.bf16.xpose.msra.mxu0 %v1789
      %1799 = vmatmul.bf16.gmra.mxu0 %v1786
      %v1800 = vpop.f32.mrf.mxu0
      %v1801 = vadd.f32 0.0, %v1800
      %v1802 = vpop.f32.mrf.mxu0
      %v1803 = vadd.f32 0.0, %v1802
      %1804 = vdwg.mxu0
      %v1807 = vunpack.c.l.b16 %v1041
      %v1808 = vunpack.c.l.b16 %v1042
      %v1809 = vpack.c.b16 %v1808, %v1807
      %1810 = vrot.lane.b32.xlu0 %v1809, 96
      %v1811 = vpop.permute.xlu0 %1810
      %v1813 = vsel %vm719, %v1809, 0
      %v1816 = vsel %vm719, %v1811, 0
      %1818 = vmatpush.bf16.xpose.msra.mxu0 0
      %1819 = vmatpush.bf16.xpose.msra.mxu0 0
      %1820 = vmatpush.bf16.xpose.msra.mxu0 0
      %1821 = vmatpush.bf16.xpose.msra.mxu0 0
      %1822 = vmatpush.bf16.xpose.msra.mxu0 0
      %1823 = vmatpush.bf16.xpose.msra.mxu0 0
      %1824 = vmatpush.bf16.xpose.msra.mxu0 0
      %1825 = vmatpush.bf16.xpose.msra.mxu0 %v1816
      %1826 = vmatmul.bf16.gmra.mxu0 %v1813
      %v1827 = vpop.f32.mrf.mxu0
      %v1828 = vadd.f32 0.0, %v1827
      %v1829 = vpop.f32.mrf.mxu0
      %v1830 = vadd.f32 0.0, %v1829
      %1831 = vdwg.mxu0
      %v1834 = vunpack.c.l.b16 %v1043
      %v1835 = vunpack.c.l.b16 %v1044
      %v1836 = vpack.c.b16 %v1835, %v1834
      %1837 = vrot.lane.b32.xlu0 %v1836, 96
      %v1838 = vpop.permute.xlu0 %1837
      %v1840 = vsel %vm719, %v1836, 0
      %v1843 = vsel %vm719, %v1838, 0
      %1845 = vmatpush.bf16.xpose.msra.mxu0 0
      %1846 = vmatpush.bf16.xpose.msra.mxu0 0
      %1847 = vmatpush.bf16.xpose.msra.mxu0 0
      %1848 = vmatpush.bf16.xpose.msra.mxu0 0
      %1849 = vmatpush.bf16.xpose.msra.mxu0 0
      %1850 = vmatpush.bf16.xpose.msra.mxu0 0
      %1851 = vmatpush.bf16.xpose.msra.mxu0 0
      %1852 = vmatpush.bf16.xpose.msra.mxu0 %v1843
      %1853 = vmatmul.bf16.gmra.mxu0 %v1840
      %v1854 = vpop.f32.mrf.mxu0
      %v1855 = vadd.f32 0.0, %v1854
      %v1856 = vpop.f32.mrf.mxu0
      %v1857 = vadd.f32 0.0, %v1856
      %1858 = vdwg.mxu0
      %v1861 = vunpack.c.l.b16 %v1045
      %v1862 = vunpack.c.l.b16 %v1046
      %v1863 = vpack.c.b16 %v1862, %v1861
      %1864 = vrot.lane.b32.xlu0 %v1863, 96
      %v1865 = vpop.permute.xlu0 %1864
      %v1867 = vsel %vm719, %v1863, 0
      %v1870 = vsel %vm719, %v1865, 0
      %1872 = vmatpush.bf16.xpose.msra.mxu0 0
      %1873 = vmatpush.bf16.xpose.msra.mxu0 0
      %1874 = vmatpush.bf16.xpose.msra.mxu0 0
      %1875 = vmatpush.bf16.xpose.msra.mxu0 0
      %1876 = vmatpush.bf16.xpose.msra.mxu0 0
      %1877 = vmatpush.bf16.xpose.msra.mxu0 0
      %1878 = vmatpush.bf16.xpose.msra.mxu0 0
      %1879 = vmatpush.bf16.xpose.msra.mxu0 %v1870
      %1880 = vmatmul.bf16.gmra.mxu0 %v1867
      %v1881 = vpop.f32.mrf.mxu0
      %v1882 = vadd.f32 0.0, %v1881
      %v1883 = vpop.f32.mrf.mxu0
      %v1884 = vadd.f32 0.0, %v1883
      %1885 = vdwg.mxu0
      %v1888 = vunpack.c.l.b16 %v1047
      %v1889 = vunpack.c.l.b16 %v1048
      %v1890 = vpack.c.b16 %v1889, %v1888
      %1891 = vrot.lane.b32.xlu0 %v1890, 96
      %v1892 = vpop.permute.xlu0 %1891
      %v1894 = vsel %vm719, %v1890, 0
      %v1897 = vsel %vm719, %v1892, 0
      %1899 = vmatpush.bf16.xpose.msra.mxu0 0
      %1900 = vmatpush.bf16.xpose.msra.mxu0 0
      %1901 = vmatpush.bf16.xpose.msra.mxu0 0
      %1902 = vmatpush.bf16.xpose.msra.mxu0 0
      %1903 = vmatpush.bf16.xpose.msra.mxu0 0
      %1904 = vmatpush.bf16.xpose.msra.mxu0 0
      %1905 = vmatpush.bf16.xpose.msra.mxu0 0
      %1906 = vmatpush.bf16.xpose.msra.mxu0 %v1897
      %1907 = vmatmul.bf16.gmra.mxu0 %v1894
      %v1908 = vpop.f32.mrf.mxu0
      %v1909 = vadd.f32 0.0, %v1908
      %v1910 = vpop.f32.mrf.mxu0
      %v1911 = vadd.f32 0.0, %v1910
      %1912 = vdwg.mxu0
      %v1913 = vmul.f32 %v1072, 0.17677669
      %v1914 = vmul.f32 %v1074, 0.17677669
      %v1915 = vmul.f32 %v1099, 0.17677669
      %v1916 = vmul.f32 %v1101, 0.17677669
      %v1917 = vmul.f32 %v1126, 0.17677669
      %v1918 = vmul.f32 %v1128, 0.17677669
      %v1919 = vmul.f32 %v1153, 0.17677669
      %v1920 = vmul.f32 %v1155, 0.17677669
      %v1921 = vmul.f32 %v1180, 0.17677669
      %v1922 = vmul.f32 %v1182, 0.17677669
      %v1923 = vmul.f32 %v1207, 0.17677669
      %v1924 = vmul.f32 %v1209, 0.17677669
      %v1925 = vmul.f32 %v1234, 0.17677669
      %v1926 = vmul.f32 %v1236, 0.17677669
      %v1927 = vmul.f32 %v1261, 0.17677669
      %v1928 = vmul.f32 %v1263, 0.17677669
      %v1929 = vmul.f32 %v1288, 0.17677669
      %v1930 = vmul.f32 %v1290, 0.17677669
      %v1931 = vmul.f32 %v1315, 0.17677669
      %v1932 = vmul.f32 %v1317, 0.17677669
      %v1933 = vmul.f32 %v1342, 0.17677669
      %v1934 = vmul.f32 %v1344, 0.17677669
      %v1935 = vmul.f32 %v1369, 0.17677669
      %v1936 = vmul.f32 %v1371, 0.17677669
      %v1937 = vmul.f32 %v1396, 0.17677669
      %v1938 = vmul.f32 %v1398, 0.17677669
      %v1939 = vmul.f32 %v1423, 0.17677669
      %v1940 = vmul.f32 %v1425, 0.17677669
      %v1941 = vmul.f32 %v1450, 0.17677669
      %v1942 = vmul.f32 %v1452, 0.17677669
      %v1943 = vmul.f32 %v1477, 0.17677669
      %v1944 = vmul.f32 %v1479, 0.17677669
      %v1945 = vmul.f32 %v1504, 0.17677669
      %v1946 = vmul.f32 %v1506, 0.17677669
      %v1947 = vmul.f32 %v1531, 0.17677669
      %v1948 = vmul.f32 %v1533, 0.17677669
      %v1949 = vmul.f32 %v1558, 0.17677669
      %v1950 = vmul.f32 %v1560, 0.17677669
      %v1951 = vmul.f32 %v1585, 0.17677669
      %v1952 = vmul.f32 %v1587, 0.17677669
      %v1953 = vmul.f32 %v1612, 0.17677669
      %v1954 = vmul.f32 %v1614, 0.17677669
      %v1955 = vmul.f32 %v1639, 0.17677669
      %v1956 = vmul.f32 %v1641, 0.17677669
      %v1957 = vmul.f32 %v1666, 0.17677669
      %v1958 = vmul.f32 %v1668, 0.17677669
      %v1959 = vmul.f32 %v1693, 0.17677669
      %v1960 = vmul.f32 %v1695, 0.17677669
      %v1961 = vmul.f32 %v1720, 0.17677669
      %v1962 = vmul.f32 %v1722, 0.17677669
      %v1963 = vmul.f32 %v1747, 0.17677669
      %v1964 = vmul.f32 %v1749, 0.17677669
      %v1965 = vmul.f32 %v1774, 0.17677669
      %v1966 = vmul.f32 %v1776, 0.17677669
      %v1967 = vmul.f32 %v1801, 0.17677669
      %v1968 = vmul.f32 %v1803, 0.17677669
      %v1969 = vmul.f32 %v1828, 0.17677669
      %v1970 = vmul.f32 %v1830, 0.17677669
      %v1971 = vmul.f32 %v1855, 0.17677669
      %v1972 = vmul.f32 %v1857, 0.17677669
      %v1973 = vmul.f32 %v1882, 0.17677669
      %v1974 = vmul.f32 %v1884, 0.17677669
      %v1975 = vmul.f32 %v1909, 0.17677669
      %v1976 = vmul.f32 %v1911, 0.17677669
      %v1977 = vadd.f32 %v1913, %v344
      %v1978 = vadd.f32 %v1914, %v344
      %v1979 = vadd.f32 %v1915, %v344
      %v1980 = vadd.f32 %v1916, %v344
      %v1981 = vadd.f32 %v1917, %v344
      %v1982 = vadd.f32 %v1918, %v344
      %v1983 = vadd.f32 %v1919, %v344
      %v1984 = vadd.f32 %v1920, %v344
      %v1985 = vadd.f32 %v1921, %v344
      %v1986 = vadd.f32 %v1922, %v344
      %v1987 = vadd.f32 %v1923, %v344
      %v1988 = vadd.f32 %v1924, %v344
      %v1989 = vadd.f32 %v1925, %v344
      %v1990 = vadd.f32 %v1926, %v344
      %v1991 = vadd.f32 %v1927, %v344
      %v1992 = vadd.f32 %v1928, %v344
      %v1993 = vadd.f32 %v1929, %v344
      %v1994 = vadd.f32 %v1930, %v344
      %v1995 = vadd.f32 %v1931, %v344
      %v1996 = vadd.f32 %v1932, %v344
      %v1997 = vadd.f32 %v1933, %v344
      %v1998 = vadd.f32 %v1934, %v344
      %v1999 = vadd.f32 %v1935, %v344
      %v2000 = vadd.f32 %v1936, %v344
      %v2001 = vadd.f32 %v1937, %v344
      %v2002 = vadd.f32 %v1938, %v344
      %v2003 = vadd.f32 %v1939, %v344
      %v2004 = vadd.f32 %v1940, %v344
      %v2005 = vadd.f32 %v1941, %v344
      %v2006 = vadd.f32 %v1942, %v344
      %v2007 = vadd.f32 %v1943, %v344
      %v2008 = vadd.f32 %v1944, %v344
      %v2009 = vadd.f32 %v1945, %v344
      %v2010 = vadd.f32 %v1946, %v344
      %v2011 = vadd.f32 %v1947, %v344
      %v2012 = vadd.f32 %v1948, %v344
      %v2013 = vadd.f32 %v1949, %v344
      %v2014 = vadd.f32 %v1950, %v344
      %v2015 = vadd.f32 %v1951, %v344
      %v2016 = vadd.f32 %v1952, %v344
      %v2017 = vadd.f32 %v1953, %v344
      %v2018 = vadd.f32 %v1954, %v344
      %v2019 = vadd.f32 %v1955, %v344
      %v2020 = vadd.f32 %v1956, %v344
      %v2021 = vadd.f32 %v1957, %v344
      %v2022 = vadd.f32 %v1958, %v344
      %v2023 = vadd.f32 %v1959, %v344
      %v2024 = vadd.f32 %v1960, %v344
      %v2025 = vadd.f32 %v1961, %v344
      %v2026 = vadd.f32 %v1962, %v344
      %v2027 = vadd.f32 %v1963, %v344
      %v2028 = vadd.f32 %v1964, %v344
      %v2029 = vadd.f32 %v1965, %v344
      %v2030 = vadd.f32 %v1966, %v344
      %v2031 = vadd.f32 %v1967, %v344
      %v2032 = vadd.f32 %v1968, %v344
      %v2033 = vadd.f32 %v1969, %v344
      %v2034 = vadd.f32 %v1970, %v344
      %v2035 = vadd.f32 %v1971, %v344
      %v2036 = vadd.f32 %v1972, %v344
      %v2037 = vadd.f32 %v1973, %v344
      %v2038 = vadd.f32 %v1974, %v344
      %v2039 = vadd.f32 %v1975, %v344
      %v2040 = vadd.f32 %v1976, %v344
      %v2041 = vsel %vm440, %v1977, -inf
      %2042 = vmax.xlane.f32.xlu0 %v2041
      %v2043 = vpop.xlane.xlu0 %2042
      %v2044 = vsel %vm440, %v1978, -inf
      %2045 = vmax.xlane.f32.xlu0 %v2044
      %v2046 = vpop.xlane.xlu0 %2045
      %v2047 = vsel %vm440, %v1979, -inf
      %2048 = vmax.xlane.f32.xlu0 %v2047
      %v2049 = vpop.xlane.xlu0 %2048
      %v2050 = vsel %vm440, %v1980, -inf
      %2051 = vmax.xlane.f32.xlu0 %v2050
      %v2052 = vpop.xlane.xlu0 %2051
      %v2053 = vsel %vm440, %v1981, -inf
      %2054 = vmax.xlane.f32.xlu0 %v2053
      %v2055 = vpop.xlane.xlu0 %2054
      %v2056 = vsel %vm440, %v1982, -inf
      %2057 = vmax.xlane.f32.xlu0 %v2056
      %v2058 = vpop.xlane.xlu0 %2057
      %v2059 = vsel %vm440, %v1983, -inf
      %2060 = vmax.xlane.f32.xlu0 %v2059
      %v2061 = vpop.xlane.xlu0 %2060
      %v2062 = vsel %vm440, %v1984, -inf
      %2063 = vmax.xlane.f32.xlu0 %v2062
      %v2064 = vpop.xlane.xlu0 %2063
      %v2065 = vsel %vm440, %v1985, -inf
      %2066 = vmax.xlane.f32.xlu0 %v2065
      %v2067 = vpop.xlane.xlu0 %2066
      %v2068 = vsel %vm440, %v1986, -inf
      %2069 = vmax.xlane.f32.xlu0 %v2068
      %v2070 = vpop.xlane.xlu0 %2069
      %v2071 = vsel %vm440, %v1987, -inf
      %2072 = vmax.xlane.f32.xlu0 %v2071
      %v2073 = vpop.xlane.xlu0 %2072
      %v2074 = vsel %vm440, %v1988, -inf
      %2075 = vmax.xlane.f32.xlu0 %v2074
      %v2076 = vpop.xlane.xlu0 %2075
      %v2077 = vsel %vm440, %v1989, -inf
      %2078 = vmax.xlane.f32.xlu0 %v2077
      %v2079 = vpop.xlane.xlu0 %2078
      %v2080 = vsel %vm440, %v1990, -inf
      %2081 = vmax.xlane.f32.xlu0 %v2080
      %v2082 = vpop.xlane.xlu0 %2081
      %v2083 = vsel %vm440, %v1991, -inf
      %2084 = vmax.xlane.f32.xlu0 %v2083
      %v2085 = vpop.xlane.xlu0 %2084
      %v2086 = vsel %vm440, %v1992, -inf
      %2087 = vmax.xlane.f32.xlu0 %v2086
      %v2088 = vpop.xlane.xlu0 %2087
      %v2089 = vsel %vm440, %v1993, -inf
      %2090 = vmax.xlane.f32.xlu0 %v2089
      %v2091 = vpop.xlane.xlu0 %2090
      %v2092 = vsel %vm440, %v1994, -inf
      %2093 = vmax.xlane.f32.xlu0 %v2092
      %v2094 = vpop.xlane.xlu0 %2093
      %v2095 = vsel %vm440, %v1995, -inf
      %2096 = vmax.xlane.f32.xlu0 %v2095
      %v2097 = vpop.xlane.xlu0 %2096
      %v2098 = vsel %vm440, %v1996, -inf
      %2099 = vmax.xlane.f32.xlu0 %v2098
      %v2100 = vpop.xlane.xlu0 %2099
      %v2101 = vsel %vm440, %v1997, -inf
      %2102 = vmax.xlane.f32.xlu0 %v2101
      %v2103 = vpop.xlane.xlu0 %2102
      %v2104 = vsel %vm440, %v1998, -inf
      %2105 = vmax.xlane.f32.xlu0 %v2104
      %v2106 = vpop.xlane.xlu0 %2105
      %v2107 = vsel %vm440, %v1999, -inf
      %2108 = vmax.xlane.f32.xlu0 %v2107
      %v2109 = vpop.xlane.xlu0 %2108
      %v2110 = vsel %vm440, %v2000, -inf
      %2111 = vmax.xlane.f32.xlu0 %v2110
      %v2112 = vpop.xlane.xlu0 %2111
      %v2113 = vsel %vm440, %v2001, -inf
      %2114 = vmax.xlane.f32.xlu0 %v2113
      %v2115 = vpop.xlane.xlu0 %2114
      %v2116 = vsel %vm440, %v2002, -inf
      %2117 = vmax.xlane.f32.xlu0 %v2116
      %v2118 = vpop.xlane.xlu0 %2117
      %v2119 = vsel %vm440, %v2003, -inf
      %2120 = vmax.xlane.f32.xlu0 %v2119
      %v2121 = vpop.xlane.xlu0 %2120
      %v2122 = vsel %vm440, %v2004, -inf
      %2123 = vmax.xlane.f32.xlu0 %v2122
      %v2124 = vpop.xlane.xlu0 %2123
      %v2125 = vsel %vm440, %v2005, -inf
      %2126 = vmax.xlane.f32.xlu0 %v2125
      %v2127 = vpop.xlane.xlu0 %2126
      %v2128 = vsel %vm440, %v2006, -inf
      %2129 = vmax.xlane.f32.xlu0 %v2128
      %v2130 = vpop.xlane.xlu0 %2129
      %v2131 = vsel %vm440, %v2007, -inf
      %2132 = vmax.xlane.f32.xlu0 %v2131
      %v2133 = vpop.xlane.xlu0 %2132
      %v2134 = vsel %vm440, %v2008, -inf
      %2135 = vmax.xlane.f32.xlu0 %v2134
      %v2136 = vpop.xlane.xlu0 %2135
      %v2137 = vsel %vm440, %v2009, -inf
      %2138 = vmax.xlane.f32.xlu0 %v2137
      %v2139 = vpop.xlane.xlu0 %2138
      %v2140 = vsel %vm440, %v2010, -inf
      %2141 = vmax.xlane.f32.xlu0 %v2140
      %v2142 = vpop.xlane.xlu0 %2141
      %v2143 = vsel %vm440, %v2011, -inf
      %2144 = vmax.xlane.f32.xlu0 %v2143
      %v2145 = vpop.xlane.xlu0 %2144
      %v2146 = vsel %vm440, %v2012, -inf
      %2147 = vmax.xlane.f32.xlu0 %v2146
      %v2148 = vpop.xlane.xlu0 %2147
      %v2149 = vsel %vm440, %v2013, -inf
      %2150 = vmax.xlane.f32.xlu0 %v2149
      %v2151 = vpop.xlane.xlu0 %2150
      %v2152 = vsel %vm440, %v2014, -inf
      %2153 = vmax.xlane.f32.xlu0 %v2152
      %v2154 = vpop.xlane.xlu0 %2153
      %v2155 = vsel %vm440, %v2015, -inf
      %2156 = vmax.xlane.f32.xlu0 %v2155
      %v2157 = vpop.xlane.xlu0 %2156
      %v2158 = vsel %vm440, %v2016, -inf
      %2159 = vmax.xlane.f32.xlu0 %v2158
      %v2160 = vpop.xlane.xlu0 %2159
      %v2161 = vsel %vm440, %v2017, -inf
      %2162 = vmax.xlane.f32.xlu0 %v2161
      %v2163 = vpop.xlane.xlu0 %2162
      %v2164 = vsel %vm440, %v2018, -inf
      %2165 = vmax.xlane.f32.xlu0 %v2164
      %v2166 = vpop.xlane.xlu0 %2165
      %v2167 = vsel %vm440, %v2019, -inf
      %2168 = vmax.xlane.f32.xlu0 %v2167
      %v2169 = vpop.xlane.xlu0 %2168
      %v2170 = vsel %vm440, %v2020, -inf
      %2171 = vmax.xlane.f32.xlu0 %v2170
      %v2172 = vpop.xlane.xlu0 %2171
      %v2173 = vsel %vm440, %v2021, -inf
      %2174 = vmax.xlane.f32.xlu0 %v2173
      %v2175 = vpop.xlane.xlu0 %2174
      %v2176 = vsel %vm440, %v2022, -inf
      %2177 = vmax.xlane.f32.xlu0 %v2176
      %v2178 = vpop.xlane.xlu0 %2177
      %v2179 = vsel %vm440, %v2023, -inf
      %2180 = vmax.xlane.f32.xlu0 %v2179
      %v2181 = vpop.xlane.xlu0 %2180
      %v2182 = vsel %vm440, %v2024, -inf
      %2183 = vmax.xlane.f32.xlu0 %v2182
      %v2184 = vpop.xlane.xlu0 %2183
      %v2185 = vsel %vm440, %v2025, -inf
      %2186 = vmax.xlane.f32.xlu0 %v2185
      %v2187 = vpop.xlane.xlu0 %2186
      %v2188 = vsel %vm440, %v2026, -inf
      %2189 = vmax.xlane.f32.xlu0 %v2188
      %v2190 = vpop.xlane.xlu0 %2189
      %v2191 = vsel %vm440, %v2027, -inf
      %2192 = vmax.xlane.f32.xlu0 %v2191
      %v2193 = vpop.xlane.xlu0 %2192
      %v2194 = vsel %vm440, %v2028, -inf
      %2195 = vmax.xlane.f32.xlu0 %v2194
      %v2196 = vpop.xlane.xlu0 %2195
      %v2197 = vsel %vm440, %v2029, -inf
      %2198 = vmax.xlane.f32.xlu0 %v2197
      %v2199 = vpop.xlane.xlu0 %2198
      %v2200 = vsel %vm440, %v2030, -inf
      %2201 = vmax.xlane.f32.xlu0 %v2200
      %v2202 = vpop.xlane.xlu0 %2201
      %v2203 = vsel %vm440, %v2031, -inf
      %2204 = vmax.xlane.f32.xlu0 %v2203
      %v2205 = vpop.xlane.xlu0 %2204
      %v2206 = vsel %vm440, %v2032, -inf
      %2207 = vmax.xlane.f32.xlu0 %v2206
      %v2208 = vpop.xlane.xlu0 %2207
      %v2209 = vsel %vm440, %v2033, -inf
      %2210 = vmax.xlane.f32.xlu0 %v2209
      %v2211 = vpop.xlane.xlu0 %2210
      %v2212 = vsel %vm440, %v2034, -inf
      %2213 = vmax.xlane.f32.xlu0 %v2212
      %v2214 = vpop.xlane.xlu0 %2213
      %v2215 = vsel %vm440, %v2035, -inf
      %2216 = vmax.xlane.f32.xlu0 %v2215
      %v2217 = vpop.xlane.xlu0 %2216
      %v2218 = vsel %vm440, %v2036, -inf
      %2219 = vmax.xlane.f32.xlu0 %v2218
      %v2220 = vpop.xlane.xlu0 %2219
      %v2221 = vsel %vm440, %v2037, -inf
      %2222 = vmax.xlane.f32.xlu0 %v2221
      %v2223 = vpop.xlane.xlu0 %2222
      %v2224 = vsel %vm440, %v2038, -inf
      %2225 = vmax.xlane.f32.xlu0 %v2224
      %v2226 = vpop.xlane.xlu0 %2225
      %v2227 = vsel %vm440, %v2039, -inf
      %2228 = vmax.xlane.f32.xlu0 %v2227
      %v2229 = vpop.xlane.xlu0 %2228
      %v2230 = vsel %vm440, %v2040, -inf
      %2231 = vmax.xlane.f32.xlu0 %v2230
      %v2232 = vpop.xlane.xlu0 %2231
      %v2233 = vsub.f32 %v1977, %v2043
      %v2234 = vsub.f32 %v1978, %v2046
      %v2235 = vsub.f32 %v1979, %v2049
      %v2236 = vsub.f32 %v1980, %v2052
      %v2237 = vsub.f32 %v1981, %v2055
      %v2238 = vsub.f32 %v1982, %v2058
      %v2239 = vsub.f32 %v1983, %v2061
      %v2240 = vsub.f32 %v1984, %v2064
      %v2241 = vsub.f32 %v1985, %v2067
      %v2242 = vsub.f32 %v1986, %v2070
      %v2243 = vsub.f32 %v1987, %v2073
      %v2244 = vsub.f32 %v1988, %v2076
      %v2245 = vsub.f32 %v1989, %v2079
      %v2246 = vsub.f32 %v1990, %v2082
      %v2247 = vsub.f32 %v1991, %v2085
      %v2248 = vsub.f32 %v1992, %v2088
      %v2249 = vsub.f32 %v1993, %v2091
      %v2250 = vsub.f32 %v1994, %v2094
      %v2251 = vsub.f32 %v1995, %v2097
      %v2252 = vsub.f32 %v1996, %v2100
      %v2253 = vsub.f32 %v1997, %v2103
      %v2254 = vsub.f32 %v1998, %v2106
      %v2255 = vsub.f32 %v1999, %v2109
      %v2256 = vsub.f32 %v2000, %v2112
      %v2257 = vsub.f32 %v2001, %v2115
      %v2258 = vsub.f32 %v2002, %v2118
      %v2259 = vsub.f32 %v2003, %v2121
      %v2260 = vsub.f32 %v2004, %v2124
      %v2261 = vsub.f32 %v2005, %v2127
      %v2262 = vsub.f32 %v2006, %v2130
      %v2263 = vsub.f32 %v2007, %v2133
      %v2264 = vsub.f32 %v2008, %v2136
      %v2265 = vsub.f32 %v2009, %v2139
      %v2266 = vsub.f32 %v2010, %v2142
      %v2267 = vsub.f32 %v2011, %v2145
      %v2268 = vsub.f32 %v2012, %v2148
      %v2269 = vsub.f32 %v2013, %v2151
      %v2270 = vsub.f32 %v2014, %v2154
      %v2271 = vsub.f32 %v2015, %v2157
      %v2272 = vsub.f32 %v2016, %v2160
      %v2273 = vsub.f32 %v2017, %v2163
      %v2274 = vsub.f32 %v2018, %v2166
      %v2275 = vsub.f32 %v2019, %v2169
      %v2276 = vsub.f32 %v2020, %v2172
      %v2277 = vsub.f32 %v2021, %v2175
      %v2278 = vsub.f32 %v2022, %v2178
      %v2279 = vsub.f32 %v2023, %v2181
      %v2280 = vsub.f32 %v2024, %v2184
      %v2281 = vsub.f32 %v2025, %v2187
      %v2282 = vsub.f32 %v2026, %v2190
      %v2283 = vsub.f32 %v2027, %v2193
      %v2284 = vsub.f32 %v2028, %v2196
      %v2285 = vsub.f32 %v2029, %v2199
      %v2286 = vsub.f32 %v2030, %v2202
      %v2287 = vsub.f32 %v2031, %v2205
      %v2288 = vsub.f32 %v2032, %v2208
      %v2289 = vsub.f32 %v2033, %v2211
      %v2290 = vsub.f32 %v2034, %v2214
      %v2291 = vsub.f32 %v2035, %v2217
      %v2292 = vsub.f32 %v2036, %v2220
      %v2293 = vsub.f32 %v2037, %v2223
      %v2294 = vsub.f32 %v2038, %v2226
      %v2295 = vsub.f32 %v2039, %v2229
      %v2296 = vsub.f32 %v2040, %v2232
      %v2297 = vmul.f32 %v2233, 1.442695
      %v2298 = vpow.pop %v2297
      %v2299 = vmul.f32 %v2234, 1.442695
      %v2300 = vpow.pop %v2299
      %v2301 = vmul.f32 %v2235, 1.442695
      %v2302 = vpow.pop %v2301
      %v2303 = vmul.f32 %v2236, 1.442695
      %v2304 = vpow.pop %v2303
      %v2305 = vmul.f32 %v2237, 1.442695
      %v2306 = vpow.pop %v2305
      %v2307 = vmul.f32 %v2238, 1.442695
      %v2308 = vpow.pop %v2307
      %v2309 = vmul.f32 %v2239, 1.442695
      %v2310 = vpow.pop %v2309
      %v2311 = vmul.f32 %v2240, 1.442695
      %v2312 = vpow.pop %v2311
      %v2313 = vmul.f32 %v2241, 1.442695
      %v2314 = vpow.pop %v2313
      %v2315 = vmul.f32 %v2242, 1.442695
      %v2316 = vpow.pop %v2315
      %v2317 = vmul.f32 %v2243, 1.442695
      %v2318 = vpow.pop %v2317
      %v2319 = vmul.f32 %v2244, 1.442695
      %v2320 = vpow.pop %v2319
      %v2321 = vmul.f32 %v2245, 1.442695
      %v2322 = vpow.pop %v2321
      %v2323 = vmul.f32 %v2246, 1.442695
      %v2324 = vpow.pop %v2323
      %v2325 = vmul.f32 %v2247, 1.442695
      %v2326 = vpow.pop %v2325
      %v2327 = vmul.f32 %v2248, 1.442695
      %v2328 = vpow.pop %v2327
      %v2329 = vmul.f32 %v2249, 1.442695
      %v2330 = vpow.pop %v2329
      %v2331 = vmul.f32 %v2250, 1.442695
      %v2332 = vpow.pop %v2331
      %v2333 = vmul.f32 %v2251, 1.442695
      %v2334 = vpow.pop %v2333
      %v2335 = vmul.f32 %v2252, 1.442695
      %v2336 = vpow.pop %v2335
      %v2337 = vmul.f32 %v2253, 1.442695
      %v2338 = vpow.pop %v2337
      %v2339 = vmul.f32 %v2254, 1.442695
      %v2340 = vpow.pop %v2339
      %v2341 = vmul.f32 %v2255, 1.442695
      %v2342 = vpow.pop %v2341
      %v2343 = vmul.f32 %v2256, 1.442695
      %v2344 = vpow.pop %v2343
      %v2345 = vmul.f32 %v2257, 1.442695
      %v2346 = vpow.pop %v2345
      %v2347 = vmul.f32 %v2258, 1.442695
      %v2348 = vpow.pop %v2347
      %v2349 = vmul.f32 %v2259, 1.442695
      %v2350 = vpow.pop %v2349
      %v2351 = vmul.f32 %v2260, 1.442695
      %v2352 = vpow.pop %v2351
      %v2353 = vmul.f32 %v2261, 1.442695
      %v2354 = vpow.pop %v2353
      %v2355 = vmul.f32 %v2262, 1.442695
      %v2356 = vpow.pop %v2355
      %v2357 = vmul.f32 %v2263, 1.442695
      %v2358 = vpow.pop %v2357
      %v2359 = vmul.f32 %v2264, 1.442695
      %v2360 = vpow.pop %v2359
      %v2361 = vmul.f32 %v2265, 1.442695
      %v2362 = vpow.pop %v2361
      %v2363 = vmul.f32 %v2266, 1.442695
      %v2364 = vpow.pop %v2363
      %v2365 = vmul.f32 %v2267, 1.442695
      %v2366 = vpow.pop %v2365
      %v2367 = vmul.f32 %v2268, 1.442695
      %v2368 = vpow.pop %v2367
      %v2369 = vmul.f32 %v2269, 1.442695
      %v2370 = vpow.pop %v2369
      %v2371 = vmul.f32 %v2270, 1.442695
      %v2372 = vpow.pop %v2371
      %v2373 = vmul.f32 %v2271, 1.442695
      %v2374 = vpow.pop %v2373
      %v2375 = vmul.f32 %v2272, 1.442695
      %v2376 = vpow.pop %v2375
      %v2377 = vmul.f32 %v2273, 1.442695
      %v2378 = vpow.pop %v2377
      %v2379 = vmul.f32 %v2274, 1.442695
      %v2380 = vpow.pop %v2379
      %v2381 = vmul.f32 %v2275, 1.442695
      %v2382 = vpow.pop %v2381
      %v2383 = vmul.f32 %v2276, 1.442695
      %v2384 = vpow.pop %v2383
      %v2385 = vmul.f32 %v2277, 1.442695
      %v2386 = vpow.pop %v2385
      %v2387 = vmul.f32 %v2278, 1.442695
      %v2388 = vpow.pop %v2387
      %v2389 = vmul.f32 %v2279, 1.442695
      %v2390 = vpow.pop %v2389
      %v2391 = vmul.f32 %v2280, 1.442695
      %v2392 = vpow.pop %v2391
      %v2393 = vmul.f32 %v2281, 1.442695
      %v2394 = vpow.pop %v2393
      %v2395 = vmul.f32 %v2282, 1.442695
      %v2396 = vpow.pop %v2395
      %v2397 = vmul.f32 %v2283, 1.442695
      %v2398 = vpow.pop %v2397
      %v2399 = vmul.f32 %v2284, 1.442695
      %v2400 = vpow.pop %v2399
      %v2401 = vmul.f32 %v2285, 1.442695
      %v2402 = vpow.pop %v2401
      %v2403 = vmul.f32 %v2286, 1.442695
      %v2404 = vpow.pop %v2403
      %v2405 = vmul.f32 %v2287, 1.442695
      %v2406 = vpow.pop %v2405
      %v2407 = vmul.f32 %v2288, 1.442695
      %v2408 = vpow.pop %v2407
      %v2409 = vmul.f32 %v2289, 1.442695
      %v2410 = vpow.pop %v2409
      %v2411 = vmul.f32 %v2290, 1.442695
      %v2412 = vpow.pop %v2411
      %v2413 = vmul.f32 %v2291, 1.442695
      %v2414 = vpow.pop %v2413
      %v2415 = vmul.f32 %v2292, 1.442695
      %v2416 = vpow.pop %v2415
      %v2417 = vmul.f32 %v2293, 1.442695
      %v2418 = vpow.pop %v2417
      %v2419 = vmul.f32 %v2294, 1.442695
      %v2420 = vpow.pop %v2419
      %v2421 = vmul.f32 %v2295, 1.442695
      %v2422 = vpow.pop %v2421
      %v2423 = vmul.f32 %v2296, 1.442695
      %v2424 = vpow.pop %v2423
      %v2425 = vsel %vm440, %v2298, 0.0
      %2426 = vadd.xlane.f32.xlu0 %v2425
      %v2427 = vpop.xlane.xlu0 %2426
      %v2428 = vsel %vm440, %v2300, 0.0
      %2429 = vadd.xlane.f32.xlu0 %v2428
      %v2430 = vpop.xlane.xlu0 %2429
      %v2431 = vsel %vm440, %v2302, 0.0
      %2432 = vadd.xlane.f32.xlu0 %v2431
      %v2433 = vpop.xlane.xlu0 %2432
      %v2434 = vsel %vm440, %v2304, 0.0
      %2435 = vadd.xlane.f32.xlu0 %v2434
      %v2436 = vpop.xlane.xlu0 %2435
      %v2437 = vsel %vm440, %v2306, 0.0
      %2438 = vadd.xlane.f32.xlu0 %v2437
      %v2439 = vpop.xlane.xlu0 %2438
      %v2440 = vsel %vm440, %v2308, 0.0
      %2441 = vadd.xlane.f32.xlu0 %v2440
      %v2442 = vpop.xlane.xlu0 %2441
      %v2443 = vsel %vm440, %v2310, 0.0
      %2444 = vadd.xlane.f32.xlu0 %v2443
      %v2445 = vpop.xlane.xlu0 %2444
      %v2446 = vsel %vm440, %v2312, 0.0
      %2447 = vadd.xlane.f32.xlu0 %v2446
      %v2448 = vpop.xlane.xlu0 %2447
      %v2449 = vsel %vm440, %v2314, 0.0
      %2450 = vadd.xlane.f32.xlu0 %v2449
      %v2451 = vpop.xlane.xlu0 %2450
      %v2452 = vsel %vm440, %v2316, 0.0
      %2453 = vadd.xlane.f32.xlu0 %v2452
      %v2454 = vpop.xlane.xlu0 %2453
      %v2455 = vsel %vm440, %v2318, 0.0
      %2456 = vadd.xlane.f32.xlu0 %v2455
      %v2457 = vpop.xlane.xlu0 %2456
      %v2458 = vsel %vm440, %v2320, 0.0
      %2459 = vadd.xlane.f32.xlu0 %v2458
      %v2460 = vpop.xlane.xlu0 %2459
      %v2461 = vsel %vm440, %v2322, 0.0
      %2462 = vadd.xlane.f32.xlu0 %v2461
      %v2463 = vpop.xlane.xlu0 %2462
      %v2464 = vsel %vm440, %v2324, 0.0
      %2465 = vadd.xlane.f32.xlu0 %v2464
      %v2466 = vpop.xlane.xlu0 %2465
      %v2467 = vsel %vm440, %v2326, 0.0
      %2468 = vadd.xlane.f32.xlu0 %v2467
      %v2469 = vpop.xlane.xlu0 %2468
      %v2470 = vsel %vm440, %v2328, 0.0
      %2471 = vadd.xlane.f32.xlu0 %v2470
      %v2472 = vpop.xlane.xlu0 %2471
      %v2473 = vsel %vm440, %v2330, 0.0
      %2474 = vadd.xlane.f32.xlu0 %v2473
      %v2475 = vpop.xlane.xlu0 %2474
      %v2476 = vsel %vm440, %v2332, 0.0
      %2477 = vadd.xlane.f32.xlu0 %v2476
      %v2478 = vpop.xlane.xlu0 %2477
      %v2479 = vsel %vm440, %v2334, 0.0
      %2480 = vadd.xlane.f32.xlu0 %v2479
      %v2481 = vpop.xlane.xlu0 %2480
      %v2482 = vsel %vm440, %v2336, 0.0
      %2483 = vadd.xlane.f32.xlu0 %v2482
      %v2484 = vpop.xlane.xlu0 %2483
      %v2485 = vsel %vm440, %v2338, 0.0
      %2486 = vadd.xlane.f32.xlu0 %v2485
      %v2487 = vpop.xlane.xlu0 %2486
      %v2488 = vsel %vm440, %v2340, 0.0
      %2489 = vadd.xlane.f32.xlu0 %v2488
      %v2490 = vpop.xlane.xlu0 %2489
      %v2491 = vsel %vm440, %v2342, 0.0
      %2492 = vadd.xlane.f32.xlu0 %v2491
      %v2493 = vpop.xlane.xlu0 %2492
      %v2494 = vsel %vm440, %v2344, 0.0
      %2495 = vadd.xlane.f32.xlu0 %v2494
      %v2496 = vpop.xlane.xlu0 %2495
      %v2497 = vsel %vm440, %v2346, 0.0
      %2498 = vadd.xlane.f32.xlu0 %v2497
      %v2499 = vpop.xlane.xlu0 %2498
      %v2500 = vsel %vm440, %v2348, 0.0
      %2501 = vadd.xlane.f32.xlu0 %v2500
      %v2502 = vpop.xlane.xlu0 %2501
      %v2503 = vsel %vm440, %v2350, 0.0
      %2504 = vadd.xlane.f32.xlu0 %v2503
      %v2505 = vpop.xlane.xlu0 %2504
      %v2506 = vsel %vm440, %v2352, 0.0
      %2507 = vadd.xlane.f32.xlu0 %v2506
      %v2508 = vpop.xlane.xlu0 %2507
      %v2509 = vsel %vm440, %v2354, 0.0
      %2510 = vadd.xlane.f32.xlu0 %v2509
      %v2511 = vpop.xlane.xlu0 %2510
      %v2512 = vsel %vm440, %v2356, 0.0
      %2513 = vadd.xlane.f32.xlu0 %v2512
      %v2514 = vpop.xlane.xlu0 %2513
      %v2515 = vsel %vm440, %v2358, 0.0
      %2516 = vadd.xlane.f32.xlu0 %v2515
      %v2517 = vpop.xlane.xlu0 %2516
      %v2518 = vsel %vm440, %v2360, 0.0
      %2519 = vadd.xlane.f32.xlu0 %v2518
      %v2520 = vpop.xlane.xlu0 %2519
      %v2521 = vsel %vm440, %v2362, 0.0
      %2522 = vadd.xlane.f32.xlu0 %v2521
      %v2523 = vpop.xlane.xlu0 %2522
      %v2524 = vsel %vm440, %v2364, 0.0
      %2525 = vadd.xlane.f32.xlu0 %v2524
      %v2526 = vpop.xlane.xlu0 %2525
      %v2527 = vsel %vm440, %v2366, 0.0
      %2528 = vadd.xlane.f32.xlu0 %v2527
      %v2529 = vpop.xlane.xlu0 %2528
      %v2530 = vsel %vm440, %v2368, 0.0
      %2531 = vadd.xlane.f32.xlu0 %v2530
      %v2532 = vpop.xlane.xlu0 %2531
      %v2533 = vsel %vm440, %v2370, 0.0
      %2534 = vadd.xlane.f32.xlu0 %v2533
      %v2535 = vpop.xlane.xlu0 %2534
      %v2536 = vsel %vm440, %v2372, 0.0
      %2537 = vadd.xlane.f32.xlu0 %v2536
      %v2538 = vpop.xlane.xlu0 %2537
      %v2539 = vsel %vm440, %v2374, 0.0
      %2540 = vadd.xlane.f32.xlu0 %v2539
      %v2541 = vpop.xlane.xlu0 %2540
      %v2542 = vsel %vm440, %v2376, 0.0
      %2543 = vadd.xlane.f32.xlu0 %v2542
      %v2544 = vpop.xlane.xlu0 %2543
      %v2545 = vsel %vm440, %v2378, 0.0
      %2546 = vadd.xlane.f32.xlu0 %v2545
      %v2547 = vpop.xlane.xlu0 %2546
      %v2548 = vsel %vm440, %v2380, 0.0
      %2549 = vadd.xlane.f32.xlu0 %v2548
      %v2550 = vpop.xlane.xlu0 %2549
      %v2551 = vsel %vm440, %v2382, 0.0
      %2552 = vadd.xlane.f32.xlu0 %v2551
      %v2553 = vpop.xlane.xlu0 %2552
      %v2554 = vsel %vm440, %v2384, 0.0
      %2555 = vadd.xlane.f32.xlu0 %v2554
      %v2556 = vpop.xlane.xlu0 %2555
      %v2557 = vsel %vm440, %v2386, 0.0
      %2558 = vadd.xlane.f32.xlu0 %v2557
      %v2559 = vpop.xlane.xlu0 %2558
      %v2560 = vsel %vm440, %v2388, 0.0
      %2561 = vadd.xlane.f32.xlu0 %v2560
      %v2562 = vpop.xlane.xlu0 %2561
      %v2563 = vsel %vm440, %v2390, 0.0
      %2564 = vadd.xlane.f32.xlu0 %v2563
      %v2565 = vpop.xlane.xlu0 %2564
      %v2566 = vsel %vm440, %v2392, 0.0
      %2567 = vadd.xlane.f32.xlu0 %v2566
      %v2568 = vpop.xlane.xlu0 %2567
      %v2569 = vsel %vm440, %v2394, 0.0
      %2570 = vadd.xlane.f32.xlu0 %v2569
      %v2571 = vpop.xlane.xlu0 %2570
      %v2572 = vsel %vm440, %v2396, 0.0
      %2573 = vadd.xlane.f32.xlu0 %v2572
      %v2574 = vpop.xlane.xlu0 %2573
      %v2575 = vsel %vm440, %v2398, 0.0
      %2576 = vadd.xlane.f32.xlu0 %v2575
      %v2577 = vpop.xlane.xlu0 %2576
      %v2578 = vsel %vm440, %v2400, 0.0
      %2579 = vadd.xlane.f32.xlu0 %v2578
      %v2580 = vpop.xlane.xlu0 %2579
      %v2581 = vsel %vm440, %v2402, 0.0
      %2582 = vadd.xlane.f32.xlu0 %v2581
      %v2583 = vpop.xlane.xlu0 %2582
      %v2584 = vsel %vm440, %v2404, 0.0
      %2585 = vadd.xlane.f32.xlu0 %v2584
      %v2586 = vpop.xlane.xlu0 %2585
      %v2587 = vsel %vm440, %v2406, 0.0
      %2588 = vadd.xlane.f32.xlu0 %v2587
      %v2589 = vpop.xlane.xlu0 %2588
      %v2590 = vsel %vm440, %v2408, 0.0
      %2591 = vadd.xlane.f32.xlu0 %v2590
      %v2592 = vpop.xlane.xlu0 %2591
      %v2593 = vsel %vm440, %v2410, 0.0
      %2594 = vadd.xlane.f32.xlu0 %v2593
      %v2595 = vpop.xlane.xlu0 %2594
      %v2596 = vsel %vm440, %v2412, 0.0
      %2597 = vadd.xlane.f32.xlu0 %v2596
      %v2598 = vpop.xlane.xlu0 %2597
      %v2599 = vsel %vm440, %v2414, 0.0
      %2600 = vadd.xlane.f32.xlu0 %v2599
      %v2601 = vpop.xlane.xlu0 %2600
      %v2602 = vsel %vm440, %v2416, 0.0
      %2603 = vadd.xlane.f32.xlu0 %v2602
      %v2604 = vpop.xlane.xlu0 %2603
      %v2605 = vsel %vm440, %v2418, 0.0
      %2606 = vadd.xlane.f32.xlu0 %v2605
      %v2607 = vpop.xlane.xlu0 %2606
      %v2608 = vsel %vm440, %v2420, 0.0
      %2609 = vadd.xlane.f32.xlu0 %v2608
      %v2610 = vpop.xlane.xlu0 %2609
      %v2611 = vsel %vm440, %v2422, 0.0
      %2612 = vadd.xlane.f32.xlu0 %v2611
      %v2613 = vpop.xlane.xlu0 %2612
      %v2614 = vsel %vm440, %v2424, 0.0
      %2615 = vadd.xlane.f32.xlu0 %v2614
      %v2616 = vpop.xlane.xlu0 %2615
      %v2617 = vrcp.pop %v2427
      %v2618 = vrcp.pop %v2430
      %v2619 = vrcp.pop %v2433
      %v2620 = vrcp.pop %v2436
      %v2621 = vrcp.pop %v2439
      %v2622 = vrcp.pop %v2442
      %v2623 = vrcp.pop %v2445
      %v2624 = vrcp.pop %v2448
      %v2625 = vrcp.pop %v2451
      %v2626 = vrcp.pop %v2454
      %v2627 = vrcp.pop %v2457
      %v2628 = vrcp.pop %v2460
      %v2629 = vrcp.pop %v2463
      %v2630 = vrcp.pop %v2466
      %v2631 = vrcp.pop %v2469
      %v2632 = vrcp.pop %v2472
      %v2633 = vrcp.pop %v2475
      %v2634 = vrcp.pop %v2478
      %v2635 = vrcp.pop %v2481
      %v2636 = vrcp.pop %v2484
      %v2637 = vrcp.pop %v2487
      %v2638 = vrcp.pop %v2490
      %v2639 = vrcp.pop %v2493
      %v2640 = vrcp.pop %v2496
      %v2641 = vrcp.pop %v2499
      %v2642 = vrcp.pop %v2502
      %v2643 = vrcp.pop %v2505
      %v2644 = vrcp.pop %v2508
      %v2645 = vrcp.pop %v2511
      %v2646 = vrcp.pop %v2514
      %v2647 = vrcp.pop %v2517
      %v2648 = vrcp.pop %v2520
      %v2649 = vrcp.pop %v2523
      %v2650 = vrcp.pop %v2526
      %v2651 = vrcp.pop %v2529
      %v2652 = vrcp.pop %v2532
      %v2653 = vrcp.pop %v2535
      %v2654 = vrcp.pop %v2538
      %v2655 = vrcp.pop %v2541
      %v2656 = vrcp.pop %v2544
      %v2657 = vrcp.pop %v2547
      %v2658 = vrcp.pop %v2550
      %v2659 = vrcp.pop %v2553
      %v2660 = vrcp.pop %v2556
      %v2661 = vrcp.pop %v2559
      %v2662 = vrcp.pop %v2562
      %v2663 = vrcp.pop %v2565
      %v2664 = vrcp.pop %v2568
      %v2665 = vrcp.pop %v2571
      %v2666 = vrcp.pop %v2574
      %v2667 = vrcp.pop %v2577
      %v2668 = vrcp.pop %v2580
      %v2669 = vrcp.pop %v2583
      %v2670 = vrcp.pop %v2586
      %v2671 = vrcp.pop %v2589
      %v2672 = vrcp.pop %v2592
      %v2673 = vrcp.pop %v2595
      %v2674 = vrcp.pop %v2598
      %v2675 = vrcp.pop %v2601
      %v2676 = vrcp.pop %v2604
      %v2677 = vrcp.pop %v2607
      %v2678 = vrcp.pop %v2610
      %v2679 = vrcp.pop %v2613
      %v2680 = vrcp.pop %v2616
      %v2681 = vmul.f32 %v2298, %v2617
      %v2682 = vmul.f32 %v2300, %v2618
      %v2683 = vmul.f32 %v2302, %v2619
      %v2684 = vmul.f32 %v2304, %v2620
      %v2685 = vmul.f32 %v2306, %v2621
      %v2686 = vmul.f32 %v2308, %v2622
      %v2687 = vmul.f32 %v2310, %v2623
      %v2688 = vmul.f32 %v2312, %v2624
      %v2689 = vmul.f32 %v2314, %v2625
      %v2690 = vmul.f32 %v2316, %v2626
      %v2691 = vmul.f32 %v2318, %v2627
      %v2692 = vmul.f32 %v2320, %v2628
      %v2693 = vmul.f32 %v2322, %v2629
      %v2694 = vmul.f32 %v2324, %v2630
      %v2695 = vmul.f32 %v2326, %v2631
      %v2696 = vmul.f32 %v2328, %v2632
      %v2697 = vmul.f32 %v2330, %v2633
      %v2698 = vmul.f32 %v2332, %v2634
      %v2699 = vmul.f32 %v2334, %v2635
      %v2700 = vmul.f32 %v2336, %v2636
      %v2701 = vmul.f32 %v2338, %v2637
      %v2702 = vmul.f32 %v2340, %v2638
      %v2703 = vmul.f32 %v2342, %v2639
      %v2704 = vmul.f32 %v2344, %v2640
      %v2705 = vmul.f32 %v2346, %v2641
      %v2706 = vmul.f32 %v2348, %v2642
      %v2707 = vmul.f32 %v2350, %v2643
      %v2708 = vmul.f32 %v2352, %v2644
      %v2709 = vmul.f32 %v2354, %v2645
      %v2710 = vmul.f32 %v2356, %v2646
      %v2711 = vmul.f32 %v2358, %v2647
      %v2712 = vmul.f32 %v2360, %v2648
      %v2713 = vmul.f32 %v2362, %v2649
      %v2714 = vmul.f32 %v2364, %v2650
      %v2715 = vmul.f32 %v2366, %v2651
      %v2716 = vmul.f32 %v2368, %v2652
      %v2717 = vmul.f32 %v2370, %v2653
      %v2718 = vmul.f32 %v2372, %v2654
      %v2719 = vmul.f32 %v2374, %v2655
      %v2720 = vmul.f32 %v2376, %v2656
      %v2721 = vmul.f32 %v2378, %v2657
      %v2722 = vmul.f32 %v2380, %v2658
      %v2723 = vmul.f32 %v2382, %v2659
      %v2724 = vmul.f32 %v2384, %v2660
      %v2725 = vmul.f32 %v2386, %v2661
      %v2726 = vmul.f32 %v2388, %v2662
      %v2727 = vmul.f32 %v2390, %v2663
      %v2728 = vmul.f32 %v2392, %v2664
      %v2729 = vmul.f32 %v2394, %v2665
      %v2730 = vmul.f32 %v2396, %v2666
      %v2731 = vmul.f32 %v2398, %v2667
      %v2732 = vmul.f32 %v2400, %v2668
      %v2733 = vmul.f32 %v2402, %v2669
      %v2734 = vmul.f32 %v2404, %v2670
      %v2735 = vmul.f32 %v2406, %v2671
      %v2736 = vmul.f32 %v2408, %v2672
      %v2737 = vmul.f32 %v2410, %v2673
      %v2738 = vmul.f32 %v2412, %v2674
      %v2739 = vmul.f32 %v2414, %v2675
      %v2740 = vmul.f32 %v2416, %v2676
      %v2741 = vmul.f32 %v2418, %v2677
      %v2742 = vmul.f32 %v2420, %v2678
      %v2743 = vmul.f32 %v2422, %v2679
      %v2744 = vmul.f32 %v2424, %v2680
      %v2745 = vpack.c.bf16 %v2681, %v2681
      %v2746 = vpack.c.bf16 %v2682, %v2682
      %v2747 = vpack.c.bf16 %v2683, %v2683
      %v2748 = vpack.c.bf16 %v2684, %v2684
      %v2749 = vpack.c.bf16 %v2685, %v2685
      %v2750 = vpack.c.bf16 %v2686, %v2686
      %v2751 = vpack.c.bf16 %v2687, %v2687
      %v2752 = vpack.c.bf16 %v2688, %v2688
      %v2753 = vpack.c.bf16 %v2689, %v2689
      %v2754 = vpack.c.bf16 %v2690, %v2690
      %v2755 = vpack.c.bf16 %v2691, %v2691
      %v2756 = vpack.c.bf16 %v2692, %v2692
      %v2757 = vpack.c.bf16 %v2693, %v2693
      %v2758 = vpack.c.bf16 %v2694, %v2694
      %v2759 = vpack.c.bf16 %v2695, %v2695
      %v2760 = vpack.c.bf16 %v2696, %v2696
      %v2761 = vpack.c.bf16 %v2697, %v2697
      %v2762 = vpack.c.bf16 %v2698, %v2698
      %v2763 = vpack.c.bf16 %v2699, %v2699
      %v2764 = vpack.c.bf16 %v2700, %v2700
      %v2765 = vpack.c.bf16 %v2701, %v2701
      %v2766 = vpack.c.bf16 %v2702, %v2702
      %v2767 = vpack.c.bf16 %v2703, %v2703
      %v2768 = vpack.c.bf16 %v2704, %v2704
      %v2769 = vpack.c.bf16 %v2705, %v2705
      %v2770 = vpack.c.bf16 %v2706, %v2706
      %v2771 = vpack.c.bf16 %v2707, %v2707
      %v2772 = vpack.c.bf16 %v2708, %v2708
      %v2773 = vpack.c.bf16 %v2709, %v2709
      %v2774 = vpack.c.bf16 %v2710, %v2710
      %v2775 = vpack.c.bf16 %v2711, %v2711
      %v2776 = vpack.c.bf16 %v2712, %v2712
      %v2777 = vpack.c.bf16 %v2713, %v2713
      %v2778 = vpack.c.bf16 %v2714, %v2714
      %v2779 = vpack.c.bf16 %v2715, %v2715
      %v2780 = vpack.c.bf16 %v2716, %v2716
      %v2781 = vpack.c.bf16 %v2717, %v2717
      %v2782 = vpack.c.bf16 %v2718, %v2718
      %v2783 = vpack.c.bf16 %v2719, %v2719
      %v2784 = vpack.c.bf16 %v2720, %v2720
      %v2785 = vpack.c.bf16 %v2721, %v2721
      %v2786 = vpack.c.bf16 %v2722, %v2722
      %v2787 = vpack.c.bf16 %v2723, %v2723
      %v2788 = vpack.c.bf16 %v2724, %v2724
      %v2789 = vpack.c.bf16 %v2725, %v2725
      %v2790 = vpack.c.bf16 %v2726, %v2726
      %v2791 = vpack.c.bf16 %v2727, %v2727
      %v2792 = vpack.c.bf16 %v2728, %v2728
      %v2793 = vpack.c.bf16 %v2729, %v2729
      %v2794 = vpack.c.bf16 %v2730, %v2730
      %v2795 = vpack.c.bf16 %v2731, %v2731
      %v2796 = vpack.c.bf16 %v2732, %v2732
      %v2797 = vpack.c.bf16 %v2733, %v2733
      %v2798 = vpack.c.bf16 %v2734, %v2734
      %v2799 = vpack.c.bf16 %v2735, %v2735
      %v2800 = vpack.c.bf16 %v2736, %v2736
      %v2801 = vpack.c.bf16 %v2737, %v2737
      %v2802 = vpack.c.bf16 %v2738, %v2738
      %v2803 = vpack.c.bf16 %v2739, %v2739
      %v2804 = vpack.c.bf16 %v2740, %v2740
      %v2805 = vpack.c.bf16 %v2741, %v2741
      %v2806 = vpack.c.bf16 %v2742, %v2742
      %v2807 = vpack.c.bf16 %v2743, %v2743
      %v2808 = vpack.c.bf16 %v2744, %v2744
      %v2811 = vunpack.c.l.b16 %v2745
      %v2812 = vunpack.c.l.b16 %v2746
      %v2813 = vpack.c.b16 %v2812, %v2811
      %2814 = vrot.lane.b32.xlu0 %v1053, 64
      %v2815 = vpop.permute.xlu0 %2814
      %v2818 = vsel %vm440, %v2813, 0
      %2820 = vmatpush.bf16.msra.mxu0 0
      %2821 = vmatpush.bf16.msra.mxu0 0
      %2822 = vmatpush.bf16.msra.mxu0 0
      %2823 = vmatpush.bf16.msra.mxu0 0
      %2824 = vmatpush.bf16.msra.mxu0 0
      %2825 = vmatpush.bf16.msra.mxu0 0
      %2826 = vmatpush.bf16.msra.mxu0 0
      %2827 = vmatpush.bf16.msra.mxu0 %v2815
      %2828 = vmatmul.bf16.gmra.mxu0 %v2818
      %v2829 = vpop.f32.mrf.mxu0
      %v2830 = vadd.f32 0.0, %v2829
      %v2831 = vpop.f32.mrf.mxu0
      %v2832 = vadd.f32 0.0, %v2831
      %2833 = vdwg.mxu0
      %v2836 = vunpack.c.l.b16 %v2747
      %v2837 = vunpack.c.l.b16 %v2748
      %v2838 = vpack.c.b16 %v2837, %v2836
      %2839 = vrot.lane.b32.xlu0 %v1080, 64
      %v2840 = vpop.permute.xlu0 %2839
      %v2843 = vsel %vm440, %v2838, 0
      %2845 = vmatpush.bf16.msra.mxu0 0
      %2846 = vmatpush.bf16.msra.mxu0 0
      %2847 = vmatpush.bf16.msra.mxu0 0
      %2848 = vmatpush.bf16.msra.mxu0 0
      %2849 = vmatpush.bf16.msra.mxu0 0
      %2850 = vmatpush.bf16.msra.mxu0 0
      %2851 = vmatpush.bf16.msra.mxu0 0
      %2852 = vmatpush.bf16.msra.mxu0 %v2840
      %2853 = vmatmul.bf16.gmra.mxu0 %v2843
      %v2854 = vpop.f32.mrf.mxu0
      %v2855 = vadd.f32 0.0, %v2854
      %v2856 = vpop.f32.mrf.mxu0
      %v2857 = vadd.f32 0.0, %v2856
      %2858 = vdwg.mxu0
      %v2861 = vunpack.c.l.b16 %v2749
      %v2862 = vunpack.c.l.b16 %v2750
      %v2863 = vpack.c.b16 %v2862, %v2861
      %2864 = vrot.lane.b32.xlu0 %v1107, 64
      %v2865 = vpop.permute.xlu0 %2864
      %v2868 = vsel %vm440, %v2863, 0
      %2870 = vmatpush.bf16.msra.mxu0 0
      %2871 = vmatpush.bf16.msra.mxu0 0
      %2872 = vmatpush.bf16.msra.mxu0 0
      %2873 = vmatpush.bf16.msra.mxu0 0
      %2874 = vmatpush.bf16.msra.mxu0 0
      %2875 = vmatpush.bf16.msra.mxu0 0
      %2876 = vmatpush.bf16.msra.mxu0 0
      %2877 = vmatpush.bf16.msra.mxu0 %v2865
      %2878 = vmatmul.bf16.gmra.mxu0 %v2868
      %v2879 = vpop.f32.mrf.mxu0
      %v2880 = vadd.f32 0.0, %v2879
      %v2881 = vpop.f32.mrf.mxu0
      %v2882 = vadd.f32 0.0, %v2881
      %2883 = vdwg.mxu0
      %v2886 = vunpack.c.l.b16 %v2751
      %v2887 = vunpack.c.l.b16 %v2752
      %v2888 = vpack.c.b16 %v2887, %v2886
      %2889 = vrot.lane.b32.xlu0 %v1134, 64
      %v2890 = vpop.permute.xlu0 %2889
      %v2893 = vsel %vm440, %v2888, 0
      %2895 = vmatpush.bf16.msra.mxu0 0
      %2896 = vmatpush.bf16.msra.mxu0 0
      %2897 = vmatpush.bf16.msra.mxu0 0
      %2898 = vmatpush.bf16.msra.mxu0 0
      %2899 = vmatpush.bf16.msra.mxu0 0
      %2900 = vmatpush.bf16.msra.mxu0 0
      %2901 = vmatpush.bf16.msra.mxu0 0
      %2902 = vmatpush.bf16.msra.mxu0 %v2890
      %2903 = vmatmul.bf16.gmra.mxu0 %v2893
      %v2904 = vpop.f32.mrf.mxu0
      %v2905 = vadd.f32 0.0, %v2904
      %v2906 = vpop.f32.mrf.mxu0
      %v2907 = vadd.f32 0.0, %v2906
      %2908 = vdwg.mxu0
      %v2911 = vunpack.c.l.b16 %v2753
      %v2912 = vunpack.c.l.b16 %v2754
      %v2913 = vpack.c.b16 %v2912, %v2911
      %2914 = vrot.lane.b32.xlu0 %v1161, 64
      %v2915 = vpop.permute.xlu0 %2914
      %v2918 = vsel %vm440, %v2913, 0
      %2920 = vmatpush.bf16.msra.mxu0 0
      %2921 = vmatpush.bf16.msra.mxu0 0
      %2922 = vmatpush.bf16.msra.mxu0 0
      %2923 = vmatpush.bf16.msra.mxu0 0
      %2924 = vmatpush.bf16.msra.mxu0 0
      %2925 = vmatpush.bf16.msra.mxu0 0
      %2926 = vmatpush.bf16.msra.mxu0 0
      %2927 = vmatpush.bf16.msra.mxu0 %v2915
      %2928 = vmatmul.bf16.gmra.mxu0 %v2918
      %v2929 = vpop.f32.mrf.mxu0
      %v2930 = vadd.f32 0.0, %v2929
      %v2931 = vpop.f32.mrf.mxu0
      %v2932 = vadd.f32 0.0, %v2931
      %2933 = vdwg.mxu0
      %v2936 = vunpack.c.l.b16 %v2755
      %v2937 = vunpack.c.l.b16 %v2756
      %v2938 = vpack.c.b16 %v2937, %v2936
      %2939 = vrot.lane.b32.xlu0 %v1188, 64
      %v2940 = vpop.permute.xlu0 %2939
      %v2943 = vsel %vm440, %v2938, 0
      %2945 = vmatpush.bf16.msra.mxu0 0
      %2946 = vmatpush.bf16.msra.mxu0 0
      %2947 = vmatpush.bf16.msra.mxu0 0
      %2948 = vmatpush.bf16.msra.mxu0 0
      %2949 = vmatpush.bf16.msra.mxu0 0
      %2950 = vmatpush.bf16.msra.mxu0 0
      %2951 = vmatpush.bf16.msra.mxu0 0
      %2952 = vmatpush.bf16.msra.mxu0 %v2940
      %2953 = vmatmul.bf16.gmra.mxu0 %v2943
      %v2954 = vpop.f32.mrf.mxu0
      %v2955 = vadd.f32 0.0, %v2954
      %v2956 = vpop.f32.mrf.mxu0
      %v2957 = vadd.f32 0.0, %v2956
      %2958 = vdwg.mxu0
      %v2961 = vunpack.c.l.b16 %v2757
      %v2962 = vunpack.c.l.b16 %v2758
      %v2963 = vpack.c.b16 %v2962, %v2961
      %2964 = vrot.lane.b32.xlu0 %v1215, 64
      %v2965 = vpop.permute.xlu0 %2964
      %v2968 = vsel %vm440, %v2963, 0
      %2970 = vmatpush.bf16.msra.mxu0 0
      %2971 = vmatpush.bf16.msra.mxu0 0
      %2972 = vmatpush.bf16.msra.mxu0 0
      %2973 = vmatpush.bf16.msra.mxu0 0
      %2974 = vmatpush.bf16.msra.mxu0 0
      %2975 = vmatpush.bf16.msra.mxu0 0
      %2976 = vmatpush.bf16.msra.mxu0 0
      %2977 = vmatpush.bf16.msra.mxu0 %v2965
      %2978 = vmatmul.bf16.gmra.mxu0 %v2968
      %v2979 = vpop.f32.mrf.mxu0
      %v2980 = vadd.f32 0.0, %v2979
      %v2981 = vpop.f32.mrf.mxu0
      %v2982 = vadd.f32 0.0, %v2981
      %2983 = vdwg.mxu0
      %v2986 = vunpack.c.l.b16 %v2759
      %v2987 = vunpack.c.l.b16 %v2760
      %v2988 = vpack.c.b16 %v2987, %v2986
      %2989 = vrot.lane.b32.xlu0 %v1242, 64
      %v2990 = vpop.permute.xlu0 %2989
      %v2993 = vsel %vm440, %v2988, 0
      %2995 = vmatpush.bf16.msra.mxu0 0
      %2996 = vmatpush.bf16.msra.mxu0 0
      %2997 = vmatpush.bf16.msra.mxu0 0
      %2998 = vmatpush.bf16.msra.mxu0 0
      %2999 = vmatpush.bf16.msra.mxu0 0
      %3000 = vmatpush.bf16.msra.mxu0 0
      %3001 = vmatpush.bf16.msra.mxu0 0
      %3002 = vmatpush.bf16.msra.mxu0 %v2990
      %3003 = vmatmul.bf16.gmra.mxu0 %v2993
      %v3004 = vpop.f32.mrf.mxu0
      %v3005 = vadd.f32 0.0, %v3004
      %v3006 = vpop.f32.mrf.mxu0
      %v3007 = vadd.f32 0.0, %v3006
      %3008 = vdwg.mxu0
      %v3011 = vunpack.c.l.b16 %v2761
      %v3012 = vunpack.c.l.b16 %v2762
      %v3013 = vpack.c.b16 %v3012, %v3011
      %3014 = vrot.lane.b32.xlu0 %v1269, 64
      %v3015 = vpop.permute.xlu0 %3014
      %v3018 = vsel %vm440, %v3013, 0
      %3020 = vmatpush.bf16.msra.mxu0 0
      %3021 = vmatpush.bf16.msra.mxu0 0
      %3022 = vmatpush.bf16.msra.mxu0 0
      %3023 = vmatpush.bf16.msra.mxu0 0
      %3024 = vmatpush.bf16.msra.mxu0 0
      %3025 = vmatpush.bf16.msra.mxu0 0
      %3026 = vmatpush.bf16.msra.mxu0 0
      %3027 = vmatpush.bf16.msra.mxu0 %v3015
      %3028 = vmatmul.bf16.gmra.mxu0 %v3018
      %v3029 = vpop.f32.mrf.mxu0
      %v3030 = vadd.f32 0.0, %v3029
      %v3031 = vpop.f32.mrf.mxu0
      %v3032 = vadd.f32 0.0, %v3031
      %3033 = vdwg.mxu0
      %v3036 = vunpack.c.l.b16 %v2763
      %v3037 = vunpack.c.l.b16 %v2764
      %v3038 = vpack.c.b16 %v3037, %v3036
      %3039 = vrot.lane.b32.xlu0 %v1296, 64
      %v3040 = vpop.permute.xlu0 %3039
      %v3043 = vsel %vm440, %v3038, 0
      %3045 = vmatpush.bf16.msra.mxu0 0
      %3046 = vmatpush.bf16.msra.mxu0 0
      %3047 = vmatpush.bf16.msra.mxu0 0
      %3048 = vmatpush.bf16.msra.mxu0 0
      %3049 = vmatpush.bf16.msra.mxu0 0
      %3050 = vmatpush.bf16.msra.mxu0 0
      %3051 = vmatpush.bf16.msra.mxu0 0
      %3052 = vmatpush.bf16.msra.mxu0 %v3040
      %3053 = vmatmul.bf16.gmra.mxu0 %v3043
      %v3054 = vpop.f32.mrf.mxu0
      %v3055 = vadd.f32 0.0, %v3054
      %v3056 = vpop.f32.mrf.mxu0
      %v3057 = vadd.f32 0.0, %v3056
      %3058 = vdwg.mxu0
      %v3061 = vunpack.c.l.b16 %v2765
      %v3062 = vunpack.c.l.b16 %v2766
      %v3063 = vpack.c.b16 %v3062, %v3061
      %3064 = vrot.lane.b32.xlu0 %v1323, 64
      %v3065 = vpop.permute.xlu0 %3064
      %v3068 = vsel %vm440, %v3063, 0
      %3070 = vmatpush.bf16.msra.mxu0 0
      %3071 = vmatpush.bf16.msra.mxu0 0
      %3072 = vmatpush.bf16.msra.mxu0 0
      %3073 = vmatpush.bf16.msra.mxu0 0
      %3074 = vmatpush.bf16.msra.mxu0 0
      %3075 = vmatpush.bf16.msra.mxu0 0
      %3076 = vmatpush.bf16.msra.mxu0 0
      %3077 = vmatpush.bf16.msra.mxu0 %v3065
      %3078 = vmatmul.bf16.gmra.mxu0 %v3068
      %v3079 = vpop.f32.mrf.mxu0
      %v3080 = vadd.f32 0.0, %v3079
      %v3081 = vpop.f32.mrf.mxu0
      %v3082 = vadd.f32 0.0, %v3081
      %3083 = vdwg.mxu0
      %v3086 = vunpack.c.l.b16 %v2767
      %v3087 = vunpack.c.l.b16 %v2768
      %v3088 = vpack.c.b16 %v3087, %v3086
      %3089 = vrot.lane.b32.xlu0 %v1350, 64
      %v3090 = vpop.permute.xlu0 %3089
      %v3093 = vsel %vm440, %v3088, 0
      %3095 = vmatpush.bf16.msra.mxu0 0
      %3096 = vmatpush.bf16.msra.mxu0 0
      %3097 = vmatpush.bf16.msra.mxu0 0
      %3098 = vmatpush.bf16.msra.mxu0 0
      %3099 = vmatpush.bf16.msra.mxu0 0
      %3100 = vmatpush.bf16.msra.mxu0 0
      %3101 = vmatpush.bf16.msra.mxu0 0
      %3102 = vmatpush.bf16.msra.mxu0 %v3090
      %3103 = vmatmul.bf16.gmra.mxu0 %v3093
      %v3104 = vpop.f32.mrf.mxu0
      %v3105 = vadd.f32 0.0, %v3104
      %v3106 = vpop.f32.mrf.mxu0
      %v3107 = vadd.f32 0.0, %v3106
      %3108 = vdwg.mxu0
      %v3111 = vunpack.c.l.b16 %v2769
      %v3112 = vunpack.c.l.b16 %v2770
      %v3113 = vpack.c.b16 %v3112, %v3111
      %3114 = vrot.lane.b32.xlu0 %v1377, 64
      %v3115 = vpop.permute.xlu0 %3114
      %v3118 = vsel %vm440, %v3113, 0
      %3120 = vmatpush.bf16.msra.mxu0 0
      %3121 = vmatpush.bf16.msra.mxu0 0
      %3122 = vmatpush.bf16.msra.mxu0 0
      %3123 = vmatpush.bf16.msra.mxu0 0
      %3124 = vmatpush.bf16.msra.mxu0 0
      %3125 = vmatpush.bf16.msra.mxu0 0
      %3126 = vmatpush.bf16.msra.mxu0 0
      %3127 = vmatpush.bf16.msra.mxu0 %v3115
      %3128 = vmatmul.bf16.gmra.mxu0 %v3118
      %v3129 = vpop.f32.mrf.mxu0
      %v3130 = vadd.f32 0.0, %v3129
      %v3131 = vpop.f32.mrf.mxu0
      %v3132 = vadd.f32 0.0, %v3131
      %3133 = vdwg.mxu0
      %v3136 = vunpack.c.l.b16 %v2771
      %v3137 = vunpack.c.l.b16 %v2772
      %v3138 = vpack.c.b16 %v3137, %v3136
      %3139 = vrot.lane.b32.xlu0 %v1404, 64
      %v3140 = vpop.permute.xlu0 %3139
      %v3143 = vsel %vm440, %v3138, 0
      %3145 = vmatpush.bf16.msra.mxu0 0
      %3146 = vmatpush.bf16.msra.mxu0 0
      %3147 = vmatpush.bf16.msra.mxu0 0
      %3148 = vmatpush.bf16.msra.mxu0 0
      %3149 = vmatpush.bf16.msra.mxu0 0
      %3150 = vmatpush.bf16.msra.mxu0 0
      %3151 = vmatpush.bf16.msra.mxu0 0
      %3152 = vmatpush.bf16.msra.mxu0 %v3140
      %3153 = vmatmul.bf16.gmra.mxu0 %v3143
      %v3154 = vpop.f32.mrf.mxu0
      %v3155 = vadd.f32 0.0, %v3154
      %v3156 = vpop.f32.mrf.mxu0
      %v3157 = vadd.f32 0.0, %v3156
      %3158 = vdwg.mxu0
      %v3161 = vunpack.c.l.b16 %v2773
      %v3162 = vunpack.c.l.b16 %v2774
      %v3163 = vpack.c.b16 %v3162, %v3161
      %3164 = vrot.lane.b32.xlu0 %v1431, 64
      %v3165 = vpop.permute.xlu0 %3164
      %v3168 = vsel %vm440, %v3163, 0
      %3170 = vmatpush.bf16.msra.mxu0 0
      %3171 = vmatpush.bf16.msra.mxu0 0
      %3172 = vmatpush.bf16.msra.mxu0 0
      %3173 = vmatpush.bf16.msra.mxu0 0
      %3174 = vmatpush.bf16.msra.mxu0 0
      %3175 = vmatpush.bf16.msra.mxu0 0
      %3176 = vmatpush.bf16.msra.mxu0 0
      %3177 = vmatpush.bf16.msra.mxu0 %v3165
      %3178 = vmatmul.bf16.gmra.mxu0 %v3168
      %v3179 = vpop.f32.mrf.mxu0
      %v3180 = vadd.f32 0.0, %v3179
      %v3181 = vpop.f32.mrf.mxu0
      %v3182 = vadd.f32 0.0, %v3181
      %3183 = vdwg.mxu0
      %v3186 = vunpack.c.l.b16 %v2775
      %v3187 = vunpack.c.l.b16 %v2776
      %v3188 = vpack.c.b16 %v3187, %v3186
      %3189 = vrot.lane.b32.xlu0 %v1458, 64
      %v3190 = vpop.permute.xlu0 %3189
      %v3193 = vsel %vm440, %v3188, 0
      %3195 = vmatpush.bf16.msra.mxu0 0
      %3196 = vmatpush.bf16.msra.mxu0 0
      %3197 = vmatpush.bf16.msra.mxu0 0
      %3198 = vmatpush.bf16.msra.mxu0 0
      %3199 = vmatpush.bf16.msra.mxu0 0
      %3200 = vmatpush.bf16.msra.mxu0 0
      %3201 = vmatpush.bf16.msra.mxu0 0
      %3202 = vmatpush.bf16.msra.mxu0 %v3190
      %3203 = vmatmul.bf16.gmra.mxu0 %v3193
      %v3204 = vpop.f32.mrf.mxu0
      %v3205 = vadd.f32 0.0, %v3204
      %v3206 = vpop.f32.mrf.mxu0
      %v3207 = vadd.f32 0.0, %v3206
      %3208 = vdwg.mxu0
      %v3211 = vunpack.c.l.b16 %v2777
      %v3212 = vunpack.c.l.b16 %v2778
      %v3213 = vpack.c.b16 %v3212, %v3211
      %3214 = vrot.lane.b32.xlu0 %v1485, 64
      %v3215 = vpop.permute.xlu0 %3214
      %v3218 = vsel %vm440, %v3213, 0
      %3220 = vmatpush.bf16.msra.mxu0 0
      %3221 = vmatpush.bf16.msra.mxu0 0
      %3222 = vmatpush.bf16.msra.mxu0 0
      %3223 = vmatpush.bf16.msra.mxu0 0
      %3224 = vmatpush.bf16.msra.mxu0 0
      %3225 = vmatpush.bf16.msra.mxu0 0
      %3226 = vmatpush.bf16.msra.mxu0 0
      %3227 = vmatpush.bf16.msra.mxu0 %v3215
      %3228 = vmatmul.bf16.gmra.mxu0 %v3218
      %v3229 = vpop.f32.mrf.mxu0
      %v3230 = vadd.f32 0.0, %v3229
      %v3231 = vpop.f32.mrf.mxu0
      %v3232 = vadd.f32 0.0, %v3231
      %3233 = vdwg.mxu0
      %v3236 = vunpack.c.l.b16 %v2779
      %v3237 = vunpack.c.l.b16 %v2780
      %v3238 = vpack.c.b16 %v3237, %v3236
      %3239 = vrot.lane.b32.xlu0 %v1512, 64
      %v3240 = vpop.permute.xlu0 %3239
      %v3243 = vsel %vm440, %v3238, 0
      %3245 = vmatpush.bf16.msra.mxu0 0
      %3246 = vmatpush.bf16.msra.mxu0 0
      %3247 = vmatpush.bf16.msra.mxu0 0
      %3248 = vmatpush.bf16.msra.mxu0 0
      %3249 = vmatpush.bf16.msra.mxu0 0
      %3250 = vmatpush.bf16.msra.mxu0 0
      %3251 = vmatpush.bf16.msra.mxu0 0
      %3252 = vmatpush.bf16.msra.mxu0 %v3240
      %3253 = vmatmul.bf16.gmra.mxu0 %v3243
      %v3254 = vpop.f32.mrf.mxu0
      %v3255 = vadd.f32 0.0, %v3254
      %v3256 = vpop.f32.mrf.mxu0
      %v3257 = vadd.f32 0.0, %v3256
      %3258 = vdwg.mxu0
      %v3261 = vunpack.c.l.b16 %v2781
      %v3262 = vunpack.c.l.b16 %v2782
      %v3263 = vpack.c.b16 %v3262, %v3261
      %3264 = vrot.lane.b32.xlu0 %v1539, 64
      %v3265 = vpop.permute.xlu0 %3264
      %v3268 = vsel %vm440, %v3263, 0
      %3270 = vmatpush.bf16.msra.mxu0 0
      %3271 = vmatpush.bf16.msra.mxu0 0
      %3272 = vmatpush.bf16.msra.mxu0 0
      %3273 = vmatpush.bf16.msra.mxu0 0
      %3274 = vmatpush.bf16.msra.mxu0 0
      %3275 = vmatpush.bf16.msra.mxu0 0
      %3276 = vmatpush.bf16.msra.mxu0 0
      %3277 = vmatpush.bf16.msra.mxu0 %v3265
      %3278 = vmatmul.bf16.gmra.mxu0 %v3268
      %v3279 = vpop.f32.mrf.mxu0
      %v3280 = vadd.f32 0.0, %v3279
      %v3281 = vpop.f32.mrf.mxu0
      %v3282 = vadd.f32 0.0, %v3281
      %3283 = vdwg.mxu0
      %v3286 = vunpack.c.l.b16 %v2783
      %v3287 = vunpack.c.l.b16 %v2784
      %v3288 = vpack.c.b16 %v3287, %v3286
      %3289 = vrot.lane.b32.xlu0 %v1566, 64
      %v3290 = vpop.permute.xlu0 %3289
      %v3293 = vsel %vm440, %v3288, 0
      %3295 = vmatpush.bf16.msra.mxu0 0
      %3296 = vmatpush.bf16.msra.mxu0 0
      %3297 = vmatpush.bf16.msra.mxu0 0
      %3298 = vmatpush.bf16.msra.mxu0 0
      %3299 = vmatpush.bf16.msra.mxu0 0
      %3300 = vmatpush.bf16.msra.mxu0 0
      %3301 = vmatpush.bf16.msra.mxu0 0
      %3302 = vmatpush.bf16.msra.mxu0 %v3290
      %3303 = vmatmul.bf16.gmra.mxu0 %v3293
      %v3304 = vpop.f32.mrf.mxu0
      %v3305 = vadd.f32 0.0, %v3304
      %v3306 = vpop.f32.mrf.mxu0
      %v3307 = vadd.f32 0.0, %v3306
      %3308 = vdwg.mxu0
      %v3311 = vunpack.c.l.b16 %v2785
      %v3312 = vunpack.c.l.b16 %v2786
      %v3313 = vpack.c.b16 %v3312, %v3311
      %3314 = vrot.lane.b32.xlu0 %v1593, 64
      %v3315 = vpop.permute.xlu0 %3314
      %v3318 = vsel %vm440, %v3313, 0
      %3320 = vmatpush.bf16.msra.mxu0 0
      %3321 = vmatpush.bf16.msra.mxu0 0
      %3322 = vmatpush.bf16.msra.mxu0 0
      %3323 = vmatpush.bf16.msra.mxu0 0
      %3324 = vmatpush.bf16.msra.mxu0 0
      %3325 = vmatpush.bf16.msra.mxu0 0
      %3326 = vmatpush.bf16.msra.mxu0 0
      %3327 = vmatpush.bf16.msra.mxu0 %v3315
      %3328 = vmatmul.bf16.gmra.mxu0 %v3318
      %v3329 = vpop.f32.mrf.mxu0
      %v3330 = vadd.f32 0.0, %v3329
      %v3331 = vpop.f32.mrf.mxu0
      %v3332 = vadd.f32 0.0, %v3331
      %3333 = vdwg.mxu0
      %v3336 = vunpack.c.l.b16 %v2787
      %v3337 = vunpack.c.l.b16 %v2788
      %v3338 = vpack.c.b16 %v3337, %v3336
      %3339 = vrot.lane.b32.xlu0 %v1620, 64
      %v3340 = vpop.permute.xlu0 %3339
      %v3343 = vsel %vm440, %v3338, 0
      %3345 = vmatpush.bf16.msra.mxu0 0
      %3346 = vmatpush.bf16.msra.mxu0 0
      %3347 = vmatpush.bf16.msra.mxu0 0
      %3348 = vmatpush.bf16.msra.mxu0 0
      %3349 = vmatpush.bf16.msra.mxu0 0
      %3350 = vmatpush.bf16.msra.mxu0 0
      %3351 = vmatpush.bf16.msra.mxu0 0
      %3352 = vmatpush.bf16.msra.mxu0 %v3340
      %3353 = vmatmul.bf16.gmra.mxu0 %v3343
      %v3354 = vpop.f32.mrf.mxu0
      %v3355 = vadd.f32 0.0, %v3354
      %v3356 = vpop.f32.mrf.mxu0
      %v3357 = vadd.f32 0.0, %v3356
      %3358 = vdwg.mxu0
      %v3361 = vunpack.c.l.b16 %v2789
      %v3362 = vunpack.c.l.b16 %v2790
      %v3363 = vpack.c.b16 %v3362, %v3361
      %3364 = vrot.lane.b32.xlu0 %v1647, 64
      %v3365 = vpop.permute.xlu0 %3364
      %v3368 = vsel %vm440, %v3363, 0
      %3370 = vmatpush.bf16.msra.mxu0 0
      %3371 = vmatpush.bf16.msra.mxu0 0
      %3372 = vmatpush.bf16.msra.mxu0 0
      %3373 = vmatpush.bf16.msra.mxu0 0
      %3374 = vmatpush.bf16.msra.mxu0 0
      %3375 = vmatpush.bf16.msra.mxu0 0
      %3376 = vmatpush.bf16.msra.mxu0 0
      %3377 = vmatpush.bf16.msra.mxu0 %v3365
      %3378 = vmatmul.bf16.gmra.mxu0 %v3368
      %v3379 = vpop.f32.mrf.mxu0
      %v3380 = vadd.f32 0.0, %v3379
      %v3381 = vpop.f32.mrf.mxu0
      %v3382 = vadd.f32 0.0, %v3381
      %3383 = vdwg.mxu0
      %v3386 = vunpack.c.l.b16 %v2791
      %v3387 = vunpack.c.l.b16 %v2792
      %v3388 = vpack.c.b16 %v3387, %v3386
      %3389 = vrot.lane.b32.xlu0 %v1674, 64
      %v3390 = vpop.permute.xlu0 %3389
      %v3393 = vsel %vm440, %v3388, 0
      %3395 = vmatpush.bf16.msra.mxu0 0
      %3396 = vmatpush.bf16.msra.mxu0 0
      %3397 = vmatpush.bf16.msra.mxu0 0
      %3398 = vmatpush.bf16.msra.mxu0 0
      %3399 = vmatpush.bf16.msra.mxu0 0
      %3400 = vmatpush.bf16.msra.mxu0 0
      %3401 = vmatpush.bf16.msra.mxu0 0
      %3402 = vmatpush.bf16.msra.mxu0 %v3390
      %3403 = vmatmul.bf16.gmra.mxu0 %v3393
      %v3404 = vpop.f32.mrf.mxu0
      %v3405 = vadd.f32 0.0, %v3404
      %v3406 = vpop.f32.mrf.mxu0
      %v3407 = vadd.f32 0.0, %v3406
      %3408 = vdwg.mxu0
      %v3411 = vunpack.c.l.b16 %v2793
      %v3412 = vunpack.c.l.b16 %v2794
      %v3413 = vpack.c.b16 %v3412, %v3411
      %3414 = vrot.lane.b32.xlu0 %v1701, 64
      %v3415 = vpop.permute.xlu0 %3414
      %v3418 = vsel %vm440, %v3413, 0
      %3420 = vmatpush.bf16.msra.mxu0 0
      %3421 = vmatpush.bf16.msra.mxu0 0
      %3422 = vmatpush.bf16.msra.mxu0 0
      %3423 = vmatpush.bf16.msra.mxu0 0
      %3424 = vmatpush.bf16.msra.mxu0 0
      %3425 = vmatpush.bf16.msra.mxu0 0
      %3426 = vmatpush.bf16.msra.mxu0 0
      %3427 = vmatpush.bf16.msra.mxu0 %v3415
      %3428 = vmatmul.bf16.gmra.mxu0 %v3418
      %v3429 = vpop.f32.mrf.mxu0
      %v3430 = vadd.f32 0.0, %v3429
      %v3431 = vpop.f32.mrf.mxu0
      %v3432 = vadd.f32 0.0, %v3431
      %3433 = vdwg.mxu0
      %v3436 = vunpack.c.l.b16 %v2795
      %v3437 = vunpack.c.l.b16 %v2796
      %v3438 = vpack.c.b16 %v3437, %v3436
      %3439 = vrot.lane.b32.xlu0 %v1728, 64
      %v3440 = vpop.permute.xlu0 %3439
      %v3443 = vsel %vm440, %v3438, 0
      %3445 = vmatpush.bf16.msra.mxu0 0
      %3446 = vmatpush.bf16.msra.mxu0 0
      %3447 = vmatpush.bf16.msra.mxu0 0
      %3448 = vmatpush.bf16.msra.mxu0 0
      %3449 = vmatpush.bf16.msra.mxu0 0
      %3450 = vmatpush.bf16.msra.mxu0 0
      %3451 = vmatpush.bf16.msra.mxu0 0
      %3452 = vmatpush.bf16.msra.mxu0 %v3440
      %3453 = vmatmul.bf16.gmra.mxu0 %v3443
      %v3454 = vpop.f32.mrf.mxu0
      %v3455 = vadd.f32 0.0, %v3454
      %v3456 = vpop.f32.mrf.mxu0
      %v3457 = vadd.f32 0.0, %v3456
      %3458 = vdwg.mxu0
      %v3461 = vunpack.c.l.b16 %v2797
      %v3462 = vunpack.c.l.b16 %v2798
      %v3463 = vpack.c.b16 %v3462, %v3461
      %3464 = vrot.lane.b32.xlu0 %v1755, 64
      %v3465 = vpop.permute.xlu0 %3464
      %v3468 = vsel %vm440, %v3463, 0
      %3470 = vmatpush.bf16.msra.mxu0 0
      %3471 = vmatpush.bf16.msra.mxu0 0
      %3472 = vmatpush.bf16.msra.mxu0 0
      %3473 = vmatpush.bf16.msra.mxu0 0
      %3474 = vmatpush.bf16.msra.mxu0 0
      %3475 = vmatpush.bf16.msra.mxu0 0
      %3476 = vmatpush.bf16.msra.mxu0 0
      %3477 = vmatpush.bf16.msra.mxu0 %v3465
      %3478 = vmatmul.bf16.gmra.mxu0 %v3468
      %v3479 = vpop.f32.mrf.mxu0
      %v3480 = vadd.f32 0.0, %v3479
      %v3481 = vpop.f32.mrf.mxu0
      %v3482 = vadd.f32 0.0, %v3481
      %3483 = vdwg.mxu0
      %v3486 = vunpack.c.l.b16 %v2799
      %v3487 = vunpack.c.l.b16 %v2800
      %v3488 = vpack.c.b16 %v3487, %v3486
      %3489 = vrot.lane.b32.xlu0 %v1782, 64
      %v3490 = vpop.permute.xlu0 %3489
      %v3493 = vsel %vm440, %v3488, 0
      %3495 = vmatpush.bf16.msra.mxu0 0
      %3496 = vmatpush.bf16.msra.mxu0 0
      %3497 = vmatpush.bf16.msra.mxu0 0
      %3498 = vmatpush.bf16.msra.mxu0 0
      %3499 = vmatpush.bf16.msra.mxu0 0
      %3500 = vmatpush.bf16.msra.mxu0 0
      %3501 = vmatpush.bf16.msra.mxu0 0
      %3502 = vmatpush.bf16.msra.mxu0 %v3490
      %3503 = vmatmul.bf16.gmra.mxu0 %v3493
      %v3504 = vpop.f32.mrf.mxu0
      %v3505 = vadd.f32 0.0, %v3504
      %v3506 = vpop.f32.mrf.mxu0
      %v3507 = vadd.f32 0.0, %v3506
      %3508 = vdwg.mxu0
      %v3511 = vunpack.c.l.b16 %v2801
      %v3512 = vunpack.c.l.b16 %v2802
      %v3513 = vpack.c.b16 %v3512, %v3511
      %3514 = vrot.lane.b32.xlu0 %v1809, 64
      %v3515 = vpop.permute.xlu0 %3514
      %v3518 = vsel %vm440, %v3513, 0
      %3520 = vmatpush.bf16.msra.mxu0 0
      %3521 = vmatpush.bf16.msra.mxu0 0
      %3522 = vmatpush.bf16.msra.mxu0 0
      %3523 = vmatpush.bf16.msra.mxu0 0
      %3524 = vmatpush.bf16.msra.mxu0 0
      %3525 = vmatpush.bf16.msra.mxu0 0
      %3526 = vmatpush.bf16.msra.mxu0 0
      %3527 = vmatpush.bf16.msra.mxu0 %v3515
      %3528 = vmatmul.bf16.gmra.mxu0 %v3518
      %v3529 = vpop.f32.mrf.mxu0
      %v3530 = vadd.f32 0.0, %v3529
      %v3531 = vpop.f32.mrf.mxu0
      %v3532 = vadd.f32 0.0, %v3531
      %3533 = vdwg.mxu0
      %v3536 = vunpack.c.l.b16 %v2803
      %v3537 = vunpack.c.l.b16 %v2804
      %v3538 = vpack.c.b16 %v3537, %v3536
      %3539 = vrot.lane.b32.xlu0 %v1836, 64
      %v3540 = vpop.permute.xlu0 %3539
      %v3543 = vsel %vm440, %v3538, 0
      %3545 = vmatpush.bf16.msra.mxu0 0
      %3546 = vmatpush.bf16.msra.mxu0 0
      %3547 = vmatpush.bf16.msra.mxu0 0
      %3548 = vmatpush.bf16.msra.mxu0 0
      %3549 = vmatpush.bf16.msra.mxu0 0
      %3550 = vmatpush.bf16.msra.mxu0 0
      %3551 = vmatpush.bf16.msra.mxu0 0
      %3552 = vmatpush.bf16.msra.mxu0 %v3540
      %3553 = vmatmul.bf16.gmra.mxu0 %v3543
      %v3554 = vpop.f32.mrf.mxu0
      %v3555 = vadd.f32 0.0, %v3554
      %v3556 = vpop.f32.mrf.mxu0
      %v3557 = vadd.f32 0.0, %v3556
      %3558 = vdwg.mxu0
      %v3561 = vunpack.c.l.b16 %v2805
      %v3562 = vunpack.c.l.b16 %v2806
      %v3563 = vpack.c.b16 %v3562, %v3561
      %3564 = vrot.lane.b32.xlu0 %v1863, 64
      %v3565 = vpop.permute.xlu0 %3564
      %v3568 = vsel %vm440, %v3563, 0
      %3570 = vmatpush.bf16.msra.mxu0 0
      %3571 = vmatpush.bf16.msra.mxu0 0
      %3572 = vmatpush.bf16.msra.mxu0 0
      %3573 = vmatpush.bf16.msra.mxu0 0
      %3574 = vmatpush.bf16.msra.mxu0 0
      %3575 = vmatpush.bf16.msra.mxu0 0
      %3576 = vmatpush.bf16.msra.mxu0 0
      %3577 = vmatpush.bf16.msra.mxu0 %v3565
      %3578 = vmatmul.bf16.gmra.mxu0 %v3568
      %v3579 = vpop.f32.mrf.mxu0
      %v3580 = vadd.f32 0.0, %v3579
      %v3581 = vpop.f32.mrf.mxu0
      %v3582 = vadd.f32 0.0, %v3581
      %3583 = vdwg.mxu0
      %v3586 = vunpack.c.l.b16 %v2807
      %v3587 = vunpack.c.l.b16 %v2808
      %v3588 = vpack.c.b16 %v3587, %v3586
      %3589 = vrot.lane.b32.xlu0 %v1890, 64
      %v3590 = vpop.permute.xlu0 %3589
      %v3593 = vsel %vm440, %v3588, 0
      %3595 = vmatpush.bf16.msra.mxu0 0
      %3596 = vmatpush.bf16.msra.mxu0 0
      %3597 = vmatpush.bf16.msra.mxu0 0
      %3598 = vmatpush.bf16.msra.mxu0 0
      %3599 = vmatpush.bf16.msra.mxu0 0
      %3600 = vmatpush.bf16.msra.mxu0 0
      %3601 = vmatpush.bf16.msra.mxu0 0
      %3602 = vmatpush.bf16.msra.mxu0 %v3590
      %3603 = vmatmul.bf16.gmra.mxu0 %v3593
      %v3604 = vpop.f32.mrf.mxu0
      %v3605 = vadd.f32 0.0, %v3604
      %v3606 = vpop.f32.mrf.mxu0
      %v3607 = vadd.f32 0.0, %v3606
      %3608 = vdwg.mxu0
      %v3609 = vpack.c.bf16 %v2832, %v2830
      %v3610 = vpack.c.bf16 %v2857, %v2855
      %v3611 = vpack.c.bf16 %v2882, %v2880
      %v3612 = vpack.c.bf16 %v2907, %v2905
      %v3613 = vpack.c.bf16 %v2932, %v2930
      %v3614 = vpack.c.bf16 %v2957, %v2955
      %v3615 = vpack.c.bf16 %v2982, %v2980
      %v3616 = vpack.c.bf16 %v3007, %v3005
      %v3617 = vpack.c.bf16 %v3032, %v3030
      %v3618 = vpack.c.bf16 %v3057, %v3055
      %v3619 = vpack.c.bf16 %v3082, %v3080
      %v3620 = vpack.c.bf16 %v3107, %v3105
      %v3621 = vpack.c.bf16 %v3132, %v3130
      %v3622 = vpack.c.bf16 %v3157, %v3155
      %v3623 = vpack.c.bf16 %v3182, %v3180
      %v3624 = vpack.c.bf16 %v3207, %v3205
      %v3625 = vpack.c.bf16 %v3232, %v3230
      %v3626 = vpack.c.bf16 %v3257, %v3255
      %v3627 = vpack.c.bf16 %v3282, %v3280
      %v3628 = vpack.c.bf16 %v3307, %v3305
      %v3629 = vpack.c.bf16 %v3332, %v3330
      %v3630 = vpack.c.bf16 %v3357, %v3355
      %v3631 = vpack.c.bf16 %v3382, %v3380
      %v3632 = vpack.c.bf16 %v3407, %v3405
      %v3633 = vpack.c.bf16 %v3432, %v3430
      %v3634 = vpack.c.bf16 %v3457, %v3455
      %v3635 = vpack.c.bf16 %v3482, %v3480
      %v3636 = vpack.c.bf16 %v3507, %v3505
      %v3637 = vpack.c.bf16 %v3532, %v3530
      %v3638 = vpack.c.bf16 %v3557, %v3555
      %v3639 = vpack.c.bf16 %v3582, %v3580
      %v3640 = vpack.c.bf16 %v3607, %v3605
      %v3641 = vld [vmem:[%s4 + $0x20] sm:$0xf]
      %v3642 = vld [vmem:[%s4 + $0x24] sm:$0xf]
      %v3643 = vld [vmem:[%s4 + $0x28] sm:$0xf]
      %v3644 = vld [vmem:[%s4 + $0x2c] sm:$0xf]
      %v3649 = vunpack.c.l.b16 %v3641
      %v3650 = vunpack.c.l.b16 %v3642
      %v3651 = vunpack.c.l.b16 %v3643
      %v3652 = vunpack.c.l.b16 %v3644
      %v3653 = vpack.c.b16 %v3650, %v3649
      %v3654 = vpack.c.b16 %v3652, %v3651
      %v3658 = vsel %vm719, %v3609, 0
      %v3661 = vsel %vm719, %v3610, 0
      %v3664 = vsel %vm719, %v3611, 0
      %v3667 = vsel %vm719, %v3612, 0
      %v3670 = vsel %vm719, %v3613, 0
      %v3673 = vsel %vm719, %v3614, 0
      %v3676 = vsel %vm719, %v3615, 0
      %v3679 = vsel %vm719, %v3616, 0
      %v3682 = vsel %vm719, %v3617, 0
      %v3685 = vsel %vm719, %v3618, 0
      %v3688 = vsel %vm719, %v3619, 0
      %v3691 = vsel %vm719, %v3620, 0
      %v3694 = vsel %vm719, %v3621, 0
      %v3697 = vsel %vm719, %v3622, 0
      %v3700 = vsel %vm719, %v3623, 0
      %v3703 = vsel %vm719, %v3624, 0
      %v3706 = vsel %vm719, %v3625, 0
      %v3709 = vsel %vm719, %v3626, 0
      %v3712 = vsel %vm719, %v3627, 0
      %v3715 = vsel %vm719, %v3628, 0
      %v3718 = vsel %vm719, %v3629, 0
      %v3721 = vsel %vm719, %v3630, 0
      %v3724 = vsel %vm719, %v3631, 0
      %v3727 = vsel %vm719, %v3632, 0
      %v3730 = vsel %vm719, %v3633, 0
      %v3733 = vsel %vm719, %v3634, 0
      %v3736 = vsel %vm719, %v3635, 0
      %v3739 = vsel %vm719, %v3636, 0
      %v3742 = vsel %vm719, %v3637, 0
      %v3745 = vsel %vm719, %v3638, 0
      %v3748 = vsel %vm719, %v3639, 0
      %v3751 = vsel %vm719, %v3640, 0
      %3753 = vmatpush.bf16.msra.mxu0 0
      %3754 = vmatpush.bf16.msra.mxu0 0
      %3755 = vmatpush.bf16.msra.mxu0 0
      %3756 = vmatpush.bf16.msra.mxu0 0
      %3757 = vmatpush.bf16.msra.mxu0 0
      %3758 = vmatpush.bf16.msra.mxu0 0
      %3759 = vmatpush.bf16.msra.mxu0 %v3654
      %3760 = vmatpush.bf16.msra.mxu0 %v3653
      %3761 = vmatmul.bf16.gmra.mxu0 %v3658
      %v3762 = vpop.f32.mrf.mxu0
      %v3763 = vadd.f32 0.0, %v3762
      %v3764 = vpop.f32.mrf.mxu0
      %v3765 = vadd.f32 0.0, %v3764
      %3766 = vmatmul.bf16.gmra.mxu0 %v3661
      %v3767 = vpop.f32.mrf.mxu0
      %v3768 = vadd.f32 0.0, %v3767
      %v3769 = vpop.f32.mrf.mxu0
      %v3770 = vadd.f32 0.0, %v3769
      %3771 = vmatmul.bf16.gmra.mxu0 %v3664
      %v3772 = vpop.f32.mrf.mxu0
      %v3773 = vadd.f32 0.0, %v3772
      %v3774 = vpop.f32.mrf.mxu0
      %v3775 = vadd.f32 0.0, %v3774
      %3776 = vmatmul.bf16.gmra.mxu0 %v3667
      %v3777 = vpop.f32.mrf.mxu0
      %v3778 = vadd.f32 0.0, %v3777
      %v3779 = vpop.f32.mrf.mxu0
      %v3780 = vadd.f32 0.0, %v3779
      %3781 = vmatmul.bf16.gmra.mxu0 %v3670
      %v3782 = vpop.f32.mrf.mxu0
      %v3783 = vadd.f32 0.0, %v3782
      %v3784 = vpop.f32.mrf.mxu0
      %v3785 = vadd.f32 0.0, %v3784
      %3786 = vmatmul.bf16.gmra.mxu0 %v3673
      %v3787 = vpop.f32.mrf.mxu0
      %v3788 = vadd.f32 0.0, %v3787
      %v3789 = vpop.f32.mrf.mxu0
      %v3790 = vadd.f32 0.0, %v3789
      %3791 = vmatmul.bf16.gmra.mxu0 %v3676
      %v3792 = vpop.f32.mrf.mxu0
      %v3793 = vadd.f32 0.0, %v3792
      %v3794 = vpop.f32.mrf.mxu0
      %v3795 = vadd.f32 0.0, %v3794
      %3796 = vmatmul.bf16.gmra.mxu0 %v3679
      %v3797 = vpop.f32.mrf.mxu0
      %v3798 = vadd.f32 0.0, %v3797
      %v3799 = vpop.f32.mrf.mxu0
      %v3800 = vadd.f32 0.0, %v3799
      %3801 = vmatmul.bf16.gmra.mxu0 %v3682
      %v3802 = vpop.f32.mrf.mxu0
      %v3803 = vadd.f32 0.0, %v3802
      %v3804 = vpop.f32.mrf.mxu0
      %v3805 = vadd.f32 0.0, %v3804
      %3806 = vmatmul.bf16.gmra.mxu0 %v3685
      %v3807 = vpop.f32.mrf.mxu0
      %v3808 = vadd.f32 0.0, %v3807
      %v3809 = vpop.f32.mrf.mxu0
      %v3810 = vadd.f32 0.0, %v3809
      %3811 = vmatmul.bf16.gmra.mxu0 %v3688
      %v3812 = vpop.f32.mrf.mxu0
      %v3813 = vadd.f32 0.0, %v3812
      %v3814 = vpop.f32.mrf.mxu0
      %v3815 = vadd.f32 0.0, %v3814
      %3816 = vmatmul.bf16.gmra.mxu0 %v3691
      %v3817 = vpop.f32.mrf.mxu0
      %v3818 = vadd.f32 0.0, %v3817
      %v3819 = vpop.f32.mrf.mxu0
      %v3820 = vadd.f32 0.0, %v3819
      %3821 = vmatmul.bf16.gmra.mxu0 %v3694
      %v3822 = vpop.f32.mrf.mxu0
      %v3823 = vadd.f32 0.0, %v3822
      %v3824 = vpop.f32.mrf.mxu0
      %v3825 = vadd.f32 0.0, %v3824
      %3826 = vmatmul.bf16.gmra.mxu0 %v3697
      %v3827 = vpop.f32.mrf.mxu0
      %v3828 = vadd.f32 0.0, %v3827
      %v3829 = vpop.f32.mrf.mxu0
      %v3830 = vadd.f32 0.0, %v3829
      %3831 = vmatmul.bf16.gmra.mxu0 %v3700
      %v3832 = vpop.f32.mrf.mxu0
      %v3833 = vadd.f32 0.0, %v3832
      %v3834 = vpop.f32.mrf.mxu0
      %v3835 = vadd.f32 0.0, %v3834
      %3836 = vmatmul.bf16.gmra.mxu0 %v3703
      %v3837 = vpop.f32.mrf.mxu0
      %v3838 = vadd.f32 0.0, %v3837
      %v3839 = vpop.f32.mrf.mxu0
      %v3840 = vadd.f32 0.0, %v3839
      %3841 = vmatmul.bf16.gmra.mxu0 %v3706
      %v3842 = vpop.f32.mrf.mxu0
      %v3843 = vadd.f32 0.0, %v3842
      %v3844 = vpop.f32.mrf.mxu0
      %v3845 = vadd.f32 0.0, %v3844
      %3846 = vmatmul.bf16.gmra.mxu0 %v3709
      %v3847 = vpop.f32.mrf.mxu0
      %v3848 = vadd.f32 0.0, %v3847
      %v3849 = vpop.f32.mrf.mxu0
      %v3850 = vadd.f32 0.0, %v3849
      %3851 = vmatmul.bf16.gmra.mxu0 %v3712
      %v3852 = vpop.f32.mrf.mxu0
      %v3853 = vadd.f32 0.0, %v3852
      %v3854 = vpop.f32.mrf.mxu0
      %v3855 = vadd.f32 0.0, %v3854
      %3856 = vmatmul.bf16.gmra.mxu0 %v3715
      %v3857 = vpop.f32.mrf.mxu0
      %v3858 = vadd.f32 0.0, %v3857
      %v3859 = vpop.f32.mrf.mxu0
      %v3860 = vadd.f32 0.0, %v3859
      %3861 = vmatmul.bf16.gmra.mxu0 %v3718
      %v3862 = vpop.f32.mrf.mxu0
      %v3863 = vadd.f32 0.0, %v3862
      %v3864 = vpop.f32.mrf.mxu0
      %v3865 = vadd.f32 0.0, %v3864
      %3866 = vmatmul.bf16.gmra.mxu0 %v3721
      %v3867 = vpop.f32.mrf.mxu0
      %v3868 = vadd.f32 0.0, %v3867
      %v3869 = vpop.f32.mrf.mxu0
      %v3870 = vadd.f32 0.0, %v3869
      %3871 = vmatmul.bf16.gmra.mxu0 %v3724
      %v3872 = vpop.f32.mrf.mxu0
      %v3873 = vadd.f32 0.0, %v3872
      %v3874 = vpop.f32.mrf.mxu0
      %v3875 = vadd.f32 0.0, %v3874
      %3876 = vmatmul.bf16.gmra.mxu0 %v3727
      %v3877 = vpop.f32.mrf.mxu0
      %v3878 = vadd.f32 0.0, %v3877
      %v3879 = vpop.f32.mrf.mxu0
      %v3880 = vadd.f32 0.0, %v3879
      %3881 = vmatmul.bf16.gmra.mxu0 %v3730
      %v3882 = vpop.f32.mrf.mxu0
      %v3883 = vadd.f32 0.0, %v3882
      %v3884 = vpop.f32.mrf.mxu0
      %v3885 = vadd.f32 0.0, %v3884
      %3886 = vmatmul.bf16.gmra.mxu0 %v3733
      %v3887 = vpop.f32.mrf.mxu0
      %v3888 = vadd.f32 0.0, %v3887
      %v3889 = vpop.f32.mrf.mxu0
      %v3890 = vadd.f32 0.0, %v3889
      %3891 = vmatmul.bf16.gmra.mxu0 %v3736
      %v3892 = vpop.f32.mrf.mxu0
      %v3893 = vadd.f32 0.0, %v3892
      %v3894 = vpop.f32.mrf.mxu0
      %v3895 = vadd.f32 0.0, %v3894
      %3896 = vmatmul.bf16.gmra.mxu0 %v3739
      %v3897 = vpop.f32.mrf.mxu0
      %v3898 = vadd.f32 0.0, %v3897
      %v3899 = vpop.f32.mrf.mxu0
      %v3900 = vadd.f32 0.0, %v3899
      %3901 = vmatmul.bf16.gmra.mxu0 %v3742
      %v3902 = vpop.f32.mrf.mxu0
      %v3903 = vadd.f32 0.0, %v3902
      %v3904 = vpop.f32.mrf.mxu0
      %v3905 = vadd.f32 0.0, %v3904
      %3906 = vmatmul.bf16.gmra.mxu0 %v3745
      %v3907 = vpop.f32.mrf.mxu0
      %v3908 = vadd.f32 0.0, %v3907
      %v3909 = vpop.f32.mrf.mxu0
      %v3910 = vadd.f32 0.0, %v3909
      %3911 = vmatmul.bf16.gmra.mxu0 %v3748
      %v3912 = vpop.f32.mrf.mxu0
      %v3913 = vadd.f32 0.0, %v3912
      %v3914 = vpop.f32.mrf.mxu0
      %v3915 = vadd.f32 0.0, %v3914
      %3916 = vmatmul.bf16.gmra.mxu0 %v3751
      %v3917 = vpop.f32.mrf.mxu0
      %v3918 = vadd.f32 0.0, %v3917
      %v3919 = vpop.f32.mrf.mxu0
      %v3920 = vadd.f32 0.0, %v3919
      %3921 = vdwg.mxu0
      %v3922 = vadd.f32 %v499, %v3763
      %v3923 = vadd.f32 %v639, %v3765
      %v3924 = vadd.f32 %v501, %v3768
      %v3925 = vadd.f32 %v640, %v3770
      %v3926 = vadd.f32 %v504, %v3773
      %v3927 = vadd.f32 %v641, %v3775
      %v3928 = vadd.f32 %v506, %v3778
      %v3929 = vadd.f32 %v642, %v3780
      %v3930 = vadd.f32 %v509, %v3783
      %v3931 = vadd.f32 %v643, %v3785
      %v3932 = vadd.f32 %v511, %v3788
      %v3933 = vadd.f32 %v644, %v3790
      %v3934 = vadd.f32 %v514, %v3793
      %v3935 = vadd.f32 %v645, %v3795
      %v3936 = vadd.f32 %v516, %v3798
      %v3937 = vadd.f32 %v646, %v3800
      %v3938 = vadd.f32 %v519, %v3803
      %v3939 = vadd.f32 %v647, %v3805
      %v3940 = vadd.f32 %v521, %v3808
      %v3941 = vadd.f32 %v648, %v3810
      %v3942 = vadd.f32 %v524, %v3813
      %v3943 = vadd.f32 %v649, %v3815
      %v3944 = vadd.f32 %v526, %v3818
      %v3945 = vadd.f32 %v650, %v3820
      %v3946 = vadd.f32 %v529, %v3823
      %v3947 = vadd.f32 %v651, %v3825
      %v3948 = vadd.f32 %v531, %v3828
      %v3949 = vadd.f32 %v652, %v3830
      %v3950 = vadd.f32 %v534, %v3833
      %v3951 = vadd.f32 %v653, %v3835
      %v3952 = vadd.f32 %v536, %v3838
      %v3953 = vadd.f32 %v654, %v3840
      %v3954 = vadd.f32 %v539, %v3843
      %v3955 = vadd.f32 %v655, %v3845
      %v3956 = vadd.f32 %v541, %v3848
      %v3957 = vadd.f32 %v656, %v3850
      %v3958 = vadd.f32 %v544, %v3853
      %v3959 = vadd.f32 %v657, %v3855
      %v3960 = vadd.f32 %v546, %v3858
      %v3961 = vadd.f32 %v658, %v3860
      %v3962 = vadd.f32 %v549, %v3863
      %v3963 = vadd.f32 %v659, %v3865
      %v3964 = vadd.f32 %v551, %v3868
      %v3965 = vadd.f32 %v660, %v3870
      %v3966 = vadd.f32 %v554, %v3873
      %v3967 = vadd.f32 %v661, %v3875
      %v3968 = vadd.f32 %v556, %v3878
      %v3969 = vadd.f32 %v662, %v3880
      %v3970 = vadd.f32 %v559, %v3883
      %v3971 = vadd.f32 %v663, %v3885
      %v3972 = vadd.f32 %v561, %v3888
      %v3973 = vadd.f32 %v664, %v3890
      %v3974 = vadd.f32 %v564, %v3893
      %v3975 = vadd.f32 %v665, %v3895
      %v3976 = vadd.f32 %v566, %v3898
      %v3977 = vadd.f32 %v666, %v3900
      %v3978 = vadd.f32 %v569, %v3903
      %v3979 = vadd.f32 %v667, %v3905
      %v3980 = vadd.f32 %v571, %v3908
      %v3981 = vadd.f32 %v668, %v3910
      %v3982 = vadd.f32 %v574, %v3913
      %v3983 = vadd.f32 %v669, %v3915
      %v3984 = vadd.f32 %v576, %v3918
      %v3985 = vadd.f32 %v670, %v3920
      %v3986 = vpack.c.bf16 %v3923, %v3922
      %v3987 = vpack.c.bf16 %v3925, %v3924
      %v3988 = vpack.c.bf16 %v3927, %v3926
      %v3989 = vpack.c.bf16 %v3929, %v3928
      %v3990 = vpack.c.bf16 %v3931, %v3930
      %v3991 = vpack.c.bf16 %v3933, %v3932
      %v3992 = vpack.c.bf16 %v3935, %v3934
      %v3993 = vpack.c.bf16 %v3937, %v3936
      %v3994 = vpack.c.bf16 %v3939, %v3938
      %v3995 = vpack.c.bf16 %v3941, %v3940
      %v3996 = vpack.c.bf16 %v3943, %v3942
      %v3997 = vpack.c.bf16 %v3945, %v3944
      %v3998 = vpack.c.bf16 %v3947, %v3946
      %v3999 = vpack.c.bf16 %v3949, %v3948
      %v4000 = vpack.c.bf16 %v3951, %v3950
      %v4001 = vpack.c.bf16 %v3953, %v3952
      %v4002 = vpack.c.bf16 %v3955, %v3954
      %v4003 = vpack.c.bf16 %v3957, %v3956
      %v4004 = vpack.c.bf16 %v3959, %v3958
      %v4005 = vpack.c.bf16 %v3961, %v3960
      %v4006 = vpack.c.bf16 %v3963, %v3962
      %v4007 = vpack.c.bf16 %v3965, %v3964
      %v4008 = vpack.c.bf16 %v3967, %v3966
      %v4009 = vpack.c.bf16 %v3969, %v3968
      %v4010 = vpack.c.bf16 %v3971, %v3970
      %v4011 = vpack.c.bf16 %v3973, %v3972
      %v4012 = vpack.c.bf16 %v3975, %v3974
      %v4013 = vpack.c.bf16 %v3977, %v3976
      %v4014 = vpack.c.bf16 %v3979, %v3978
      %v4015 = vpack.c.bf16 %v3981, %v3980
      %v4016 = vpack.c.bf16 %v3983, %v3982
      %v4017 = vpack.c.bf16 %v3985, %v3984
      %v4018 = vld [vmem:[%s4 + $0x30] sm:$0xf]
      %v4019 = vld [vmem:[%s4 + $0x34] sm:$0xf]
      %v4020 = vld [vmem:[%s4 + $0x38] sm:$0xf]
      %v4021 = vld [vmem:[%s4 + $0x3c] sm:$0xf]
      %v4022 = vld [vmem:[%s5 + $0x2] sm:$0x1]
      %v4023 = vperm.slane %v4022, 0
      %v4028 = vunpack.c.l.b16 %v4018
      %v4029 = vunpack.c.l.b16 %v4019
      %v4030 = vunpack.c.l.b16 %v4020
      %v4031 = vunpack.c.l.b16 %v4021
      %v4032 = vpack.c.b16 %v4029, %v4028
      %v4033 = vpack.c.b16 %v4031, %v4030
      %v4037 = vsel %vm719, %v3986, 0
      %v4040 = vsel %vm719, %v3987, 0
      %v4043 = vsel %vm719, %v3988, 0
      %v4046 = vsel %vm719, %v3989, 0
      %v4049 = vsel %vm719, %v3990, 0
      %v4052 = vsel %vm719, %v3991, 0
      %v4055 = vsel %vm719, %v3992, 0
      %v4058 = vsel %vm719, %v3993, 0
      %v4061 = vsel %vm719, %v3994, 0
      %v4064 = vsel %vm719, %v3995, 0
      %v4067 = vsel %vm719, %v3996, 0
      %v4070 = vsel %vm719, %v3997, 0
      %v4073 = vsel %vm719, %v3998, 0
      %v4076 = vsel %vm719, %v3999, 0
      %v4079 = vsel %vm719, %v4000, 0
      %v4082 = vsel %vm719, %v4001, 0
      %v4085 = vsel %vm719, %v4002, 0
      %v4088 = vsel %vm719, %v4003, 0
      %v4091 = vsel %vm719, %v4004, 0
      %v4094 = vsel %vm719, %v4005, 0
      %v4097 = vsel %vm719, %v4006, 0
      %v4100 = vsel %vm719, %v4007, 0
      %v4103 = vsel %vm719, %v4008, 0
      %v4106 = vsel %vm719, %v4009, 0
      %v4109 = vsel %vm719, %v4010, 0
      %v4112 = vsel %vm719, %v4011, 0
      %v4115 = vsel %vm719, %v4012, 0
      %v4118 = vsel %vm719, %v4013, 0
      %v4121 = vsel %vm719, %v4014, 0
      %v4124 = vsel %vm719, %v4015, 0
      %v4127 = vsel %vm719, %v4016, 0
      %v4130 = vsel %vm719, %v4017, 0
      %4132 = vmatpush.bf16.msra.mxu0 0
      %4133 = vmatpush.bf16.msra.mxu0 0
      %4134 = vmatpush.bf16.msra.mxu0 0
      %4135 = vmatpush.bf16.msra.mxu0 0
      %4136 = vmatpush.bf16.msra.mxu0 0
      %4137 = vmatpush.bf16.msra.mxu0 0
      %4138 = vmatpush.bf16.msra.mxu0 %v4033
      %4139 = vmatpush.bf16.msra.mxu0 %v4032
      %4140 = vmatmul.bf16.gmra.mxu0 %v4037
      %v4141 = vpop.f32.mrf.mxu0
      %v4142 = vadd.f32 %v4023, %v4141
      %v4143 = vpop.f32.mrf.mxu0
      %v4144 = vadd.f32 %v4023, %v4143
      %4145 = vmatmul.bf16.gmra.mxu0 %v4040
      %v4146 = vpop.f32.mrf.mxu0
      %v4147 = vadd.f32 %v4023, %v4146
      %v4148 = vpop.f32.mrf.mxu0
      %v4149 = vadd.f32 %v4023, %v4148
      %4150 = vmatmul.bf16.gmra.mxu0 %v4043
      %v4151 = vpop.f32.mrf.mxu0
      %v4152 = vadd.f32 %v4023, %v4151
      %v4153 = vpop.f32.mrf.mxu0
      %v4154 = vadd.f32 %v4023, %v4153
      %4155 = vmatmul.bf16.gmra.mxu0 %v4046
      %v4156 = vpop.f32.mrf.mxu0
      %v4157 = vadd.f32 %v4023, %v4156
      %v4158 = vpop.f32.mrf.mxu0
      %v4159 = vadd.f32 %v4023, %v4158
      %4160 = vmatmul.bf16.gmra.mxu0 %v4049
      %v4161 = vpop.f32.mrf.mxu0
      %v4162 = vadd.f32 %v4023, %v4161
      %v4163 = vpop.f32.mrf.mxu0
      %v4164 = vadd.f32 %v4023, %v4163
      %4165 = vmatmul.bf16.gmra.mxu0 %v4052
      %v4166 = vpop.f32.mrf.mxu0
      %v4167 = vadd.f32 %v4023, %v4166
      %v4168 = vpop.f32.mrf.mxu0
      %v4169 = vadd.f32 %v4023, %v4168
      %4170 = vmatmul.bf16.gmra.mxu0 %v4055
      %v4171 = vpop.f32.mrf.mxu0
      %v4172 = vadd.f32 %v4023, %v4171
      %v4173 = vpop.f32.mrf.mxu0
      %v4174 = vadd.f32 %v4023, %v4173
      %4175 = vmatmul.bf16.gmra.mxu0 %v4058
      %v4176 = vpop.f32.mrf.mxu0
      %v4177 = vadd.f32 %v4023, %v4176
      %v4178 = vpop.f32.mrf.mxu0
      %v4179 = vadd.f32 %v4023, %v4178
      %4180 = vmatmul.bf16.gmra.mxu0 %v4061
      %v4181 = vpop.f32.mrf.mxu0
      %v4182 = vadd.f32 %v4023, %v4181
      %v4183 = vpop.f32.mrf.mxu0
      %v4184 = vadd.f32 %v4023, %v4183
      %4185 = vmatmul.bf16.gmra.mxu0 %v4064
      %v4186 = vpop.f32.mrf.mxu0
      %v4187 = vadd.f32 %v4023, %v4186
      %v4188 = vpop.f32.mrf.mxu0
      %v4189 = vadd.f32 %v4023, %v4188
      %4190 = vmatmul.bf16.gmra.mxu0 %v4067
      %v4191 = vpop.f32.mrf.mxu0
      %v4192 = vadd.f32 %v4023, %v4191
      %v4193 = vpop.f32.mrf.mxu0
      %v4194 = vadd.f32 %v4023, %v4193
      %4195 = vmatmul.bf16.gmra.mxu0 %v4070
      %v4196 = vpop.f32.mrf.mxu0
      %v4197 = vadd.f32 %v4023, %v4196
      %v4198 = vpop.f32.mrf.mxu0
      %v4199 = vadd.f32 %v4023, %v4198
      %4200 = vmatmul.bf16.gmra.mxu0 %v4073
      %v4201 = vpop.f32.mrf.mxu0
      %v4202 = vadd.f32 %v4023, %v4201
      %v4203 = vpop.f32.mrf.mxu0
      %v4204 = vadd.f32 %v4023, %v4203
      %4205 = vmatmul.bf16.gmra.mxu0 %v4076
      %v4206 = vpop.f32.mrf.mxu0
      %v4207 = vadd.f32 %v4023, %v4206
      %v4208 = vpop.f32.mrf.mxu0
      %v4209 = vadd.f32 %v4023, %v4208
      %4210 = vmatmul.bf16.gmra.mxu0 %v4079
      %v4211 = vpop.f32.mrf.mxu0
      %v4212 = vadd.f32 %v4023, %v4211
      %v4213 = vpop.f32.mrf.mxu0
      %v4214 = vadd.f32 %v4023, %v4213
      %4215 = vmatmul.bf16.gmra.mxu0 %v4082
      %v4216 = vpop.f32.mrf.mxu0
      %v4217 = vadd.f32 %v4023, %v4216
      %v4218 = vpop.f32.mrf.mxu0
      %v4219 = vadd.f32 %v4023, %v4218
      %4220 = vmatmul.bf16.gmra.mxu0 %v4085
      %v4221 = vpop.f32.mrf.mxu0
      %v4222 = vadd.f32 %v4023, %v4221
      %v4223 = vpop.f32.mrf.mxu0
      %v4224 = vadd.f32 %v4023, %v4223
      %4225 = vmatmul.bf16.gmra.mxu0 %v4088
      %v4226 = vpop.f32.mrf.mxu0
      %v4227 = vadd.f32 %v4023, %v4226
      %v4228 = vpop.f32.mrf.mxu0
      %v4229 = vadd.f32 %v4023, %v4228
      %4230 = vmatmul.bf16.gmra.mxu0 %v4091
      %v4231 = vpop.f32.mrf.mxu0
      %v4232 = vadd.f32 %v4023, %v4231
      %v4233 = vpop.f32.mrf.mxu0
      %v4234 = vadd.f32 %v4023, %v4233
      %4235 = vmatmul.bf16.gmra.mxu0 %v4094
      %v4236 = vpop.f32.mrf.mxu0
      %v4237 = vadd.f32 %v4023, %v4236
      %v4238 = vpop.f32.mrf.mxu0
      %v4239 = vadd.f32 %v4023, %v4238
      %4240 = vmatmul.bf16.gmra.mxu0 %v4097
      %v4241 = vpop.f32.mrf.mxu0
      %v4242 = vadd.f32 %v4023, %v4241
      %v4243 = vpop.f32.mrf.mxu0
      %v4244 = vadd.f32 %v4023, %v4243
      %4245 = vmatmul.bf16.gmra.mxu0 %v4100
      %v4246 = vpop.f32.mrf.mxu0
      %v4247 = vadd.f32 %v4023, %v4246
      %v4248 = vpop.f32.mrf.mxu0
      %v4249 = vadd.f32 %v4023, %v4248
      %4250 = vmatmul.bf16.gmra.mxu0 %v4103
      %v4251 = vpop.f32.mrf.mxu0
      %v4252 = vadd.f32 %v4023, %v4251
      %v4253 = vpop.f32.mrf.mxu0
      %v4254 = vadd.f32 %v4023, %v4253
      %4255 = vmatmul.bf16.gmra.mxu0 %v4106
      %v4256 = vpop.f32.mrf.mxu0
      %v4257 = vadd.f32 %v4023, %v4256
      %v4258 = vpop.f32.mrf.mxu0
      %v4259 = vadd.f32 %v4023, %v4258
      %4260 = vmatmul.bf16.gmra.mxu0 %v4109
      %v4261 = vpop.f32.mrf.mxu0
      %v4262 = vadd.f32 %v4023, %v4261
      %v4263 = vpop.f32.mrf.mxu0
      %v4264 = vadd.f32 %v4023, %v4263
      %4265 = vmatmul.bf16.gmra.mxu0 %v4112
      %v4266 = vpop.f32.mrf.mxu0
      %v4267 = vadd.f32 %v4023, %v4266
      %v4268 = vpop.f32.mrf.mxu0
      %v4269 = vadd.f32 %v4023, %v4268
      %4270 = vmatmul.bf16.gmra.mxu0 %v4115
      %v4271 = vpop.f32.mrf.mxu0
      %v4272 = vadd.f32 %v4023, %v4271
      %v4273 = vpop.f32.mrf.mxu0
      %v4274 = vadd.f32 %v4023, %v4273
      %4275 = vmatmul.bf16.gmra.mxu0 %v4118
      %v4276 = vpop.f32.mrf.mxu0
      %v4277 = vadd.f32 %v4023, %v4276
      %v4278 = vpop.f32.mrf.mxu0
      %v4279 = vadd.f32 %v4023, %v4278
      %4280 = vmatmul.bf16.gmra.mxu0 %v4121
      %v4281 = vpop.f32.mrf.mxu0
      %v4282 = vadd.f32 %v4023, %v4281
      %v4283 = vpop.f32.mrf.mxu0
      %v4284 = vadd.f32 %v4023, %v4283
      %4285 = vmatmul.bf16.gmra.mxu0 %v4124
      %v4286 = vpop.f32.mrf.mxu0
      %v4287 = vadd.f32 %v4023, %v4286
      %v4288 = vpop.f32.mrf.mxu0
      %v4289 = vadd.f32 %v4023, %v4288
      %4290 = vmatmul.bf16.gmra.mxu0 %v4127
      %v4291 = vpop.f32.mrf.mxu0
      %v4292 = vadd.f32 %v4023, %v4291
      %v4293 = vpop.f32.mrf.mxu0
      %v4294 = vadd.f32 %v4023, %v4293
      %4295 = vmatmul.bf16.gmra.mxu0 %v4130
      %v4296 = vpop.f32.mrf.mxu0
      %v4297 = vadd.f32 %v4023, %v4296
      %v4298 = vpop.f32.mrf.mxu0
      %v4299 = vadd.f32 %v4023, %v4298
      %4300 = vdwg.mxu0
      %v4301 = vmax.f32 %v4142, 0.0
      %v4302 = vmax.f32 %v4144, 0.0
      %v4303 = vmax.f32 %v4147, 0.0
      %v4304 = vmax.f32 %v4149, 0.0
      %v4305 = vmax.f32 %v4152, 0.0
      %v4306 = vmax.f32 %v4154, 0.0
      %v4307 = vmax.f32 %v4157, 0.0
      %v4308 = vmax.f32 %v4159, 0.0
      %v4309 = vmax.f32 %v4162, 0.0
      %v4310 = vmax.f32 %v4164, 0.0
      %v4311 = vmax.f32 %v4167, 0.0
      %v4312 = vmax.f32 %v4169, 0.0
      %v4313 = vmax.f32 %v4172, 0.0
      %v4314 = vmax.f32 %v4174, 0.0
      %v4315 = vmax.f32 %v4177, 0.0
      %v4316 = vmax.f32 %v4179, 0.0
      %v4317 = vmax.f32 %v4182, 0.0
      %v4318 = vmax.f32 %v4184, 0.0
      %v4319 = vmax.f32 %v4187, 0.0
      %v4320 = vmax.f32 %v4189, 0.0
      %v4321 = vmax.f32 %v4192, 0.0
      %v4322 = vmax.f32 %v4194, 0.0
      %v4323 = vmax.f32 %v4197, 0.0
      %v4324 = vmax.f32 %v4199, 0.0
      %v4325 = vmax.f32 %v4202, 0.0
      %v4326 = vmax.f32 %v4204, 0.0
      %v4327 = vmax.f32 %v4207, 0.0
      %v4328 = vmax.f32 %v4209, 0.0
      %v4329 = vmax.f32 %v4212, 0.0
      %v4330 = vmax.f32 %v4214, 0.0
      %v4331 = vmax.f32 %v4217, 0.0
      %v4332 = vmax.f32 %v4219, 0.0
      %v4333 = vmax.f32 %v4222, 0.0
      %v4334 = vmax.f32 %v4224, 0.0
      %v4335 = vmax.f32 %v4227, 0.0
      %v4336 = vmax.f32 %v4229, 0.0
      %v4337 = vmax.f32 %v4232, 0.0
      %v4338 = vmax.f32 %v4234, 0.0
      %v4339 = vmax.f32 %v4237, 0.0
      %v4340 = vmax.f32 %v4239, 0.0
      %v4341 = vmax.f32 %v4242, 0.0
      %v4342 = vmax.f32 %v4244, 0.0
      %v4343 = vmax.f32 %v4247, 0.0
      %v4344 = vmax.f32 %v4249, 0.0
      %v4345 = vmax.f32 %v4252, 0.0
      %v4346 = vmax.f32 %v4254, 0.0
      %v4347 = vmax.f32 %v4257, 0.0
      %v4348 = vmax.f32 %v4259, 0.0
      %v4349 = vmax.f32 %v4262, 0.0
      %v4350 = vmax.f32 %v4264, 0.0
      %v4351 = vmax.f32 %v4267, 0.0
      %v4352 = vmax.f32 %v4269, 0.0
      %v4353 = vmax.f32 %v4272, 0.0
      %v4354 = vmax.f32 %v4274, 0.0
      %v4355 = vmax.f32 %v4277, 0.0
      %v4356 = vmax.f32 %v4279, 0.0
      %v4357 = vmax.f32 %v4282, 0.0
      %v4358 = vmax.f32 %v4284, 0.0
      %v4359 = vmax.f32 %v4287, 0.0
      %v4360 = vmax.f32 %v4289, 0.0
      %v4361 = vmax.f32 %v4292, 0.0
      %v4362 = vmax.f32 %v4294, 0.0
      %v4363 = vmax.f32 %v4297, 0.0
      %v4364 = vmax.f32 %v4299, 0.0
      %v4365 = vpack.c.bf16 %v4302, %v4301
      %v4366 = vpack.c.bf16 %v4304, %v4303
      %v4367 = vpack.c.bf16 %v4306, %v4305
      %v4368 = vpack.c.bf16 %v4308, %v4307
      %v4369 = vpack.c.bf16 %v4310, %v4309
      %v4370 = vpack.c.bf16 %v4312, %v4311
      %v4371 = vpack.c.bf16 %v4314, %v4313
      %v4372 = vpack.c.bf16 %v4316, %v4315
      %v4373 = vpack.c.bf16 %v4318, %v4317
      %v4374 = vpack.c.bf16 %v4320, %v4319
      %v4375 = vpack.c.bf16 %v4322, %v4321
      %v4376 = vpack.c.bf16 %v4324, %v4323
      %v4377 = vpack.c.bf16 %v4326, %v4325
      %v4378 = vpack.c.bf16 %v4328, %v4327
      %v4379 = vpack.c.bf16 %v4330, %v4329
      %v4380 = vpack.c.bf16 %v4332, %v4331
      %v4381 = vpack.c.bf16 %v4334, %v4333
      %v4382 = vpack.c.bf16 %v4336, %v4335
      %v4383 = vpack.c.bf16 %v4338, %v4337
      %v4384 = vpack.c.bf16 %v4340, %v4339
      %v4385 = vpack.c.bf16 %v4342, %v4341
      %v4386 = vpack.c.bf16 %v4344, %v4343
      %v4387 = vpack.c.bf16 %v4346, %v4345
      %v4388 = vpack.c.bf16 %v4348, %v4347
      %v4389 = vpack.c.bf16 %v4350, %v4349
      %v4390 = vpack.c.bf16 %v4352, %v4351
      %v4391 = vpack.c.bf16 %v4354, %v4353
      %v4392 = vpack.c.bf16 %v4356, %v4355
      %v4393 = vpack.c.bf16 %v4358, %v4357
      %v4394 = vpack.c.bf16 %v4360, %v4359
      %v4395 = vpack.c.bf16 %v4362, %v4361
      %v4396 = vpack.c.bf16 %v4364, %v4363
      %v4397 = vld [vmem:[%s4 + $0x40] sm:$0xf]
      %v4398 = vld [vmem:[%s4 + $0x44] sm:$0xf]
      %v4399 = vld [vmem:[%s4 + $0x48] sm:$0xf]
      %v4400 = vld [vmem:[%s4 + $0x4c] sm:$0xf]
      %v4401 = vld [vmem:[%s4 + $0x50] sm:$0xf]
      %v4402 = vld [vmem:[%s4 + $0x54] sm:$0xf]
      %v4403 = vld [vmem:[%s4 + $0x58] sm:$0xf]
      %v4404 = vld [vmem:[%s4 + $0x5c] sm:$0xf]
      %v4413 = vunpack.c.l.b16 %v4397
      %v4414 = vunpack.c.l.b16 %v4398
      %v4415 = vunpack.c.l.b16 %v4399
      %v4416 = vunpack.c.l.b16 %v4400
      %v4417 = vunpack.c.l.b16 %v4401
      %v4418 = vunpack.c.l.b16 %v4402
      %v4419 = vunpack.c.l.b16 %v4403
      %v4420 = vunpack.c.l.b16 %v4404
      %v4421 = vpack.c.b16 %v4414, %v4413
      %v4422 = vpack.c.b16 %v4416, %v4415
      %v4423 = vpack.c.b16 %v4418, %v4417
      %v4424 = vpack.c.b16 %v4420, %v4419
      %vm4429 = vcmask 523264
      %v4431 = vsel %vm4429, %v4365, 0
      %v4434 = vsel %vm4429, %v4366, 0
      %v4437 = vsel %vm4429, %v4367, 0
      %v4440 = vsel %vm4429, %v4368, 0
      %v4443 = vsel %vm4429, %v4369, 0
      %v4446 = vsel %vm4429, %v4370, 0
      %v4449 = vsel %vm4429, %v4371, 0
      %v4452 = vsel %vm4429, %v4372, 0
      %v4455 = vsel %vm4429, %v4373, 0
      %v4458 = vsel %vm4429, %v4374, 0
      %v4461 = vsel %vm4429, %v4375, 0
      %v4464 = vsel %vm4429, %v4376, 0
      %v4467 = vsel %vm4429, %v4377, 0
      %v4470 = vsel %vm4429, %v4378, 0
      %v4473 = vsel %vm4429, %v4379, 0
      %v4476 = vsel %vm4429, %v4380, 0
      %v4479 = vsel %vm4429, %v4381, 0
      %v4482 = vsel %vm4429, %v4382, 0
      %v4485 = vsel %vm4429, %v4383, 0
      %v4488 = vsel %vm4429, %v4384, 0
      %v4491 = vsel %vm4429, %v4385, 0
      %v4494 = vsel %vm4429, %v4386, 0
      %v4497 = vsel %vm4429, %v4387, 0
      %v4500 = vsel %vm4429, %v4388, 0
      %v4503 = vsel %vm4429, %v4389, 0
      %v4506 = vsel %vm4429, %v4390, 0
      %v4509 = vsel %vm4429, %v4391, 0
      %v4512 = vsel %vm4429, %v4392, 0
      %v4515 = vsel %vm4429, %v4393, 0
      %v4518 = vsel %vm4429, %v4394, 0
      %v4521 = vsel %vm4429, %v4395, 0
      %v4524 = vsel %vm4429, %v4396, 0
      %4526 = vmatpush.bf16.msra.mxu0 0
      %4527 = vmatpush.bf16.msra.mxu0 0
      %4528 = vmatpush.bf16.msra.mxu0 0
      %4529 = vmatpush.bf16.msra.mxu0 0
      %4530 = vmatpush.bf16.msra.mxu0 %v4424
      %4531 = vmatpush.bf16.msra.mxu0 %v4423
      %4532 = vmatpush.bf16.msra.mxu0 %v4422
      %4533 = vmatpush.bf16.msra.mxu0 %v4421
      %4534 = vmatmul.bf16.gmra.mxu0 %v4431
      %v4535 = vpop.f32.mrf.mxu0
      %v4536 = vadd.f32 0.0, %v4535
      %v4537 = vpop.f32.mrf.mxu0
      %v4538 = vadd.f32 0.0, %v4537
      %4539 = vmatmul.bf16.gmra.mxu0 %v4434
      %v4540 = vpop.f32.mrf.mxu0
      %v4541 = vadd.f32 0.0, %v4540
      %v4542 = vpop.f32.mrf.mxu0
      %v4543 = vadd.f32 0.0, %v4542
      %4544 = vmatmul.bf16.gmra.mxu0 %v4437
      %v4545 = vpop.f32.mrf.mxu0
      %v4546 = vadd.f32 0.0, %v4545
      %v4547 = vpop.f32.mrf.mxu0
      %v4548 = vadd.f32 0.0, %v4547
      %4549 = vmatmul.bf16.gmra.mxu0 %v4440
      %v4550 = vpop.f32.mrf.mxu0
      %v4551 = vadd.f32 0.0, %v4550
      %v4552 = vpop.f32.mrf.mxu0
      %v4553 = vadd.f32 0.0, %v4552
      %4554 = vmatmul.bf16.gmra.mxu0 %v4443
      %v4555 = vpop.f32.mrf.mxu0
      %v4556 = vadd.f32 0.0, %v4555
      %v4557 = vpop.f32.mrf.mxu0
      %v4558 = vadd.f32 0.0, %v4557
      %4559 = vmatmul.bf16.gmra.mxu0 %v4446
      %v4560 = vpop.f32.mrf.mxu0
      %v4561 = vadd.f32 0.0, %v4560
      %v4562 = vpop.f32.mrf.mxu0
      %v4563 = vadd.f32 0.0, %v4562
      %4564 = vmatmul.bf16.gmra.mxu0 %v4449
      %v4565 = vpop.f32.mrf.mxu0
      %v4566 = vadd.f32 0.0, %v4565
      %v4567 = vpop.f32.mrf.mxu0
      %v4568 = vadd.f32 0.0, %v4567
      %4569 = vmatmul.bf16.gmra.mxu0 %v4452
      %v4570 = vpop.f32.mrf.mxu0
      %v4571 = vadd.f32 0.0, %v4570
      %v4572 = vpop.f32.mrf.mxu0
      %v4573 = vadd.f32 0.0, %v4572
      %4574 = vmatmul.bf16.gmra.mxu0 %v4455
      %v4575 = vpop.f32.mrf.mxu0
      %v4576 = vadd.f32 0.0, %v4575
      %v4577 = vpop.f32.mrf.mxu0
      %v4578 = vadd.f32 0.0, %v4577
      %4579 = vmatmul.bf16.gmra.mxu0 %v4458
      %v4580 = vpop.f32.mrf.mxu0
      %v4581 = vadd.f32 0.0, %v4580
      %v4582 = vpop.f32.mrf.mxu0
      %v4583 = vadd.f32 0.0, %v4582
      %4584 = vmatmul.bf16.gmra.mxu0 %v4461
      %v4585 = vpop.f32.mrf.mxu0
      %v4586 = vadd.f32 0.0, %v4585
      %v4587 = vpop.f32.mrf.mxu0
      %v4588 = vadd.f32 0.0, %v4587
      %4589 = vmatmul.bf16.gmra.mxu0 %v4464
      %v4590 = vpop.f32.mrf.mxu0
      %v4591 = vadd.f32 0.0, %v4590
      %v4592 = vpop.f32.mrf.mxu0
      %v4593 = vadd.f32 0.0, %v4592
      %4594 = vmatmul.bf16.gmra.mxu0 %v4467
      %v4595 = vpop.f32.mrf.mxu0
      %v4596 = vadd.f32 0.0, %v4595
      %v4597 = vpop.f32.mrf.mxu0
      %v4598 = vadd.f32 0.0, %v4597
      %4599 = vmatmul.bf16.gmra.mxu0 %v4470
      %v4600 = vpop.f32.mrf.mxu0
      %v4601 = vadd.f32 0.0, %v4600
      %v4602 = vpop.f32.mrf.mxu0
      %v4603 = vadd.f32 0.0, %v4602
      %4604 = vmatmul.bf16.gmra.mxu0 %v4473
      %v4605 = vpop.f32.mrf.mxu0
      %v4606 = vadd.f32 0.0, %v4605
      %v4607 = vpop.f32.mrf.mxu0
      %v4608 = vadd.f32 0.0, %v4607
      %4609 = vmatmul.bf16.gmra.mxu0 %v4476
      %v4610 = vpop.f32.mrf.mxu0
      %v4611 = vadd.f32 0.0, %v4610
      %v4612 = vpop.f32.mrf.mxu0
      %v4613 = vadd.f32 0.0, %v4612
      %4614 = vmatmul.bf16.gmra.mxu0 %v4479
      %v4615 = vpop.f32.mrf.mxu0
      %v4616 = vadd.f32 0.0, %v4615
      %v4617 = vpop.f32.mrf.mxu0
      %v4618 = vadd.f32 0.0, %v4617
      %4619 = vmatmul.bf16.gmra.mxu0 %v4482
      %v4620 = vpop.f32.mrf.mxu0
      %v4621 = vadd.f32 0.0, %v4620
      %v4622 = vpop.f32.mrf.mxu0
      %v4623 = vadd.f32 0.0, %v4622
      %4624 = vmatmul.bf16.gmra.mxu0 %v4485
      %v4625 = vpop.f32.mrf.mxu0
      %v4626 = vadd.f32 0.0, %v4625
      %v4627 = vpop.f32.mrf.mxu0
      %v4628 = vadd.f32 0.0, %v4627
      %4629 = vmatmul.bf16.gmra.mxu0 %v4488
      %v4630 = vpop.f32.mrf.mxu0
      %v4631 = vadd.f32 0.0, %v4630
      %v4632 = vpop.f32.mrf.mxu0
      %v4633 = vadd.f32 0.0, %v4632
      %4634 = vmatmul.bf16.gmra.mxu0 %v4491
      %v4635 = vpop.f32.mrf.mxu0
      %v4636 = vadd.f32 0.0, %v4635
      %v4637 = vpop.f32.mrf.mxu0
      %v4638 = vadd.f32 0.0, %v4637
      %4639 = vmatmul.bf16.gmra.mxu0 %v4494
      %v4640 = vpop.f32.mrf.mxu0
      %v4641 = vadd.f32 0.0, %v4640
      %v4642 = vpop.f32.mrf.mxu0
      %v4643 = vadd.f32 0.0, %v4642
      %4644 = vmatmul.bf16.gmra.mxu0 %v4497
      %v4645 = vpop.f32.mrf.mxu0
      %v4646 = vadd.f32 0.0, %v4645
      %v4647 = vpop.f32.mrf.mxu0
      %v4648 = vadd.f32 0.0, %v4647
      %4649 = vmatmul.bf16.gmra.mxu0 %v4500
      %v4650 = vpop.f32.mrf.mxu0
      %v4651 = vadd.f32 0.0, %v4650
      %v4652 = vpop.f32.mrf.mxu0
      %v4653 = vadd.f32 0.0, %v4652
      %4654 = vmatmul.bf16.gmra.mxu0 %v4503
      %v4655 = vpop.f32.mrf.mxu0
      %v4656 = vadd.f32 0.0, %v4655
      %v4657 = vpop.f32.mrf.mxu0
      %v4658 = vadd.f32 0.0, %v4657
      %4659 = vmatmul.bf16.gmra.mxu0 %v4506
      %v4660 = vpop.f32.mrf.mxu0
      %v4661 = vadd.f32 0.0, %v4660
      %v4662 = vpop.f32.mrf.mxu0
      %v4663 = vadd.f32 0.0, %v4662
      %4664 = vmatmul.bf16.gmra.mxu0 %v4509
      %v4665 = vpop.f32.mrf.mxu0
      %v4666 = vadd.f32 0.0, %v4665
      %v4667 = vpop.f32.mrf.mxu0
      %v4668 = vadd.f32 0.0, %v4667
      %4669 = vmatmul.bf16.gmra.mxu0 %v4512
      %v4670 = vpop.f32.mrf.mxu0
      %v4671 = vadd.f32 0.0, %v4670
      %v4672 = vpop.f32.mrf.mxu0
      %v4673 = vadd.f32 0.0, %v4672
      %4674 = vmatmul.bf16.gmra.mxu0 %v4515
      %v4675 = vpop.f32.mrf.mxu0
      %v4676 = vadd.f32 0.0, %v4675
      %v4677 = vpop.f32.mrf.mxu0
      %v4678 = vadd.f32 0.0, %v4677
      %4679 = vmatmul.bf16.gmra.mxu0 %v4518
      %v4680 = vpop.f32.mrf.mxu0
      %v4681 = vadd.f32 0.0, %v4680
      %v4682 = vpop.f32.mrf.mxu0
      %v4683 = vadd.f32 0.0, %v4682
      %4684 = vmatmul.bf16.gmra.mxu0 %v4521
      %v4685 = vpop.f32.mrf.mxu0
      %v4686 = vadd.f32 0.0, %v4685
      %v4687 = vpop.f32.mrf.mxu0
      %v4688 = vadd.f32 0.0, %v4687
      %4689 = vmatmul.bf16.gmra.mxu0 %v4524
      %v4690 = vpop.f32.mrf.mxu0
      %v4691 = vadd.f32 0.0, %v4690
      %v4692 = vpop.f32.mrf.mxu0
      %v4693 = vadd.f32 0.0, %v4692
      %4694 = vdwg.mxu0
      %v4695 = vadd.f32 %v3922, %v4536
      %v4696 = vadd.f32 %v3923, %v4538
      %v4697 = vadd.f32 %v3924, %v4541
      %v4698 = vadd.f32 %v3925, %v4543
      %v4699 = vadd.f32 %v3926, %v4546
      %v4700 = vadd.f32 %v3927, %v4548
      %v4701 = vadd.f32 %v3928, %v4551
      %v4702 = vadd.f32 %v3929, %v4553
      %v4703 = vadd.f32 %v3930, %v4556
      %v4704 = vadd.f32 %v3931, %v4558
      %v4705 = vadd.f32 %v3932, %v4561
      %v4706 = vadd.f32 %v3933, %v4563
      %v4707 = vadd.f32 %v3934, %v4566
      %v4708 = vadd.f32 %v3935, %v4568
      %v4709 = vadd.f32 %v3936, %v4571
      %v4710 = vadd.f32 %v3937, %v4573
      %v4711 = vadd.f32 %v3938, %v4576
      %v4712 = vadd.f32 %v3939, %v4578
      %v4713 = vadd.f32 %v3940, %v4581
      %v4714 = vadd.f32 %v3941, %v4583
      %v4715 = vadd.f32 %v3942, %v4586
      %v4716 = vadd.f32 %v3943, %v4588
      %v4717 = vadd.f32 %v3944, %v4591
      %v4718 = vadd.f32 %v3945, %v4593
      %v4719 = vadd.f32 %v3946, %v4596
      %v4720 = vadd.f32 %v3947, %v4598
      %v4721 = vadd.f32 %v3948, %v4601
      %v4722 = vadd.f32 %v3949, %v4603
      %v4723 = vadd.f32 %v3950, %v4606
      %v4724 = vadd.f32 %v3951, %v4608
      %v4725 = vadd.f32 %v3952, %v4611
      %v4726 = vadd.f32 %v3953, %v4613
      %v4727 = vadd.f32 %v3954, %v4616
      %v4728 = vadd.f32 %v3955, %v4618
      %v4729 = vadd.f32 %v3956, %v4621
      %v4730 = vadd.f32 %v3957, %v4623
      %v4731 = vadd.f32 %v3958, %v4626
      %v4732 = vadd.f32 %v3959, %v4628
      %v4733 = vadd.f32 %v3960, %v4631
      %v4734 = vadd.f32 %v3961, %v4633
      %v4735 = vadd.f32 %v3962, %v4636
      %v4736 = vadd.f32 %v3963, %v4638
      %v4737 = vadd.f32 %v3964, %v4641
      %v4738 = vadd.f32 %v3965, %v4643
      %v4739 = vadd.f32 %v3966, %v4646
      %v4740 = vadd.f32 %v3967, %v4648
      %v4741 = vadd.f32 %v3968, %v4651
      %v4742 = vadd.f32 %v3969, %v4653
      %v4743 = vadd.f32 %v3970, %v4656
      %v4744 = vadd.f32 %v3971, %v4658
      %v4745 = vadd.f32 %v3972, %v4661
      %v4746 = vadd.f32 %v3973, %v4663
      %v4747 = vadd.f32 %v3974, %v4666
      %v4748 = vadd.f32 %v3975, %v4668
      %v4749 = vadd.f32 %v3976, %v4671
      %v4750 = vadd.f32 %v3977, %v4673
      %v4751 = vadd.f32 %v3978, %v4676
      %v4752 = vadd.f32 %v3979, %v4678
      %v4753 = vadd.f32 %v3980, %v4681
      %v4754 = vadd.f32 %v3981, %v4683
      %v4755 = vadd.f32 %v3982, %v4686
      %v4756 = vadd.f32 %v3983, %v4688
      %v4757 = vadd.f32 %v3984, %v4691
      %v4758 = vadd.f32 %v3985, %v4693
      %v4759 = vld [vmem:[%s5 + $0x3] sm:$0x1]
      %v4760 = vperm.slane %v4759, 0
      %v4761 = vadd.f32 %v4695, %v4760
      %v4762 = vadd.f32 %v4696, %v4760
      %v4763 = vadd.f32 %v4697, %v4760
      %v4764 = vadd.f32 %v4698, %v4760
      %v4765 = vadd.f32 %v4699, %v4760
      %v4766 = vadd.f32 %v4700, %v4760
      %v4767 = vadd.f32 %v4701, %v4760
      %v4768 = vadd.f32 %v4702, %v4760
      %v4769 = vadd.f32 %v4703, %v4760
      %v4770 = vadd.f32 %v4704, %v4760
      %v4771 = vadd.f32 %v4705, %v4760
      %v4772 = vadd.f32 %v4706, %v4760
      %v4773 = vadd.f32 %v4707, %v4760
      %v4774 = vadd.f32 %v4708, %v4760
      %v4775 = vadd.f32 %v4709, %v4760
      %v4776 = vadd.f32 %v4710, %v4760
      %v4777 = vadd.f32 %v4711, %v4760
      %v4778 = vadd.f32 %v4712, %v4760
      %v4779 = vadd.f32 %v4713, %v4760
      %v4780 = vadd.f32 %v4714, %v4760
      %v4781 = vadd.f32 %v4715, %v4760
      %v4782 = vadd.f32 %v4716, %v4760
      %v4783 = vadd.f32 %v4717, %v4760
      %v4784 = vadd.f32 %v4718, %v4760
      %v4785 = vadd.f32 %v4719, %v4760
      %v4786 = vadd.f32 %v4720, %v4760
      %v4787 = vadd.f32 %v4721, %v4760
      %v4788 = vadd.f32 %v4722, %v4760
      %v4789 = vadd.f32 %v4723, %v4760
      %v4790 = vadd.f32 %v4724, %v4760
      %v4791 = vadd.f32 %v4725, %v4760
      %v4792 = vadd.f32 %v4726, %v4760
      %v4793 = vadd.f32 %v4727, %v4760
      %v4794 = vadd.f32 %v4728, %v4760
      %v4795 = vadd.f32 %v4729, %v4760
      %v4796 = vadd.f32 %v4730, %v4760
      %v4797 = vadd.f32 %v4731, %v4760
      %v4798 = vadd.f32 %v4732, %v4760
      %v4799 = vadd.f32 %v4733, %v4760
      %v4800 = vadd.f32 %v4734, %v4760
      %v4801 = vadd.f32 %v4735, %v4760
      %v4802 = vadd.f32 %v4736, %v4760
      %v4803 = vadd.f32 %v4737, %v4760
      %v4804 = vadd.f32 %v4738, %v4760
      %v4805 = vadd.f32 %v4739, %v4760
      %v4806 = vadd.f32 %v4740, %v4760
      %v4807 = vadd.f32 %v4741, %v4760
      %v4808 = vadd.f32 %v4742, %v4760
      %v4809 = vadd.f32 %v4743, %v4760
      %v4810 = vadd.f32 %v4744, %v4760
      %v4811 = vadd.f32 %v4745, %v4760
      %v4812 = vadd.f32 %v4746, %v4760
      %v4813 = vadd.f32 %v4747, %v4760
      %v4814 = vadd.f32 %v4748, %v4760
      %v4815 = vadd.f32 %v4749, %v4760
      %v4816 = vadd.f32 %v4750, %v4760
      %v4817 = vadd.f32 %v4751, %v4760
      %v4818 = vadd.f32 %v4752, %v4760
      %v4819 = vadd.f32 %v4753, %v4760
      %v4820 = vadd.f32 %v4754, %v4760
      %v4821 = vadd.f32 %v4755, %v4760
      %v4822 = vadd.f32 %v4756, %v4760
      %v4823 = vadd.f32 %v4757, %v4760
      %v4824 = vadd.f32 %v4758, %v4760
      %v4857 = vrot.slane %v4764, 7
      %vm4858 = vcmask 1041409
      %v4859 = vsel %vm4858, %v4857, %v4762
      %v4860 = vrot.slane %v4766, 6
      %vm4861 = vcmask 1042434
      %v4862 = vsel %vm4861, %v4860, %v4859
      %v4863 = vrot.slane %v4768, 5
      %vm4864 = vcmask 1043459
      %v4865 = vsel %vm4864, %v4863, %v4862
      %v4866 = vrot.slane %v4770, 4
      %vm4867 = vcmask 1044484
      %v4868 = vsel %vm4867, %v4866, %v4865
      %v4869 = vrot.slane %v4772, 3
      %vm4870 = vcmask 1045509
      %v4871 = vsel %vm4870, %v4869, %v4868
      %v4872 = vrot.slane %v4774, 2
      %vm4873 = vcmask 1046534
      %v4874 = vsel %vm4873, %v4872, %v4871
      %v4875 = vrot.slane %v4776, 1
      %vm4876 = vcmask 1047559
      %v4877 = vsel %vm4876, %v4875, %v4874
      %v4878 = vrot.slane %v4780, 7
      %v4879 = vsel %vm4858, %v4878, %v4778
      %v4880 = vrot.slane %v4782, 6
      %v4881 = vsel %vm4861, %v4880, %v4879
      %v4882 = vrot.slane %v4784, 5
      %v4883 = vsel %vm4864, %v4882, %v4881
      %v4884 = vrot.slane %v4786, 4
      %v4885 = vsel %vm4867, %v4884, %v4883
      %v4886 = vrot.slane %v4788, 3
      %v4887 = vsel %vm4870, %v4886, %v4885
      %v4888 = vrot.slane %v4790, 2
      %v4889 = vsel %vm4873, %v4888, %v4887
      %v4890 = vrot.slane %v4792, 1
      %v4891 = vsel %vm4876, %v4890, %v4889
      %v4892 = vrot.slane %v4796, 7
      %v4893 = vsel %vm4858, %v4892, %v4794
      %v4894 = vrot.slane %v4798, 6
      %v4895 = vsel %vm4861, %v4894, %v4893
      %v4896 = vrot.slane %v4800, 5
      %v4897 = vsel %vm4864, %v4896, %v4895
      %v4898 = vrot.slane %v4802, 4
      %v4899 = vsel %vm4867, %v4898, %v4897
      %v4900 = vrot.slane %v4804, 3
      %v4901 = vsel %vm4870, %v4900, %v4899
      %v4902 = vrot.slane %v4806, 2
      %v4903 = vsel %vm4873, %v4902, %v4901
      %v4904 = vrot.slane %v4808, 1
      %v4905 = vsel %vm4876, %v4904, %v4903
      %v4906 = vrot.slane %v4812, 7
      %v4907 = vsel %vm4858, %v4906, %v4810
      %v4908 = vrot.slane %v4814, 6
      %v4909 = vsel %vm4861, %v4908, %v4907
      %v4910 = vrot.slane %v4816, 5
      %v4911 = vsel %vm4864, %v4910, %v4909
      %v4912 = vrot.slane %v4818, 4
      %v4913 = vsel %vm4867, %v4912, %v4911
      %v4914 = vrot.slane %v4820, 3
      %v4915 = vsel %vm4870, %v4914, %v4913
      %v4916 = vrot.slane %v4822, 2
      %v4917 = vsel %vm4873, %v4916, %v4915
      %v4918 = vrot.slane %v4824, 1
      %v4919 = vsel %vm4876, %v4918, %v4917
      %4924 = vst.msk [vmem:[%s338] sm:$0xff] %vm719, %v4877
      %4925 = vst.msk [vmem:[%s338 + $0x8] sm:$0xff] %vm719, %v4891
      %4926 = vst.msk [vmem:[%s338 + $0x10] sm:$0xff] %vm719, %v4905
      %4927 = vst.msk [vmem:[%s338 + $0x18] sm:$0xff] %vm719, %v4919
      %v4928 = vpack.c.bf16 %v378, %v377
      %v4929 = vpack.c.bf16 %v380, %v379
      %v4930 = vpack.c.bf16 %v382, %v381
      %v4931 = vpack.c.bf16 %v384, %v383
      %v4932 = vpack.c.bf16 %v386, %v385
      %v4933 = vpack.c.bf16 %v388, %v387
      %v4934 = vpack.c.bf16 %v390, %v389
      %v4935 = vpack.c.bf16 %v392, %v391
      %v4936 = vpack.c.bf16 %v394, %v393
      %v4937 = vpack.c.bf16 %v396, %v395
      %v4938 = vpack.c.bf16 %v398, %v397
      %v4939 = vpack.c.bf16 %v400, %v399
      %v4940 = vpack.c.bf16 %v402, %v401
      %v4941 = vpack.c.bf16 %v404, %v403
      %v4942 = vpack.c.bf16 %v406, %v405
      %v4943 = vpack.c.bf16 %v408, %v407
      %v4944 = vld [vmem:[%s4 + $0x8] sm:$0xf]
      %v4945 = vld [vmem:[%s4 + $0xc] sm:$0xf]
      %v4946 = vld [vmem:[%s5 + $0x1] sm:$0x1]
      %v4947 = vperm.slane %v4946, 0
      %v4950 = vunpack.c.l.b16 %v4944
      %v4951 = vunpack.c.l.b16 %v4945
      %v4952 = vpack.c.b16 %v4951, %v4950
      %v4955 = vsel %vm440, %v4928, 0
      %v4958 = vsel %vm440, %v4929, 0
      %v4961 = vsel %vm440, %v4930, 0
      %v4964 = vsel %vm440, %v4931, 0
      %v4967 = vsel %vm440, %v4932, 0
      %v4970 = vsel %vm440, %v4933, 0
      %v4973 = vsel %vm440, %v4934, 0
      %v4976 = vsel %vm440, %v4935, 0
      %v4979 = vsel %vm440, %v4936, 0
      %v4982 = vsel %vm440, %v4937, 0
      %v4985 = vsel %vm440, %v4938, 0
      %v4988 = vsel %vm440, %v4939, 0
      %v4991 = vsel %vm440, %v4940, 0
      %v4994 = vsel %vm440, %v4941, 0
      %v4997 = vsel %vm440, %v4942, 0
      %v5000 = vsel %vm440, %v4943, 0
      %5002 = vmatpush.bf16.msra.mxu0 0
      %5003 = vmatpush.bf16.msra.mxu0 0
      %5004 = vmatpush.bf16.msra.mxu0 0
      %5005 = vmatpush.bf16.msra.mxu0 0
      %5006 = vmatpush.bf16.msra.mxu0 0
      %5007 = vmatpush.bf16.msra.mxu0 0
      %5008 = vmatpush.bf16.msra.mxu0 0
      %5009 = vmatpush.bf16.msra.mxu0 %v4952
      %5010 = vmatmul.bf16.gmra.mxu0 %v4955
      %v5011 = vpop.f32.mrf.mxu0
      %v5012 = vadd.f32 %v4947, %v5011
      %v5013 = vpop.f32.mrf.mxu0
      %v5014 = vadd.f32 %v4947, %v5013
      %5015 = vmatmul.bf16.gmra.mxu0 %v4958
      %v5016 = vpop.f32.mrf.mxu0
      %v5017 = vadd.f32 %v4947, %v5016
      %v5018 = vpop.f32.mrf.mxu0
      %v5019 = vadd.f32 %v4947, %v5018
      %5020 = vmatmul.bf16.gmra.mxu0 %v4961
      %v5021 = vpop.f32.mrf.mxu0
      %v5022 = vadd.f32 %v4947, %v5021
      %v5023 = vpop.f32.mrf.mxu0
      %v5024 = vadd.f32 %v4947, %v5023
      %5025 = vmatmul.bf16.gmra.mxu0 %v4964
      %v5026 = vpop.f32.mrf.mxu0
      %v5027 = vadd.f32 %v4947, %v5026
      %v5028 = vpop.f32.mrf.mxu0
      %v5029 = vadd.f32 %v4947, %v5028
      %5030 = vmatmul.bf16.gmra.mxu0 %v4967
      %v5031 = vpop.f32.mrf.mxu0
      %v5032 = vadd.f32 %v4947, %v5031
      %v5033 = vpop.f32.mrf.mxu0
      %v5034 = vadd.f32 %v4947, %v5033
      %5035 = vmatmul.bf16.gmra.mxu0 %v4970
      %v5036 = vpop.f32.mrf.mxu0
      %v5037 = vadd.f32 %v4947, %v5036
      %v5038 = vpop.f32.mrf.mxu0
      %v5039 = vadd.f32 %v4947, %v5038
      %5040 = vmatmul.bf16.gmra.mxu0 %v4973
      %v5041 = vpop.f32.mrf.mxu0
      %v5042 = vadd.f32 %v4947, %v5041
      %v5043 = vpop.f32.mrf.mxu0
      %v5044 = vadd.f32 %v4947, %v5043
      %5045 = vmatmul.bf16.gmra.mxu0 %v4976
      %v5046 = vpop.f32.mrf.mxu0
      %v5047 = vadd.f32 %v4947, %v5046
      %v5048 = vpop.f32.mrf.mxu0
      %v5049 = vadd.f32 %v4947, %v5048
      %5050 = vmatmul.bf16.gmra.mxu0 %v4979
      %v5051 = vpop.f32.mrf.mxu0
      %v5052 = vadd.f32 %v4947, %v5051
      %v5053 = vpop.f32.mrf.mxu0
      %v5054 = vadd.f32 %v4947, %v5053
      %5055 = vmatmul.bf16.gmra.mxu0 %v4982
      %v5056 = vpop.f32.mrf.mxu0
      %v5057 = vadd.f32 %v4947, %v5056
      %v5058 = vpop.f32.mrf.mxu0
      %v5059 = vadd.f32 %v4947, %v5058
      %5060 = vmatmul.bf16.gmra.mxu0 %v4985
      %v5061 = vpop.f32.mrf.mxu0
      %v5062 = vadd.f32 %v4947, %v5061
      %v5063 = vpop.f32.mrf.mxu0
      %v5064 = vadd.f32 %v4947, %v5063
      %5065 = vmatmul.bf16.gmra.mxu0 %v4988
      %v5066 = vpop.f32.mrf.mxu0
      %v5067 = vadd.f32 %v4947, %v5066
      %v5068 = vpop.f32.mrf.mxu0
      %v5069 = vadd.f32 %v4947, %v5068
      %5070 = vmatmul.bf16.gmra.mxu0 %v4991
      %v5071 = vpop.f32.mrf.mxu0
      %v5072 = vadd.f32 %v4947, %v5071
      %v5073 = vpop.f32.mrf.mxu0
      %v5074 = vadd.f32 %v4947, %v5073
      %5075 = vmatmul.bf16.gmra.mxu0 %v4994
      %v5076 = vpop.f32.mrf.mxu0
      %v5077 = vadd.f32 %v4947, %v5076
      %v5078 = vpop.f32.mrf.mxu0
      %v5079 = vadd.f32 %v4947, %v5078
      %5080 = vmatmul.bf16.gmra.mxu0 %v4997
      %v5081 = vpop.f32.mrf.mxu0
      %v5082 = vadd.f32 %v4947, %v5081
      %v5083 = vpop.f32.mrf.mxu0
      %v5084 = vadd.f32 %v4947, %v5083
      %5085 = vmatmul.bf16.gmra.mxu0 %v5000
      %v5086 = vpop.f32.mrf.mxu0
      %v5087 = vadd.f32 %v4947, %v5086
      %v5088 = vpop.f32.mrf.mxu0
      %v5089 = vadd.f32 %v4947, %v5088
      %5090 = vdwg.mxu0
      %v5091 = vpack.c.bf16 %v5012, %v413
      %v5092 = vpack.c.bf16 %v5014, %v413
      %v5093 = vpack.c.bf16 %v5017, %v413
      %v5094 = vpack.c.bf16 %v5019, %v413
      %v5095 = vpack.c.bf16 %v5022, %v413
      %v5096 = vpack.c.bf16 %v5024, %v413
      %v5097 = vpack.c.bf16 %v5027, %v413
      %v5098 = vpack.c.bf16 %v5029, %v413
      %v5099 = vpack.c.bf16 %v5032, %v413
      %v5100 = vpack.c.bf16 %v5034, %v413
      %v5101 = vpack.c.bf16 %v5037, %v413
      %v5102 = vpack.c.bf16 %v5039, %v413
      %v5103 = vpack.c.bf16 %v5042, %v413
      %v5104 = vpack.c.bf16 %v5044, %v413
      %v5105 = vpack.c.bf16 %v5047, %v413
      %v5106 = vpack.c.bf16 %v5049, %v413
      %v5107 = vpack.c.bf16 %v5052, %v413
      %v5108 = vpack.c.bf16 %v5054, %v413
      %v5109 = vpack.c.bf16 %v5057, %v413
      %v5110 = vpack.c.bf16 %v5059, %v413
      %v5111 = vpack.c.bf16 %v5062, %v413
      %v5112 = vpack.c.bf16 %v5064, %v413
      %v5113 = vpack.c.bf16 %v5067, %v413
      %v5114 = vpack.c.bf16 %v5069, %v413
      %v5115 = vpack.c.bf16 %v5072, %v413
      %v5116 = vpack.c.bf16 %v5074, %v413
      %v5117 = vpack.c.bf16 %v5077, %v413
      %v5118 = vpack.c.bf16 %v5079, %v413
      %v5119 = vpack.c.bf16 %v5082, %v413
      %v5120 = vpack.c.bf16 %v5084, %v413
      %v5121 = vpack.c.bf16 %v5087, %v413
      %v5122 = vpack.c.bf16 %v5089, %v413
      %v5123 = vld [vmem:[%s4 + $0x60] sm:$0xf]
      %v5124 = vld [vmem:[%s4 + $0x64] sm:$0xf]
      %v5125 = vld [vmem:[%s4 + $0x68] sm:$0xf]
      %v5126 = vld [vmem:[%s4 + $0x6c] sm:$0xf]
      %v5131 = vunpack.c.l.b16 %v5123
      %v5132 = vunpack.c.l.b16 %v5124
      %v5133 = vunpack.c.l.b16 %v5125
      %v5134 = vunpack.c.l.b16 %v5126
      %v5135 = vpack.c.b16 %v5132, %v5131
      %v5136 = vpack.c.b16 %v5134, %v5133
      %v5140 = vsel %vm719, %v5091, 0
      %v5143 = vsel %vm719, %v5092, 0
      %v5146 = vsel %vm719, %v5093, 0
      %v5149 = vsel %vm719, %v5094, 0
      %v5152 = vsel %vm719, %v5095, 0
      %v5155 = vsel %vm719, %v5096, 0
      %v5158 = vsel %vm719, %v5097, 0
      %v5161 = vsel %vm719, %v5098, 0
      %v5164 = vsel %vm719, %v5099, 0
      %v5167 = vsel %vm719, %v5100, 0
      %v5170 = vsel %vm719, %v5101, 0
      %v5173 = vsel %vm719, %v5102, 0
      %v5176 = vsel %vm719, %v5103, 0
      %v5179 = vsel %vm719, %v5104, 0
      %v5182 = vsel %vm719, %v5105, 0
      %v5185 = vsel %vm719, %v5106, 0
      %v5188 = vsel %vm719, %v5107, 0
      %v5191 = vsel %vm719, %v5108, 0
      %v5194 = vsel %vm719, %v5109, 0
      %v5197 = vsel %vm719, %v5110, 0
      %v5200 = vsel %vm719, %v5111, 0
      %v5203 = vsel %vm719, %v5112, 0
      %v5206 = vsel %vm719, %v5113, 0
      %v5209 = vsel %vm719, %v5114, 0
      %v5212 = vsel %vm719, %v5115, 0
      %v5215 = vsel %vm719, %v5116, 0
      %v5218 = vsel %vm719, %v5117, 0
      %v5221 = vsel %vm719, %v5118, 0
      %v5224 = vsel %vm719, %v5119, 0
      %v5227 = vsel %vm719, %v5120, 0
      %v5230 = vsel %vm719, %v5121, 0
      %v5233 = vsel %vm719, %v5122, 0
      %5235 = vmatpush.bf16.msra.mxu0 0
      %5236 = vmatpush.bf16.msra.mxu0 0
      %5237 = vmatpush.bf16.msra.mxu0 0
      %5238 = vmatpush.bf16.msra.mxu0 0
      %5239 = vmatpush.bf16.msra.mxu0 0
      %5240 = vmatpush.bf16.msra.mxu0 0
      %5241 = vmatpush.bf16.msra.mxu0 %v5136
      %5242 = vmatpush.bf16.msra.mxu0 %v5135
      %5243 = vmatmul.bf16.gmra.mxu0 %v5140
      %v5244 = vpop.f32.mrf.mxu0
      %v5245 = vadd.f32 0.0, %v5244
      %v5246 = vpop.f32.mrf.mxu0
      %v5247 = vadd.f32 0.0, %v5246
      %5248 = vmatmul.bf16.gmra.mxu0 %v5143
      %v5249 = vpop.f32.mrf.mxu0
      %v5250 = vadd.f32 0.0, %v5249
      %v5251 = vpop.f32.mrf.mxu0
      %v5252 = vadd.f32 0.0, %v5251
      %5253 = vmatmul.bf16.gmra.mxu0 %v5146
      %v5254 = vpop.f32.mrf.mxu0
      %v5255 = vadd.f32 0.0, %v5254
      %v5256 = vpop.f32.mrf.mxu0
      %v5257 = vadd.f32 0.0, %v5256
      %5258 = vmatmul.bf16.gmra.mxu0 %v5149
      %v5259 = vpop.f32.mrf.mxu0
      %v5260 = vadd.f32 0.0, %v5259
      %v5261 = vpop.f32.mrf.mxu0
      %v5262 = vadd.f32 0.0, %v5261
      %5263 = vmatmul.bf16.gmra.mxu0 %v5152
      %v5264 = vpop.f32.mrf.mxu0
      %v5265 = vadd.f32 0.0, %v5264
      %v5266 = vpop.f32.mrf.mxu0
      %v5267 = vadd.f32 0.0, %v5266
      %5268 = vmatmul.bf16.gmra.mxu0 %v5155
      %v5269 = vpop.f32.mrf.mxu0
      %v5270 = vadd.f32 0.0, %v5269
      %v5271 = vpop.f32.mrf.mxu0
      %v5272 = vadd.f32 0.0, %v5271
      %5273 = vmatmul.bf16.gmra.mxu0 %v5158
      %v5274 = vpop.f32.mrf.mxu0
      %v5275 = vadd.f32 0.0, %v5274
      %v5276 = vpop.f32.mrf.mxu0
      %v5277 = vadd.f32 0.0, %v5276
      %5278 = vmatmul.bf16.gmra.mxu0 %v5161
      %v5279 = vpop.f32.mrf.mxu0
      %v5280 = vadd.f32 0.0, %v5279
      %v5281 = vpop.f32.mrf.mxu0
      %v5282 = vadd.f32 0.0, %v5281
      %5283 = vmatmul.bf16.gmra.mxu0 %v5164
      %v5284 = vpop.f32.mrf.mxu0
      %v5285 = vadd.f32 0.0, %v5284
      %v5286 = vpop.f32.mrf.mxu0
      %v5287 = vadd.f32 0.0, %v5286
      %5288 = vmatmul.bf16.gmra.mxu0 %v5167
      %v5289 = vpop.f32.mrf.mxu0
      %v5290 = vadd.f32 0.0, %v5289
      %v5291 = vpop.f32.mrf.mxu0
      %v5292 = vadd.f32 0.0, %v5291
      %5293 = vmatmul.bf16.gmra.mxu0 %v5170
      %v5294 = vpop.f32.mrf.mxu0
      %v5295 = vadd.f32 0.0, %v5294
      %v5296 = vpop.f32.mrf.mxu0
      %v5297 = vadd.f32 0.0, %v5296
      %5298 = vmatmul.bf16.gmra.mxu0 %v5173
      %v5299 = vpop.f32.mrf.mxu0
      %v5300 = vadd.f32 0.0, %v5299
      %v5301 = vpop.f32.mrf.mxu0
      %v5302 = vadd.f32 0.0, %v5301
      %5303 = vmatmul.bf16.gmra.mxu0 %v5176
      %v5304 = vpop.f32.mrf.mxu0
      %v5305 = vadd.f32 0.0, %v5304
      %v5306 = vpop.f32.mrf.mxu0
      %v5307 = vadd.f32 0.0, %v5306
      %5308 = vmatmul.bf16.gmra.mxu0 %v5179
      %v5309 = vpop.f32.mrf.mxu0
      %v5310 = vadd.f32 0.0, %v5309
      %v5311 = vpop.f32.mrf.mxu0
      %v5312 = vadd.f32 0.0, %v5311
      %5313 = vmatmul.bf16.gmra.mxu0 %v5182
      %v5314 = vpop.f32.mrf.mxu0
      %v5315 = vadd.f32 0.0, %v5314
      %v5316 = vpop.f32.mrf.mxu0
      %v5317 = vadd.f32 0.0, %v5316
      %5318 = vmatmul.bf16.gmra.mxu0 %v5185
      %v5319 = vpop.f32.mrf.mxu0
      %v5320 = vadd.f32 0.0, %v5319
      %v5321 = vpop.f32.mrf.mxu0
      %v5322 = vadd.f32 0.0, %v5321
      %5323 = vmatmul.bf16.gmra.mxu0 %v5188
      %v5324 = vpop.f32.mrf.mxu0
      %v5325 = vadd.f32 0.0, %v5324
      %v5326 = vpop.f32.mrf.mxu0
      %v5327 = vadd.f32 0.0, %v5326
      %5328 = vmatmul.bf16.gmra.mxu0 %v5191
      %v5329 = vpop.f32.mrf.mxu0
      %v5330 = vadd.f32 0.0, %v5329
      %v5331 = vpop.f32.mrf.mxu0
      %v5332 = vadd.f32 0.0, %v5331
      %5333 = vmatmul.bf16.gmra.mxu0 %v5194
      %v5334 = vpop.f32.mrf.mxu0
      %v5335 = vadd.f32 0.0, %v5334
      %v5336 = vpop.f32.mrf.mxu0
      %v5337 = vadd.f32 0.0, %v5336
      %5338 = vmatmul.bf16.gmra.mxu0 %v5197
      %v5339 = vpop.f32.mrf.mxu0
      %v5340 = vadd.f32 0.0, %v5339
      %v5341 = vpop.f32.mrf.mxu0
      %v5342 = vadd.f32 0.0, %v5341
      %5343 = vmatmul.bf16.gmra.mxu0 %v5200
      %v5344 = vpop.f32.mrf.mxu0
      %v5345 = vadd.f32 0.0, %v5344
      %v5346 = vpop.f32.mrf.mxu0
      %v5347 = vadd.f32 0.0, %v5346
      %5348 = vmatmul.bf16.gmra.mxu0 %v5203
      %v5349 = vpop.f32.mrf.mxu0
      %v5350 = vadd.f32 0.0, %v5349
      %v5351 = vpop.f32.mrf.mxu0
      %v5352 = vadd.f32 0.0, %v5351
      %5353 = vmatmul.bf16.gmra.mxu0 %v5206
      %v5354 = vpop.f32.mrf.mxu0
      %v5355 = vadd.f32 0.0, %v5354
      %v5356 = vpop.f32.mrf.mxu0
      %v5357 = vadd.f32 0.0, %v5356
      %5358 = vmatmul.bf16.gmra.mxu0 %v5209
      %v5359 = vpop.f32.mrf.mxu0
      %v5360 = vadd.f32 0.0, %v5359
      %v5361 = vpop.f32.mrf.mxu0
      %v5362 = vadd.f32 0.0, %v5361
      %5363 = vmatmul.bf16.gmra.mxu0 %v5212
      %v5364 = vpop.f32.mrf.mxu0
      %v5365 = vadd.f32 0.0, %v5364
      %v5366 = vpop.f32.mrf.mxu0
      %v5367 = vadd.f32 0.0, %v5366
      %5368 = vmatmul.bf16.gmra.mxu0 %v5215
      %v5369 = vpop.f32.mrf.mxu0
      %v5370 = vadd.f32 0.0, %v5369
      %v5371 = vpop.f32.mrf.mxu0
      %v5372 = vadd.f32 0.0, %v5371
      %5373 = vmatmul.bf16.gmra.mxu0 %v5218
      %v5374 = vpop.f32.mrf.mxu0
      %v5375 = vadd.f32 0.0, %v5374
      %v5376 = vpop.f32.mrf.mxu0
      %v5377 = vadd.f32 0.0, %v5376
      %5378 = vmatmul.bf16.gmra.mxu0 %v5221
      %v5379 = vpop.f32.mrf.mxu0
      %v5380 = vadd.f32 0.0, %v5379
      %v5381 = vpop.f32.mrf.mxu0
      %v5382 = vadd.f32 0.0, %v5381
      %5383 = vmatmul.bf16.gmra.mxu0 %v5224
      %v5384 = vpop.f32.mrf.mxu0
      %v5385 = vadd.f32 0.0, %v5384
      %v5386 = vpop.f32.mrf.mxu0
      %v5387 = vadd.f32 0.0, %v5386
      %5388 = vmatmul.bf16.gmra.mxu0 %v5227
      %v5389 = vpop.f32.mrf.mxu0
      %v5390 = vadd.f32 0.0, %v5389
      %v5391 = vpop.f32.mrf.mxu0
      %v5392 = vadd.f32 0.0, %v5391
      %5393 = vmatmul.bf16.gmra.mxu0 %v5230
      %v5394 = vpop.f32.mrf.mxu0
      %v5395 = vadd.f32 0.0, %v5394
      %v5396 = vpop.f32.mrf.mxu0
      %v5397 = vadd.f32 0.0, %v5396
      %5398 = vmatmul.bf16.gmra.mxu0 %v5233
      %v5399 = vpop.f32.mrf.mxu0
      %v5400 = vadd.f32 0.0, %v5399
      %v5401 = vpop.f32.mrf.mxu0
      %v5402 = vadd.f32 0.0, %v5401
      %5403 = vdwg.mxu0
      %v5404 = vpack.c.bf16 %v4762, %v4761
      %v5405 = vpack.c.bf16 %v4764, %v4763
      %v5406 = vpack.c.bf16 %v4766, %v4765
      %v5407 = vpack.c.bf16 %v4768, %v4767
      %v5408 = vpack.c.bf16 %v4770, %v4769
      %v5409 = vpack.c.bf16 %v4772, %v4771
      %v5410 = vpack.c.bf16 %v4774, %v4773
      %v5411 = vpack.c.bf16 %v4776, %v4775
      %v5412 = vpack.c.bf16 %v4778, %v4777
      %v5413 = vpack.c.bf16 %v4780, %v4779
      %v5414 = vpack.c.bf16 %v4782, %v4781
      %v5415 = vpack.c.bf16 %v4784, %v4783
      %v5416 = vpack.c.bf16 %v4786, %v4785
      %v5417 = vpack.c.bf16 %v4788, %v4787
      %v5418 = vpack.c.bf16 %v4790, %v4789
      %v5419 = vpack.c.bf16 %v4792, %v4791
      %v5420 = vpack.c.bf16 %v4794, %v4793
      %v5421 = vpack.c.bf16 %v4796, %v4795
      %v5422 = vpack.c.bf16 %v4798, %v4797
      %v5423 = vpack.c.bf16 %v4800, %v4799
      %v5424 = vpack.c.bf16 %v4802, %v4801
      %v5425 = vpack.c.bf16 %v4804, %v4803
      %v5426 = vpack.c.bf16 %v4806, %v4805
      %v5427 = vpack.c.bf16 %v4808, %v4807
      %v5428 = vpack.c.bf16 %v4810, %v4809
      %v5429 = vpack.c.bf16 %v4812, %v4811
      %v5430 = vpack.c.bf16 %v4814, %v4813
      %v5431 = vpack.c.bf16 %v4816, %v4815
      %v5432 = vpack.c.bf16 %v4818, %v4817
      %v5433 = vpack.c.bf16 %v4820, %v4819
      %v5434 = vpack.c.bf16 %v4822, %v4821
      %v5435 = vpack.c.bf16 %v4824, %v4823
      %v5436 = vld [vmem:[%s4 + $0x70] sm:$0xf]
      %v5437 = vld [vmem:[%s4 + $0x74] sm:$0xf]
      %v5438 = vld [vmem:[%s4 + $0x78] sm:$0xf]
      %v5439 = vld [vmem:[%s4 + $0x7c] sm:$0xf]
      %v5444 = vunpack.c.l.b16 %v5436
      %v5445 = vunpack.c.l.b16 %v5437
      %v5446 = vunpack.c.l.b16 %v5438
      %v5447 = vunpack.c.l.b16 %v5439
      %v5448 = vpack.c.b16 %v5445, %v5444
      %v5449 = vpack.c.b16 %v5447, %v5446
      %v5453 = vsel %vm719, %v5404, 0
      %v5456 = vsel %vm719, %v5405, 0
      %v5459 = vsel %vm719, %v5406, 0
      %v5462 = vsel %vm719, %v5407, 0
      %v5465 = vsel %vm719, %v5408, 0
      %v5468 = vsel %vm719, %v5409, 0
      %v5471 = vsel %vm719, %v5410, 0
      %v5474 = vsel %vm719, %v5411, 0
      %v5477 = vsel %vm719, %v5412, 0
      %v5480 = vsel %vm719, %v5413, 0
      %v5483 = vsel %vm719, %v5414, 0
      %v5486 = vsel %vm719, %v5415, 0
      %v5489 = vsel %vm719, %v5416, 0
      %v5492 = vsel %vm719, %v5417, 0
      %v5495 = vsel %vm719, %v5418, 0
      %v5498 = vsel %vm719, %v5419, 0
      %v5501 = vsel %vm719, %v5420, 0
      %v5504 = vsel %vm719, %v5421, 0
      %v5507 = vsel %vm719, %v5422, 0
      %v5510 = vsel %vm719, %v5423, 0
      %v5513 = vsel %vm719, %v5424, 0
      %v5516 = vsel %vm719, %v5425, 0
      %v5519 = vsel %vm719, %v5426, 0
      %v5522 = vsel %vm719, %v5427, 0
      %v5525 = vsel %vm719, %v5428, 0
      %v5528 = vsel %vm719, %v5429, 0
      %v5531 = vsel %vm719, %v5430, 0
      %v5534 = vsel %vm719, %v5431, 0
      %v5537 = vsel %vm719, %v5432, 0
      %v5540 = vsel %vm719, %v5433, 0
      %v5543 = vsel %vm719, %v5434, 0
      %v5546 = vsel %vm719, %v5435, 0
      %5548 = vmatpush.bf16.msra.mxu0 0
      %5549 = vmatpush.bf16.msra.mxu0 0
      %5550 = vmatpush.bf16.msra.mxu0 0
      %5551 = vmatpush.bf16.msra.mxu0 0
      %5552 = vmatpush.bf16.msra.mxu0 0
      %5553 = vmatpush.bf16.msra.mxu0 0
      %5554 = vmatpush.bf16.msra.mxu0 %v5449
      %5555 = vmatpush.bf16.msra.mxu0 %v5448
      %5556 = vmatmul.bf16.gmra.mxu0 %v5453
      %v5557 = vpop.f32.mrf.mxu0
      %v5558 = vadd.f32 0.0, %v5557
      %v5559 = vpop.f32.mrf.mxu0
      %v5560 = vadd.f32 0.0, %v5559
      %5561 = vmatmul.bf16.gmra.mxu0 %v5456
      %v5562 = vpop.f32.mrf.mxu0
      %v5563 = vadd.f32 0.0, %v5562
      %v5564 = vpop.f32.mrf.mxu0
      %v5565 = vadd.f32 0.0, %v5564
      %5566 = vmatmul.bf16.gmra.mxu0 %v5459
      %v5567 = vpop.f32.mrf.mxu0
      %v5568 = vadd.f32 0.0, %v5567
      %v5569 = vpop.f32.mrf.mxu0
      %v5570 = vadd.f32 0.0, %v5569
      %5571 = vmatmul.bf16.gmra.mxu0 %v5462
      %v5572 = vpop.f32.mrf.mxu0
      %v5573 = vadd.f32 0.0, %v5572
      %v5574 = vpop.f32.mrf.mxu0
      %v5575 = vadd.f32 0.0, %v5574
      %5576 = vmatmul.bf16.gmra.mxu0 %v5465
      %v5577 = vpop.f32.mrf.mxu0
      %v5578 = vadd.f32 0.0, %v5577
      %v5579 = vpop.f32.mrf.mxu0
      %v5580 = vadd.f32 0.0, %v5579
      %5581 = vmatmul.bf16.gmra.mxu0 %v5468
      %v5582 = vpop.f32.mrf.mxu0
      %v5583 = vadd.f32 0.0, %v5582
      %v5584 = vpop.f32.mrf.mxu0
      %v5585 = vadd.f32 0.0, %v5584
      %5586 = vmatmul.bf16.gmra.mxu0 %v5471
      %v5587 = vpop.f32.mrf.mxu0
      %v5588 = vadd.f32 0.0, %v5587
      %v5589 = vpop.f32.mrf.mxu0
      %v5590 = vadd.f32 0.0, %v5589
      %5591 = vmatmul.bf16.gmra.mxu0 %v5474
      %v5592 = vpop.f32.mrf.mxu0
      %v5593 = vadd.f32 0.0, %v5592
      %v5594 = vpop.f32.mrf.mxu0
      %v5595 = vadd.f32 0.0, %v5594
      %5596 = vmatmul.bf16.gmra.mxu0 %v5477
      %v5597 = vpop.f32.mrf.mxu0
      %v5598 = vadd.f32 0.0, %v5597
      %v5599 = vpop.f32.mrf.mxu0
      %v5600 = vadd.f32 0.0, %v5599
      %5601 = vmatmul.bf16.gmra.mxu0 %v5480
      %v5602 = vpop.f32.mrf.mxu0
      %v5603 = vadd.f32 0.0, %v5602
      %v5604 = vpop.f32.mrf.mxu0
      %v5605 = vadd.f32 0.0, %v5604
      %5606 = vmatmul.bf16.gmra.mxu0 %v5483
      %v5607 = vpop.f32.mrf.mxu0
      %v5608 = vadd.f32 0.0, %v5607
      %v5609 = vpop.f32.mrf.mxu0
      %v5610 = vadd.f32 0.0, %v5609
      %5611 = vmatmul.bf16.gmra.mxu0 %v5486
      %v5612 = vpop.f32.mrf.mxu0
      %v5613 = vadd.f32 0.0, %v5612
      %v5614 = vpop.f32.mrf.mxu0
      %v5615 = vadd.f32 0.0, %v5614
      %5616 = vmatmul.bf16.gmra.mxu0 %v5489
      %v5617 = vpop.f32.mrf.mxu0
      %v5618 = vadd.f32 0.0, %v5617
      %v5619 = vpop.f32.mrf.mxu0
      %v5620 = vadd.f32 0.0, %v5619
      %5621 = vmatmul.bf16.gmra.mxu0 %v5492
      %v5622 = vpop.f32.mrf.mxu0
      %v5623 = vadd.f32 0.0, %v5622
      %v5624 = vpop.f32.mrf.mxu0
      %v5625 = vadd.f32 0.0, %v5624
      %5626 = vmatmul.bf16.gmra.mxu0 %v5495
      %v5627 = vpop.f32.mrf.mxu0
      %v5628 = vadd.f32 0.0, %v5627
      %v5629 = vpop.f32.mrf.mxu0
      %v5630 = vadd.f32 0.0, %v5629
      %5631 = vmatmul.bf16.gmra.mxu0 %v5498
      %v5632 = vpop.f32.mrf.mxu0
      %v5633 = vadd.f32 0.0, %v5632
      %v5634 = vpop.f32.mrf.mxu0
      %v5635 = vadd.f32 0.0, %v5634
      %5636 = vmatmul.bf16.gmra.mxu0 %v5501
      %v5637 = vpop.f32.mrf.mxu0
      %v5638 = vadd.f32 0.0, %v5637
      %v5639 = vpop.f32.mrf.mxu0
      %v5640 = vadd.f32 0.0, %v5639
      %5641 = vmatmul.bf16.gmra.mxu0 %v5504
      %v5642 = vpop.f32.mrf.mxu0
      %v5643 = vadd.f32 0.0, %v5642
      %v5644 = vpop.f32.mrf.mxu0
      %v5645 = vadd.f32 0.0, %v5644
      %5646 = vmatmul.bf16.gmra.mxu0 %v5507
      %v5647 = vpop.f32.mrf.mxu0
      %v5648 = vadd.f32 0.0, %v5647
      %v5649 = vpop.f32.mrf.mxu0
      %v5650 = vadd.f32 0.0, %v5649
      %5651 = vmatmul.bf16.gmra.mxu0 %v5510
      %v5652 = vpop.f32.mrf.mxu0
      %v5653 = vadd.f32 0.0, %v5652
      %v5654 = vpop.f32.mrf.mxu0
      %v5655 = vadd.f32 0.0, %v5654
      %5656 = vmatmul.bf16.gmra.mxu0 %v5513
      %v5657 = vpop.f32.mrf.mxu0
      %v5658 = vadd.f32 0.0, %v5657
      %v5659 = vpop.f32.mrf.mxu0
      %v5660 = vadd.f32 0.0, %v5659
      %5661 = vmatmul.bf16.gmra.mxu0 %v5516
      %v5662 = vpop.f32.mrf.mxu0
      %v5663 = vadd.f32 0.0, %v5662
      %v5664 = vpop.f32.mrf.mxu0
      %v5665 = vadd.f32 0.0, %v5664
      %5666 = vmatmul.bf16.gmra.mxu0 %v5519
      %v5667 = vpop.f32.mrf.mxu0
      %v5668 = vadd.f32 0.0, %v5667
      %v5669 = vpop.f32.mrf.mxu0
      %v5670 = vadd.f32 0.0, %v5669
      %5671 = vmatmul.bf16.gmra.mxu0 %v5522
      %v5672 = vpop.f32.mrf.mxu0
      %v5673 = vadd.f32 0.0, %v5672
      %v5674 = vpop.f32.mrf.mxu0
      %v5675 = vadd.f32 0.0, %v5674
      %5676 = vmatmul.bf16.gmra.mxu0 %v5525
      %v5677 = vpop.f32.mrf.mxu0
      %v5678 = vadd.f32 0.0, %v5677
      %v5679 = vpop.f32.mrf.mxu0
      %v5680 = vadd.f32 0.0, %v5679
      %5681 = vmatmul.bf16.gmra.mxu0 %v5528
      %v5682 = vpop.f32.mrf.mxu0
      %v5683 = vadd.f32 0.0, %v5682
      %v5684 = vpop.f32.mrf.mxu0
      %v5685 = vadd.f32 0.0, %v5684
      %5686 = vmatmul.bf16.gmra.mxu0 %v5531
      %v5687 = vpop.f32.mrf.mxu0
      %v5688 = vadd.f32 0.0, %v5687
      %v5689 = vpop.f32.mrf.mxu0
      %v5690 = vadd.f32 0.0, %v5689
      %5691 = vmatmul.bf16.gmra.mxu0 %v5534
      %v5692 = vpop.f32.mrf.mxu0
      %v5693 = vadd.f32 0.0, %v5692
      %v5694 = vpop.f32.mrf.mxu0
      %v5695 = vadd.f32 0.0, %v5694
      %5696 = vmatmul.bf16.gmra.mxu0 %v5537
      %v5697 = vpop.f32.mrf.mxu0
      %v5698 = vadd.f32 0.0, %v5697
      %v5699 = vpop.f32.mrf.mxu0
      %v5700 = vadd.f32 0.0, %v5699
      %5701 = vmatmul.bf16.gmra.mxu0 %v5540
      %v5702 = vpop.f32.mrf.mxu0
      %v5703 = vadd.f32 0.0, %v5702
      %v5704 = vpop.f32.mrf.mxu0
      %v5705 = vadd.f32 0.0, %v5704
      %5706 = vmatmul.bf16.gmra.mxu0 %v5543
      %v5707 = vpop.f32.mrf.mxu0
      %v5708 = vadd.f32 0.0, %v5707
      %v5709 = vpop.f32.mrf.mxu0
      %v5710 = vadd.f32 0.0, %v5709
      %5711 = vmatmul.bf16.gmra.mxu0 %v5546
      %v5712 = vpop.f32.mrf.mxu0
      %v5713 = vadd.f32 0.0, %v5712
      %v5714 = vpop.f32.mrf.mxu0
      %v5715 = vadd.f32 0.0, %v5714
      %5716 = vdwg.mxu0
      %v5717 = vpack.c.bf16 %v5245, %v5245
      %v5718 = vpack.c.bf16 %v5247, %v5247
      %v5719 = vpack.c.bf16 %v5250, %v5250
      %v5720 = vpack.c.bf16 %v5252, %v5252
      %v5721 = vpack.c.bf16 %v5255, %v5255
      %v5722 = vpack.c.bf16 %v5257, %v5257
      %v5723 = vpack.c.bf16 %v5260, %v5260
      %v5724 = vpack.c.bf16 %v5262, %v5262
      %v5725 = vpack.c.bf16 %v5265, %v5265
      %v5726 = vpack.c.bf16 %v5267, %v5267
      %v5727 = vpack.c.bf16 %v5270, %v5270
      %v5728 = vpack.c.bf16 %v5272, %v5272
      %v5729 = vpack.c.bf16 %v5275, %v5275
      %v5730 = vpack.c.bf16 %v5277, %v5277
      %v5731 = vpack.c.bf16 %v5280, %v5280
      %v5732 = vpack.c.bf16 %v5282, %v5282
      %v5733 = vpack.c.bf16 %v5285, %v5285
      %v5734 = vpack.c.bf16 %v5287, %v5287
      %v5735 = vpack.c.bf16 %v5290, %v5290
      %v5736 = vpack.c.bf16 %v5292, %v5292
      %v5737 = vpack.c.bf16 %v5295, %v5295
      %v5738 = vpack.c.bf16 %v5297, %v5297
      %v5739 = vpack.c.bf16 %v5300, %v5300
      %v5740 = vpack.c.bf16 %v5302, %v5302
      %v5741 = vpack.c.bf16 %v5305, %v5305
      %v5742 = vpack.c.bf16 %v5307, %v5307
      %v5743 = vpack.c.bf16 %v5310, %v5310
      %v5744 = vpack.c.bf16 %v5312, %v5312
      %v5745 = vpack.c.bf16 %v5315, %v5315
      %v5746 = vpack.c.bf16 %v5317, %v5317
      %v5747 = vpack.c.bf16 %v5320, %v5320
      %v5748 = vpack.c.bf16 %v5322, %v5322
      %v5749 = vpack.c.bf16 %v5325, %v5325
      %v5750 = vpack.c.bf16 %v5327, %v5327
      %v5751 = vpack.c.bf16 %v5330, %v5330
      %v5752 = vpack.c.bf16 %v5332, %v5332
      %v5753 = vpack.c.bf16 %v5335, %v5335
      %v5754 = vpack.c.bf16 %v5337, %v5337
      %v5755 = vpack.c.bf16 %v5340, %v5340
      %v5756 = vpack.c.bf16 %v5342, %v5342
      %v5757 = vpack.c.bf16 %v5345, %v5345
      %v5758 = vpack.c.bf16 %v5347, %v5347
      %v5759 = vpack.c.bf16 %v5350, %v5350
      %v5760 = vpack.c.bf16 %v5352, %v5352
      %v5761 = vpack.c.bf16 %v5355, %v5355
      %v5762 = vpack.c.bf16 %v5357, %v5357
      %v5763 = vpack.c.bf16 %v5360, %v5360
      %v5764 = vpack.c.bf16 %v5362, %v5362
      %v5765 = vpack.c.bf16 %v5365, %v5365
      %v5766 = vpack.c.bf16 %v5367, %v5367
      %v5767 = vpack.c.bf16 %v5370, %v5370
      %v5768 = vpack.c.bf16 %v5372, %v5372
      %v5769 = vpack.c.bf16 %v5375, %v5375
      %v5770 = vpack.c.bf16 %v5377, %v5377
      %v5771 = vpack.c.bf16 %v5380, %v5380
      %v5772 = vpack.c.bf16 %v5382, %v5382
      %v5773 = vpack.c.bf16 %v5385, %v5385
      %v5774 = vpack.c.bf16 %v5387, %v5387
      %v5775 = vpack.c.bf16 %v5390, %v5390
      %v5776 = vpack.c.bf16 %v5392, %v5392
      %v5777 = vpack.c.bf16 %v5395, %v5395
      %v5778 = vpack.c.bf16 %v5397, %v5397
      %v5779 = vpack.c.bf16 %v5400, %v5400
      %v5780 = vpack.c.bf16 %v5402, %v5402
      %v5781 = vpack.c.bf16 %v5558, %v5558
      %v5782 = vpack.c.bf16 %v5560, %v5560
      %v5783 = vpack.c.bf16 %v5563, %v5563
      %v5784 = vpack.c.bf16 %v5565, %v5565
      %v5785 = vpack.c.bf16 %v5568, %v5568
      %v5786 = vpack.c.bf16 %v5570, %v5570
      %v5787 = vpack.c.bf16 %v5573, %v5573
      %v5788 = vpack.c.bf16 %v5575, %v5575
      %v5789 = vpack.c.bf16 %v5578, %v5578
      %v5790 = vpack.c.bf16 %v5580, %v5580
      %v5791 = vpack.c.bf16 %v5583, %v5583
      %v5792 = vpack.c.bf16 %v5585, %v5585
      %v5793 = vpack.c.bf16 %v5588, %v5588
      %v5794 = vpack.c.bf16 %v5590, %v5590
      %v5795 = vpack.c.bf16 %v5593, %v5593
      %v5796 = vpack.c.bf16 %v5595, %v5595
      %v5797 = vpack.c.bf16 %v5598, %v5598
      %v5798 = vpack.c.bf16 %v5600, %v5600
      %v5799 = vpack.c.bf16 %v5603, %v5603
      %v5800 = vpack.c.bf16 %v5605, %v5605
      %v5801 = vpack.c.bf16 %v5608, %v5608
      %v5802 = vpack.c.bf16 %v5610, %v5610
      %v5803 = vpack.c.bf16 %v5613, %v5613
      %v5804 = vpack.c.bf16 %v5615, %v5615
      %v5805 = vpack.c.bf16 %v5618, %v5618
      %v5806 = vpack.c.bf16 %v5620, %v5620
      %v5807 = vpack.c.bf16 %v5623, %v5623
      %v5808 = vpack.c.bf16 %v5625, %v5625
      %v5809 = vpack.c.bf16 %v5628, %v5628
      %v5810 = vpack.c.bf16 %v5630, %v5630
      %v5811 = vpack.c.bf16 %v5633, %v5633
      %v5812 = vpack.c.bf16 %v5635, %v5635
      %v5813 = vpack.c.bf16 %v5638, %v5638
      %v5814 = vpack.c.bf16 %v5640, %v5640
      %v5815 = vpack.c.bf16 %v5643, %v5643
      %v5816 = vpack.c.bf16 %v5645, %v5645
      %v5817 = vpack.c.bf16 %v5648, %v5648
      %v5818 = vpack.c.bf16 %v5650, %v5650
      %v5819 = vpack.c.bf16 %v5653, %v5653
      %v5820 = vpack.c.bf16 %v5655, %v5655
      %v5821 = vpack.c.bf16 %v5658, %v5658
      %v5822 = vpack.c.bf16 %v5660, %v5660
      %v5823 = vpack.c.bf16 %v5663, %v5663
      %v5824 = vpack.c.bf16 %v5665, %v5665
      %v5825 = vpack.c.bf16 %v5668, %v5668
      %v5826 = vpack.c.bf16 %v5670, %v5670
      %v5827 = vpack.c.bf16 %v5673, %v5673
      %v5828 = vpack.c.bf16 %v5675, %v5675
      %v5829 = vpack.c.bf16 %v5678, %v5678
      %v5830 = vpack.c.bf16 %v5680, %v5680
      %v5831 = vpack.c.bf16 %v5683, %v5683
      %v5832 = vpack.c.bf16 %v5685, %v5685
      %v5833 = vpack.c.bf16 %v5688, %v5688
      %v5834 = vpack.c.bf16 %v5690, %v5690
      %v5835 = vpack.c.bf16 %v5693, %v5693
      %v5836 = vpack.c.bf16 %v5695, %v5695
      %v5837 = vpack.c.bf16 %v5698, %v5698
      %v5838 = vpack.c.bf16 %v5700, %v5700
      %v5839 = vpack.c.bf16 %v5703, %v5703
      %v5840 = vpack.c.bf16 %v5705, %v5705
      %v5841 = vpack.c.bf16 %v5708, %v5708
      %v5842 = vpack.c.bf16 %v5710, %v5710
      %v5843 = vpack.c.bf16 %v5713, %v5713
      %v5844 = vpack.c.bf16 %v5715, %v5715
      %v5847 = vunpack.c.l.b16 %v5717
      %v5848 = vunpack.c.l.b16 %v5718
      %v5849 = vpack.c.b16 %v5848, %v5847
      %v5852 = vunpack.c.l.b16 %v5781
      %v5853 = vunpack.c.l.b16 %v5782
      %v5854 = vpack.c.b16 %v5853, %v5852
      %v5856 = vsel %vm719, %v5849, 0
      %v5859 = vsel %vm719, %v5854, 0
      %5861 = vmatpush.bf16.xpose.msra.mxu0 0
      %5862 = vmatpush.bf16.xpose.msra.mxu0 0
      %5863 = vmatpush.bf16.xpose.msra.mxu0 0
      %5864 = vmatpush.bf16.xpose.msra.mxu0 0
      %5865 = vmatpush.bf16.xpose.msra.mxu0 0
      %5866 = vmatpush.bf16.xpose.msra.mxu0 0
      %5867 = vmatpush.bf16.xpose.msra.mxu0 0
      %5868 = vmatpush.bf16.xpose.msra.mxu0 %v5859
      %5869 = vmatmul.bf16.gmra.mxu0 %v5856
      %v5870 = vpop.f32.mrf.mxu0
      %v5871 = vadd.f32 0.0, %v5870
      %v5872 = vpop.f32.mrf.mxu0
      %v5873 = vadd.f32 0.0, %v5872
      %5874 = vdwg.mxu0
      %v5877 = vunpack.c.l.b16 %v5719
      %v5878 = vunpack.c.l.b16 %v5720
      %v5879 = vpack.c.b16 %v5878, %v5877
      %v5882 = vunpack.c.l.b16 %v5783
      %v5883 = vunpack.c.l.b16 %v5784
      %v5884 = vpack.c.b16 %v5883, %v5882
      %v5886 = vsel %vm719, %v5879, 0
      %v5889 = vsel %vm719, %v5884, 0
      %5891 = vmatpush.bf16.xpose.msra.mxu0 0
      %5892 = vmatpush.bf16.xpose.msra.mxu0 0
      %5893 = vmatpush.bf16.xpose.msra.mxu0 0
      %5894 = vmatpush.bf16.xpose.msra.mxu0 0
      %5895 = vmatpush.bf16.xpose.msra.mxu0 0
      %5896 = vmatpush.bf16.xpose.msra.mxu0 0
      %5897 = vmatpush.bf16.xpose.msra.mxu0 0
      %5898 = vmatpush.bf16.xpose.msra.mxu0 %v5889
      %5899 = vmatmul.bf16.gmra.mxu0 %v5886
      %v5900 = vpop.f32.mrf.mxu0
      %v5901 = vadd.f32 0.0, %v5900
      %v5902 = vpop.f32.mrf.mxu0
      %v5903 = vadd.f32 0.0, %v5902
      %5904 = vdwg.mxu0
      %v5907 = vunpack.c.l.b16 %v5721
      %v5908 = vunpack.c.l.b16 %v5722
      %v5909 = vpack.c.b16 %v5908, %v5907
      %v5912 = vunpack.c.l.b16 %v5785
      %v5913 = vunpack.c.l.b16 %v5786
      %v5914 = vpack.c.b16 %v5913, %v5912
      %v5916 = vsel %vm719, %v5909, 0
      %v5919 = vsel %vm719, %v5914, 0
      %5921 = vmatpush.bf16.xpose.msra.mxu0 0
      %5922 = vmatpush.bf16.xpose.msra.mxu0 0
      %5923 = vmatpush.bf16.xpose.msra.mxu0 0
      %5924 = vmatpush.bf16.xpose.msra.mxu0 0
      %5925 = vmatpush.bf16.xpose.msra.mxu0 0
      %5926 = vmatpush.bf16.xpose.msra.mxu0 0
      %5927 = vmatpush.bf16.xpose.msra.mxu0 0
      %5928 = vmatpush.bf16.xpose.msra.mxu0 %v5919
      %5929 = vmatmul.bf16.gmra.mxu0 %v5916
      %v5930 = vpop.f32.mrf.mxu0
      %v5931 = vadd.f32 0.0, %v5930
      %v5932 = vpop.f32.mrf.mxu0
      %v5933 = vadd.f32 0.0, %v5932
      %5934 = vdwg.mxu0
      %v5937 = vunpack.c.l.b16 %v5723
      %v5938 = vunpack.c.l.b16 %v5724
      %v5939 = vpack.c.b16 %v5938, %v5937
      %v5942 = vunpack.c.l.b16 %v5787
      %v5943 = vunpack.c.l.b16 %v5788
      %v5944 = vpack.c.b16 %v5943, %v5942
      %v5946 = vsel %vm719, %v5939, 0
      %v5949 = vsel %vm719, %v5944, 0
      %5951 = vmatpush.bf16.xpose.msra.mxu0 0
      %5952 = vmatpush.bf16.xpose.msra.mxu0 0
      %5953 = vmatpush.bf16.xpose.msra.mxu0 0
      %5954 = vmatpush.bf16.xpose.msra.mxu0 0
      %5955 = vmatpush.bf16.xpose.msra.mxu0 0
      %5956 = vmatpush.bf16.xpose.msra.mxu0 0
      %5957 = vmatpush.bf16.xpose.msra.mxu0 0
      %5958 = vmatpush.bf16.xpose.msra.mxu0 %v5949
      %5959 = vmatmul.bf16.gmra.mxu0 %v5946
      %v5960 = vpop.f32.mrf.mxu0
      %v5961 = vadd.f32 0.0, %v5960
      %v5962 = vpop.f32.mrf.mxu0
      %v5963 = vadd.f32 0.0, %v5962
      %5964 = vdwg.mxu0
      %v5967 = vunpack.c.l.b16 %v5725
      %v5968 = vunpack.c.l.b16 %v5726
      %v5969 = vpack.c.b16 %v5968, %v5967
      %v5972 = vunpack.c.l.b16 %v5789
      %v5973 = vunpack.c.l.b16 %v5790
      %v5974 = vpack.c.b16 %v5973, %v5972
      %v5976 = vsel %vm719, %v5969, 0
      %v5979 = vsel %vm719, %v5974, 0
      %5981 = vmatpush.bf16.xpose.msra.mxu0 0
      %5982 = vmatpush.bf16.xpose.msra.mxu0 0
      %5983 = vmatpush.bf16.xpose.msra.mxu0 0
      %5984 = vmatpush.bf16.xpose.msra.mxu0 0
      %5985 = vmatpush.bf16.xpose.msra.mxu0 0
      %5986 = vmatpush.bf16.xpose.msra.mxu0 0
      %5987 = vmatpush.bf16.xpose.msra.mxu0 0
      %5988 = vmatpush.bf16.xpose.msra.mxu0 %v5979
      %5989 = vmatmul.bf16.gmra.mxu0 %v5976
      %v5990 = vpop.f32.mrf.mxu0
      %v5991 = vadd.f32 0.0, %v5990
      %v5992 = vpop.f32.mrf.mxu0
      %v5993 = vadd.f32 0.0, %v5992
      %5994 = vdwg.mxu0
      %v5997 = vunpack.c.l.b16 %v5727
      %v5998 = vunpack.c.l.b16 %v5728
      %v5999 = vpack.c.b16 %v5998, %v5997
      %v6002 = vunpack.c.l.b16 %v5791
      %v6003 = vunpack.c.l.b16 %v5792
      %v6004 = vpack.c.b16 %v6003, %v6002
      %v6006 = vsel %vm719, %v5999, 0
      %v6009 = vsel %vm719, %v6004, 0
      %6011 = vmatpush.bf16.xpose.msra.mxu0 0
      %6012 = vmatpush.bf16.xpose.msra.mxu0 0
      %6013 = vmatpush.bf16.xpose.msra.mxu0 0
      %6014 = vmatpush.bf16.xpose.msra.mxu0 0
      %6015 = vmatpush.bf16.xpose.msra.mxu0 0
      %6016 = vmatpush.bf16.xpose.msra.mxu0 0
      %6017 = vmatpush.bf16.xpose.msra.mxu0 0
      %6018 = vmatpush.bf16.xpose.msra.mxu0 %v6009
      %6019 = vmatmul.bf16.gmra.mxu0 %v6006
      %v6020 = vpop.f32.mrf.mxu0
      %v6021 = vadd.f32 0.0, %v6020
      %v6022 = vpop.f32.mrf.mxu0
      %v6023 = vadd.f32 0.0, %v6022
      %6024 = vdwg.mxu0
      %v6027 = vunpack.c.l.b16 %v5729
      %v6028 = vunpack.c.l.b16 %v5730
      %v6029 = vpack.c.b16 %v6028, %v6027
      %v6032 = vunpack.c.l.b16 %v5793
      %v6033 = vunpack.c.l.b16 %v5794
      %v6034 = vpack.c.b16 %v6033, %v6032
      %v6036 = vsel %vm719, %v6029, 0
      %v6039 = vsel %vm719, %v6034, 0
      %6041 = vmatpush.bf16.xpose.msra.mxu0 0
      %6042 = vmatpush.bf16.xpose.msra.mxu0 0
      %6043 = vmatpush.bf16.xpose.msra.mxu0 0
      %6044 = vmatpush.bf16.xpose.msra.mxu0 0
      %6045 = vmatpush.bf16.xpose.msra.mxu0 0
      %6046 = vmatpush.bf16.xpose.msra.mxu0 0
      %6047 = vmatpush.bf16.xpose.msra.mxu0 0
      %6048 = vmatpush.bf16.xpose.msra.mxu0 %v6039
      %6049 = vmatmul.bf16.gmra.mxu0 %v6036
      %v6050 = vpop.f32.mrf.mxu0
      %v6051 = vadd.f32 0.0, %v6050
      %v6052 = vpop.f32.mrf.mxu0
      %v6053 = vadd.f32 0.0, %v6052
      %6054 = vdwg.mxu0
      %v6057 = vunpack.c.l.b16 %v5731
      %v6058 = vunpack.c.l.b16 %v5732
      %v6059 = vpack.c.b16 %v6058, %v6057
      %v6062 = vunpack.c.l.b16 %v5795
      %v6063 = vunpack.c.l.b16 %v5796
      %v6064 = vpack.c.b16 %v6063, %v6062
      %v6066 = vsel %vm719, %v6059, 0
      %v6069 = vsel %vm719, %v6064, 0
      %6071 = vmatpush.bf16.xpose.msra.mxu0 0
      %6072 = vmatpush.bf16.xpose.msra.mxu0 0
      %6073 = vmatpush.bf16.xpose.msra.mxu0 0
      %6074 = vmatpush.bf16.xpose.msra.mxu0 0
      %6075 = vmatpush.bf16.xpose.msra.mxu0 0
      %6076 = vmatpush.bf16.xpose.msra.mxu0 0
      %6077 = vmatpush.bf16.xpose.msra.mxu0 0
      %6078 = vmatpush.bf16.xpose.msra.mxu0 %v6069
      %6079 = vmatmul.bf16.gmra.mxu0 %v6066
      %v6080 = vpop.f32.mrf.mxu0
      %v6081 = vadd.f32 0.0, %v6080
      %v6082 = vpop.f32.mrf.mxu0
      %v6083 = vadd.f32 0.0, %v6082
      %6084 = vdwg.mxu0
      %v6087 = vunpack.c.l.b16 %v5733
      %v6088 = vunpack.c.l.b16 %v5734
      %v6089 = vpack.c.b16 %v6088, %v6087
      %v6092 = vunpack.c.l.b16 %v5797
      %v6093 = vunpack.c.l.b16 %v5798
      %v6094 = vpack.c.b16 %v6093, %v6092
      %v6096 = vsel %vm719, %v6089, 0
      %v6099 = vsel %vm719, %v6094, 0
      %6101 = vmatpush.bf16.xpose.msra.mxu0 0
      %6102 = vmatpush.bf16.xpose.msra.mxu0 0
      %6103 = vmatpush.bf16.xpose.msra.mxu0 0
      %6104 = vmatpush.bf16.xpose.msra.mxu0 0
      %6105 = vmatpush.bf16.xpose.msra.mxu0 0
      %6106 = vmatpush.bf16.xpose.msra.mxu0 0
      %6107 = vmatpush.bf16.xpose.msra.mxu0 0
      %6108 = vmatpush.bf16.xpose.msra.mxu0 %v6099
      %6109 = vmatmul.bf16.gmra.mxu0 %v6096
      %v6110 = vpop.f32.mrf.mxu0
      %v6111 = vadd.f32 0.0, %v6110
      %v6112 = vpop.f32.mrf.mxu0
      %v6113 = vadd.f32 0.0, %v6112
      %6114 = vdwg.mxu0
      %v6117 = vunpack.c.l.b16 %v5735
      %v6118 = vunpack.c.l.b16 %v5736
      %v6119 = vpack.c.b16 %v6118, %v6117
      %v6122 = vunpack.c.l.b16 %v5799
      %v6123 = vunpack.c.l.b16 %v5800
      %v6124 = vpack.c.b16 %v6123, %v6122
      %v6126 = vsel %vm719, %v6119, 0
      %v6129 = vsel %vm719, %v6124, 0
      %6131 = vmatpush.bf16.xpose.msra.mxu0 0
      %6132 = vmatpush.bf16.xpose.msra.mxu0 0
      %6133 = vmatpush.bf16.xpose.msra.mxu0 0
      %6134 = vmatpush.bf16.xpose.msra.mxu0 0
      %6135 = vmatpush.bf16.xpose.msra.mxu0 0
      %6136 = vmatpush.bf16.xpose.msra.mxu0 0
      %6137 = vmatpush.bf16.xpose.msra.mxu0 0
      %6138 = vmatpush.bf16.xpose.msra.mxu0 %v6129
      %6139 = vmatmul.bf16.gmra.mxu0 %v6126
      %v6140 = vpop.f32.mrf.mxu0
      %v6141 = vadd.f32 0.0, %v6140
      %v6142 = vpop.f32.mrf.mxu0
      %v6143 = vadd.f32 0.0, %v6142
      %6144 = vdwg.mxu0
      %v6147 = vunpack.c.l.b16 %v5737
      %v6148 = vunpack.c.l.b16 %v5738
      %v6149 = vpack.c.b16 %v6148, %v6147
      %v6152 = vunpack.c.l.b16 %v5801
      %v6153 = vunpack.c.l.b16 %v5802
      %v6154 = vpack.c.b16 %v6153, %v6152
      %v6156 = vsel %vm719, %v6149, 0
      %v6159 = vsel %vm719, %v6154, 0
      %6161 = vmatpush.bf16.xpose.msra.mxu0 0
      %6162 = vmatpush.bf16.xpose.msra.mxu0 0
      %6163 = vmatpush.bf16.xpose.msra.mxu0 0
      %6164 = vmatpush.bf16.xpose.msra.mxu0 0
      %6165 = vmatpush.bf16.xpose.msra.mxu0 0
      %6166 = vmatpush.bf16.xpose.msra.mxu0 0
      %6167 = vmatpush.bf16.xpose.msra.mxu0 0
      %6168 = vmatpush.bf16.xpose.msra.mxu0 %v6159
      %6169 = vmatmul.bf16.gmra.mxu0 %v6156
      %v6170 = vpop.f32.mrf.mxu0
      %v6171 = vadd.f32 0.0, %v6170
      %v6172 = vpop.f32.mrf.mxu0
      %v6173 = vadd.f32 0.0, %v6172
      %6174 = vdwg.mxu0
      %v6177 = vunpack.c.l.b16 %v5739
      %v6178 = vunpack.c.l.b16 %v5740
      %v6179 = vpack.c.b16 %v6178, %v6177
      %v6182 = vunpack.c.l.b16 %v5803
      %v6183 = vunpack.c.l.b16 %v5804
      %v6184 = vpack.c.b16 %v6183, %v6182
      %v6186 = vsel %vm719, %v6179, 0
      %v6189 = vsel %vm719, %v6184, 0
      %6191 = vmatpush.bf16.xpose.msra.mxu0 0
      %6192 = vmatpush.bf16.xpose.msra.mxu0 0
      %6193 = vmatpush.bf16.xpose.msra.mxu0 0
      %6194 = vmatpush.bf16.xpose.msra.mxu0 0
      %6195 = vmatpush.bf16.xpose.msra.mxu0 0
      %6196 = vmatpush.bf16.xpose.msra.mxu0 0
      %6197 = vmatpush.bf16.xpose.msra.mxu0 0
      %6198 = vmatpush.bf16.xpose.msra.mxu0 %v6189
      %6199 = vmatmul.bf16.gmra.mxu0 %v6186
      %v6200 = vpop.f32.mrf.mxu0
      %v6201 = vadd.f32 0.0, %v6200
      %v6202 = vpop.f32.mrf.mxu0
      %v6203 = vadd.f32 0.0, %v6202
      %6204 = vdwg.mxu0
      %v6207 = vunpack.c.l.b16 %v5741
      %v6208 = vunpack.c.l.b16 %v5742
      %v6209 = vpack.c.b16 %v6208, %v6207
      %v6212 = vunpack.c.l.b16 %v5805
      %v6213 = vunpack.c.l.b16 %v5806
      %v6214 = vpack.c.b16 %v6213, %v6212
      %v6216 = vsel %vm719, %v6209, 0
      %v6219 = vsel %vm719, %v6214, 0
      %6221 = vmatpush.bf16.xpose.msra.mxu0 0
      %6222 = vmatpush.bf16.xpose.msra.mxu0 0
      %6223 = vmatpush.bf16.xpose.msra.mxu0 0
      %6224 = vmatpush.bf16.xpose.msra.mxu0 0
      %6225 = vmatpush.bf16.xpose.msra.mxu0 0
      %6226 = vmatpush.bf16.xpose.msra.mxu0 0
      %6227 = vmatpush.bf16.xpose.msra.mxu0 0
      %6228 = vmatpush.bf16.xpose.msra.mxu0 %v6219
      %6229 = vmatmul.bf16.gmra.mxu0 %v6216
      %v6230 = vpop.f32.mrf.mxu0
      %v6231 = vadd.f32 0.0, %v6230
      %v6232 = vpop.f32.mrf.mxu0
      %v6233 = vadd.f32 0.0, %v6232
      %6234 = vdwg.mxu0
      %v6237 = vunpack.c.l.b16 %v5743
      %v6238 = vunpack.c.l.b16 %v5744
      %v6239 = vpack.c.b16 %v6238, %v6237
      %v6242 = vunpack.c.l.b16 %v5807
      %v6243 = vunpack.c.l.b16 %v5808
      %v6244 = vpack.c.b16 %v6243, %v6242
      %v6246 = vsel %vm719, %v6239, 0
      %v6249 = vsel %vm719, %v6244, 0
      %6251 = vmatpush.bf16.xpose.msra.mxu0 0
      %6252 = vmatpush.bf16.xpose.msra.mxu0 0
      %6253 = vmatpush.bf16.xpose.msra.mxu0 0
      %6254 = vmatpush.bf16.xpose.msra.mxu0 0
      %6255 = vmatpush.bf16.xpose.msra.mxu0 0
      %6256 = vmatpush.bf16.xpose.msra.mxu0 0
      %6257 = vmatpush.bf16.xpose.msra.mxu0 0
      %6258 = vmatpush.bf16.xpose.msra.mxu0 %v6249
      %6259 = vmatmul.bf16.gmra.mxu0 %v6246
      %v6260 = vpop.f32.mrf.mxu0
      %v6261 = vadd.f32 0.0, %v6260
      %v6262 = vpop.f32.mrf.mxu0
      %v6263 = vadd.f32 0.0, %v6262
      %6264 = vdwg.mxu0
      %v6267 = vunpack.c.l.b16 %v5745
      %v6268 = vunpack.c.l.b16 %v5746
      %v6269 = vpack.c.b16 %v6268, %v6267
      %v6272 = vunpack.c.l.b16 %v5809
      %v6273 = vunpack.c.l.b16 %v5810
      %v6274 = vpack.c.b16 %v6273, %v6272
      %v6276 = vsel %vm719, %v6269, 0
      %v6279 = vsel %vm719, %v6274, 0
      %6281 = vmatpush.bf16.xpose.msra.mxu0 0
      %6282 = vmatpush.bf16.xpose.msra.mxu0 0
      %6283 = vmatpush.bf16.xpose.msra.mxu0 0
      %6284 = vmatpush.bf16.xpose.msra.mxu0 0
      %6285 = vmatpush.bf16.xpose.msra.mxu0 0
      %6286 = vmatpush.bf16.xpose.msra.mxu0 0
      %6287 = vmatpush.bf16.xpose.msra.mxu0 0
      %6288 = vmatpush.bf16.xpose.msra.mxu0 %v6279
      %6289 = vmatmul.bf16.gmra.mxu0 %v6276
      %v6290 = vpop.f32.mrf.mxu0
      %v6291 = vadd.f32 0.0, %v6290
      %v6292 = vpop.f32.mrf.mxu0
      %v6293 = vadd.f32 0.0, %v6292
      %6294 = vdwg.mxu0
      %v6297 = vunpack.c.l.b16 %v5747
      %v6298 = vunpack.c.l.b16 %v5748
      %v6299 = vpack.c.b16 %v6298, %v6297
      %v6302 = vunpack.c.l.b16 %v5811
      %v6303 = vunpack.c.l.b16 %v5812
      %v6304 = vpack.c.b16 %v6303, %v6302
      %v6306 = vsel %vm719, %v6299, 0
      %v6309 = vsel %vm719, %v6304, 0
      %6311 = vmatpush.bf16.xpose.msra.mxu0 0
      %6312 = vmatpush.bf16.xpose.msra.mxu0 0
      %6313 = vmatpush.bf16.xpose.msra.mxu0 0
      %6314 = vmatpush.bf16.xpose.msra.mxu0 0
      %6315 = vmatpush.bf16.xpose.msra.mxu0 0
      %6316 = vmatpush.bf16.xpose.msra.mxu0 0
      %6317 = vmatpush.bf16.xpose.msra.mxu0 0
      %6318 = vmatpush.bf16.xpose.msra.mxu0 %v6309
      %6319 = vmatmul.bf16.gmra.mxu0 %v6306
      %v6320 = vpop.f32.mrf.mxu0
      %v6321 = vadd.f32 0.0, %v6320
      %v6322 = vpop.f32.mrf.mxu0
      %v6323 = vadd.f32 0.0, %v6322
      %6324 = vdwg.mxu0
      %v6327 = vunpack.c.l.b16 %v5749
      %v6328 = vunpack.c.l.b16 %v5750
      %v6329 = vpack.c.b16 %v6328, %v6327
      %v6332 = vunpack.c.l.b16 %v5813
      %v6333 = vunpack.c.l.b16 %v5814
      %v6334 = vpack.c.b16 %v6333, %v6332
      %v6336 = vsel %vm719, %v6329, 0
      %v6339 = vsel %vm719, %v6334, 0
      %6341 = vmatpush.bf16.xpose.msra.mxu0 0
      %6342 = vmatpush.bf16.xpose.msra.mxu0 0
      %6343 = vmatpush.bf16.xpose.msra.mxu0 0
      %6344 = vmatpush.bf16.xpose.msra.mxu0 0
      %6345 = vmatpush.bf16.xpose.msra.mxu0 0
      %6346 = vmatpush.bf16.xpose.msra.mxu0 0
      %6347 = vmatpush.bf16.xpose.msra.mxu0 0
      %6348 = vmatpush.bf16.xpose.msra.mxu0 %v6339
      %6349 = vmatmul.bf16.gmra.mxu0 %v6336
      %v6350 = vpop.f32.mrf.mxu0
      %v6351 = vadd.f32 0.0, %v6350
      %v6352 = vpop.f32.mrf.mxu0
      %v6353 = vadd.f32 0.0, %v6352
      %6354 = vdwg.mxu0
      %v6357 = vunpack.c.l.b16 %v5751
      %v6358 = vunpack.c.l.b16 %v5752
      %v6359 = vpack.c.b16 %v6358, %v6357
      %v6362 = vunpack.c.l.b16 %v5815
      %v6363 = vunpack.c.l.b16 %v5816
      %v6364 = vpack.c.b16 %v6363, %v6362
      %v6366 = vsel %vm719, %v6359, 0
      %v6369 = vsel %vm719, %v6364, 0
      %6371 = vmatpush.bf16.xpose.msra.mxu0 0
      %6372 = vmatpush.bf16.xpose.msra.mxu0 0
      %6373 = vmatpush.bf16.xpose.msra.mxu0 0
      %6374 = vmatpush.bf16.xpose.msra.mxu0 0
      %6375 = vmatpush.bf16.xpose.msra.mxu0 0
      %6376 = vmatpush.bf16.xpose.msra.mxu0 0
      %6377 = vmatpush.bf16.xpose.msra.mxu0 0
      %6378 = vmatpush.bf16.xpose.msra.mxu0 %v6369
      %6379 = vmatmul.bf16.gmra.mxu0 %v6366
      %v6380 = vpop.f32.mrf.mxu0
      %v6381 = vadd.f32 0.0, %v6380
      %v6382 = vpop.f32.mrf.mxu0
      %v6383 = vadd.f32 0.0, %v6382
      %6384 = vdwg.mxu0
      %v6387 = vunpack.c.l.b16 %v5753
      %v6388 = vunpack.c.l.b16 %v5754
      %v6389 = vpack.c.b16 %v6388, %v6387
      %v6392 = vunpack.c.l.b16 %v5817
      %v6393 = vunpack.c.l.b16 %v5818
      %v6394 = vpack.c.b16 %v6393, %v6392
      %v6396 = vsel %vm719, %v6389, 0
      %v6399 = vsel %vm719, %v6394, 0
      %6401 = vmatpush.bf16.xpose.msra.mxu0 0
      %6402 = vmatpush.bf16.xpose.msra.mxu0 0
      %6403 = vmatpush.bf16.xpose.msra.mxu0 0
      %6404 = vmatpush.bf16.xpose.msra.mxu0 0
      %6405 = vmatpush.bf16.xpose.msra.mxu0 0
      %6406 = vmatpush.bf16.xpose.msra.mxu0 0
      %6407 = vmatpush.bf16.xpose.msra.mxu0 0
      %6408 = vmatpush.bf16.xpose.msra.mxu0 %v6399
      %6409 = vmatmul.bf16.gmra.mxu0 %v6396
      %v6410 = vpop.f32.mrf.mxu0
      %v6411 = vadd.f32 0.0, %v6410
      %v6412 = vpop.f32.mrf.mxu0
      %v6413 = vadd.f32 0.0, %v6412
      %6414 = vdwg.mxu0
      %v6417 = vunpack.c.l.b16 %v5755
      %v6418 = vunpack.c.l.b16 %v5756
      %v6419 = vpack.c.b16 %v6418, %v6417
      %v6422 = vunpack.c.l.b16 %v5819
      %v6423 = vunpack.c.l.b16 %v5820
      %v6424 = vpack.c.b16 %v6423, %v6422
      %v6426 = vsel %vm719, %v6419, 0
      %v6429 = vsel %vm719, %v6424, 0
      %6431 = vmatpush.bf16.xpose.msra.mxu0 0
      %6432 = vmatpush.bf16.xpose.msra.mxu0 0
      %6433 = vmatpush.bf16.xpose.msra.mxu0 0
      %6434 = vmatpush.bf16.xpose.msra.mxu0 0
      %6435 = vmatpush.bf16.xpose.msra.mxu0 0
      %6436 = vmatpush.bf16.xpose.msra.mxu0 0
      %6437 = vmatpush.bf16.xpose.msra.mxu0 0
      %6438 = vmatpush.bf16.xpose.msra.mxu0 %v6429
      %6439 = vmatmul.bf16.gmra.mxu0 %v6426
      %v6440 = vpop.f32.mrf.mxu0
      %v6441 = vadd.f32 0.0, %v6440
      %v6442 = vpop.f32.mrf.mxu0
      %v6443 = vadd.f32 0.0, %v6442
      %6444 = vdwg.mxu0
      %v6447 = vunpack.c.l.b16 %v5757
      %v6448 = vunpack.c.l.b16 %v5758
      %v6449 = vpack.c.b16 %v6448, %v6447
      %v6452 = vunpack.c.l.b16 %v5821
      %v6453 = vunpack.c.l.b16 %v5822
      %v6454 = vpack.c.b16 %v6453, %v6452
      %v6456 = vsel %vm719, %v6449, 0
      %v6459 = vsel %vm719, %v6454, 0
      %6461 = vmatpush.bf16.xpose.msra.mxu0 0
      %6462 = vmatpush.bf16.xpose.msra.mxu0 0
      %6463 = vmatpush.bf16.xpose.msra.mxu0 0
      %6464 = vmatpush.bf16.xpose.msra.mxu0 0
      %6465 = vmatpush.bf16.xpose.msra.mxu0 0
      %6466 = vmatpush.bf16.xpose.msra.mxu0 0
      %6467 = vmatpush.bf16.xpose.msra.mxu0 0
      %6468 = vmatpush.bf16.xpose.msra.mxu0 %v6459
      %6469 = vmatmul.bf16.gmra.mxu0 %v6456
      %v6470 = vpop.f32.mrf.mxu0
      %v6471 = vadd.f32 0.0, %v6470
      %v6472 = vpop.f32.mrf.mxu0
      %v6473 = vadd.f32 0.0, %v6472
      %6474 = vdwg.mxu0
      %v6477 = vunpack.c.l.b16 %v5759
      %v6478 = vunpack.c.l.b16 %v5760
      %v6479 = vpack.c.b16 %v6478, %v6477
      %v6482 = vunpack.c.l.b16 %v5823
      %v6483 = vunpack.c.l.b16 %v5824
      %v6484 = vpack.c.b16 %v6483, %v6482
      %v6486 = vsel %vm719, %v6479, 0
      %v6489 = vsel %vm719, %v6484, 0
      %6491 = vmatpush.bf16.xpose.msra.mxu0 0
      %6492 = vmatpush.bf16.xpose.msra.mxu0 0
      %6493 = vmatpush.bf16.xpose.msra.mxu0 0
      %6494 = vmatpush.bf16.xpose.msra.mxu0 0
      %6495 = vmatpush.bf16.xpose.msra.mxu0 0
      %6496 = vmatpush.bf16.xpose.msra.mxu0 0
      %6497 = vmatpush.bf16.xpose.msra.mxu0 0
      %6498 = vmatpush.bf16.xpose.msra.mxu0 %v6489
      %6499 = vmatmul.bf16.gmra.mxu0 %v6486
      %v6500 = vpop.f32.mrf.mxu0
      %v6501 = vadd.f32 0.0, %v6500
      %v6502 = vpop.f32.mrf.mxu0
      %v6503 = vadd.f32 0.0, %v6502
      %6504 = vdwg.mxu0
      %v6507 = vunpack.c.l.b16 %v5761
      %v6508 = vunpack.c.l.b16 %v5762
      %v6509 = vpack.c.b16 %v6508, %v6507
      %v6512 = vunpack.c.l.b16 %v5825
      %v6513 = vunpack.c.l.b16 %v5826
      %v6514 = vpack.c.b16 %v6513, %v6512
      %v6516 = vsel %vm719, %v6509, 0
      %v6519 = vsel %vm719, %v6514, 0
      %6521 = vmatpush.bf16.xpose.msra.mxu0 0
      %6522 = vmatpush.bf16.xpose.msra.mxu0 0
      %6523 = vmatpush.bf16.xpose.msra.mxu0 0
      %6524 = vmatpush.bf16.xpose.msra.mxu0 0
      %6525 = vmatpush.bf16.xpose.msra.mxu0 0
      %6526 = vmatpush.bf16.xpose.msra.mxu0 0
      %6527 = vmatpush.bf16.xpose.msra.mxu0 0
      %6528 = vmatpush.bf16.xpose.msra.mxu0 %v6519
      %6529 = vmatmul.bf16.gmra.mxu0 %v6516
      %v6530 = vpop.f32.mrf.mxu0
      %v6531 = vadd.f32 0.0, %v6530
      %v6532 = vpop.f32.mrf.mxu0
      %v6533 = vadd.f32 0.0, %v6532
      %6534 = vdwg.mxu0
      %v6537 = vunpack.c.l.b16 %v5763
      %v6538 = vunpack.c.l.b16 %v5764
      %v6539 = vpack.c.b16 %v6538, %v6537
      %v6542 = vunpack.c.l.b16 %v5827
      %v6543 = vunpack.c.l.b16 %v5828
      %v6544 = vpack.c.b16 %v6543, %v6542
      %v6546 = vsel %vm719, %v6539, 0
      %v6549 = vsel %vm719, %v6544, 0
      %6551 = vmatpush.bf16.xpose.msra.mxu0 0
      %6552 = vmatpush.bf16.xpose.msra.mxu0 0
      %6553 = vmatpush.bf16.xpose.msra.mxu0 0
      %6554 = vmatpush.bf16.xpose.msra.mxu0 0
      %6555 = vmatpush.bf16.xpose.msra.mxu0 0
      %6556 = vmatpush.bf16.xpose.msra.mxu0 0
      %6557 = vmatpush.bf16.xpose.msra.mxu0 0
      %6558 = vmatpush.bf16.xpose.msra.mxu0 %v6549
      %6559 = vmatmul.bf16.gmra.mxu0 %v6546
      %v6560 = vpop.f32.mrf.mxu0
      %v6561 = vadd.f32 0.0, %v6560
      %v6562 = vpop.f32.mrf.mxu0
      %v6563 = vadd.f32 0.0, %v6562
      %6564 = vdwg.mxu0
      %v6567 = vunpack.c.l.b16 %v5765
      %v6568 = vunpack.c.l.b16 %v5766
      %v6569 = vpack.c.b16 %v6568, %v6567
      %v6572 = vunpack.c.l.b16 %v5829
      %v6573 = vunpack.c.l.b16 %v5830
      %v6574 = vpack.c.b16 %v6573, %v6572
      %v6576 = vsel %vm719, %v6569, 0
      %v6579 = vsel %vm719, %v6574, 0
      %6581 = vmatpush.bf16.xpose.msra.mxu0 0
      %6582 = vmatpush.bf16.xpose.msra.mxu0 0
      %6583 = vmatpush.bf16.xpose.msra.mxu0 0
      %6584 = vmatpush.bf16.xpose.msra.mxu0 0
      %6585 = vmatpush.bf16.xpose.msra.mxu0 0
      %6586 = vmatpush.bf16.xpose.msra.mxu0 0
      %6587 = vmatpush.bf16.xpose.msra.mxu0 0
      %6588 = vmatpush.bf16.xpose.msra.mxu0 %v6579
      %6589 = vmatmul.bf16.gmra.mxu0 %v6576
      %v6590 = vpop.f32.mrf.mxu0
      %v6591 = vadd.f32 0.0, %v6590
      %v6592 = vpop.f32.mrf.mxu0
      %v6593 = vadd.f32 0.0, %v6592
      %6594 = vdwg.mxu0
      %v6597 = vunpack.c.l.b16 %v5767
      %v6598 = vunpack.c.l.b16 %v5768
      %v6599 = vpack.c.b16 %v6598, %v6597
      %v6602 = vunpack.c.l.b16 %v5831
      %v6603 = vunpack.c.l.b16 %v5832
      %v6604 = vpack.c.b16 %v6603, %v6602
      %v6606 = vsel %vm719, %v6599, 0
      %v6609 = vsel %vm719, %v6604, 0
      %6611 = vmatpush.bf16.xpose.msra.mxu0 0
      %6612 = vmatpush.bf16.xpose.msra.mxu0 0
      %6613 = vmatpush.bf16.xpose.msra.mxu0 0
      %6614 = vmatpush.bf16.xpose.msra.mxu0 0
      %6615 = vmatpush.bf16.xpose.msra.mxu0 0
      %6616 = vmatpush.bf16.xpose.msra.mxu0 0
      %6617 = vmatpush.bf16.xpose.msra.mxu0 0
      %6618 = vmatpush.bf16.xpose.msra.mxu0 %v6609
      %6619 = vmatmul.bf16.gmra.mxu0 %v6606
      %v6620 = vpop.f32.mrf.mxu0
      %v6621 = vadd.f32 0.0, %v6620
      %v6622 = vpop.f32.mrf.mxu0
      %v6623 = vadd.f32 0.0, %v6622
      %6624 = vdwg.mxu0
      %v6627 = vunpack.c.l.b16 %v5769
      %v6628 = vunpack.c.l.b16 %v5770
      %v6629 = vpack.c.b16 %v6628, %v6627
      %v6632 = vunpack.c.l.b16 %v5833
      %v6633 = vunpack.c.l.b16 %v5834
      %v6634 = vpack.c.b16 %v6633, %v6632
      %v6636 = vsel %vm719, %v6629, 0
      %v6639 = vsel %vm719, %v6634, 0
      %6641 = vmatpush.bf16.xpose.msra.mxu0 0
      %6642 = vmatpush.bf16.xpose.msra.mxu0 0
      %6643 = vmatpush.bf16.xpose.msra.mxu0 0
      %6644 = vmatpush.bf16.xpose.msra.mxu0 0
      %6645 = vmatpush.bf16.xpose.msra.mxu0 0
      %6646 = vmatpush.bf16.xpose.msra.mxu0 0
      %6647 = vmatpush.bf16.xpose.msra.mxu0 0
      %6648 = vmatpush.bf16.xpose.msra.mxu0 %v6639
      %6649 = vmatmul.bf16.gmra.mxu0 %v6636
      %v6650 = vpop.f32.mrf.mxu0
      %v6651 = vadd.f32 0.0, %v6650
      %v6652 = vpop.f32.mrf.mxu0
      %v6653 = vadd.f32 0.0, %v6652
      %6654 = vdwg.mxu0
      %v6657 = vunpack.c.l.b16 %v5771
      %v6658 = vunpack.c.l.b16 %v5772
      %v6659 = vpack.c.b16 %v6658, %v6657
      %v6662 = vunpack.c.l.b16 %v5835
      %v6663 = vunpack.c.l.b16 %v5836
      %v6664 = vpack.c.b16 %v6663, %v6662
      %v6666 = vsel %vm719, %v6659, 0
      %v6669 = vsel %vm719, %v6664, 0
      %6671 = vmatpush.bf16.xpose.msra.mxu0 0
      %6672 = vmatpush.bf16.xpose.msra.mxu0 0
      %6673 = vmatpush.bf16.xpose.msra.mxu0 0
      %6674 = vmatpush.bf16.xpose.msra.mxu0 0
      %6675 = vmatpush.bf16.xpose.msra.mxu0 0
      %6676 = vmatpush.bf16.xpose.msra.mxu0 0
      %6677 = vmatpush.bf16.xpose.msra.mxu0 0
      %6678 = vmatpush.bf16.xpose.msra.mxu0 %v6669
      %6679 = vmatmul.bf16.gmra.mxu0 %v6666
      %v6680 = vpop.f32.mrf.mxu0
      %v6681 = vadd.f32 0.0, %v6680
      %v6682 = vpop.f32.mrf.mxu0
      %v6683 = vadd.f32 0.0, %v6682
      %6684 = vdwg.mxu0
      %v6687 = vunpack.c.l.b16 %v5773
      %v6688 = vunpack.c.l.b16 %v5774
      %v6689 = vpack.c.b16 %v6688, %v6687
      %v6692 = vunpack.c.l.b16 %v5837
      %v6693 = vunpack.c.l.b16 %v5838
      %v6694 = vpack.c.b16 %v6693, %v6692
      %v6696 = vsel %vm719, %v6689, 0
      %v6699 = vsel %vm719, %v6694, 0
      %6701 = vmatpush.bf16.xpose.msra.mxu0 0
      %6702 = vmatpush.bf16.xpose.msra.mxu0 0
      %6703 = vmatpush.bf16.xpose.msra.mxu0 0
      %6704 = vmatpush.bf16.xpose.msra.mxu0 0
      %6705 = vmatpush.bf16.xpose.msra.mxu0 0
      %6706 = vmatpush.bf16.xpose.msra.mxu0 0
      %6707 = vmatpush.bf16.xpose.msra.mxu0 0
      %6708 = vmatpush.bf16.xpose.msra.mxu0 %v6699
      %6709 = vmatmul.bf16.gmra.mxu0 %v6696
      %v6710 = vpop.f32.mrf.mxu0
      %v6711 = vadd.f32 0.0, %v6710
      %v6712 = vpop.f32.mrf.mxu0
      %v6713 = vadd.f32 0.0, %v6712
      %6714 = vdwg.mxu0
      %v6717 = vunpack.c.l.b16 %v5775
      %v6718 = vunpack.c.l.b16 %v5776
      %v6719 = vpack.c.b16 %v6718, %v6717
      %v6722 = vunpack.c.l.b16 %v5839
      %v6723 = vunpack.c.l.b16 %v5840
      %v6724 = vpack.c.b16 %v6723, %v6722
      %v6726 = vsel %vm719, %v6719, 0
      %v6729 = vsel %vm719, %v6724, 0
      %6731 = vmatpush.bf16.xpose.msra.mxu0 0
      %6732 = vmatpush.bf16.xpose.msra.mxu0 0
      %6733 = vmatpush.bf16.xpose.msra.mxu0 0
      %6734 = vmatpush.bf16.xpose.msra.mxu0 0
      %6735 = vmatpush.bf16.xpose.msra.mxu0 0
      %6736 = vmatpush.bf16.xpose.msra.mxu0 0
      %6737 = vmatpush.bf16.xpose.msra.mxu0 0
      %6738 = vmatpush.bf16.xpose.msra.mxu0 %v6729
      %6739 = vmatmul.bf16.gmra.mxu0 %v6726
      %v6740 = vpop.f32.mrf.mxu0
      %v6741 = vadd.f32 0.0, %v6740
      %v6742 = vpop.f32.mrf.mxu0
      %v6743 = vadd.f32 0.0, %v6742
      %6744 = vdwg.mxu0
      %v6747 = vunpack.c.l.b16 %v5777
      %v6748 = vunpack.c.l.b16 %v5778
      %v6749 = vpack.c.b16 %v6748, %v6747
      %v6752 = vunpack.c.l.b16 %v5841
      %v6753 = vunpack.c.l.b16 %v5842
      %v6754 = vpack.c.b16 %v6753, %v6752
      %v6756 = vsel %vm719, %v6749, 0
      %v6759 = vsel %vm719, %v6754, 0
      %6761 = vmatpush.bf16.xpose.msra.mxu0 0
      %6762 = vmatpush.bf16.xpose.msra.mxu0 0
      %6763 = vmatpush.bf16.xpose.msra.mxu0 0
      %6764 = vmatpush.bf16.xpose.msra.mxu0 0
      %6765 = vmatpush.bf16.xpose.msra.mxu0 0
      %6766 = vmatpush.bf16.xpose.msra.mxu0 0
      %6767 = vmatpush.bf16.xpose.msra.mxu0 0
      %6768 = vmatpush.bf16.xpose.msra.mxu0 %v6759
      %6769 = vmatmul.bf16.gmra.mxu0 %v6756
      %v6770 = vpop.f32.mrf.mxu0
      %v6771 = vadd.f32 0.0, %v6770
      %v6772 = vpop.f32.mrf.mxu0
      %v6773 = vadd.f32 0.0, %v6772
      %6774 = vdwg.mxu0
      %v6777 = vunpack.c.l.b16 %v5779
      %v6778 = vunpack.c.l.b16 %v5780
      %v6779 = vpack.c.b16 %v6778, %v6777
      %v6782 = vunpack.c.l.b16 %v5843
      %v6783 = vunpack.c.l.b16 %v5844
      %v6784 = vpack.c.b16 %v6783, %v6782
      %v6786 = vsel %vm719, %v6779, 0
      %v6789 = vsel %vm719, %v6784, 0
      %6791 = vmatpush.bf16.xpose.msra.mxu0 0
      %6792 = vmatpush.bf16.xpose.msra.mxu0 0
      %6793 = vmatpush.bf16.xpose.msra.mxu0 0
      %6794 = vmatpush.bf16.xpose.msra.mxu0 0
      %6795 = vmatpush.bf16.xpose.msra.mxu0 0
      %6796 = vmatpush.bf16.xpose.msra.mxu0 0
      %6797 = vmatpush.bf16.xpose.msra.mxu0 0
      %6798 = vmatpush.bf16.xpose.msra.mxu0 %v6789
      %6799 = vmatmul.bf16.gmra.mxu0 %v6786
      %v6800 = vpop.f32.mrf.mxu0
      %v6801 = vadd.f32 0.0, %v6800
      %v6802 = vpop.f32.mrf.mxu0
      %v6803 = vadd.f32 0.0, %v6802
      %6804 = vdwg.mxu0
      %v6805 = vmul.f32 %v5871, 0.17677669
      %v6806 = vmul.f32 %v5873, 0.17677669
      %v6807 = vmul.f32 %v5901, 0.17677669
      %v6808 = vmul.f32 %v5903, 0.17677669
      %v6809 = vmul.f32 %v5931, 0.17677669
      %v6810 = vmul.f32 %v5933, 0.17677669
      %v6811 = vmul.f32 %v5961, 0.17677669
      %v6812 = vmul.f32 %v5963, 0.17677669
      %v6813 = vmul.f32 %v5991, 0.17677669
      %v6814 = vmul.f32 %v5993, 0.17677669
      %v6815 = vmul.f32 %v6021, 0.17677669
      %v6816 = vmul.f32 %v6023, 0.17677669
      %v6817 = vmul.f32 %v6051, 0.17677669
      %v6818 = vmul.f32 %v6053, 0.17677669
      %v6819 = vmul.f32 %v6081, 0.17677669
      %v6820 = vmul.f32 %v6083, 0.17677669
      %v6821 = vmul.f32 %v6111, 0.17677669
      %v6822 = vmul.f32 %v6113, 0.17677669
      %v6823 = vmul.f32 %v6141, 0.17677669
      %v6824 = vmul.f32 %v6143, 0.17677669
      %v6825 = vmul.f32 %v6171, 0.17677669
      %v6826 = vmul.f32 %v6173, 0.17677669
      %v6827 = vmul.f32 %v6201, 0.17677669
      %v6828 = vmul.f32 %v6203, 0.17677669
      %v6829 = vmul.f32 %v6231, 0.17677669
      %v6830 = vmul.f32 %v6233, 0.17677669
      %v6831 = vmul.f32 %v6261, 0.17677669
      %v6832 = vmul.f32 %v6263, 0.17677669
      %v6833 = vmul.f32 %v6291, 0.17677669
      %v6834 = vmul.f32 %v6293, 0.17677669
      %v6835 = vmul.f32 %v6321, 0.17677669
      %v6836 = vmul.f32 %v6323, 0.17677669
      %v6837 = vmul.f32 %v6351, 0.17677669
      %v6838 = vmul.f32 %v6353, 0.17677669
      %v6839 = vmul.f32 %v6381, 0.17677669
      %v6840 = vmul.f32 %v6383, 0.17677669
      %v6841 = vmul.f32 %v6411, 0.17677669
      %v6842 = vmul.f32 %v6413, 0.17677669
      %v6843 = vmul.f32 %v6441, 0.17677669
      %v6844 = vmul.f32 %v6443, 0.17677669
      %v6845 = vmul.f32 %v6471, 0.17677669
      %v6846 = vmul.f32 %v6473, 0.17677669
      %v6847 = vmul.f32 %v6501, 0.17677669
      %v6848 = vmul.f32 %v6503, 0.17677669
      %v6849 = vmul.f32 %v6531, 0.17677669
      %v6850 = vmul.f32 %v6533, 0.17677669
      %v6851 = vmul.f32 %v6561, 0.17677669
      %v6852 = vmul.f32 %v6563, 0.17677669
      %v6853 = vmul.f32 %v6591, 0.17677669
      %v6854 = vmul.f32 %v6593, 0.17677669
      %v6855 = vmul.f32 %v6621, 0.17677669
      %v6856 = vmul.f32 %v6623, 0.17677669
      %v6857 = vmul.f32 %v6651, 0.17677669
      %v6858 = vmul.f32 %v6653, 0.17677669
      %v6859 = vmul.f32 %v6681, 0.17677669
      %v6860 = vmul.f32 %v6683, 0.17677669
      %v6861 = vmul.f32 %v6711, 0.17677669
      %v6862 = vmul.f32 %v6713, 0.17677669
      %v6863 = vmul.f32 %v6741, 0.17677669
      %v6864 = vmul.f32 %v6743, 0.17677669
      %v6865 = vmul.f32 %v6771, 0.17677669
      %v6866 = vmul.f32 %v6773, 0.17677669
      %v6867 = vmul.f32 %v6801, 0.17677669
      %v6868 = vmul.f32 %v6803, 0.17677669
      %v6869 = vadd.f32 %v6805, %v344
      %v6870 = vadd.f32 %v6806, %v344
      %v6871 = vadd.f32 %v6807, %v344
      %v6872 = vadd.f32 %v6808, %v344
      %v6873 = vadd.f32 %v6809, %v344
      %v6874 = vadd.f32 %v6810, %v344
      %v6875 = vadd.f32 %v6811, %v344
      %v6876 = vadd.f32 %v6812, %v344
      %v6877 = vadd.f32 %v6813, %v344
      %v6878 = vadd.f32 %v6814, %v344
      %v6879 = vadd.f32 %v6815, %v344
      %v6880 = vadd.f32 %v6816, %v344
      %v6881 = vadd.f32 %v6817, %v344
      %v6882 = vadd.f32 %v6818, %v344
      %v6883 = vadd.f32 %v6819, %v344
      %v6884 = vadd.f32 %v6820, %v344
      %v6885 = vadd.f32 %v6821, %v344
      %v6886 = vadd.f32 %v6822, %v344
      %v6887 = vadd.f32 %v6823, %v344
      %v6888 = vadd.f32 %v6824, %v344
      %v6889 = vadd.f32 %v6825, %v344
      %v6890 = vadd.f32 %v6826, %v344
      %v6891 = vadd.f32 %v6827, %v344
      %v6892 = vadd.f32 %v6828, %v344
      %v6893 = vadd.f32 %v6829, %v344
      %v6894 = vadd.f32 %v6830, %v344
      %v6895 = vadd.f32 %v6831, %v344
      %v6896 = vadd.f32 %v6832, %v344
      %v6897 = vadd.f32 %v6833, %v344
      %v6898 = vadd.f32 %v6834, %v344
      %v6899 = vadd.f32 %v6835, %v344
      %v6900 = vadd.f32 %v6836, %v344
      %v6901 = vadd.f32 %v6837, %v344
      %v6902 = vadd.f32 %v6838, %v344
      %v6903 = vadd.f32 %v6839, %v344
      %v6904 = vadd.f32 %v6840, %v344
      %v6905 = vadd.f32 %v6841, %v344
      %v6906 = vadd.f32 %v6842, %v344
      %v6907 = vadd.f32 %v6843, %v344
      %v6908 = vadd.f32 %v6844, %v344
      %v6909 = vadd.f32 %v6845, %v344
      %v6910 = vadd.f32 %v6846, %v344
      %v6911 = vadd.f32 %v6847, %v344
      %v6912 = vadd.f32 %v6848, %v344
      %v6913 = vadd.f32 %v6849, %v344
      %v6914 = vadd.f32 %v6850, %v344
      %v6915 = vadd.f32 %v6851, %v344
      %v6916 = vadd.f32 %v6852, %v344
      %v6917 = vadd.f32 %v6853, %v344
      %v6918 = vadd.f32 %v6854, %v344
      %v6919 = vadd.f32 %v6855, %v344
      %v6920 = vadd.f32 %v6856, %v344
      %v6921 = vadd.f32 %v6857, %v344
      %v6922 = vadd.f32 %v6858, %v344
      %v6923 = vadd.f32 %v6859, %v344
      %v6924 = vadd.f32 %v6860, %v344
      %v6925 = vadd.f32 %v6861, %v344
      %v6926 = vadd.f32 %v6862, %v344
      %v6927 = vadd.f32 %v6863, %v344
      %v6928 = vadd.f32 %v6864, %v344
      %v6929 = vadd.f32 %v6865, %v344
      %v6930 = vadd.f32 %v6866, %v344
      %v6931 = vadd.f32 %v6867, %v344
      %v6932 = vadd.f32 %v6868, %v344
      %v6933 = vsel %vm440, %v6869, -inf
      %6934 = vmax.xlane.f32.xlu0 %v6933
      %v6935 = vpop.xlane.xlu0 %6934
      %v6936 = vsel %vm440, %v6870, -inf
      %6937 = vmax.xlane.f32.xlu0 %v6936
      %v6938 = vpop.xlane.xlu0 %6937
      %v6939 = vsel %vm440, %v6871, -inf
      %6940 = vmax.xlane.f32.xlu0 %v6939
      %v6941 = vpop.xlane.xlu0 %6940
      %v6942 = vsel %vm440, %v6872, -inf
      %6943 = vmax.xlane.f32.xlu0 %v6942
      %v6944 = vpop.xlane.xlu0 %6943
      %v6945 = vsel %vm440, %v6873, -inf
      %6946 = vmax.xlane.f32.xlu0 %v6945
      %v6947 = vpop.xlane.xlu0 %6946
      %v6948 = vsel %vm440, %v6874, -inf
      %6949 = vmax.xlane.f32.xlu0 %v6948
      %v6950 = vpop.xlane.xlu0 %6949
      %v6951 = vsel %vm440, %v6875, -inf
      %6952 = vmax.xlane.f32.xlu0 %v6951
      %v6953 = vpop.xlane.xlu0 %6952
      %v6954 = vsel %vm440, %v6876, -inf
      %6955 = vmax.xlane.f32.xlu0 %v6954
      %v6956 = vpop.xlane.xlu0 %6955
      %v6957 = vsel %vm440, %v6877, -inf
      %6958 = vmax.xlane.f32.xlu0 %v6957
      %v6959 = vpop.xlane.xlu0 %6958
      %v6960 = vsel %vm440, %v6878, -inf
      %6961 = vmax.xlane.f32.xlu0 %v6960
      %v6962 = vpop.xlane.xlu0 %6961
      %v6963 = vsel %vm440, %v6879, -inf
      %6964 = vmax.xlane.f32.xlu0 %v6963
      %v6965 = vpop.xlane.xlu0 %6964
      %v6966 = vsel %vm440, %v6880, -inf
      %6967 = vmax.xlane.f32.xlu0 %v6966
      %v6968 = vpop.xlane.xlu0 %6967
      %v6969 = vsel %vm440, %v6881, -inf
      %6970 = vmax.xlane.f32.xlu0 %v6969
      %v6971 = vpop.xlane.xlu0 %6970
      %v6972 = vsel %vm440, %v6882, -inf
      %6973 = vmax.xlane.f32.xlu0 %v6972
      %v6974 = vpop.xlane.xlu0 %6973
      %v6975 = vsel %vm440, %v6883, -inf
      %6976 = vmax.xlane.f32.xlu0 %v6975
      %v6977 = vpop.xlane.xlu0 %6976
      %v6978 = vsel %vm440, %v6884, -inf
      %6979 = vmax.xlane.f32.xlu0 %v6978
      %v6980 = vpop.xlane.xlu0 %6979
      %v6981 = vsel %vm440, %v6885, -inf
      %6982 = vmax.xlane.f32.xlu0 %v6981
      %v6983 = vpop.xlane.xlu0 %6982
      %v6984 = vsel %vm440, %v6886, -inf
      %6985 = vmax.xlane.f32.xlu0 %v6984
      %v6986 = vpop.xlane.xlu0 %6985
      %v6987 = vsel %vm440, %v6887, -inf
      %6988 = vmax.xlane.f32.xlu0 %v6987
      %v6989 = vpop.xlane.xlu0 %6988
      %v6990 = vsel %vm440, %v6888, -inf
      %6991 = vmax.xlane.f32.xlu0 %v6990
      %v6992 = vpop.xlane.xlu0 %6991
      %v6993 = vsel %vm440, %v6889, -inf
      %6994 = vmax.xlane.f32.xlu0 %v6993
      %v6995 = vpop.xlane.xlu0 %6994
      %v6996 = vsel %vm440, %v6890, -inf
      %6997 = vmax.xlane.f32.xlu0 %v6996
      %v6998 = vpop.xlane.xlu0 %6997
      %v6999 = vsel %vm440, %v6891, -inf
      %7000 = vmax.xlane.f32.xlu0 %v6999
      %v7001 = vpop.xlane.xlu0 %7000
      %v7002 = vsel %vm440, %v6892, -inf
      %7003 = vmax.xlane.f32.xlu0 %v7002
      %v7004 = vpop.xlane.xlu0 %7003
      %v7005 = vsel %vm440, %v6893, -inf
      %7006 = vmax.xlane.f32.xlu0 %v7005
      %v7007 = vpop.xlane.xlu0 %7006
      %v7008 = vsel %vm440, %v6894, -inf
      %7009 = vmax.xlane.f32.xlu0 %v7008
      %v7010 = vpop.xlane.xlu0 %7009
      %v7011 = vsel %vm440, %v6895, -inf
      %7012 = vmax.xlane.f32.xlu0 %v7011
      %v7013 = vpop.xlane.xlu0 %7012
      %v7014 = vsel %vm440, %v6896, -inf
      %7015 = vmax.xlane.f32.xlu0 %v7014
      %v7016 = vpop.xlane.xlu0 %7015
      %v7017 = vsel %vm440, %v6897, -inf
      %7018 = vmax.xlane.f32.xlu0 %v7017
      %v7019 = vpop.xlane.xlu0 %7018
      %v7020 = vsel %vm440, %v6898, -inf
      %7021 = vmax.xlane.f32.xlu0 %v7020
      %v7022 = vpop.xlane.xlu0 %7021
      %v7023 = vsel %vm440, %v6899, -inf
      %7024 = vmax.xlane.f32.xlu0 %v7023
      %v7025 = vpop.xlane.xlu0 %7024
      %v7026 = vsel %vm440, %v6900, -inf
      %7027 = vmax.xlane.f32.xlu0 %v7026
      %v7028 = vpop.xlane.xlu0 %7027
      %v7029 = vsel %vm440, %v6901, -inf
      %7030 = vmax.xlane.f32.xlu0 %v7029
      %v7031 = vpop.xlane.xlu0 %7030
      %v7032 = vsel %vm440, %v6902, -inf
      %7033 = vmax.xlane.f32.xlu0 %v7032
      %v7034 = vpop.xlane.xlu0 %7033
      %v7035 = vsel %vm440, %v6903, -inf
      %7036 = vmax.xlane.f32.xlu0 %v7035
      %v7037 = vpop.xlane.xlu0 %7036
      %v7038 = vsel %vm440, %v6904, -inf
      %7039 = vmax.xlane.f32.xlu0 %v7038
      %v7040 = vpop.xlane.xlu0 %7039
      %v7041 = vsel %vm440, %v6905, -inf
      %7042 = vmax.xlane.f32.xlu0 %v7041
      %v7043 = vpop.xlane.xlu0 %7042
      %v7044 = vsel %vm440, %v6906, -inf
      %7045 = vmax.xlane.f32.xlu0 %v7044
      %v7046 = vpop.xlane.xlu0 %7045
      %v7047 = vsel %vm440, %v6907, -inf
      %7048 = vmax.xlane.f32.xlu0 %v7047
      %v7049 = vpop.xlane.xlu0 %7048
      %v7050 = vsel %vm440, %v6908, -inf
      %7051 = vmax.xlane.f32.xlu0 %v7050
      %v7052 = vpop.xlane.xlu0 %7051
      %v7053 = vsel %vm440, %v6909, -inf
      %7054 = vmax.xlane.f32.xlu0 %v7053
      %v7055 = vpop.xlane.xlu0 %7054
      %v7056 = vsel %vm440, %v6910, -inf
      %7057 = vmax.xlane.f32.xlu0 %v7056
      %v7058 = vpop.xlane.xlu0 %7057
      %v7059 = vsel %vm440, %v6911, -inf
      %7060 = vmax.xlane.f32.xlu0 %v7059
      %v7061 = vpop.xlane.xlu0 %7060
      %v7062 = vsel %vm440, %v6912, -inf
      %7063 = vmax.xlane.f32.xlu0 %v7062
      %v7064 = vpop.xlane.xlu0 %7063
      %v7065 = vsel %vm440, %v6913, -inf
      %7066 = vmax.xlane.f32.xlu0 %v7065
      %v7067 = vpop.xlane.xlu0 %7066
      %v7068 = vsel %vm440, %v6914, -inf
      %7069 = vmax.xlane.f32.xlu0 %v7068
      %v7070 = vpop.xlane.xlu0 %7069
      %v7071 = vsel %vm440, %v6915, -inf
      %7072 = vmax.xlane.f32.xlu0 %v7071
      %v7073 = vpop.xlane.xlu0 %7072
      %v7074 = vsel %vm440, %v6916, -inf
      %7075 = vmax.xlane.f32.xlu0 %v7074
      %v7076 = vpop.xlane.xlu0 %7075
      %v7077 = vsel %vm440, %v6917, -inf
      %7078 = vmax.xlane.f32.xlu0 %v7077
      %v7079 = vpop.xlane.xlu0 %7078
      %v7080 = vsel %vm440, %v6918, -inf
      %7081 = vmax.xlane.f32.xlu0 %v7080
      %v7082 = vpop.xlane.xlu0 %7081
      %v7083 = vsel %vm440, %v6919, -inf
      %7084 = vmax.xlane.f32.xlu0 %v7083
      %v7085 = vpop.xlane.xlu0 %7084
      %v7086 = vsel %vm440, %v6920, -inf
      %7087 = vmax.xlane.f32.xlu0 %v7086
      %v7088 = vpop.xlane.xlu0 %7087
      %v7089 = vsel %vm440, %v6921, -inf
      %7090 = vmax.xlane.f32.xlu0 %v7089
      %v7091 = vpop.xlane.xlu0 %7090
      %v7092 = vsel %vm440, %v6922, -inf
      %7093 = vmax.xlane.f32.xlu0 %v7092
      %v7094 = vpop.xlane.xlu0 %7093
      %v7095 = vsel %vm440, %v6923, -inf
      %7096 = vmax.xlane.f32.xlu0 %v7095
      %v7097 = vpop.xlane.xlu0 %7096
      %v7098 = vsel %vm440, %v6924, -inf
      %7099 = vmax.xlane.f32.xlu0 %v7098
      %v7100 = vpop.xlane.xlu0 %7099
      %v7101 = vsel %vm440, %v6925, -inf
      %7102 = vmax.xlane.f32.xlu0 %v7101
      %v7103 = vpop.xlane.xlu0 %7102
      %v7104 = vsel %vm440, %v6926, -inf
      %7105 = vmax.xlane.f32.xlu0 %v7104
      %v7106 = vpop.xlane.xlu0 %7105
      %v7107 = vsel %vm440, %v6927, -inf
      %7108 = vmax.xlane.f32.xlu0 %v7107
      %v7109 = vpop.xlane.xlu0 %7108
      %v7110 = vsel %vm440, %v6928, -inf
      %7111 = vmax.xlane.f32.xlu0 %v7110
      %v7112 = vpop.xlane.xlu0 %7111
      %v7113 = vsel %vm440, %v6929, -inf
      %7114 = vmax.xlane.f32.xlu0 %v7113
      %v7115 = vpop.xlane.xlu0 %7114
      %v7116 = vsel %vm440, %v6930, -inf
      %7117 = vmax.xlane.f32.xlu0 %v7116
      %v7118 = vpop.xlane.xlu0 %7117
      %v7119 = vsel %vm440, %v6931, -inf
      %7120 = vmax.xlane.f32.xlu0 %v7119
      %v7121 = vpop.xlane.xlu0 %7120
      %v7122 = vsel %vm440, %v6932, -inf
      %7123 = vmax.xlane.f32.xlu0 %v7122
      %v7124 = vpop.xlane.xlu0 %7123
      %v7125 = vsub.f32 %v6869, %v6935
      %v7126 = vsub.f32 %v6870, %v6938
      %v7127 = vsub.f32 %v6871, %v6941
      %v7128 = vsub.f32 %v6872, %v6944
      %v7129 = vsub.f32 %v6873, %v6947
      %v7130 = vsub.f32 %v6874, %v6950
      %v7131 = vsub.f32 %v6875, %v6953
      %v7132 = vsub.f32 %v6876, %v6956
      %v7133 = vsub.f32 %v6877, %v6959
      %v7134 = vsub.f32 %v6878, %v6962
      %v7135 = vsub.f32 %v6879, %v6965
      %v7136 = vsub.f32 %v6880, %v6968
      %v7137 = vsub.f32 %v6881, %v6971
      %v7138 = vsub.f32 %v6882, %v6974
      %v7139 = vsub.f32 %v6883, %v6977
      %v7140 = vsub.f32 %v6884, %v6980
      %v7141 = vsub.f32 %v6885, %v6983
      %v7142 = vsub.f32 %v6886, %v6986
      %v7143 = vsub.f32 %v6887, %v6989
      %v7144 = vsub.f32 %v6888, %v6992
      %v7145 = vsub.f32 %v6889, %v6995
      %v7146 = vsub.f32 %v6890, %v6998
      %v7147 = vsub.f32 %v6891, %v7001
      %v7148 = vsub.f32 %v6892, %v7004
      %v7149 = vsub.f32 %v6893, %v7007
      %v7150 = vsub.f32 %v6894, %v7010
      %v7151 = vsub.f32 %v6895, %v7013
      %v7152 = vsub.f32 %v6896, %v7016
      %v7153 = vsub.f32 %v6897, %v7019
      %v7154 = vsub.f32 %v6898, %v7022
      %v7155 = vsub.f32 %v6899, %v7025
      %v7156 = vsub.f32 %v6900, %v7028
      %v7157 = vsub.f32 %v6901, %v7031
      %v7158 = vsub.f32 %v6902, %v7034
      %v7159 = vsub.f32 %v6903, %v7037
      %v7160 = vsub.f32 %v6904, %v7040
      %v7161 = vsub.f32 %v6905, %v7043
      %v7162 = vsub.f32 %v6906, %v7046
      %v7163 = vsub.f32 %v6907, %v7049
      %v7164 = vsub.f32 %v6908, %v7052
      %v7165 = vsub.f32 %v6909, %v7055
      %v7166 = vsub.f32 %v6910, %v7058
      %v7167 = vsub.f32 %v6911, %v7061
      %v7168 = vsub.f32 %v6912, %v7064
      %v7169 = vsub.f32 %v6913, %v7067
      %v7170 = vsub.f32 %v6914, %v7070
      %v7171 = vsub.f32 %v6915, %v7073
      %v7172 = vsub.f32 %v6916, %v7076
      %v7173 = vsub.f32 %v6917, %v7079
      %v7174 = vsub.f32 %v6918, %v7082
      %v7175 = vsub.f32 %v6919, %v7085
      %v7176 = vsub.f32 %v6920, %v7088
      %v7177 = vsub.f32 %v6921, %v7091
      %v7178 = vsub.f32 %v6922, %v7094
      %v7179 = vsub.f32 %v6923, %v7097
      %v7180 = vsub.f32 %v6924, %v7100
      %v7181 = vsub.f32 %v6925, %v7103
      %v7182 = vsub.f32 %v6926, %v7106
      %v7183 = vsub.f32 %v6927, %v7109
      %v7184 = vsub.f32 %v6928, %v7112
      %v7185 = vsub.f32 %v6929, %v7115
      %v7186 = vsub.f32 %v6930, %v7118
      %v7187 = vsub.f32 %v6931, %v7121
      %v7188 = vsub.f32 %v6932, %v7124
      %v7189 = vmul.f32 %v7125, 1.442695
      %v7190 = vpow.pop %v7189
      %v7191 = vmul.f32 %v7126, 1.442695
      %v7192 = vpow.pop %v7191
      %v7193 = vmul.f32 %v7127, 1.442695
      %v7194 = vpow.pop %v7193
      %v7195 = vmul.f32 %v7128, 1.442695
      %v7196 = vpow.pop %v7195
      %v7197 = vmul.f32 %v7129, 1.442695
      %v7198 = vpow.pop %v7197
      %v7199 = vmul.f32 %v7130, 1.442695
      %v7200 = vpow.pop %v7199
      %v7201 = vmul.f32 %v7131, 1.442695
      %v7202 = vpow.pop %v7201
      %v7203 = vmul.f32 %v7132, 1.442695
      %v7204 = vpow.pop %v7203
      %v7205 = vmul.f32 %v7133, 1.442695
      %v7206 = vpow.pop %v7205
      %v7207 = vmul.f32 %v7134, 1.442695
      %v7208 = vpow.pop %v7207
      %v7209 = vmul.f32 %v7135, 1.442695
      %v7210 = vpow.pop %v7209
      %v7211 = vmul.f32 %v7136, 1.442695
      %v7212 = vpow.pop %v7211
      %v7213 = vmul.f32 %v7137, 1.442695
      %v7214 = vpow.pop %v7213
      %v7215 = vmul.f32 %v7138, 1.442695
      %v7216 = vpow.pop %v7215
      %v7217 = vmul.f32 %v7139, 1.442695
      %v7218 = vpow.pop %v7217
      %v7219 = vmul.f32 %v7140, 1.442695
      %v7220 = vpow.pop %v7219
      %v7221 = vmul.f32 %v7141, 1.442695
      %v7222 = vpow.pop %v7221
      %v7223 = vmul.f32 %v7142, 1.442695
      %v7224 = vpow.pop %v7223
      %v7225 = vmul.f32 %v7143, 1.442695
      %v7226 = vpow.pop %v7225
      %v7227 = vmul.f32 %v7144, 1.442695
      %v7228 = vpow.pop %v7227
      %v7229 = vmul.f32 %v7145, 1.442695
      %v7230 = vpow.pop %v7229
      %v7231 = vmul.f32 %v7146, 1.442695
      %v7232 = vpow.pop %v7231
      %v7233 = vmul.f32 %v7147, 1.442695
      %v7234 = vpow.pop %v7233
      %v7235 = vmul.f32 %v7148, 1.442695
      %v7236 = vpow.pop %v7235
      %v7237 = vmul.f32 %v7149, 1.442695
      %v7238 = vpow.pop %v7237
      %v7239 = vmul.f32 %v7150, 1.442695
      %v7240 = vpow.pop %v7239
      %v7241 = vmul.f32 %v7151, 1.442695
      %v7242 = vpow.pop %v7241
      %v7243 = vmul.f32 %v7152, 1.442695
      %v7244 = vpow.pop %v7243
      %v7245 = vmul.f32 %v7153, 1.442695
      %v7246 = vpow.pop %v7245
      %v7247 = vmul.f32 %v7154, 1.442695
      %v7248 = vpow.pop %v7247
      %v7249 = vmul.f32 %v7155, 1.442695
      %v7250 = vpow.pop %v7249
      %v7251 = vmul.f32 %v7156, 1.442695
      %v7252 = vpow.pop %v7251
      %v7253 = vmul.f32 %v7157, 1.442695
      %v7254 = vpow.pop %v7253
      %v7255 = vmul.f32 %v7158, 1.442695
      %v7256 = vpow.pop %v7255
      %v7257 = vmul.f32 %v7159, 1.442695
      %v7258 = vpow.pop %v7257
      %v7259 = vmul.f32 %v7160, 1.442695
      %v7260 = vpow.pop %v7259
      %v7261 = vmul.f32 %v7161, 1.442695
      %v7262 = vpow.pop %v7261
      %v7263 = vmul.f32 %v7162, 1.442695
      %v7264 = vpow.pop %v7263
      %v7265 = vmul.f32 %v7163, 1.442695
      %v7266 = vpow.pop %v7265
      %v7267 = vmul.f32 %v7164, 1.442695
      %v7268 = vpow.pop %v7267
      %v7269 = vmul.f32 %v7165, 1.442695
      %v7270 = vpow.pop %v7269
      %v7271 = vmul.f32 %v7166, 1.442695
      %v7272 = vpow.pop %v7271
      %v7273 = vmul.f32 %v7167, 1.442695
      %v7274 = vpow.pop %v7273
      %v7275 = vmul.f32 %v7168, 1.442695
      %v7276 = vpow.pop %v7275
      %v7277 = vmul.f32 %v7169, 1.442695
      %v7278 = vpow.pop %v7277
      %v7279 = vmul.f32 %v7170, 1.442695
      %v7280 = vpow.pop %v7279
      %v7281 = vmul.f32 %v7171, 1.442695
      %v7282 = vpow.pop %v7281
      %v7283 = vmul.f32 %v7172, 1.442695
      %v7284 = vpow.pop %v7283
      %v7285 = vmul.f32 %v7173, 1.442695
      %v7286 = vpow.pop %v7285
      %v7287 = vmul.f32 %v7174, 1.442695
      %v7288 = vpow.pop %v7287
      %v7289 = vmul.f32 %v7175, 1.442695
      %v7290 = vpow.pop %v7289
      %v7291 = vmul.f32 %v7176, 1.442695
      %v7292 = vpow.pop %v7291
      %v7293 = vmul.f32 %v7177, 1.442695
      %v7294 = vpow.pop %v7293
      %v7295 = vmul.f32 %v7178, 1.442695
      %v7296 = vpow.pop %v7295
      %v7297 = vmul.f32 %v7179, 1.442695
      %v7298 = vpow.pop %v7297
      %v7299 = vmul.f32 %v7180, 1.442695
      %v7300 = vpow.pop %v7299
      %v7301 = vmul.f32 %v7181, 1.442695
      %v7302 = vpow.pop %v7301
      %v7303 = vmul.f32 %v7182, 1.442695
      %v7304 = vpow.pop %v7303
      %v7305 = vmul.f32 %v7183, 1.442695
      %v7306 = vpow.pop %v7305
      %v7307 = vmul.f32 %v7184, 1.442695
      %v7308 = vpow.pop %v7307
      %v7309 = vmul.f32 %v7185, 1.442695
      %v7310 = vpow.pop %v7309
      %v7311 = vmul.f32 %v7186, 1.442695
      %v7312 = vpow.pop %v7311
      %v7313 = vmul.f32 %v7187, 1.442695
      %v7314 = vpow.pop %v7313
      %v7315 = vmul.f32 %v7188, 1.442695
      %v7316 = vpow.pop %v7315
      %v7317 = vsel %vm440, %v7190, 0.0
      %7318 = vadd.xlane.f32.xlu0 %v7317
      %v7319 = vpop.xlane.xlu0 %7318
      %v7320 = vsel %vm440, %v7192, 0.0
      %7321 = vadd.xlane.f32.xlu0 %v7320
      %v7322 = vpop.xlane.xlu0 %7321
      %v7323 = vsel %vm440, %v7194, 0.0
      %7324 = vadd.xlane.f32.xlu0 %v7323
      %v7325 = vpop.xlane.xlu0 %7324
      %v7326 = vsel %vm440, %v7196, 0.0
      %7327 = vadd.xlane.f32.xlu0 %v7326
      %v7328 = vpop.xlane.xlu0 %7327
      %v7329 = vsel %vm440, %v7198, 0.0
      %7330 = vadd.xlane.f32.xlu0 %v7329
      %v7331 = vpop.xlane.xlu0 %7330
      %v7332 = vsel %vm440, %v7200, 0.0
      %7333 = vadd.xlane.f32.xlu0 %v7332
      %v7334 = vpop.xlane.xlu0 %7333
      %v7335 = vsel %vm440, %v7202, 0.0
      %7336 = vadd.xlane.f32.xlu0 %v7335
      %v7337 = vpop.xlane.xlu0 %7336
      %v7338 = vsel %vm440, %v7204, 0.0
      %7339 = vadd.xlane.f32.xlu0 %v7338
      %v7340 = vpop.xlane.xlu0 %7339
      %v7341 = vsel %vm440, %v7206, 0.0
      %7342 = vadd.xlane.f32.xlu0 %v7341
      %v7343 = vpop.xlane.xlu0 %7342
      %v7344 = vsel %vm440, %v7208, 0.0
      %7345 = vadd.xlane.f32.xlu0 %v7344
      %v7346 = vpop.xlane.xlu0 %7345
      %v7347 = vsel %vm440, %v7210, 0.0
      %7348 = vadd.xlane.f32.xlu0 %v7347
      %v7349 = vpop.xlane.xlu0 %7348
      %v7350 = vsel %vm440, %v7212, 0.0
      %7351 = vadd.xlane.f32.xlu0 %v7350
      %v7352 = vpop.xlane.xlu0 %7351
      %v7353 = vsel %vm440, %v7214, 0.0
      %7354 = vadd.xlane.f32.xlu0 %v7353
      %v7355 = vpop.xlane.xlu0 %7354
      %v7356 = vsel %vm440, %v7216, 0.0
      %7357 = vadd.xlane.f32.xlu0 %v7356
      %v7358 = vpop.xlane.xlu0 %7357
      %v7359 = vsel %vm440, %v7218, 0.0
      %7360 = vadd.xlane.f32.xlu0 %v7359
      %v7361 = vpop.xlane.xlu0 %7360
      %v7362 = vsel %vm440, %v7220, 0.0
      %7363 = vadd.xlane.f32.xlu0 %v7362
      %v7364 = vpop.xlane.xlu0 %7363
      %v7365 = vsel %vm440, %v7222, 0.0
      %7366 = vadd.xlane.f32.xlu0 %v7365
      %v7367 = vpop.xlane.xlu0 %7366
      %v7368 = vsel %vm440, %v7224, 0.0
      %7369 = vadd.xlane.f32.xlu0 %v7368
      %v7370 = vpop.xlane.xlu0 %7369
      %v7371 = vsel %vm440, %v7226, 0.0
      %7372 = vadd.xlane.f32.xlu0 %v7371
      %v7373 = vpop.xlane.xlu0 %7372
      %v7374 = vsel %vm440, %v7228, 0.0
      %7375 = vadd.xlane.f32.xlu0 %v7374
      %v7376 = vpop.xlane.xlu0 %7375
      %v7377 = vsel %vm440, %v7230, 0.0
      %7378 = vadd.xlane.f32.xlu0 %v7377
      %v7379 = vpop.xlane.xlu0 %7378
      %v7380 = vsel %vm440, %v7232, 0.0
      %7381 = vadd.xlane.f32.xlu0 %v7380
      %v7382 = vpop.xlane.xlu0 %7381
      %v7383 = vsel %vm440, %v7234, 0.0
      %7384 = vadd.xlane.f32.xlu0 %v7383
      %v7385 = vpop.xlane.xlu0 %7384
      %v7386 = vsel %vm440, %v7236, 0.0
      %7387 = vadd.xlane.f32.xlu0 %v7386
      %v7388 = vpop.xlane.xlu0 %7387
      %v7389 = vsel %vm440, %v7238, 0.0
      %7390 = vadd.xlane.f32.xlu0 %v7389
      %v7391 = vpop.xlane.xlu0 %7390
      %v7392 = vsel %vm440, %v7240, 0.0
      %7393 = vadd.xlane.f32.xlu0 %v7392
      %v7394 = vpop.xlane.xlu0 %7393
      %v7395 = vsel %vm440, %v7242, 0.0
      %7396 = vadd.xlane.f32.xlu0 %v7395
      %v7397 = vpop.xlane.xlu0 %7396
      %v7398 = vsel %vm440, %v7244, 0.0
      %7399 = vadd.xlane.f32.xlu0 %v7398
      %v7400 = vpop.xlane.xlu0 %7399
      %v7401 = vsel %vm440, %v7246, 0.0
      %7402 = vadd.xlane.f32.xlu0 %v7401
      %v7403 = vpop.xlane.xlu0 %7402
      %v7404 = vsel %vm440, %v7248, 0.0
      %7405 = vadd.xlane.f32.xlu0 %v7404
      %v7406 = vpop.xlane.xlu0 %7405
      %v7407 = vsel %vm440, %v7250, 0.0
      %7408 = vadd.xlane.f32.xlu0 %v7407
      %v7409 = vpop.xlane.xlu0 %7408
      %v7410 = vsel %vm440, %v7252, 0.0
      %7411 = vadd.xlane.f32.xlu0 %v7410
      %v7412 = vpop.xlane.xlu0 %7411
      %v7413 = vsel %vm440, %v7254, 0.0
      %7414 = vadd.xlane.f32.xlu0 %v7413
      %v7415 = vpop.xlane.xlu0 %7414
      %v7416 = vsel %vm440, %v7256, 0.0
      %7417 = vadd.xlane.f32.xlu0 %v7416
      %v7418 = vpop.xlane.xlu0 %7417
      %v7419 = vsel %vm440, %v7258, 0.0
      %7420 = vadd.xlane.f32.xlu0 %v7419
      %v7421 = vpop.xlane.xlu0 %7420
      %v7422 = vsel %vm440, %v7260, 0.0
      %7423 = vadd.xlane.f32.xlu0 %v7422
      %v7424 = vpop.xlane.xlu0 %7423
      %v7425 = vsel %vm440, %v7262, 0.0
      %7426 = vadd.xlane.f32.xlu0 %v7425
      %v7427 = vpop.xlane.xlu0 %7426
      %v7428 = vsel %vm440, %v7264, 0.0
      %7429 = vadd.xlane.f32.xlu0 %v7428
      %v7430 = vpop.xlane.xlu0 %7429
      %v7431 = vsel %vm440, %v7266, 0.0
      %7432 = vadd.xlane.f32.xlu0 %v7431
      %v7433 = vpop.xlane.xlu0 %7432
      %v7434 = vsel %vm440, %v7268, 0.0
      %7435 = vadd.xlane.f32.xlu0 %v7434
      %v7436 = vpop.xlane.xlu0 %7435
      %v7437 = vsel %vm440, %v7270, 0.0
      %7438 = vadd.xlane.f32.xlu0 %v7437
      %v7439 = vpop.xlane.xlu0 %7438
      %v7440 = vsel %vm440, %v7272, 0.0
      %7441 = vadd.xlane.f32.xlu0 %v7440
      %v7442 = vpop.xlane.xlu0 %7441
      %v7443 = vsel %vm440, %v7274, 0.0
      %7444 = vadd.xlane.f32.xlu0 %v7443
      %v7445 = vpop.xlane.xlu0 %7444
      %v7446 = vsel %vm440, %v7276, 0.0
      %7447 = vadd.xlane.f32.xlu0 %v7446
      %v7448 = vpop.xlane.xlu0 %7447
      %v7449 = vsel %vm440, %v7278, 0.0
      %7450 = vadd.xlane.f32.xlu0 %v7449
      %v7451 = vpop.xlane.xlu0 %7450
      %v7452 = vsel %vm440, %v7280, 0.0
      %7453 = vadd.xlane.f32.xlu0 %v7452
      %v7454 = vpop.xlane.xlu0 %7453
      %v7455 = vsel %vm440, %v7282, 0.0
      %7456 = vadd.xlane.f32.xlu0 %v7455
      %v7457 = vpop.xlane.xlu0 %7456
      %v7458 = vsel %vm440, %v7284, 0.0
      %7459 = vadd.xlane.f32.xlu0 %v7458
      %v7460 = vpop.xlane.xlu0 %7459
      %v7461 = vsel %vm440, %v7286, 0.0
      %7462 = vadd.xlane.f32.xlu0 %v7461
      %v7463 = vpop.xlane.xlu0 %7462
      %v7464 = vsel %vm440, %v7288, 0.0
      %7465 = vadd.xlane.f32.xlu0 %v7464
      %v7466 = vpop.xlane.xlu0 %7465
      %v7467 = vsel %vm440, %v7290, 0.0
      %7468 = vadd.xlane.f32.xlu0 %v7467
      %v7469 = vpop.xlane.xlu0 %7468
      %v7470 = vsel %vm440, %v7292, 0.0
      %7471 = vadd.xlane.f32.xlu0 %v7470
      %v7472 = vpop.xlane.xlu0 %7471
      %v7473 = vsel %vm440, %v7294, 0.0
      %7474 = vadd.xlane.f32.xlu0 %v7473
      %v7475 = vpop.xlane.xlu0 %7474
      %v7476 = vsel %vm440, %v7296, 0.0
      %7477 = vadd.xlane.f32.xlu0 %v7476
      %v7478 = vpop.xlane.xlu0 %7477
      %v7479 = vsel %vm440, %v7298, 0.0
      %7480 = vadd.xlane.f32.xlu0 %v7479
      %v7481 = vpop.xlane.xlu0 %7480
      %v7482 = vsel %vm440, %v7300, 0.0
      %7483 = vadd.xlane.f32.xlu0 %v7482
      %v7484 = vpop.xlane.xlu0 %7483
      %v7485 = vsel %vm440, %v7302, 0.0
      %7486 = vadd.xlane.f32.xlu0 %v7485
      %v7487 = vpop.xlane.xlu0 %7486
      %v7488 = vsel %vm440, %v7304, 0.0
      %7489 = vadd.xlane.f32.xlu0 %v7488
      %v7490 = vpop.xlane.xlu0 %7489
      %v7491 = vsel %vm440, %v7306, 0.0
      %7492 = vadd.xlane.f32.xlu0 %v7491
      %v7493 = vpop.xlane.xlu0 %7492
      %v7494 = vsel %vm440, %v7308, 0.0
      %7495 = vadd.xlane.f32.xlu0 %v7494
      %v7496 = vpop.xlane.xlu0 %7495
      %v7497 = vsel %vm440, %v7310, 0.0
      %7498 = vadd.xlane.f32.xlu0 %v7497
      %v7499 = vpop.xlane.xlu0 %7498
      %v7500 = vsel %vm440, %v7312, 0.0
      %7501 = vadd.xlane.f32.xlu0 %v7500
      %v7502 = vpop.xlane.xlu0 %7501
      %v7503 = vsel %vm440, %v7314, 0.0
      %7504 = vadd.xlane.f32.xlu0 %v7503
      %v7505 = vpop.xlane.xlu0 %7504
      %v7506 = vsel %vm440, %v7316, 0.0
      %7507 = vadd.xlane.f32.xlu0 %v7506
      %v7508 = vpop.xlane.xlu0 %7507
      %v7509 = vrcp.pop %v7319
      %v7510 = vrcp.pop %v7322
      %v7511 = vrcp.pop %v7325
      %v7512 = vrcp.pop %v7328
      %v7513 = vrcp.pop %v7331
      %v7514 = vrcp.pop %v7334
      %v7515 = vrcp.pop %v7337
      %v7516 = vrcp.pop %v7340
      %v7517 = vrcp.pop %v7343
      %v7518 = vrcp.pop %v7346
      %v7519 = vrcp.pop %v7349
      %v7520 = vrcp.pop %v7352
      %v7521 = vrcp.pop %v7355
      %v7522 = vrcp.pop %v7358
      %v7523 = vrcp.pop %v7361
      %v7524 = vrcp.pop %v7364
      %v7525 = vrcp.pop %v7367
      %v7526 = vrcp.pop %v7370
      %v7527 = vrcp.pop %v7373
      %v7528 = vrcp.pop %v7376
      %v7529 = vrcp.pop %v7379
      %v7530 = vrcp.pop %v7382
      %v7531 = vrcp.pop %v7385
      %v7532 = vrcp.pop %v7388
      %v7533 = vrcp.pop %v7391
      %v7534 = vrcp.pop %v7394
      %v7535 = vrcp.pop %v7397
      %v7536 = vrcp.pop %v7400
      %v7537 = vrcp.pop %v7403
      %v7538 = vrcp.pop %v7406
      %v7539 = vrcp.pop %v7409
      %v7540 = vrcp.pop %v7412
      %v7541 = vrcp.pop %v7415
      %v7542 = vrcp.pop %v7418
      %v7543 = vrcp.pop %v7421
      %v7544 = vrcp.pop %v7424
      %v7545 = vrcp.pop %v7427
      %v7546 = vrcp.pop %v7430
      %v7547 = vrcp.pop %v7433
      %v7548 = vrcp.pop %v7436
      %v7549 = vrcp.pop %v7439
      %v7550 = vrcp.pop %v7442
      %v7551 = vrcp.pop %v7445
      %v7552 = vrcp.pop %v7448
      %v7553 = vrcp.pop %v7451
      %v7554 = vrcp.pop %v7454
      %v7555 = vrcp.pop %v7457
      %v7556 = vrcp.pop %v7460
      %v7557 = vrcp.pop %v7463
      %v7558 = vrcp.pop %v7466
      %v7559 = vrcp.pop %v7469
      %v7560 = vrcp.pop %v7472
      %v7561 = vrcp.pop %v7475
      %v7562 = vrcp.pop %v7478
      %v7563 = vrcp.pop %v7481
      %v7564 = vrcp.pop %v7484
      %v7565 = vrcp.pop %v7487
      %v7566 = vrcp.pop %v7490
      %v7567 = vrcp.pop %v7493
      %v7568 = vrcp.pop %v7496
      %v7569 = vrcp.pop %v7499
      %v7570 = vrcp.pop %v7502
      %v7571 = vrcp.pop %v7505
      %v7572 = vrcp.pop %v7508
      %v7573 = vmul.f32 %v7190, %v7509
      %v7574 = vmul.f32 %v7192, %v7510
      %v7575 = vmul.f32 %v7194, %v7511
      %v7576 = vmul.f32 %v7196, %v7512
      %v7577 = vmul.f32 %v7198, %v7513
      %v7578 = vmul.f32 %v7200, %v7514
      %v7579 = vmul.f32 %v7202, %v7515
      %v7580 = vmul.f32 %v7204, %v7516
      %v7581 = vmul.f32 %v7206, %v7517
      %v7582 = vmul.f32 %v7208, %v7518
      %v7583 = vmul.f32 %v7210, %v7519
      %v7584 = vmul.f32 %v7212, %v7520
      %v7585 = vmul.f32 %v7214, %v7521
      %v7586 = vmul.f32 %v7216, %v7522
      %v7587 = vmul.f32 %v7218, %v7523
      %v7588 = vmul.f32 %v7220, %v7524
      %v7589 = vmul.f32 %v7222, %v7525
      %v7590 = vmul.f32 %v7224, %v7526
      %v7591 = vmul.f32 %v7226, %v7527
      %v7592 = vmul.f32 %v7228, %v7528
      %v7593 = vmul.f32 %v7230, %v7529
      %v7594 = vmul.f32 %v7232, %v7530
      %v7595 = vmul.f32 %v7234, %v7531
      %v7596 = vmul.f32 %v7236, %v7532
      %v7597 = vmul.f32 %v7238, %v7533
      %v7598 = vmul.f32 %v7240, %v7534
      %v7599 = vmul.f32 %v7242, %v7535
      %v7600 = vmul.f32 %v7244, %v7536
      %v7601 = vmul.f32 %v7246, %v7537
      %v7602 = vmul.f32 %v7248, %v7538
      %v7603 = vmul.f32 %v7250, %v7539
      %v7604 = vmul.f32 %v7252, %v7540
      %v7605 = vmul.f32 %v7254, %v7541
      %v7606 = vmul.f32 %v7256, %v7542
      %v7607 = vmul.f32 %v7258, %v7543
      %v7608 = vmul.f32 %v7260, %v7544
      %v7609 = vmul.f32 %v7262, %v7545
      %v7610 = vmul.f32 %v7264, %v7546
      %v7611 = vmul.f32 %v7266, %v7547
      %v7612 = vmul.f32 %v7268, %v7548
      %v7613 = vmul.f32 %v7270, %v7549
      %v7614 = vmul.f32 %v7272, %v7550
      %v7615 = vmul.f32 %v7274, %v7551
      %v7616 = vmul.f32 %v7276, %v7552
      %v7617 = vmul.f32 %v7278, %v7553
      %v7618 = vmul.f32 %v7280, %v7554
      %v7619 = vmul.f32 %v7282, %v7555
      %v7620 = vmul.f32 %v7284, %v7556
      %v7621 = vmul.f32 %v7286, %v7557
      %v7622 = vmul.f32 %v7288, %v7558
      %v7623 = vmul.f32 %v7290, %v7559
      %v7624 = vmul.f32 %v7292, %v7560
      %v7625 = vmul.f32 %v7294, %v7561
      %v7626 = vmul.f32 %v7296, %v7562
      %v7627 = vmul.f32 %v7298, %v7563
      %v7628 = vmul.f32 %v7300, %v7564
      %v7629 = vmul.f32 %v7302, %v7565
      %v7630 = vmul.f32 %v7304, %v7566
      %v7631 = vmul.f32 %v7306, %v7567
      %v7632 = vmul.f32 %v7308, %v7568
      %v7633 = vmul.f32 %v7310, %v7569
      %v7634 = vmul.f32 %v7312, %v7570
      %v7635 = vmul.f32 %v7314, %v7571
      %v7636 = vmul.f32 %v7316, %v7572
      %v7637 = vpack.c.bf16 %v7573, %v7573
      %v7638 = vpack.c.bf16 %v7574, %v7574
      %v7639 = vpack.c.bf16 %v7575, %v7575
      %v7640 = vpack.c.bf16 %v7576, %v7576
      %v7641 = vpack.c.bf16 %v7577, %v7577
      %v7642 = vpack.c.bf16 %v7578, %v7578
      %v7643 = vpack.c.bf16 %v7579, %v7579
      %v7644 = vpack.c.bf16 %v7580, %v7580
      %v7645 = vpack.c.bf16 %v7581, %v7581
      %v7646 = vpack.c.bf16 %v7582, %v7582
      %v7647 = vpack.c.bf16 %v7583, %v7583
      %v7648 = vpack.c.bf16 %v7584, %v7584
      %v7649 = vpack.c.bf16 %v7585, %v7585
      %v7650 = vpack.c.bf16 %v7586, %v7586
      %v7651 = vpack.c.bf16 %v7587, %v7587
      %v7652 = vpack.c.bf16 %v7588, %v7588
      %v7653 = vpack.c.bf16 %v7589, %v7589
      %v7654 = vpack.c.bf16 %v7590, %v7590
      %v7655 = vpack.c.bf16 %v7591, %v7591
      %v7656 = vpack.c.bf16 %v7592, %v7592
      %v7657 = vpack.c.bf16 %v7593, %v7593
      %v7658 = vpack.c.bf16 %v7594, %v7594
      %v7659 = vpack.c.bf16 %v7595, %v7595
      %v7660 = vpack.c.bf16 %v7596, %v7596
      %v7661 = vpack.c.bf16 %v7597, %v7597
      %v7662 = vpack.c.bf16 %v7598, %v7598
      %v7663 = vpack.c.bf16 %v7599, %v7599
      %v7664 = vpack.c.bf16 %v7600, %v7600
      %v7665 = vpack.c.bf16 %v7601, %v7601
      %v7666 = vpack.c.bf16 %v7602, %v7602
      %v7667 = vpack.c.bf16 %v7603, %v7603
      %v7668 = vpack.c.bf16 %v7604, %v7604
      %v7669 = vpack.c.bf16 %v7605, %v7605
      %v7670 = vpack.c.bf16 %v7606, %v7606
      %v7671 = vpack.c.bf16 %v7607, %v7607
      %v7672 = vpack.c.bf16 %v7608, %v7608
      %v7673 = vpack.c.bf16 %v7609, %v7609
      %v7674 = vpack.c.bf16 %v7610, %v7610
      %v7675 = vpack.c.bf16 %v7611, %v7611
      %v7676 = vpack.c.bf16 %v7612, %v7612
      %v7677 = vpack.c.bf16 %v7613, %v7613
      %v7678 = vpack.c.bf16 %v7614, %v7614
      %v7679 = vpack.c.bf16 %v7615, %v7615
      %v7680 = vpack.c.bf16 %v7616, %v7616
      %v7681 = vpack.c.bf16 %v7617, %v7617
      %v7682 = vpack.c.bf16 %v7618, %v7618
      %v7683 = vpack.c.bf16 %v7619, %v7619
      %v7684 = vpack.c.bf16 %v7620, %v7620
      %v7685 = vpack.c.bf16 %v7621, %v7621
      %v7686 = vpack.c.bf16 %v7622, %v7622
      %v7687 = vpack.c.bf16 %v7623, %v7623
      %v7688 = vpack.c.bf16 %v7624, %v7624
      %v7689 = vpack.c.bf16 %v7625, %v7625
      %v7690 = vpack.c.bf16 %v7626, %v7626
      %v7691 = vpack.c.bf16 %v7627, %v7627
      %v7692 = vpack.c.bf16 %v7628, %v7628
      %v7693 = vpack.c.bf16 %v7629, %v7629
      %v7694 = vpack.c.bf16 %v7630, %v7630
      %v7695 = vpack.c.bf16 %v7631, %v7631
      %v7696 = vpack.c.bf16 %v7632, %v7632
      %v7697 = vpack.c.bf16 %v7633, %v7633
      %v7698 = vpack.c.bf16 %v7634, %v7634
      %v7699 = vpack.c.bf16 %v7635, %v7635
      %v7700 = vpack.c.bf16 %v7636, %v7636
      %v7703 = vunpack.c.l.b16 %v7637
      %v7704 = vunpack.c.l.b16 %v7638
      %v7705 = vpack.c.b16 %v7704, %v7703
      %7706 = vrot.lane.b32.xlu0 %v5854, 96
      %v7707 = vpop.permute.xlu0 %7706
      %v7710 = vsel %vm440, %v7705, 0
      %7712 = vmatpush.bf16.msra.mxu0 0
      %7713 = vmatpush.bf16.msra.mxu0 0
      %7714 = vmatpush.bf16.msra.mxu0 0
      %7715 = vmatpush.bf16.msra.mxu0 0
      %7716 = vmatpush.bf16.msra.mxu0 0
      %7717 = vmatpush.bf16.msra.mxu0 0
      %7718 = vmatpush.bf16.msra.mxu0 0
      %7719 = vmatpush.bf16.msra.mxu0 %v7707
      %7720 = vmatmul.bf16.gmra.mxu0 %v7710
      %v7721 = vpop.f32.mrf.mxu0
      %v7722 = vadd.f32 0.0, %v7721
      %v7723 = vpop.f32.mrf.mxu0
      %v7724 = vadd.f32 0.0, %v7723
      %7725 = vdwg.mxu0
      %v7728 = vunpack.c.l.b16 %v7639
      %v7729 = vunpack.c.l.b16 %v7640
      %v7730 = vpack.c.b16 %v7729, %v7728
      %7731 = vrot.lane.b32.xlu0 %v5884, 96
      %v7732 = vpop.permute.xlu0 %7731
      %v7735 = vsel %vm440, %v7730, 0
      %7737 = vmatpush.bf16.msra.mxu0 0
      %7738 = vmatpush.bf16.msra.mxu0 0
      %7739 = vmatpush.bf16.msra.mxu0 0
      %7740 = vmatpush.bf16.msra.mxu0 0
      %7741 = vmatpush.bf16.msra.mxu0 0
      %7742 = vmatpush.bf16.msra.mxu0 0
      %7743 = vmatpush.bf16.msra.mxu0 0
      %7744 = vmatpush.bf16.msra.mxu0 %v7732
      %7745 = vmatmul.bf16.gmra.mxu0 %v7735
      %v7746 = vpop.f32.mrf.mxu0
      %v7747 = vadd.f32 0.0, %v7746
      %v7748 = vpop.f32.mrf.mxu0
      %v7749 = vadd.f32 0.0, %v7748
      %7750 = vdwg.mxu0
      %v7753 = vunpack.c.l.b16 %v7641
      %v7754 = vunpack.c.l.b16 %v7642
      %v7755 = vpack.c.b16 %v7754, %v7753
      %7756 = vrot.lane.b32.xlu0 %v5914, 96
      %v7757 = vpop.permute.xlu0 %7756
      %v7760 = vsel %vm440, %v7755, 0
      %7762 = vmatpush.bf16.msra.mxu0 0
      %7763 = vmatpush.bf16.msra.mxu0 0
      %7764 = vmatpush.bf16.msra.mxu0 0
      %7765 = vmatpush.bf16.msra.mxu0 0
      %7766 = vmatpush.bf16.msra.mxu0 0
      %7767 = vmatpush.bf16.msra.mxu0 0
      %7768 = vmatpush.bf16.msra.mxu0 0
      %7769 = vmatpush.bf16.msra.mxu0 %v7757
      %7770 = vmatmul.bf16.gmra.mxu0 %v7760
      %v7771 = vpop.f32.mrf.mxu0
      %v7772 = vadd.f32 0.0, %v7771
      %v7773 = vpop.f32.mrf.mxu0
      %v7774 = vadd.f32 0.0, %v7773
      %7775 = vdwg.mxu0
      %v7778 = vunpack.c.l.b16 %v7643
      %v7779 = vunpack.c.l.b16 %v7644
      %v7780 = vpack.c.b16 %v7779, %v7778
      %7781 = vrot.lane.b32.xlu0 %v5944, 96
      %v7782 = vpop.permute.xlu0 %7781
      %v7785 = vsel %vm440, %v7780, 0
      %7787 = vmatpush.bf16.msra.mxu0 0
      %7788 = vmatpush.bf16.msra.mxu0 0
      %7789 = vmatpush.bf16.msra.mxu0 0
      %7790 = vmatpush.bf16.msra.mxu0 0
      %7791 = vmatpush.bf16.msra.mxu0 0
      %7792 = vmatpush.bf16.msra.mxu0 0
      %7793 = vmatpush.bf16.msra.mxu0 0
      %7794 = vmatpush.bf16.msra.mxu0 %v7782
      %7795 = vmatmul.bf16.gmra.mxu0 %v7785
      %v7796 = vpop.f32.mrf.mxu0
      %v7797 = vadd.f32 0.0, %v7796
      %v7798 = vpop.f32.mrf.mxu0
      %v7799 = vadd.f32 0.0, %v7798
      %7800 = vdwg.mxu0
      %v7803 = vunpack.c.l.b16 %v7645
      %v7804 = vunpack.c.l.b16 %v7646
      %v7805 = vpack.c.b16 %v7804, %v7803
      %7806 = vrot.lane.b32.xlu0 %v5974, 96
      %v7807 = vpop.permute.xlu0 %7806
      %v7810 = vsel %vm440, %v7805, 0
      %7812 = vmatpush.bf16.msra.mxu0 0
      %7813 = vmatpush.bf16.msra.mxu0 0
      %7814 = vmatpush.bf16.msra.mxu0 0
      %7815 = vmatpush.bf16.msra.mxu0 0
      %7816 = vmatpush.bf16.msra.mxu0 0
      %7817 = vmatpush.bf16.msra.mxu0 0
      %7818 = vmatpush.bf16.msra.mxu0 0
      %7819 = vmatpush.bf16.msra.mxu0 %v7807
      %7820 = vmatmul.bf16.gmra.mxu0 %v7810
      %v7821 = vpop.f32.mrf.mxu0
      %v7822 = vadd.f32 0.0, %v7821
      %v7823 = vpop.f32.mrf.mxu0
      %v7824 = vadd.f32 0.0, %v7823
      %7825 = vdwg.mxu0
      %v7828 = vunpack.c.l.b16 %v7647
      %v7829 = vunpack.c.l.b16 %v7648
      %v7830 = vpack.c.b16 %v7829, %v7828
      %7831 = vrot.lane.b32.xlu0 %v6004, 96
      %v7832 = vpop.permute.xlu0 %7831
      %v7835 = vsel %vm440, %v7830, 0
      %7837 = vmatpush.bf16.msra.mxu0 0
      %7838 = vmatpush.bf16.msra.mxu0 0
      %7839 = vmatpush.bf16.msra.mxu0 0
      %7840 = vmatpush.bf16.msra.mxu0 0
      %7841 = vmatpush.bf16.msra.mxu0 0
      %7842 = vmatpush.bf16.msra.mxu0 0
      %7843 = vmatpush.bf16.msra.mxu0 0
      %7844 = vmatpush.bf16.msra.mxu0 %v7832
      %7845 = vmatmul.bf16.gmra.mxu0 %v7835
      %v7846 = vpop.f32.mrf.mxu0
      %v7847 = vadd.f32 0.0, %v7846
      %v7848 = vpop.f32.mrf.mxu0
      %v7849 = vadd.f32 0.0, %v7848
      %7850 = vdwg.mxu0
      %v7853 = vunpack.c.l.b16 %v7649
      %v7854 = vunpack.c.l.b16 %v7650
      %v7855 = vpack.c.b16 %v7854, %v7853
      %7856 = vrot.lane.b32.xlu0 %v6034, 96
      %v7857 = vpop.permute.xlu0 %7856
      %v7860 = vsel %vm440, %v7855, 0
      %7862 = vmatpush.bf16.msra.mxu0 0
      %7863 = vmatpush.bf16.msra.mxu0 0
      %7864 = vmatpush.bf16.msra.mxu0 0
      %7865 = vmatpush.bf16.msra.mxu0 0
      %7866 = vmatpush.bf16.msra.mxu0 0
      %7867 = vmatpush.bf16.msra.mxu0 0
      %7868 = vmatpush.bf16.msra.mxu0 0
      %7869 = vmatpush.bf16.msra.mxu0 %v7857
      %7870 = vmatmul.bf16.gmra.mxu0 %v7860
      %v7871 = vpop.f32.mrf.mxu0
      %v7872 = vadd.f32 0.0, %v7871
      %v7873 = vpop.f32.mrf.mxu0
      %v7874 = vadd.f32 0.0, %v7873
      %7875 = vdwg.mxu0
      %v7878 = vunpack.c.l.b16 %v7651
      %v7879 = vunpack.c.l.b16 %v7652
      %v7880 = vpack.c.b16 %v7879, %v7878
      %7881 = vrot.lane.b32.xlu0 %v6064, 96
      %v7882 = vpop.permute.xlu0 %7881
      %v7885 = vsel %vm440, %v7880, 0
      %7887 = vmatpush.bf16.msra.mxu0 0
      %7888 = vmatpush.bf16.msra.mxu0 0
      %7889 = vmatpush.bf16.msra.mxu0 0
      %7890 = vmatpush.bf16.msra.mxu0 0
      %7891 = vmatpush.bf16.msra.mxu0 0
      %7892 = vmatpush.bf16.msra.mxu0 0
      %7893 = vmatpush.bf16.msra.mxu0 0
      %7894 = vmatpush.bf16.msra.mxu0 %v7882
      %7895 = vmatmul.bf16.gmra.mxu0 %v7885
      %v7896 = vpop.f32.mrf.mxu0
      %v7897 = vadd.f32 0.0, %v7896
      %v7898 = vpop.f32.mrf.mxu0
      %v7899 = vadd.f32 0.0, %v7898
      %7900 = vdwg.mxu0
      %v7903 = vunpack.c.l.b16 %v7653
      %v7904 = vunpack.c.l.b16 %v7654
      %v7905 = vpack.c.b16 %v7904, %v7903
      %7906 = vrot.lane.b32.xlu0 %v6094, 96
      %v7907 = vpop.permute.xlu0 %7906
      %v7910 = vsel %vm440, %v7905, 0
      %7912 = vmatpush.bf16.msra.mxu0 0
      %7913 = vmatpush.bf16.msra.mxu0 0
      %7914 = vmatpush.bf16.msra.mxu0 0
      %7915 = vmatpush.bf16.msra.mxu0 0
      %7916 = vmatpush.bf16.msra.mxu0 0
      %7917 = vmatpush.bf16.msra.mxu0 0
      %7918 = vmatpush.bf16.msra.mxu0 0
      %7919 = vmatpush.bf16.msra.mxu0 %v7907
      %7920 = vmatmul.bf16.gmra.mxu0 %v7910
      %v7921 = vpop.f32.mrf.mxu0
      %v7922 = vadd.f32 0.0, %v7921
      %v7923 = vpop.f32.mrf.mxu0
      %v7924 = vadd.f32 0.0, %v7923
      %7925 = vdwg.mxu0
      %v7928 = vunpack.c.l.b16 %v7655
      %v7929 = vunpack.c.l.b16 %v7656
      %v7930 = vpack.c.b16 %v7929, %v7928
      %7931 = vrot.lane.b32.xlu0 %v6124, 96
      %v7932 = vpop.permute.xlu0 %7931
      %v7935 = vsel %vm440, %v7930, 0
      %7937 = vmatpush.bf16.msra.mxu0 0
      %7938 = vmatpush.bf16.msra.mxu0 0
      %7939 = vmatpush.bf16.msra.mxu0 0
      %7940 = vmatpush.bf16.msra.mxu0 0
      %7941 = vmatpush.bf16.msra.mxu0 0
      %7942 = vmatpush.bf16.msra.mxu0 0
      %7943 = vmatpush.bf16.msra.mxu0 0
      %7944 = vmatpush.bf16.msra.mxu0 %v7932
      %7945 = vmatmul.bf16.gmra.mxu0 %v7935
      %v7946 = vpop.f32.mrf.mxu0
      %v7947 = vadd.f32 0.0, %v7946
      %v7948 = vpop.f32.mrf.mxu0
      %v7949 = vadd.f32 0.0, %v7948
      %7950 = vdwg.mxu0
      %v7953 = vunpack.c.l.b16 %v7657
      %v7954 = vunpack.c.l.b16 %v7658
      %v7955 = vpack.c.b16 %v7954, %v7953
      %7956 = vrot.lane.b32.xlu0 %v6154, 96
      %v7957 = vpop.permute.xlu0 %7956
      %v7960 = vsel %vm440, %v7955, 0
      %7962 = vmatpush.bf16.msra.mxu0 0
      %7963 = vmatpush.bf16.msra.mxu0 0
      %7964 = vmatpush.bf16.msra.mxu0 0
      %7965 = vmatpush.bf16.msra.mxu0 0
      %7966 = vmatpush.bf16.msra.mxu0 0
      %7967 = vmatpush.bf16.msra.mxu0 0
      %7968 = vmatpush.bf16.msra.mxu0 0
      %7969 = vmatpush.bf16.msra.mxu0 %v7957
      %7970 = vmatmul.bf16.gmra.mxu0 %v7960
      %v7971 = vpop.f32.mrf.mxu0
      %v7972 = vadd.f32 0.0, %v7971
      %v7973 = vpop.f32.mrf.mxu0
      %v7974 = vadd.f32 0.0, %v7973
      %7975 = vdwg.mxu0
      %v7978 = vunpack.c.l.b16 %v7659
      %v7979 = vunpack.c.l.b16 %v7660
      %v7980 = vpack.c.b16 %v7979, %v7978
      %7981 = vrot.lane.b32.xlu0 %v6184, 96
      %v7982 = vpop.permute.xlu0 %7981
      %v7985 = vsel %vm440, %v7980, 0
      %7987 = vmatpush.bf16.msra.mxu0 0
      %7988 = vmatpush.bf16.msra.mxu0 0
      %7989 = vmatpush.bf16.msra.mxu0 0
      %7990 = vmatpush.bf16.msra.mxu0 0
      %7991 = vmatpush.bf16.msra.mxu0 0
      %7992 = vmatpush.bf16.msra.mxu0 0
      %7993 = vmatpush.bf16.msra.mxu0 0
      %7994 = vmatpush.bf16.msra.mxu0 %v7982
      %7995 = vmatmul.bf16.gmra.mxu0 %v7985
      %v7996 = vpop.f32.mrf.mxu0
      %v7997 = vadd.f32 0.0, %v7996
      %v7998 = vpop.f32.mrf.mxu0
      %v7999 = vadd.f32 0.0, %v7998
      %8000 = vdwg.mxu0
      %v8003 = vunpack.c.l.b16 %v7661
      %v8004 = vunpack.c.l.b16 %v7662
      %v8005 = vpack.c.b16 %v8004, %v8003
      %8006 = vrot.lane.b32.xlu0 %v6214, 96
      %v8007 = vpop.permute.xlu0 %8006
      %v8010 = vsel %vm440, %v8005, 0
      %8012 = vmatpush.bf16.msra.mxu0 0
      %8013 = vmatpush.bf16.msra.mxu0 0
      %8014 = vmatpush.bf16.msra.mxu0 0
      %8015 = vmatpush.bf16.msra.mxu0 0
      %8016 = vmatpush.bf16.msra.mxu0 0
      %8017 = vmatpush.bf16.msra.mxu0 0
      %8018 = vmatpush.bf16.msra.mxu0 0
      %8019 = vmatpush.bf16.msra.mxu0 %v8007
      %8020 = vmatmul.bf16.gmra.mxu0 %v8010
      %v8021 = vpop.f32.mrf.mxu0
      %v8022 = vadd.f32 0.0, %v8021
      %v8023 = vpop.f32.mrf.mxu0
      %v8024 = vadd.f32 0.0, %v8023
      %8025 = vdwg.mxu0
      %v8028 = vunpack.c.l.b16 %v7663
      %v8029 = vunpack.c.l.b16 %v7664
      %v8030 = vpack.c.b16 %v8029, %v8028
      %8031 = vrot.lane.b32.xlu0 %v6244, 96
      %v8032 = vpop.permute.xlu0 %8031
      %v8035 = vsel %vm440, %v8030, 0
      %8037 = vmatpush.bf16.msra.mxu0 0
      %8038 = vmatpush.bf16.msra.mxu0 0
      %8039 = vmatpush.bf16.msra.mxu0 0
      %8040 = vmatpush.bf16.msra.mxu0 0
      %8041 = vmatpush.bf16.msra.mxu0 0
      %8042 = vmatpush.bf16.msra.mxu0 0
      %8043 = vmatpush.bf16.msra.mxu0 0
      %8044 = vmatpush.bf16.msra.mxu0 %v8032
      %8045 = vmatmul.bf16.gmra.mxu0 %v8035
      %v8046 = vpop.f32.mrf.mxu0
      %v8047 = vadd.f32 0.0, %v8046
      %v8048 = vpop.f32.mrf.mxu0
      %v8049 = vadd.f32 0.0, %v8048
      %8050 = vdwg.mxu0
      %v8053 = vunpack.c.l.b16 %v7665
      %v8054 = vunpack.c.l.b16 %v7666
      %v8055 = vpack.c.b16 %v8054, %v8053
      %8056 = vrot.lane.b32.xlu0 %v6274, 96
      %v8057 = vpop.permute.xlu0 %8056
      %v8060 = vsel %vm440, %v8055, 0
      %8062 = vmatpush.bf16.msra.mxu0 0
      %8063 = vmatpush.bf16.msra.mxu0 0
      %8064 = vmatpush.bf16.msra.mxu0 0
      %8065 = vmatpush.bf16.msra.mxu0 0
      %8066 = vmatpush.bf16.msra.mxu0 0
      %8067 = vmatpush.bf16.msra.mxu0 0
      %8068 = vmatpush.bf16.msra.mxu0 0
      %8069 = vmatpush.bf16.msra.mxu0 %v8057
      %8070 = vmatmul.bf16.gmra.mxu0 %v8060
      %v8071 = vpop.f32.mrf.mxu0
      %v8072 = vadd.f32 0.0, %v8071
      %v8073 = vpop.f32.mrf.mxu0
      %v8074 = vadd.f32 0.0, %v8073
      %8075 = vdwg.mxu0
      %v8078 = vunpack.c.l.b16 %v7667
      %v8079 = vunpack.c.l.b16 %v7668
      %v8080 = vpack.c.b16 %v8079, %v8078
      %8081 = vrot.lane.b32.xlu0 %v6304, 96
      %v8082 = vpop.permute.xlu0 %8081
      %v8085 = vsel %vm440, %v8080, 0
      %8087 = vmatpush.bf16.msra.mxu0 0
      %8088 = vmatpush.bf16.msra.mxu0 0
      %8089 = vmatpush.bf16.msra.mxu0 0
      %8090 = vmatpush.bf16.msra.mxu0 0
      %8091 = vmatpush.bf16.msra.mxu0 0
      %8092 = vmatpush.bf16.msra.mxu0 0
      %8093 = vmatpush.bf16.msra.mxu0 0
      %8094 = vmatpush.bf16.msra.mxu0 %v8082
      %8095 = vmatmul.bf16.gmra.mxu0 %v8085
      %v8096 = vpop.f32.mrf.mxu0
      %v8097 = vadd.f32 0.0, %v8096
      %v8098 = vpop.f32.mrf.mxu0
      %v8099 = vadd.f32 0.0, %v8098
      %8100 = vdwg.mxu0
      %v8103 = vunpack.c.l.b16 %v7669
      %v8104 = vunpack.c.l.b16 %v7670
      %v8105 = vpack.c.b16 %v8104, %v8103
      %8106 = vrot.lane.b32.xlu0 %v6334, 96
      %v8107 = vpop.permute.xlu0 %8106
      %v8110 = vsel %vm440, %v8105, 0
      %8112 = vmatpush.bf16.msra.mxu0 0
      %8113 = vmatpush.bf16.msra.mxu0 0
      %8114 = vmatpush.bf16.msra.mxu0 0
      %8115 = vmatpush.bf16.msra.mxu0 0
      %8116 = vmatpush.bf16.msra.mxu0 0
      %8117 = vmatpush.bf16.msra.mxu0 0
      %8118 = vmatpush.bf16.msra.mxu0 0
      %8119 = vmatpush.bf16.msra.mxu0 %v8107
      %8120 = vmatmul.bf16.gmra.mxu0 %v8110
      %v8121 = vpop.f32.mrf.mxu0
      %v8122 = vadd.f32 0.0, %v8121
      %v8123 = vpop.f32.mrf.mxu0
      %v8124 = vadd.f32 0.0, %v8123
      %8125 = vdwg.mxu0
      %v8128 = vunpack.c.l.b16 %v7671
      %v8129 = vunpack.c.l.b16 %v7672
      %v8130 = vpack.c.b16 %v8129, %v8128
      %8131 = vrot.lane.b32.xlu0 %v6364, 96
      %v8132 = vpop.permute.xlu0 %8131
      %v8135 = vsel %vm440, %v8130, 0
      %8137 = vmatpush.bf16.msra.mxu0 0
      %8138 = vmatpush.bf16.msra.mxu0 0
      %8139 = vmatpush.bf16.msra.mxu0 0
      %8140 = vmatpush.bf16.msra.mxu0 0
      %8141 = vmatpush.bf16.msra.mxu0 0
      %8142 = vmatpush.bf16.msra.mxu0 0
      %8143 = vmatpush.bf16.msra.mxu0 0
      %8144 = vmatpush.bf16.msra.mxu0 %v8132
      %8145 = vmatmul.bf16.gmra.mxu0 %v8135
      %v8146 = vpop.f32.mrf.mxu0
      %v8147 = vadd.f32 0.0, %v8146
      %v8148 = vpop.f32.mrf.mxu0
      %v8149 = vadd.f32 0.0, %v8148
      %8150 = vdwg.mxu0
      %v8153 = vunpack.c.l.b16 %v7673
      %v8154 = vunpack.c.l.b16 %v7674
      %v8155 = vpack.c.b16 %v8154, %v8153
      %8156 = vrot.lane.b32.xlu0 %v6394, 96
      %v8157 = vpop.permute.xlu0 %8156
      %v8160 = vsel %vm440, %v8155, 0
      %8162 = vmatpush.bf16.msra.mxu0 0
      %8163 = vmatpush.bf16.msra.mxu0 0
      %8164 = vmatpush.bf16.msra.mxu0 0
      %8165 = vmatpush.bf16.msra.mxu0 0
      %8166 = vmatpush.bf16.msra.mxu0 0
      %8167 = vmatpush.bf16.msra.mxu0 0
      %8168 = vmatpush.bf16.msra.mxu0 0
      %8169 = vmatpush.bf16.msra.mxu0 %v8157
      %8170 = vmatmul.bf16.gmra.mxu0 %v8160
      %v8171 = vpop.f32.mrf.mxu0
      %v8172 = vadd.f32 0.0, %v8171
      %v8173 = vpop.f32.mrf.mxu0
      %v8174 = vadd.f32 0.0, %v8173
      %8175 = vdwg.mxu0
      %v8178 = vunpack.c.l.b16 %v7675
      %v8179 = vunpack.c.l.b16 %v7676
      %v8180 = vpack.c.b16 %v8179, %v8178
      %8181 = vrot.lane.b32.xlu0 %v6424, 96
      %v8182 = vpop.permute.xlu0 %8181
      %v8185 = vsel %vm440, %v8180, 0
      %8187 = vmatpush.bf16.msra.mxu0 0
      %8188 = vmatpush.bf16.msra.mxu0 0
      %8189 = vmatpush.bf16.msra.mxu0 0
      %8190 = vmatpush.bf16.msra.mxu0 0
      %8191 = vmatpush.bf16.msra.mxu0 0
      %8192 = vmatpush.bf16.msra.mxu0 0
      %8193 = vmatpush.bf16.msra.mxu0 0
      %8194 = vmatpush.bf16.msra.mxu0 %v8182
      %8195 = vmatmul.bf16.gmra.mxu0 %v8185
      %v8196 = vpop.f32.mrf.mxu0
      %v8197 = vadd.f32 0.0, %v8196
      %v8198 = vpop.f32.mrf.mxu0
      %v8199 = vadd.f32 0.0, %v8198
      %8200 = vdwg.mxu0
      %v8203 = vunpack.c.l.b16 %v7677
      %v8204 = vunpack.c.l.b16 %v7678
      %v8205 = vpack.c.b16 %v8204, %v8203
      %8206 = vrot.lane.b32.xlu0 %v6454, 96
      %v8207 = vpop.permute.xlu0 %8206
      %v8210 = vsel %vm440, %v8205, 0
      %8212 = vmatpush.bf16.msra.mxu0 0
      %8213 = vmatpush.bf16.msra.mxu0 0
      %8214 = vmatpush.bf16.msra.mxu0 0
      %8215 = vmatpush.bf16.msra.mxu0 0
      %8216 = vmatpush.bf16.msra.mxu0 0
      %8217 = vmatpush.bf16.msra.mxu0 0
      %8218 = vmatpush.bf16.msra.mxu0 0
      %8219 = vmatpush.bf16.msra.mxu0 %v8207
      %8220 = vmatmul.bf16.gmra.mxu0 %v8210
      %v8221 = vpop.f32.mrf.mxu0
      %v8222 = vadd.f32 0.0, %v8221
      %v8223 = vpop.f32.mrf.mxu0
      %v8224 = vadd.f32 0.0, %v8223
      %8225 = vdwg.mxu0
      %v8228 = vunpack.c.l.b16 %v7679
      %v8229 = vunpack.c.l.b16 %v7680
      %v8230 = vpack.c.b16 %v8229, %v8228
      %8231 = vrot.lane.b32.xlu0 %v6484, 96
      %v8232 = vpop.permute.xlu0 %8231
      %v8235 = vsel %vm440, %v8230, 0
      %8237 = vmatpush.bf16.msra.mxu0 0
      %8238 = vmatpush.bf16.msra.mxu0 0
      %8239 = vmatpush.bf16.msra.mxu0 0
      %8240 = vmatpush.bf16.msra.mxu0 0
      %8241 = vmatpush.bf16.msra.mxu0 0
      %8242 = vmatpush.bf16.msra.mxu0 0
      %8243 = vmatpush.bf16.msra.mxu0 0
      %8244 = vmatpush.bf16.msra.mxu0 %v8232
      %8245 = vmatmul.bf16.gmra.mxu0 %v8235
      %v8246 = vpop.f32.mrf.mxu0
      %v8247 = vadd.f32 0.0, %v8246
      %v8248 = vpop.f32.mrf.mxu0
      %v8249 = vadd.f32 0.0, %v8248
      %8250 = vdwg.mxu0
      %v8253 = vunpack.c.l.b16 %v7681
      %v8254 = vunpack.c.l.b16 %v7682
      %v8255 = vpack.c.b16 %v8254, %v8253
      %8256 = vrot.lane.b32.xlu0 %v6514, 96
      %v8257 = vpop.permute.xlu0 %8256
      %v8260 = vsel %vm440, %v8255, 0
      %8262 = vmatpush.bf16.msra.mxu0 0
      %8263 = vmatpush.bf16.msra.mxu0 0
      %8264 = vmatpush.bf16.msra.mxu0 0
      %8265 = vmatpush.bf16.msra.mxu0 0
      %8266 = vmatpush.bf16.msra.mxu0 0
      %8267 = vmatpush.bf16.msra.mxu0 0
      %8268 = vmatpush.bf16.msra.mxu0 0
      %8269 = vmatpush.bf16.msra.mxu0 %v8257
      %8270 = vmatmul.bf16.gmra.mxu0 %v8260
      %v8271 = vpop.f32.mrf.mxu0
      %v8272 = vadd.f32 0.0, %v8271
      %v8273 = vpop.f32.mrf.mxu0
      %v8274 = vadd.f32 0.0, %v8273
      %8275 = vdwg.mxu0
      %v8278 = vunpack.c.l.b16 %v7683
      %v8279 = vunpack.c.l.b16 %v7684
      %v8280 = vpack.c.b16 %v8279, %v8278
      %8281 = vrot.lane.b32.xlu0 %v6544, 96
      %v8282 = vpop.permute.xlu0 %8281
      %v8285 = vsel %vm440, %v8280, 0
      %8287 = vmatpush.bf16.msra.mxu0 0
      %8288 = vmatpush.bf16.msra.mxu0 0
      %8289 = vmatpush.bf16.msra.mxu0 0
      %8290 = vmatpush.bf16.msra.mxu0 0
      %8291 = vmatpush.bf16.msra.mxu0 0
      %8292 = vmatpush.bf16.msra.mxu0 0
      %8293 = vmatpush.bf16.msra.mxu0 0
      %8294 = vmatpush.bf16.msra.mxu0 %v8282
      %8295 = vmatmul.bf16.gmra.mxu0 %v8285
      %v8296 = vpop.f32.mrf.mxu0
      %v8297 = vadd.f32 0.0, %v8296
      %v8298 = vpop.f32.mrf.mxu0
      %v8299 = vadd.f32 0.0, %v8298
      %8300 = vdwg.mxu0
      %v8303 = vunpack.c.l.b16 %v7685
      %v8304 = vunpack.c.l.b16 %v7686
      %v8305 = vpack.c.b16 %v8304, %v8303
      %8306 = vrot.lane.b32.xlu0 %v6574, 96
      %v8307 = vpop.permute.xlu0 %8306
      %v8310 = vsel %vm440, %v8305, 0
      %8312 = vmatpush.bf16.msra.mxu0 0
      %8313 = vmatpush.bf16.msra.mxu0 0
      %8314 = vmatpush.bf16.msra.mxu0 0
      %8315 = vmatpush.bf16.msra.mxu0 0
      %8316 = vmatpush.bf16.msra.mxu0 0
      %8317 = vmatpush.bf16.msra.mxu0 0
      %8318 = vmatpush.bf16.msra.mxu0 0
      %8319 = vmatpush.bf16.msra.mxu0 %v8307
      %8320 = vmatmul.bf16.gmra.mxu0 %v8310
      %v8321 = vpop.f32.mrf.mxu0
      %v8322 = vadd.f32 0.0, %v8321
      %v8323 = vpop.f32.mrf.mxu0
      %v8324 = vadd.f32 0.0, %v8323
      %8325 = vdwg.mxu0
      %v8328 = vunpack.c.l.b16 %v7687
      %v8329 = vunpack.c.l.b16 %v7688
      %v8330 = vpack.c.b16 %v8329, %v8328
      %8331 = vrot.lane.b32.xlu0 %v6604, 96
      %v8332 = vpop.permute.xlu0 %8331
      %v8335 = vsel %vm440, %v8330, 0
      %8337 = vmatpush.bf16.msra.mxu0 0
      %8338 = vmatpush.bf16.msra.mxu0 0
      %8339 = vmatpush.bf16.msra.mxu0 0
      %8340 = vmatpush.bf16.msra.mxu0 0
      %8341 = vmatpush.bf16.msra.mxu0 0
      %8342 = vmatpush.bf16.msra.mxu0 0
      %8343 = vmatpush.bf16.msra.mxu0 0
      %8344 = vmatpush.bf16.msra.mxu0 %v8332
      %8345 = vmatmul.bf16.gmra.mxu0 %v8335
      %v8346 = vpop.f32.mrf.mxu0
      %v8347 = vadd.f32 0.0, %v8346
      %v8348 = vpop.f32.mrf.mxu0
      %v8349 = vadd.f32 0.0, %v8348
      %8350 = vdwg.mxu0
      %v8353 = vunpack.c.l.b16 %v7689
      %v8354 = vunpack.c.l.b16 %v7690
      %v8355 = vpack.c.b16 %v8354, %v8353
      %8356 = vrot.lane.b32.xlu0 %v6634, 96
      %v8357 = vpop.permute.xlu0 %8356
      %v8360 = vsel %vm440, %v8355, 0
      %8362 = vmatpush.bf16.msra.mxu0 0
      %8363 = vmatpush.bf16.msra.mxu0 0
      %8364 = vmatpush.bf16.msra.mxu0 0
      %8365 = vmatpush.bf16.msra.mxu0 0
      %8366 = vmatpush.bf16.msra.mxu0 0
      %8367 = vmatpush.bf16.msra.mxu0 0
      %8368 = vmatpush.bf16.msra.mxu0 0
      %8369 = vmatpush.bf16.msra.mxu0 %v8357
      %8370 = vmatmul.bf16.gmra.mxu0 %v8360
      %v8371 = vpop.f32.mrf.mxu0
      %v8372 = vadd.f32 0.0, %v8371
      %v8373 = vpop.f32.mrf.mxu0
      %v8374 = vadd.f32 0.0, %v8373
      %8375 = vdwg.mxu0
      %v8378 = vunpack.c.l.b16 %v7691
      %v8379 = vunpack.c.l.b16 %v7692
      %v8380 = vpack.c.b16 %v8379, %v8378
      %8381 = vrot.lane.b32.xlu0 %v6664, 96
      %v8382 = vpop.permute.xlu0 %8381
      %v8385 = vsel %vm440, %v8380, 0
      %8387 = vmatpush.bf16.msra.mxu0 0
      %8388 = vmatpush.bf16.msra.mxu0 0
      %8389 = vmatpush.bf16.msra.mxu0 0
      %8390 = vmatpush.bf16.msra.mxu0 0
      %8391 = vmatpush.bf16.msra.mxu0 0
      %8392 = vmatpush.bf16.msra.mxu0 0
      %8393 = vmatpush.bf16.msra.mxu0 0
      %8394 = vmatpush.bf16.msra.mxu0 %v8382
      %8395 = vmatmul.bf16.gmra.mxu0 %v8385
      %v8396 = vpop.f32.mrf.mxu0
      %v8397 = vadd.f32 0.0, %v8396
      %v8398 = vpop.f32.mrf.mxu0
      %v8399 = vadd.f32 0.0, %v8398
      %8400 = vdwg.mxu0
      %v8403 = vunpack.c.l.b16 %v7693
      %v8404 = vunpack.c.l.b16 %v7694
      %v8405 = vpack.c.b16 %v8404, %v8403
      %8406 = vrot.lane.b32.xlu0 %v6694, 96
      %v8407 = vpop.permute.xlu0 %8406
      %v8410 = vsel %vm440, %v8405, 0
      %8412 = vmatpush.bf16.msra.mxu0 0
      %8413 = vmatpush.bf16.msra.mxu0 0
      %8414 = vmatpush.bf16.msra.mxu0 0
      %8415 = vmatpush.bf16.msra.mxu0 0
      %8416 = vmatpush.bf16.msra.mxu0 0
      %8417 = vmatpush.bf16.msra.mxu0 0
      %8418 = vmatpush.bf16.msra.mxu0 0
      %8419 = vmatpush.bf16.msra.mxu0 %v8407
      %8420 = vmatmul.bf16.gmra.mxu0 %v8410
      %v8421 = vpop.f32.mrf.mxu0
      %v8422 = vadd.f32 0.0, %v8421
      %v8423 = vpop.f32.mrf.mxu0
      %v8424 = vadd.f32 0.0, %v8423
      %8425 = vdwg.mxu0
      %v8428 = vunpack.c.l.b16 %v7695
      %v8429 = vunpack.c.l.b16 %v7696
      %v8430 = vpack.c.b16 %v8429, %v8428
      %8431 = vrot.lane.b32.xlu0 %v6724, 96
      %v8432 = vpop.permute.xlu0 %8431
      %v8435 = vsel %vm440, %v8430, 0
      %8437 = vmatpush.bf16.msra.mxu0 0
      %8438 = vmatpush.bf16.msra.mxu0 0
      %8439 = vmatpush.bf16.msra.mxu0 0
      %8440 = vmatpush.bf16.msra.mxu0 0
      %8441 = vmatpush.bf16.msra.mxu0 0
      %8442 = vmatpush.bf16.msra.mxu0 0
      %8443 = vmatpush.bf16.msra.mxu0 0
      %8444 = vmatpush.bf16.msra.mxu0 %v8432
      %8445 = vmatmul.bf16.gmra.mxu0 %v8435
      %v8446 = vpop.f32.mrf.mxu0
      %v8447 = vadd.f32 0.0, %v8446
      %v8448 = vpop.f32.mrf.mxu0
      %v8449 = vadd.f32 0.0, %v8448
      %8450 = vdwg.mxu0
      %v8453 = vunpack.c.l.b16 %v7697
      %v8454 = vunpack.c.l.b16 %v7698
      %v8455 = vpack.c.b16 %v8454, %v8453
      %8456 = vrot.lane.b32.xlu0 %v6754, 96
      %v8457 = vpop.permute.xlu0 %8456
      %v8460 = vsel %vm440, %v8455, 0
      %8462 = vmatpush.bf16.msra.mxu0 0
      %8463 = vmatpush.bf16.msra.mxu0 0
      %8464 = vmatpush.bf16.msra.mxu0 0
      %8465 = vmatpush.bf16.msra.mxu0 0
      %8466 = vmatpush.bf16.msra.mxu0 0
      %8467 = vmatpush.bf16.msra.mxu0 0
      %8468 = vmatpush.bf16.msra.mxu0 0
      %8469 = vmatpush.bf16.msra.mxu0 %v8457
      %8470 = vmatmul.bf16.gmra.mxu0 %v8460
      %v8471 = vpop.f32.mrf.mxu0
      %v8472 = vadd.f32 0.0, %v8471
      %v8473 = vpop.f32.mrf.mxu0
      %v8474 = vadd.f32 0.0, %v8473
      %8475 = vdwg.mxu0
      %v8478 = vunpack.c.l.b16 %v7699
      %v8479 = vunpack.c.l.b16 %v7700
      %v8480 = vpack.c.b16 %v8479, %v8478
      %8481 = vrot.lane.b32.xlu0 %v6784, 96
      %v8482 = vpop.permute.xlu0 %8481
      %v8485 = vsel %vm440, %v8480, 0
      %8487 = vmatpush.bf16.msra.mxu0 0
      %8488 = vmatpush.bf16.msra.mxu0 0
      %8489 = vmatpush.bf16.msra.mxu0 0
      %8490 = vmatpush.bf16.msra.mxu0 0
      %8491 = vmatpush.bf16.msra.mxu0 0
      %8492 = vmatpush.bf16.msra.mxu0 0
      %8493 = vmatpush.bf16.msra.mxu0 0
      %8494 = vmatpush.bf16.msra.mxu0 %v8482
      %8495 = vmatmul.bf16.gmra.mxu0 %v8485
      %v8496 = vpop.f32.mrf.mxu0
      %v8497 = vadd.f32 0.0, %v8496
      %v8498 = vpop.f32.mrf.mxu0
      %v8499 = vadd.f32 0.0, %v8498
      %8500 = vdwg.mxu0
      %v8501 = vpack.c.bf16 %v7724, %v7722
      %v8502 = vpack.c.bf16 %v7749, %v7747
      %v8503 = vpack.c.bf16 %v7774, %v7772
      %v8504 = vpack.c.bf16 %v7799, %v7797
      %v8505 = vpack.c.bf16 %v7824, %v7822
      %v8506 = vpack.c.bf16 %v7849, %v7847
      %v8507 = vpack.c.bf16 %v7874, %v7872
      %v8508 = vpack.c.bf16 %v7899, %v7897
      %v8509 = vpack.c.bf16 %v7924, %v7922
      %v8510 = vpack.c.bf16 %v7949, %v7947
      %v8511 = vpack.c.bf16 %v7974, %v7972
      %v8512 = vpack.c.bf16 %v7999, %v7997
      %v8513 = vpack.c.bf16 %v8024, %v8022
      %v8514 = vpack.c.bf16 %v8049, %v8047
      %v8515 = vpack.c.bf16 %v8074, %v8072
      %v8516 = vpack.c.bf16 %v8099, %v8097
      %v8517 = vpack.c.bf16 %v8124, %v8122
      %v8518 = vpack.c.bf16 %v8149, %v8147
      %v8519 = vpack.c.bf16 %v8174, %v8172
      %v8520 = vpack.c.bf16 %v8199, %v8197
      %v8521 = vpack.c.bf16 %v8224, %v8222
      %v8522 = vpack.c.bf16 %v8249, %v8247
      %v8523 = vpack.c.bf16 %v8274, %v8272
      %v8524 = vpack.c.bf16 %v8299, %v8297
      %v8525 = vpack.c.bf16 %v8324, %v8322
      %v8526 = vpack.c.bf16 %v8349, %v8347
      %v8527 = vpack.c.bf16 %v8374, %v8372
      %v8528 = vpack.c.bf16 %v8399, %v8397
      %v8529 = vpack.c.bf16 %v8424, %v8422
      %v8530 = vpack.c.bf16 %v8449, %v8447
      %v8531 = vpack.c.bf16 %v8474, %v8472
      %v8532 = vpack.c.bf16 %v8499, %v8497
      %v8533 = vld [vmem:[%s4 + $0x80] sm:$0xf]
      %v8534 = vld [vmem:[%s4 + $0x84] sm:$0xf]
      %v8535 = vld [vmem:[%s4 + $0x88] sm:$0xf]
      %v8536 = vld [vmem:[%s4 + $0x8c] sm:$0xf]
      %v8541 = vunpack.c.l.b16 %v8533
      %v8542 = vunpack.c.l.b16 %v8534
      %v8543 = vunpack.c.l.b16 %v8535
      %v8544 = vunpack.c.l.b16 %v8536
      %v8545 = vpack.c.b16 %v8542, %v8541
      %v8546 = vpack.c.b16 %v8544, %v8543
      %v8550 = vsel %vm719, %v8501, 0
      %v8553 = vsel %vm719, %v8502, 0
      %v8556 = vsel %vm719, %v8503, 0
      %v8559 = vsel %vm719, %v8504, 0
      %v8562 = vsel %vm719, %v8505, 0
      %v8565 = vsel %vm719, %v8506, 0
      %v8568 = vsel %vm719, %v8507, 0
      %v8571 = vsel %vm719, %v8508, 0
      %v8574 = vsel %vm719, %v8509, 0
      %v8577 = vsel %vm719, %v8510, 0
      %v8580 = vsel %vm719, %v8511, 0
      %v8583 = vsel %vm719, %v8512, 0
      %v8586 = vsel %vm719, %v8513, 0
      %v8589 = vsel %vm719, %v8514, 0
      %v8592 = vsel %vm719, %v8515, 0
      %v8595 = vsel %vm719, %v8516, 0
      %v8598 = vsel %vm719, %v8517, 0
      %v8601 = vsel %vm719, %v8518, 0
      %v8604 = vsel %vm719, %v8519, 0
      %v8607 = vsel %vm719, %v8520, 0
      %v8610 = vsel %vm719, %v8521, 0
      %v8613 = vsel %vm719, %v8522, 0
      %v8616 = vsel %vm719, %v8523, 0
      %v8619 = vsel %vm719, %v8524, 0
      %v8622 = vsel %vm719, %v8525, 0
      %v8625 = vsel %vm719, %v8526, 0
      %v8628 = vsel %vm719, %v8527, 0
      %v8631 = vsel %vm719, %v8528, 0
      %v8634 = vsel %vm719, %v8529, 0
      %v8637 = vsel %vm719, %v8530, 0
      %v8640 = vsel %vm719, %v8531, 0
      %v8643 = vsel %vm719, %v8532, 0
      %8645 = vmatpush.bf16.msra.mxu0 0
      %8646 = vmatpush.bf16.msra.mxu0 0
      %8647 = vmatpush.bf16.msra.mxu0 0
      %8648 = vmatpush.bf16.msra.mxu0 0
      %8649 = vmatpush.bf16.msra.mxu0 0
      %8650 = vmatpush.bf16.msra.mxu0 0
      %8651 = vmatpush.bf16.msra.mxu0 %v8546
      %8652 = vmatpush.bf16.msra.mxu0 %v8545
      %8653 = vmatmul.bf16.gmra.mxu0 %v8550
      %v8654 = vpop.f32.mrf.mxu0
      %v8655 = vadd.f32 0.0, %v8654
      %v8656 = vpop.f32.mrf.mxu0
      %v8657 = vadd.f32 0.0, %v8656
      %8658 = vmatmul.bf16.gmra.mxu0 %v8553
      %v8659 = vpop.f32.mrf.mxu0
      %v8660 = vadd.f32 0.0, %v8659
      %v8661 = vpop.f32.mrf.mxu0
      %v8662 = vadd.f32 0.0, %v8661
      %8663 = vmatmul.bf16.gmra.mxu0 %v8556
      %v8664 = vpop.f32.mrf.mxu0
      %v8665 = vadd.f32 0.0, %v8664
      %v8666 = vpop.f32.mrf.mxu0
      %v8667 = vadd.f32 0.0, %v8666
      %8668 = vmatmul.bf16.gmra.mxu0 %v8559
      %v8669 = vpop.f32.mrf.mxu0
      %v8670 = vadd.f32 0.0, %v8669
      %v8671 = vpop.f32.mrf.mxu0
      %v8672 = vadd.f32 0.0, %v8671
      %8673 = vmatmul.bf16.gmra.mxu0 %v8562
      %v8674 = vpop.f32.mrf.mxu0
      %v8675 = vadd.f32 0.0, %v8674
      %v8676 = vpop.f32.mrf.mxu0
      %v8677 = vadd.f32 0.0, %v8676
      %8678 = vmatmul.bf16.gmra.mxu0 %v8565
      %v8679 = vpop.f32.mrf.mxu0
      %v8680 = vadd.f32 0.0, %v8679
      %v8681 = vpop.f32.mrf.mxu0
      %v8682 = vadd.f32 0.0, %v8681
      %8683 = vmatmul.bf16.gmra.mxu0 %v8568
      %v8684 = vpop.f32.mrf.mxu0
      %v8685 = vadd.f32 0.0, %v8684
      %v8686 = vpop.f32.mrf.mxu0
      %v8687 = vadd.f32 0.0, %v8686
      %8688 = vmatmul.bf16.gmra.mxu0 %v8571
      %v8689 = vpop.f32.mrf.mxu0
      %v8690 = vadd.f32 0.0, %v8689
      %v8691 = vpop.f32.mrf.mxu0
      %v8692 = vadd.f32 0.0, %v8691
      %8693 = vmatmul.bf16.gmra.mxu0 %v8574
      %v8694 = vpop.f32.mrf.mxu0
      %v8695 = vadd.f32 0.0, %v8694
      %v8696 = vpop.f32.mrf.mxu0
      %v8697 = vadd.f32 0.0, %v8696
      %8698 = vmatmul.bf16.gmra.mxu0 %v8577
      %v8699 = vpop.f32.mrf.mxu0
      %v8700 = vadd.f32 0.0, %v8699
      %v8701 = vpop.f32.mrf.mxu0
      %v8702 = vadd.f32 0.0, %v8701
      %8703 = vmatmul.bf16.gmra.mxu0 %v8580
      %v8704 = vpop.f32.mrf.mxu0
      %v8705 = vadd.f32 0.0, %v8704
      %v8706 = vpop.f32.mrf.mxu0
      %v8707 = vadd.f32 0.0, %v8706
      %8708 = vmatmul.bf16.gmra.mxu0 %v8583
      %v8709 = vpop.f32.mrf.mxu0
      %v8710 = vadd.f32 0.0, %v8709
      %v8711 = vpop.f32.mrf.mxu0
      %v8712 = vadd.f32 0.0, %v8711
      %8713 = vmatmul.bf16.gmra.mxu0 %v8586
      %v8714 = vpop.f32.mrf.mxu0
      %v8715 = vadd.f32 0.0, %v8714
      %v8716 = vpop.f32.mrf.mxu0
      %v8717 = vadd.f32 0.0, %v8716
      %8718 = vmatmul.bf16.gmra.mxu0 %v8589
      %v8719 = vpop.f32.mrf.mxu0
      %v8720 = vadd.f32 0.0, %v8719
      %v8721 = vpop.f32.mrf.mxu0
      %v8722 = vadd.f32 0.0, %v8721
      %8723 = vmatmul.bf16.gmra.mxu0 %v8592
      %v8724 = vpop.f32.mrf.mxu0
      %v8725 = vadd.f32 0.0, %v8724
      %v8726 = vpop.f32.mrf.mxu0
      %v8727 = vadd.f32 0.0, %v8726
      %8728 = vmatmul.bf16.gmra.mxu0 %v8595
      %v8729 = vpop.f32.mrf.mxu0
      %v8730 = vadd.f32 0.0, %v8729
      %v8731 = vpop.f32.mrf.mxu0
      %v8732 = vadd.f32 0.0, %v8731
      %8733 = vmatmul.bf16.gmra.mxu0 %v8598
      %v8734 = vpop.f32.mrf.mxu0
      %v8735 = vadd.f32 0.0, %v8734
      %v8736 = vpop.f32.mrf.mxu0
      %v8737 = vadd.f32 0.0, %v8736
      %8738 = vmatmul.bf16.gmra.mxu0 %v8601
      %v8739 = vpop.f32.mrf.mxu0
      %v8740 = vadd.f32 0.0, %v8739
      %v8741 = vpop.f32.mrf.mxu0
      %v8742 = vadd.f32 0.0, %v8741
      %8743 = vmatmul.bf16.gmra.mxu0 %v8604
      %v8744 = vpop.f32.mrf.mxu0
      %v8745 = vadd.f32 0.0, %v8744
      %v8746 = vpop.f32.mrf.mxu0
      %v8747 = vadd.f32 0.0, %v8746
      %8748 = vmatmul.bf16.gmra.mxu0 %v8607
      %v8749 = vpop.f32.mrf.mxu0
      %v8750 = vadd.f32 0.0, %v8749
      %v8751 = vpop.f32.mrf.mxu0
      %v8752 = vadd.f32 0.0, %v8751
      %8753 = vmatmul.bf16.gmra.mxu0 %v8610
      %v8754 = vpop.f32.mrf.mxu0
      %v8755 = vadd.f32 0.0, %v8754
      %v8756 = vpop.f32.mrf.mxu0
      %v8757 = vadd.f32 0.0, %v8756
      %8758 = vmatmul.bf16.gmra.mxu0 %v8613
      %v8759 = vpop.f32.mrf.mxu0
      %v8760 = vadd.f32 0.0, %v8759
      %v8761 = vpop.f32.mrf.mxu0
      %v8762 = vadd.f32 0.0, %v8761
      %8763 = vmatmul.bf16.gmra.mxu0 %v8616
      %v8764 = vpop.f32.mrf.mxu0
      %v8765 = vadd.f32 0.0, %v8764
      %v8766 = vpop.f32.mrf.mxu0
      %v8767 = vadd.f32 0.0, %v8766
      %8768 = vmatmul.bf16.gmra.mxu0 %v8619
      %v8769 = vpop.f32.mrf.mxu0
      %v8770 = vadd.f32 0.0, %v8769
      %v8771 = vpop.f32.mrf.mxu0
      %v8772 = vadd.f32 0.0, %v8771
      %8773 = vmatmul.bf16.gmra.mxu0 %v8622
      %v8774 = vpop.f32.mrf.mxu0
      %v8775 = vadd.f32 0.0, %v8774
      %v8776 = vpop.f32.mrf.mxu0
      %v8777 = vadd.f32 0.0, %v8776
      %8778 = vmatmul.bf16.gmra.mxu0 %v8625
      %v8779 = vpop.f32.mrf.mxu0
      %v8780 = vadd.f32 0.0, %v8779
      %v8781 = vpop.f32.mrf.mxu0
      %v8782 = vadd.f32 0.0, %v8781
      %8783 = vmatmul.bf16.gmra.mxu0 %v8628
      %v8784 = vpop.f32.mrf.mxu0
      %v8785 = vadd.f32 0.0, %v8784
      %v8786 = vpop.f32.mrf.mxu0
      %v8787 = vadd.f32 0.0, %v8786
      %8788 = vmatmul.bf16.gmra.mxu0 %v8631
      %v8789 = vpop.f32.mrf.mxu0
      %v8790 = vadd.f32 0.0, %v8789
      %v8791 = vpop.f32.mrf.mxu0
      %v8792 = vadd.f32 0.0, %v8791
      %8793 = vmatmul.bf16.gmra.mxu0 %v8634
      %v8794 = vpop.f32.mrf.mxu0
      %v8795 = vadd.f32 0.0, %v8794
      %v8796 = vpop.f32.mrf.mxu0
      %v8797 = vadd.f32 0.0, %v8796
      %8798 = vmatmul.bf16.gmra.mxu0 %v8637
      %v8799 = vpop.f32.mrf.mxu0
      %v8800 = vadd.f32 0.0, %v8799
      %v8801 = vpop.f32.mrf.mxu0
      %v8802 = vadd.f32 0.0, %v8801
      %8803 = vmatmul.bf16.gmra.mxu0 %v8640
      %v8804 = vpop.f32.mrf.mxu0
      %v8805 = vadd.f32 0.0, %v8804
      %v8806 = vpop.f32.mrf.mxu0
      %v8807 = vadd.f32 0.0, %v8806
      %8808 = vmatmul.bf16.gmra.mxu0 %v8643
      %v8809 = vpop.f32.mrf.mxu0
      %v8810 = vadd.f32 0.0, %v8809
      %v8811 = vpop.f32.mrf.mxu0
      %v8812 = vadd.f32 0.0, %v8811
      %8813 = vdwg.mxu0
      %v8814 = vadd.f32 %v413, %v8655
      %v8815 = vadd.f32 %v5012, %v8657
      %v8816 = vadd.f32 %v413, %v8660
      %v8817 = vadd.f32 %v5014, %v8662
      %v8818 = vadd.f32 %v413, %v8665
      %v8819 = vadd.f32 %v5017, %v8667
      %v8820 = vadd.f32 %v413, %v8670
      %v8821 = vadd.f32 %v5019, %v8672
      %v8822 = vadd.f32 %v413, %v8675
      %v8823 = vadd.f32 %v5022, %v8677
      %v8824 = vadd.f32 %v413, %v8680
      %v8825 = vadd.f32 %v5024, %v8682
      %v8826 = vadd.f32 %v413, %v8685
      %v8827 = vadd.f32 %v5027, %v8687
      %v8828 = vadd.f32 %v413, %v8690
      %v8829 = vadd.f32 %v5029, %v8692
      %v8830 = vadd.f32 %v413, %v8695
      %v8831 = vadd.f32 %v5032, %v8697
      %v8832 = vadd.f32 %v413, %v8700
      %v8833 = vadd.f32 %v5034, %v8702
      %v8834 = vadd.f32 %v413, %v8705
      %v8835 = vadd.f32 %v5037, %v8707
      %v8836 = vadd.f32 %v413, %v8710
      %v8837 = vadd.f32 %v5039, %v8712
      %v8838 = vadd.f32 %v413, %v8715
      %v8839 = vadd.f32 %v5042, %v8717
      %v8840 = vadd.f32 %v413, %v8720
      %v8841 = vadd.f32 %v5044, %v8722
      %v8842 = vadd.f32 %v413, %v8725
      %v8843 = vadd.f32 %v5047, %v8727
      %v8844 = vadd.f32 %v413, %v8730
      %v8845 = vadd.f32 %v5049, %v8732
      %v8846 = vadd.f32 %v413, %v8735
      %v8847 = vadd.f32 %v5052, %v8737
      %v8848 = vadd.f32 %v413, %v8740
      %v8849 = vadd.f32 %v5054, %v8742
      %v8850 = vadd.f32 %v413, %v8745
      %v8851 = vadd.f32 %v5057, %v8747
      %v8852 = vadd.f32 %v413, %v8750
      %v8853 = vadd.f32 %v5059, %v8752
      %v8854 = vadd.f32 %v413, %v8755
      %v8855 = vadd.f32 %v5062, %v8757
      %v8856 = vadd.f32 %v413, %v8760
      %v8857 = vadd.f32 %v5064, %v8762
      %v8858 = vadd.f32 %v413, %v8765
      %v8859 = vadd.f32 %v5067, %v8767
      %v8860 = vadd.f32 %v413, %v8770
      %v8861 = vadd.f32 %v5069, %v8772
      %v8862 = vadd.f32 %v413, %v8775
      %v8863 = vadd.f32 %v5072, %v8777
      %v8864 = vadd.f32 %v413, %v8780
      %v8865 = vadd.f32 %v5074, %v8782
      %v8866 = vadd.f32 %v413, %v8785
      %v8867 = vadd.f32 %v5077, %v8787
      %v8868 = vadd.f32 %v413, %v8790
      %v8869 = vadd.f32 %v5079, %v8792
      %v8870 = vadd.f32 %v413, %v8795
      %v8871 = vadd.f32 %v5082, %v8797
      %v8872 = vadd.f32 %v413, %v8800
      %v8873 = vadd.f32 %v5084, %v8802
      %v8874 = vadd.f32 %v413, %v8805
      %v8875 = vadd.f32 %v5087, %v8807
      %v8876 = vadd.f32 %v413, %v8810
      %v8877 = vadd.f32 %v5089, %v8812
      %v8878 = vpack.c.bf16 %v8815, %v8814
      %v8879 = vpack.c.bf16 %v8817, %v8816
      %v8880 = vpack.c.bf16 %v8819, %v8818
      %v8881 = vpack.c.bf16 %v8821, %v8820
      %v8882 = vpack.c.bf16 %v8823, %v8822
      %v8883 = vpack.c.bf16 %v8825, %v8824
      %v8884 = vpack.c.bf16 %v8827, %v8826
      %v8885 = vpack.c.bf16 %v8829, %v8828
      %v8886 = vpack.c.bf16 %v8831, %v8830
      %v8887 = vpack.c.bf16 %v8833, %v8832
      %v8888 = vpack.c.bf16 %v8835, %v8834
      %v8889 = vpack.c.bf16 %v8837, %v8836
      %v8890 = vpack.c.bf16 %v8839, %v8838
      %v8891 = vpack.c.bf16 %v8841, %v8840
      %v8892 = vpack.c.bf16 %v8843, %v8842
      %v8893 = vpack.c.bf16 %v8845, %v8844
      %v8894 = vpack.c.bf16 %v8847, %v8846
      %v8895 = vpack.c.bf16 %v8849, %v8848
      %v8896 = vpack.c.bf16 %v8851, %v8850
      %v8897 = vpack.c.bf16 %v8853, %v8852
      %v8898 = vpack.c.bf16 %v8855, %v8854
      %v8899 = vpack.c.bf16 %v8857, %v8856
      %v8900 = vpack.c.bf16 %v8859, %v8858
      %v8901 = vpack.c.bf16 %v8861, %v8860
      %v8902 = vpack.c.bf16 %v8863, %v8862
      %v8903 = vpack.c.bf16 %v8865, %v8864
      %v8904 = vpack.c.bf16 %v8867, %v8866
      %v8905 = vpack.c.bf16 %v8869, %v8868
      %v8906 = vpack.c.bf16 %v8871, %v8870
      %v8907 = vpack.c.bf16 %v8873, %v8872
      %v8908 = vpack.c.bf16 %v8875, %v8874
      %v8909 = vpack.c.bf16 %v8877, %v8876
      %v8910 = vld [vmem:[%s4 + $0x90] sm:$0xf]
      %v8911 = vld [vmem:[%s4 + $0x94] sm:$0xf]
      %v8912 = vld [vmem:[%s4 + $0x98] sm:$0xf]
      %v8913 = vld [vmem:[%s4 + $0x9c] sm:$0xf]
      %v8914 = vld [vmem:[%s5 + $0x4] sm:$0x1]
      %v8915 = vperm.slane %v8914, 0
      %v8920 = vunpack.c.l.b16 %v8910
      %v8921 = vunpack.c.l.b16 %v8911
      %v8922 = vunpack.c.l.b16 %v8912
      %v8923 = vunpack.c.l.b16 %v8913
      %v8924 = vpack.c.b16 %v8921, %v8920
      %v8925 = vpack.c.b16 %v8923, %v8922
      %v8929 = vsel %vm719, %v8878, 0
      %v8932 = vsel %vm719, %v8879, 0
      %v8935 = vsel %vm719, %v8880, 0
      %v8938 = vsel %vm719, %v8881, 0
      %v8941 = vsel %vm719, %v8882, 0
      %v8944 = vsel %vm719, %v8883, 0
      %v8947 = vsel %vm719, %v8884, 0
      %v8950 = vsel %vm719, %v8885, 0
      %v8953 = vsel %vm719, %v8886, 0
      %v8956 = vsel %vm719, %v8887, 0
      %v8959 = vsel %vm719, %v8888, 0
      %v8962 = vsel %vm719, %v8889, 0
      %v8965 = vsel %vm719, %v8890, 0
      %v8968 = vsel %vm719, %v8891, 0
      %v8971 = vsel %vm719, %v8892, 0
      %v8974 = vsel %vm719, %v8893, 0
      %v8977 = vsel %vm719, %v8894, 0
      %v8980 = vsel %vm719, %v8895, 0
      %v8983 = vsel %vm719, %v8896, 0
      %v8986 = vsel %vm719, %v8897, 0
      %v8989 = vsel %vm719, %v8898, 0
      %v8992 = vsel %vm719, %v8899, 0
      %v8995 = vsel %vm719, %v8900, 0
      %v8998 = vsel %vm719, %v8901, 0
      %v9001 = vsel %vm719, %v8902, 0
      %v9004 = vsel %vm719, %v8903, 0
      %v9007 = vsel %vm719, %v8904, 0
      %v9010 = vsel %vm719, %v8905, 0
      %v9013 = vsel %vm719, %v8906, 0
      %v9016 = vsel %vm719, %v8907, 0
      %v9019 = vsel %vm719, %v8908, 0
      %v9022 = vsel %vm719, %v8909, 0
      %9024 = vmatpush.bf16.msra.mxu0 0
      %9025 = vmatpush.bf16.msra.mxu0 0
      %9026 = vmatpush.bf16.msra.mxu0 0
      %9027 = vmatpush.bf16.msra.mxu0 0
      %9028 = vmatpush.bf16.msra.mxu0 0
      %9029 = vmatpush.bf16.msra.mxu0 0
      %9030 = vmatpush.bf16.msra.mxu0 %v8925
      %9031 = vmatpush.bf16.msra.mxu0 %v8924
      %9032 = vmatmul.bf16.gmra.mxu0 %v8929
      %v9033 = vpop.f32.mrf.mxu0
      %v9034 = vadd.f32 %v8915, %v9033
      %v9035 = vpop.f32.mrf.mxu0
      %v9036 = vadd.f32 %v8915, %v9035
      %9037 = vmatmul.bf16.gmra.mxu0 %v8932
      %v9038 = vpop.f32.mrf.mxu0
      %v9039 = vadd.f32 %v8915, %v9038
      %v9040 = vpop.f32.mrf.mxu0
      %v9041 = vadd.f32 %v8915, %v9040
      %9042 = vmatmul.bf16.gmra.mxu0 %v8935
      %v9043 = vpop.f32.mrf.mxu0
      %v9044 = vadd.f32 %v8915, %v9043
      %v9045 = vpop.f32.mrf.mxu0
      %v9046 = vadd.f32 %v8915, %v9045
      %9047 = vmatmul.bf16.gmra.mxu0 %v8938
      %v9048 = vpop.f32.mrf.mxu0
      %v9049 = vadd.f32 %v8915, %v9048
      %v9050 = vpop.f32.mrf.mxu0
      %v9051 = vadd.f32 %v8915, %v9050
      %9052 = vmatmul.bf16.gmra.mxu0 %v8941
      %v9053 = vpop.f32.mrf.mxu0
      %v9054 = vadd.f32 %v8915, %v9053
      %v9055 = vpop.f32.mrf.mxu0
      %v9056 = vadd.f32 %v8915, %v9055
      %9057 = vmatmul.bf16.gmra.mxu0 %v8944
      %v9058 = vpop.f32.mrf.mxu0
      %v9059 = vadd.f32 %v8915, %v9058
      %v9060 = vpop.f32.mrf.mxu0
      %v9061 = vadd.f32 %v8915, %v9060
      %9062 = vmatmul.bf16.gmra.mxu0 %v8947
      %v9063 = vpop.f32.mrf.mxu0
      %v9064 = vadd.f32 %v8915, %v9063
      %v9065 = vpop.f32.mrf.mxu0
      %v9066 = vadd.f32 %v8915, %v9065
      %9067 = vmatmul.bf16.gmra.mxu0 %v8950
      %v9068 = vpop.f32.mrf.mxu0
      %v9069 = vadd.f32 %v8915, %v9068
      %v9070 = vpop.f32.mrf.mxu0
      %v9071 = vadd.f32 %v8915, %v9070
      %9072 = vmatmul.bf16.gmra.mxu0 %v8953
      %v9073 = vpop.f32.mrf.mxu0
      %v9074 = vadd.f32 %v8915, %v9073
      %v9075 = vpop.f32.mrf.mxu0
      %v9076 = vadd.f32 %v8915, %v9075
      %9077 = vmatmul.bf16.gmra.mxu0 %v8956
      %v9078 = vpop.f32.mrf.mxu0
      %v9079 = vadd.f32 %v8915, %v9078
      %v9080 = vpop.f32.mrf.mxu0
      %v9081 = vadd.f32 %v8915, %v9080
      %9082 = vmatmul.bf16.gmra.mxu0 %v8959
      %v9083 = vpop.f32.mrf.mxu0
      %v9084 = vadd.f32 %v8915, %v9083
      %v9085 = vpop.f32.mrf.mxu0
      %v9086 = vadd.f32 %v8915, %v9085
      %9087 = vmatmul.bf16.gmra.mxu0 %v8962
      %v9088 = vpop.f32.mrf.mxu0
      %v9089 = vadd.f32 %v8915, %v9088
      %v9090 = vpop.f32.mrf.mxu0
      %v9091 = vadd.f32 %v8915, %v9090
      %9092 = vmatmul.bf16.gmra.mxu0 %v8965
      %v9093 = vpop.f32.mrf.mxu0
      %v9094 = vadd.f32 %v8915, %v9093
      %v9095 = vpop.f32.mrf.mxu0
      %v9096 = vadd.f32 %v8915, %v9095
      %9097 = vmatmul.bf16.gmra.mxu0 %v8968
      %v9098 = vpop.f32.mrf.mxu0
      %v9099 = vadd.f32 %v8915, %v9098
      %v9100 = vpop.f32.mrf.mxu0
      %v9101 = vadd.f32 %v8915, %v9100
      %9102 = vmatmul.bf16.gmra.mxu0 %v8971
      %v9103 = vpop.f32.mrf.mxu0
      %v9104 = vadd.f32 %v8915, %v9103
      %v9105 = vpop.f32.mrf.mxu0
      %v9106 = vadd.f32 %v8915, %v9105
      %9107 = vmatmul.bf16.gmra.mxu0 %v8974
      %v9108 = vpop.f32.mrf.mxu0
      %v9109 = vadd.f32 %v8915, %v9108
      %v9110 = vpop.f32.mrf.mxu0
      %v9111 = vadd.f32 %v8915, %v9110
      %9112 = vmatmul.bf16.gmra.mxu0 %v8977
      %v9113 = vpop.f32.mrf.mxu0
      %v9114 = vadd.f32 %v8915, %v9113
      %v9115 = vpop.f32.mrf.mxu0
      %v9116 = vadd.f32 %v8915, %v9115
      %9117 = vmatmul.bf16.gmra.mxu0 %v8980
      %v9118 = vpop.f32.mrf.mxu0
      %v9119 = vadd.f32 %v8915, %v9118
      %v9120 = vpop.f32.mrf.mxu0
      %v9121 = vadd.f32 %v8915, %v9120
      %9122 = vmatmul.bf16.gmra.mxu0 %v8983
      %v9123 = vpop.f32.mrf.mxu0
      %v9124 = vadd.f32 %v8915, %v9123
      %v9125 = vpop.f32.mrf.mxu0
      %v9126 = vadd.f32 %v8915, %v9125
      %9127 = vmatmul.bf16.gmra.mxu0 %v8986
      %v9128 = vpop.f32.mrf.mxu0
      %v9129 = vadd.f32 %v8915, %v9128
      %v9130 = vpop.f32.mrf.mxu0
      %v9131 = vadd.f32 %v8915, %v9130
      %9132 = vmatmul.bf16.gmra.mxu0 %v8989
      %v9133 = vpop.f32.mrf.mxu0
      %v9134 = vadd.f32 %v8915, %v9133
      %v9135 = vpop.f32.mrf.mxu0
      %v9136 = vadd.f32 %v8915, %v9135
      %9137 = vmatmul.bf16.gmra.mxu0 %v8992
      %v9138 = vpop.f32.mrf.mxu0
      %v9139 = vadd.f32 %v8915, %v9138
      %v9140 = vpop.f32.mrf.mxu0
      %v9141 = vadd.f32 %v8915, %v9140
      %9142 = vmatmul.bf16.gmra.mxu0 %v8995
      %v9143 = vpop.f32.mrf.mxu0
      %v9144 = vadd.f32 %v8915, %v9143
      %v9145 = vpop.f32.mrf.mxu0
      %v9146 = vadd.f32 %v8915, %v9145
      %9147 = vmatmul.bf16.gmra.mxu0 %v8998
      %v9148 = vpop.f32.mrf.mxu0
      %v9149 = vadd.f32 %v8915, %v9148
      %v9150 = vpop.f32.mrf.mxu0
      %v9151 = vadd.f32 %v8915, %v9150
      %9152 = vmatmul.bf16.gmra.mxu0 %v9001
      %v9153 = vpop.f32.mrf.mxu0
      %v9154 = vadd.f32 %v8915, %v9153
      %v9155 = vpop.f32.mrf.mxu0
      %v9156 = vadd.f32 %v8915, %v9155
      %9157 = vmatmul.bf16.gmra.mxu0 %v9004
      %v9158 = vpop.f32.mrf.mxu0
      %v9159 = vadd.f32 %v8915, %v9158
      %v9160 = vpop.f32.mrf.mxu0
      %v9161 = vadd.f32 %v8915, %v9160
      %9162 = vmatmul.bf16.gmra.mxu0 %v9007
      %v9163 = vpop.f32.mrf.mxu0
      %v9164 = vadd.f32 %v8915, %v9163
      %v9165 = vpop.f32.mrf.mxu0
      %v9166 = vadd.f32 %v8915, %v9165
      %9167 = vmatmul.bf16.gmra.mxu0 %v9010
      %v9168 = vpop.f32.mrf.mxu0
      %v9169 = vadd.f32 %v8915, %v9168
      %v9170 = vpop.f32.mrf.mxu0
      %v9171 = vadd.f32 %v8915, %v9170
      %9172 = vmatmul.bf16.gmra.mxu0 %v9013
      %v9173 = vpop.f32.mrf.mxu0
      %v9174 = vadd.f32 %v8915, %v9173
      %v9175 = vpop.f32.mrf.mxu0
      %v9176 = vadd.f32 %v8915, %v9175
      %9177 = vmatmul.bf16.gmra.mxu0 %v9016
      %v9178 = vpop.f32.mrf.mxu0
      %v9179 = vadd.f32 %v8915, %v9178
      %v9180 = vpop.f32.mrf.mxu0
      %v9181 = vadd.f32 %v8915, %v9180
      %9182 = vmatmul.bf16.gmra.mxu0 %v9019
      %v9183 = vpop.f32.mrf.mxu0
      %v9184 = vadd.f32 %v8915, %v9183
      %v9185 = vpop.f32.mrf.mxu0
      %v9186 = vadd.f32 %v8915, %v9185
      %9187 = vmatmul.bf16.gmra.mxu0 %v9022
      %v9188 = vpop.f32.mrf.mxu0
      %v9189 = vadd.f32 %v8915, %v9188
      %v9190 = vpop.f32.mrf.mxu0
      %v9191 = vadd.f32 %v8915, %v9190
      %9192 = vdwg.mxu0
      %v9193 = vmax.f32 %v9034, 0.0
      %v9194 = vmax.f32 %v9036, 0.0
      %v9195 = vmax.f32 %v9039, 0.0
      %v9196 = vmax.f32 %v9041, 0.0
      %v9197 = vmax.f32 %v9044, 0.0
      %v9198 = vmax.f32 %v9046, 0.0
      %v9199 = vmax.f32 %v9049, 0.0
      %v9200 = vmax.f32 %v9051, 0.0
      %v9201 = vmax.f32 %v9054, 0.0
      %v9202 = vmax.f32 %v9056, 0.0
      %v9203 = vmax.f32 %v9059, 0.0
      %v9204 = vmax.f32 %v9061, 0.0
      %v9205 = vmax.f32 %v9064, 0.0
      %v9206 = vmax.f32 %v9066, 0.0
      %v9207 = vmax.f32 %v9069, 0.0
      %v9208 = vmax.f32 %v9071, 0.0
      %v9209 = vmax.f32 %v9074, 0.0
      %v9210 = vmax.f32 %v9076, 0.0
      %v9211 = vmax.f32 %v9079, 0.0
      %v9212 = vmax.f32 %v9081, 0.0
      %v9213 = vmax.f32 %v9084, 0.0
      %v9214 = vmax.f32 %v9086, 0.0
      %v9215 = vmax.f32 %v9089, 0.0
      %v9216 = vmax.f32 %v9091, 0.0
      %v9217 = vmax.f32 %v9094, 0.0
      %v9218 = vmax.f32 %v9096, 0.0
      %v9219 = vmax.f32 %v9099, 0.0
      %v9220 = vmax.f32 %v9101, 0.0
      %v9221 = vmax.f32 %v9104, 0.0
      %v9222 = vmax.f32 %v9106, 0.0
      %v9223 = vmax.f32 %v9109, 0.0
      %v9224 = vmax.f32 %v9111, 0.0
      %v9225 = vmax.f32 %v9114, 0.0
      %v9226 = vmax.f32 %v9116, 0.0
      %v9227 = vmax.f32 %v9119, 0.0
      %v9228 = vmax.f32 %v9121, 0.0
      %v9229 = vmax.f32 %v9124, 0.0
      %v9230 = vmax.f32 %v9126, 0.0
      %v9231 = vmax.f32 %v9129, 0.0
      %v9232 = vmax.f32 %v9131, 0.0
      %v9233 = vmax.f32 %v9134, 0.0
      %v9234 = vmax.f32 %v9136, 0.0
      %v9235 = vmax.f32 %v9139, 0.0
      %v9236 = vmax.f32 %v9141, 0.0
      %v9237 = vmax.f32 %v9144, 0.0
      %v9238 = vmax.f32 %v9146, 0.0
      %v9239 = vmax.f32 %v9149, 0.0
      %v9240 = vmax.f32 %v9151, 0.0
      %v9241 = vmax.f32 %v9154, 0.0
      %v9242 = vmax.f32 %v9156, 0.0
      %v9243 = vmax.f32 %v9159, 0.0
      %v9244 = vmax.f32 %v9161, 0.0
      %v9245 = vmax.f32 %v9164, 0.0
      %v9246 = vmax.f32 %v9166, 0.0
      %v9247 = vmax.f32 %v9169, 0.0
      %v9248 = vmax.f32 %v9171, 0.0
      %v9249 = vmax.f32 %v9174, 0.0
      %v9250 = vmax.f32 %v9176, 0.0
      %v9251 = vmax.f32 %v9179, 0.0
      %v9252 = vmax.f32 %v9181, 0.0
      %v9253 = vmax.f32 %v9184, 0.0
      %v9254 = vmax.f32 %v9186, 0.0
      %v9255 = vmax.f32 %v9189, 0.0
      %v9256 = vmax.f32 %v9191, 0.0
      %v9257 = vpack.c.bf16 %v9194, %v9193
      %v9258 = vpack.c.bf16 %v9196, %v9195
      %v9259 = vpack.c.bf16 %v9198, %v9197
      %v9260 = vpack.c.bf16 %v9200, %v9199
      %v9261 = vpack.c.bf16 %v9202, %v9201
      %v9262 = vpack.c.bf16 %v9204, %v9203
      %v9263 = vpack.c.bf16 %v9206, %v9205
      %v9264 = vpack.c.bf16 %v9208, %v9207
      %v9265 = vpack.c.bf16 %v9210, %v9209
      %v9266 = vpack.c.bf16 %v9212, %v9211
      %v9267 = vpack.c.bf16 %v9214, %v9213
      %v9268 = vpack.c.bf16 %v9216, %v9215
      %v9269 = vpack.c.bf16 %v9218, %v9217
      %v9270 = vpack.c.bf16 %v9220, %v9219
      %v9271 = vpack.c.bf16 %v9222, %v9221
      %v9272 = vpack.c.bf16 %v9224, %v9223
      %v9273 = vpack.c.bf16 %v9226, %v9225
      %v9274 = vpack.c.bf16 %v9228, %v9227
      %v9275 = vpack.c.bf16 %v9230, %v9229
      %v9276 = vpack.c.bf16 %v9232, %v9231
      %v9277 = vpack.c.bf16 %v9234, %v9233
      %v9278 = vpack.c.bf16 %v9236, %v9235
      %v9279 = vpack.c.bf16 %v9238, %v9237
      %v9280 = vpack.c.bf16 %v9240, %v9239
      %v9281 = vpack.c.bf16 %v9242, %v9241
      %v9282 = vpack.c.bf16 %v9244, %v9243
      %v9283 = vpack.c.bf16 %v9246, %v9245
      %v9284 = vpack.c.bf16 %v9248, %v9247
      %v9285 = vpack.c.bf16 %v9250, %v9249
      %v9286 = vpack.c.bf16 %v9252, %v9251
      %v9287 = vpack.c.bf16 %v9254, %v9253
      %v9288 = vpack.c.bf16 %v9256, %v9255
      %v9289 = vld [vmem:[%s4 + $0xa0] sm:$0xf]
      %v9290 = vld [vmem:[%s4 + $0xa4] sm:$0xf]
      %v9291 = vld [vmem:[%s4 + $0xa8] sm:$0xf]
      %v9292 = vld [vmem:[%s4 + $0xac] sm:$0xf]
      %v9293 = vld [vmem:[%s4 + $0xb0] sm:$0xf]
      %v9294 = vld [vmem:[%s4 + $0xb4] sm:$0xf]
      %v9295 = vld [vmem:[%s4 + $0xb8] sm:$0xf]
      %v9296 = vld [vmem:[%s4 + $0xbc] sm:$0xf]
      %v9305 = vunpack.c.l.b16 %v9289
      %v9306 = vunpack.c.l.b16 %v9290
      %v9307 = vunpack.c.l.b16 %v9291
      %v9308 = vunpack.c.l.b16 %v9292
      %v9309 = vunpack.c.l.b16 %v9293
      %v9310 = vunpack.c.l.b16 %v9294
      %v9311 = vunpack.c.l.b16 %v9295
      %v9312 = vunpack.c.l.b16 %v9296
      %v9313 = vpack.c.b16 %v9306, %v9305
      %v9314 = vpack.c.b16 %v9308, %v9307
      %v9315 = vpack.c.b16 %v9310, %v9309
      %v9316 = vpack.c.b16 %v9312, %v9311
      %v9322 = vsel %vm4429, %v9257, 0
      %v9325 = vsel %vm4429, %v9258, 0
      %v9328 = vsel %vm4429, %v9259, 0
      %v9331 = vsel %vm4429, %v9260, 0
      %v9334 = vsel %vm4429, %v9261, 0
      %v9337 = vsel %vm4429, %v9262, 0
      %v9340 = vsel %vm4429, %v9263, 0
      %v9343 = vsel %vm4429, %v9264, 0
      %v9346 = vsel %vm4429, %v9265, 0
      %v9349 = vsel %vm4429, %v9266, 0
      %v9352 = vsel %vm4429, %v9267, 0
      %v9355 = vsel %vm4429, %v9268, 0
      %v9358 = vsel %vm4429, %v9269, 0
      %v9361 = vsel %vm4429, %v9270, 0
      %v9364 = vsel %vm4429, %v9271, 0
      %v9367 = vsel %vm4429, %v9272, 0
      %v9370 = vsel %vm4429, %v9273, 0
      %v9373 = vsel %vm4429, %v9274, 0
      %v9376 = vsel %vm4429, %v9275, 0
      %v9379 = vsel %vm4429, %v9276, 0
      %v9382 = vsel %vm4429, %v9277, 0
      %v9385 = vsel %vm4429, %v9278, 0
      %v9388 = vsel %vm4429, %v9279, 0
      %v9391 = vsel %vm4429, %v9280, 0
      %v9394 = vsel %vm4429, %v9281, 0
      %v9397 = vsel %vm4429, %v9282, 0
      %v9400 = vsel %vm4429, %v9283, 0
      %v9403 = vsel %vm4429, %v9284, 0
      %v9406 = vsel %vm4429, %v9285, 0
      %v9409 = vsel %vm4429, %v9286, 0
      %v9412 = vsel %vm4429, %v9287, 0
      %v9415 = vsel %vm4429, %v9288, 0
      %9417 = vmatpush.bf16.msra.mxu0 0
      %9418 = vmatpush.bf16.msra.mxu0 0
      %9419 = vmatpush.bf16.msra.mxu0 0
      %9420 = vmatpush.bf16.msra.mxu0 0
      %9421 = vmatpush.bf16.msra.mxu0 %v9316
      %9422 = vmatpush.bf16.msra.mxu0 %v9315
      %9423 = vmatpush.bf16.msra.mxu0 %v9314
      %9424 = vmatpush.bf16.msra.mxu0 %v9313
      %9425 = vmatmul.bf16.gmra.mxu0 %v9322
      %v9426 = vpop.f32.mrf.mxu0
      %v9427 = vadd.f32 0.0, %v9426
      %v9428 = vpop.f32.mrf.mxu0
      %v9429 = vadd.f32 0.0, %v9428
      %9430 = vmatmul.bf16.gmra.mxu0 %v9325
      %v9431 = vpop.f32.mrf.mxu0
      %v9432 = vadd.f32 0.0, %v9431
      %v9433 = vpop.f32.mrf.mxu0
      %v9434 = vadd.f32 0.0, %v9433
      %9435 = vmatmul.bf16.gmra.mxu0 %v9328
      %v9436 = vpop.f32.mrf.mxu0
      %v9437 = vadd.f32 0.0, %v9436
      %v9438 = vpop.f32.mrf.mxu0
      %v9439 = vadd.f32 0.0, %v9438
      %9440 = vmatmul.bf16.gmra.mxu0 %v9331
      %v9441 = vpop.f32.mrf.mxu0
      %v9442 = vadd.f32 0.0, %v9441
      %v9443 = vpop.f32.mrf.mxu0
      %v9444 = vadd.f32 0.0, %v9443
      %9445 = vmatmul.bf16.gmra.mxu0 %v9334
      %v9446 = vpop.f32.mrf.mxu0
      %v9447 = vadd.f32 0.0, %v9446
      %v9448 = vpop.f32.mrf.mxu0
      %v9449 = vadd.f32 0.0, %v9448
      %9450 = vmatmul.bf16.gmra.mxu0 %v9337
      %v9451 = vpop.f32.mrf.mxu0
      %v9452 = vadd.f32 0.0, %v9451
      %v9453 = vpop.f32.mrf.mxu0
      %v9454 = vadd.f32 0.0, %v9453
      %9455 = vmatmul.bf16.gmra.mxu0 %v9340
      %v9456 = vpop.f32.mrf.mxu0
      %v9457 = vadd.f32 0.0, %v9456
      %v9458 = vpop.f32.mrf.mxu0
      %v9459 = vadd.f32 0.0, %v9458
      %9460 = vmatmul.bf16.gmra.mxu0 %v9343
      %v9461 = vpop.f32.mrf.mxu0
      %v9462 = vadd.f32 0.0, %v9461
      %v9463 = vpop.f32.mrf.mxu0
      %v9464 = vadd.f32 0.0, %v9463
      %9465 = vmatmul.bf16.gmra.mxu0 %v9346
      %v9466 = vpop.f32.mrf.mxu0
      %v9467 = vadd.f32 0.0, %v9466
      %v9468 = vpop.f32.mrf.mxu0
      %v9469 = vadd.f32 0.0, %v9468
      %9470 = vmatmul.bf16.gmra.mxu0 %v9349
      %v9471 = vpop.f32.mrf.mxu0
      %v9472 = vadd.f32 0.0, %v9471
      %v9473 = vpop.f32.mrf.mxu0
      %v9474 = vadd.f32 0.0, %v9473
      %9475 = vmatmul.bf16.gmra.mxu0 %v9352
      %v9476 = vpop.f32.mrf.mxu0
      %v9477 = vadd.f32 0.0, %v9476
      %v9478 = vpop.f32.mrf.mxu0
      %v9479 = vadd.f32 0.0, %v9478
      %9480 = vmatmul.bf16.gmra.mxu0 %v9355
      %v9481 = vpop.f32.mrf.mxu0
      %v9482 = vadd.f32 0.0, %v9481
      %v9483 = vpop.f32.mrf.mxu0
      %v9484 = vadd.f32 0.0, %v9483
      %9485 = vmatmul.bf16.gmra.mxu0 %v9358
      %v9486 = vpop.f32.mrf.mxu0
      %v9487 = vadd.f32 0.0, %v9486
      %v9488 = vpop.f32.mrf.mxu0
      %v9489 = vadd.f32 0.0, %v9488
      %9490 = vmatmul.bf16.gmra.mxu0 %v9361
      %v9491 = vpop.f32.mrf.mxu0
      %v9492 = vadd.f32 0.0, %v9491
      %v9493 = vpop.f32.mrf.mxu0
      %v9494 = vadd.f32 0.0, %v9493
      %9495 = vmatmul.bf16.gmra.mxu0 %v9364
      %v9496 = vpop.f32.mrf.mxu0
      %v9497 = vadd.f32 0.0, %v9496
      %v9498 = vpop.f32.mrf.mxu0
      %v9499 = vadd.f32 0.0, %v9498
      %9500 = vmatmul.bf16.gmra.mxu0 %v9367
      %v9501 = vpop.f32.mrf.mxu0
      %v9502 = vadd.f32 0.0, %v9501
      %v9503 = vpop.f32.mrf.mxu0
      %v9504 = vadd.f32 0.0, %v9503
      %9505 = vmatmul.bf16.gmra.mxu0 %v9370
      %v9506 = vpop.f32.mrf.mxu0
      %v9507 = vadd.f32 0.0, %v9506
      %v9508 = vpop.f32.mrf.mxu0
      %v9509 = vadd.f32 0.0, %v9508
      %9510 = vmatmul.bf16.gmra.mxu0 %v9373
      %v9511 = vpop.f32.mrf.mxu0
      %v9512 = vadd.f32 0.0, %v9511
      %v9513 = vpop.f32.mrf.mxu0
      %v9514 = vadd.f32 0.0, %v9513
      %9515 = vmatmul.bf16.gmra.mxu0 %v9376
      %v9516 = vpop.f32.mrf.mxu0
      %v9517 = vadd.f32 0.0, %v9516
      %v9518 = vpop.f32.mrf.mxu0
      %v9519 = vadd.f32 0.0, %v9518
      %9520 = vmatmul.bf16.gmra.mxu0 %v9379
      %v9521 = vpop.f32.mrf.mxu0
      %v9522 = vadd.f32 0.0, %v9521
      %v9523 = vpop.f32.mrf.mxu0
      %v9524 = vadd.f32 0.0, %v9523
      %9525 = vmatmul.bf16.gmra.mxu0 %v9382
      %v9526 = vpop.f32.mrf.mxu0
      %v9527 = vadd.f32 0.0, %v9526
      %v9528 = vpop.f32.mrf.mxu0
      %v9529 = vadd.f32 0.0, %v9528
      %9530 = vmatmul.bf16.gmra.mxu0 %v9385
      %v9531 = vpop.f32.mrf.mxu0
      %v9532 = vadd.f32 0.0, %v9531
      %v9533 = vpop.f32.mrf.mxu0
      %v9534 = vadd.f32 0.0, %v9533
      %9535 = vmatmul.bf16.gmra.mxu0 %v9388
      %v9536 = vpop.f32.mrf.mxu0
      %v9537 = vadd.f32 0.0, %v9536
      %v9538 = vpop.f32.mrf.mxu0
      %v9539 = vadd.f32 0.0, %v9538
      %9540 = vmatmul.bf16.gmra.mxu0 %v9391
      %v9541 = vpop.f32.mrf.mxu0
      %v9542 = vadd.f32 0.0, %v9541
      %v9543 = vpop.f32.mrf.mxu0
      %v9544 = vadd.f32 0.0, %v9543
      %9545 = vmatmul.bf16.gmra.mxu0 %v9394
      %v9546 = vpop.f32.mrf.mxu0
      %v9547 = vadd.f32 0.0, %v9546
      %v9548 = vpop.f32.mrf.mxu0
      %v9549 = vadd.f32 0.0, %v9548
      %9550 = vmatmul.bf16.gmra.mxu0 %v9397
      %v9551 = vpop.f32.mrf.mxu0
      %v9552 = vadd.f32 0.0, %v9551
      %v9553 = vpop.f32.mrf.mxu0
      %v9554 = vadd.f32 0.0, %v9553
      %9555 = vmatmul.bf16.gmra.mxu0 %v9400
      %v9556 = vpop.f32.mrf.mxu0
      %v9557 = vadd.f32 0.0, %v9556
      %v9558 = vpop.f32.mrf.mxu0
      %v9559 = vadd.f32 0.0, %v9558
      %9560 = vmatmul.bf16.gmra.mxu0 %v9403
      %v9561 = vpop.f32.mrf.mxu0
      %v9562 = vadd.f32 0.0, %v9561
      %v9563 = vpop.f32.mrf.mxu0
      %v9564 = vadd.f32 0.0, %v9563
      %9565 = vmatmul.bf16.gmra.mxu0 %v9406
      %v9566 = vpop.f32.mrf.mxu0
      %v9567 = vadd.f32 0.0, %v9566
      %v9568 = vpop.f32.mrf.mxu0
      %v9569 = vadd.f32 0.0, %v9568
      %9570 = vmatmul.bf16.gmra.mxu0 %v9409
      %v9571 = vpop.f32.mrf.mxu0
      %v9572 = vadd.f32 0.0, %v9571
      %v9573 = vpop.f32.mrf.mxu0
      %v9574 = vadd.f32 0.0, %v9573
      %9575 = vmatmul.bf16.gmra.mxu0 %v9412
      %v9576 = vpop.f32.mrf.mxu0
      %v9577 = vadd.f32 0.0, %v9576
      %v9578 = vpop.f32.mrf.mxu0
      %v9579 = vadd.f32 0.0, %v9578
      %9580 = vmatmul.bf16.gmra.mxu0 %v9415
      %v9581 = vpop.f32.mrf.mxu0
      %v9582 = vadd.f32 0.0, %v9581
      %v9583 = vpop.f32.mrf.mxu0
      %v9584 = vadd.f32 0.0, %v9583
      %9585 = vdwg.mxu0
      %v9586 = vadd.f32 %v8814, %v9427
      %v9587 = vadd.f32 %v8815, %v9429
      %v9588 = vadd.f32 %v8816, %v9432
      %v9589 = vadd.f32 %v8817, %v9434
      %v9590 = vadd.f32 %v8818, %v9437
      %v9591 = vadd.f32 %v8819, %v9439
      %v9592 = vadd.f32 %v8820, %v9442
      %v9593 = vadd.f32 %v8821, %v9444
      %v9594 = vadd.f32 %v8822, %v9447
      %v9595 = vadd.f32 %v8823, %v9449
      %v9596 = vadd.f32 %v8824, %v9452
      %v9597 = vadd.f32 %v8825, %v9454
      %v9598 = vadd.f32 %v8826, %v9457
      %v9599 = vadd.f32 %v8827, %v9459
      %v9600 = vadd.f32 %v8828, %v9462
      %v9601 = vadd.f32 %v8829, %v9464
      %v9602 = vadd.f32 %v8830, %v9467
      %v9603 = vadd.f32 %v8831, %v9469
      %v9604 = vadd.f32 %v8832, %v9472
      %v9605 = vadd.f32 %v8833, %v9474
      %v9606 = vadd.f32 %v8834, %v9477
      %v9607 = vadd.f32 %v8835, %v9479
      %v9608 = vadd.f32 %v8836, %v9482
      %v9609 = vadd.f32 %v8837, %v9484
      %v9610 = vadd.f32 %v8838, %v9487
      %v9611 = vadd.f32 %v8839, %v9489
      %v9612 = vadd.f32 %v8840, %v9492
      %v9613 = vadd.f32 %v8841, %v9494
      %v9614 = vadd.f32 %v8842, %v9497
      %v9615 = vadd.f32 %v8843, %v9499
      %v9616 = vadd.f32 %v8844, %v9502
      %v9617 = vadd.f32 %v8845, %v9504
      %v9618 = vadd.f32 %v8846, %v9507
      %v9619 = vadd.f32 %v8847, %v9509
      %v9620 = vadd.f32 %v8848, %v9512
      %v9621 = vadd.f32 %v8849, %v9514
      %v9622 = vadd.f32 %v8850, %v9517
      %v9623 = vadd.f32 %v8851, %v9519
      %v9624 = vadd.f32 %v8852, %v9522
      %v9625 = vadd.f32 %v8853, %v9524
      %v9626 = vadd.f32 %v8854, %v9527
      %v9627 = vadd.f32 %v8855, %v9529
      %v9628 = vadd.f32 %v8856, %v9532
      %v9629 = vadd.f32 %v8857, %v9534
      %v9630 = vadd.f32 %v8858, %v9537
      %v9631 = vadd.f32 %v8859, %v9539
      %v9632 = vadd.f32 %v8860, %v9542
      %v9633 = vadd.f32 %v8861, %v9544
      %v9634 = vadd.f32 %v8862, %v9547
      %v9635 = vadd.f32 %v8863, %v9549
      %v9636 = vadd.f32 %v8864, %v9552
      %v9637 = vadd.f32 %v8865, %v9554
      %v9638 = vadd.f32 %v8866, %v9557
      %v9639 = vadd.f32 %v8867, %v9559
      %v9640 = vadd.f32 %v8868, %v9562
      %v9641 = vadd.f32 %v8869, %v9564
      %v9642 = vadd.f32 %v8870, %v9567
      %v9643 = vadd.f32 %v8871, %v9569
      %v9644 = vadd.f32 %v8872, %v9572
      %v9645 = vadd.f32 %v8873, %v9574
      %v9646 = vadd.f32 %v8874, %v9577
      %v9647 = vadd.f32 %v8875, %v9579
      %v9648 = vadd.f32 %v8876, %v9582
      %v9649 = vadd.f32 %v8877, %v9584
      %v9650 = vld [vmem:[%s5 + $0x5] sm:$0x1]
      %v9651 = vperm.slane %v9650, 0
      %v9652 = vadd.f32 %v9586, %v9651
      %v9653 = vadd.f32 %v9587, %v9651
      %v9654 = vadd.f32 %v9588, %v9651
      %v9655 = vadd.f32 %v9589, %v9651
      %v9656 = vadd.f32 %v9590, %v9651
      %v9657 = vadd.f32 %v9591, %v9651
      %v9658 = vadd.f32 %v9592, %v9651
      %v9659 = vadd.f32 %v9593, %v9651
      %v9660 = vadd.f32 %v9594, %v9651
      %v9661 = vadd.f32 %v9595, %v9651
      %v9662 = vadd.f32 %v9596, %v9651
      %v9663 = vadd.f32 %v9597, %v9651
      %v9664 = vadd.f32 %v9598, %v9651
      %v9665 = vadd.f32 %v9599, %v9651
      %v9666 = vadd.f32 %v9600, %v9651
      %v9667 = vadd.f32 %v9601, %v9651
      %v9668 = vadd.f32 %v9602, %v9651
      %v9669 = vadd.f32 %v9603, %v9651
      %v9670 = vadd.f32 %v9604, %v9651
      %v9671 = vadd.f32 %v9605, %v9651
      %v9672 = vadd.f32 %v9606, %v9651
      %v9673 = vadd.f32 %v9607, %v9651
      %v9674 = vadd.f32 %v9608, %v9651
      %v9675 = vadd.f32 %v9609, %v9651
      %v9676 = vadd.f32 %v9610, %v9651
      %v9677 = vadd.f32 %v9611, %v9651
      %v9678 = vadd.f32 %v9612, %v9651
      %v9679 = vadd.f32 %v9613, %v9651
      %v9680 = vadd.f32 %v9614, %v9651
      %v9681 = vadd.f32 %v9615, %v9651
      %v9682 = vadd.f32 %v9616, %v9651
      %v9683 = vadd.f32 %v9617, %v9651
      %v9684 = vadd.f32 %v9618, %v9651
      %v9685 = vadd.f32 %v9619, %v9651
      %v9686 = vadd.f32 %v9620, %v9651
      %v9687 = vadd.f32 %v9621, %v9651
      %v9688 = vadd.f32 %v9622, %v9651
      %v9689 = vadd.f32 %v9623, %v9651
      %v9690 = vadd.f32 %v9624, %v9651
      %v9691 = vadd.f32 %v9625, %v9651
      %v9692 = vadd.f32 %v9626, %v9651
      %v9693 = vadd.f32 %v9627, %v9651
      %v9694 = vadd.f32 %v9628, %v9651
      %v9695 = vadd.f32 %v9629, %v9651
      %v9696 = vadd.f32 %v9630, %v9651
      %v9697 = vadd.f32 %v9631, %v9651
      %v9698 = vadd.f32 %v9632, %v9651
      %v9699 = vadd.f32 %v9633, %v9651
      %v9700 = vadd.f32 %v9634, %v9651
      %v9701 = vadd.f32 %v9635, %v9651
      %v9702 = vadd.f32 %v9636, %v9651
      %v9703 = vadd.f32 %v9637, %v9651
      %v9704 = vadd.f32 %v9638, %v9651
      %v9705 = vadd.f32 %v9639, %v9651
      %v9706 = vadd.f32 %v9640, %v9651
      %v9707 = vadd.f32 %v9641, %v9651
      %v9708 = vadd.f32 %v9642, %v9651
      %v9709 = vadd.f32 %v9643, %v9651
      %v9710 = vadd.f32 %v9644, %v9651
      %v9711 = vadd.f32 %v9645, %v9651
      %v9712 = vadd.f32 %v9646, %v9651
      %v9713 = vadd.f32 %v9647, %v9651
      %v9714 = vadd.f32 %v9648, %v9651
      %v9715 = vadd.f32 %v9649, %v9651
      %v9716 = vpack.c.bf16 %v9653, %v9652
      %v9717 = vpack.c.bf16 %v9655, %v9654
      %v9718 = vpack.c.bf16 %v9657, %v9656
      %v9719 = vpack.c.bf16 %v9659, %v9658
      %v9720 = vpack.c.bf16 %v9661, %v9660
      %v9721 = vpack.c.bf16 %v9663, %v9662
      %v9722 = vpack.c.bf16 %v9665, %v9664
      %v9723 = vpack.c.bf16 %v9667, %v9666
      %v9724 = vpack.c.bf16 %v9669, %v9668
      %v9725 = vpack.c.bf16 %v9671, %v9670
      %v9726 = vpack.c.bf16 %v9673, %v9672
      %v9727 = vpack.c.bf16 %v9675, %v9674
      %v9728 = vpack.c.bf16 %v9677, %v9676
      %v9729 = vpack.c.bf16 %v9679, %v9678
      %v9730 = vpack.c.bf16 %v9681, %v9680
      %v9731 = vpack.c.bf16 %v9683, %v9682
      %v9732 = vpack.c.bf16 %v9685, %v9684
      %v9733 = vpack.c.bf16 %v9687, %v9686
      %v9734 = vpack.c.bf16 %v9689, %v9688
      %v9735 = vpack.c.bf16 %v9691, %v9690
      %v9736 = vpack.c.bf16 %v9693, %v9692
      %v9737 = vpack.c.bf16 %v9695, %v9694
      %v9738 = vpack.c.bf16 %v9697, %v9696
      %v9739 = vpack.c.bf16 %v9699, %v9698
      %v9740 = vpack.c.bf16 %v9701, %v9700
      %v9741 = vpack.c.bf16 %v9703, %v9702
      %v9742 = vpack.c.bf16 %v9705, %v9704
      %v9743 = vpack.c.bf16 %v9707, %v9706
      %v9744 = vpack.c.bf16 %v9709, %v9708
      %v9745 = vpack.c.bf16 %v9711, %v9710
      %v9746 = vpack.c.bf16 %v9713, %v9712
      %v9747 = vpack.c.bf16 %v9715, %v9714
      %v9748 = vld [vmem:[%s4 + $0xc0] sm:$0xf]
      %v9749 = vld [vmem:[%s4 + $0xc4] sm:$0xf]
      %v9750 = vld [vmem:[%s4 + $0xc8] sm:$0xf]
      %v9751 = vld [vmem:[%s4 + $0xcc] sm:$0xf]
      %v9752 = vld [vmem:[%s5 + $0x6] sm:$0x1]
      %v9753 = vperm.slane %v9752, 0
      %v9758 = vunpack.c.l.b16 %v9748
      %v9759 = vunpack.c.l.b16 %v9749
      %v9760 = vunpack.c.l.b16 %v9750
      %v9761 = vunpack.c.l.b16 %v9751
      %v9762 = vpack.c.b16 %v9759, %v9758
      %v9763 = vpack.c.b16 %v9761, %v9760
      %v9767 = vsel %vm719, %v9716, 0
      %v9770 = vsel %vm719, %v9717, 0
      %v9773 = vsel %vm719, %v9718, 0
      %v9776 = vsel %vm719, %v9719, 0
      %v9779 = vsel %vm719, %v9720, 0
      %v9782 = vsel %vm719, %v9721, 0
      %v9785 = vsel %vm719, %v9722, 0
      %v9788 = vsel %vm719, %v9723, 0
      %v9791 = vsel %vm719, %v9724, 0
      %v9794 = vsel %vm719, %v9725, 0
      %v9797 = vsel %vm719, %v9726, 0
      %v9800 = vsel %vm719, %v9727, 0
      %v9803 = vsel %vm719, %v9728, 0
      %v9806 = vsel %vm719, %v9729, 0
      %v9809 = vsel %vm719, %v9730, 0
      %v9812 = vsel %vm719, %v9731, 0
      %v9815 = vsel %vm719, %v9732, 0
      %v9818 = vsel %vm719, %v9733, 0
      %v9821 = vsel %vm719, %v9734, 0
      %v9824 = vsel %vm719, %v9735, 0
      %v9827 = vsel %vm719, %v9736, 0
      %v9830 = vsel %vm719, %v9737, 0
      %v9833 = vsel %vm719, %v9738, 0
      %v9836 = vsel %vm719, %v9739, 0
      %v9839 = vsel %vm719, %v9740, 0
      %v9842 = vsel %vm719, %v9741, 0
      %v9845 = vsel %vm719, %v9742, 0
      %v9848 = vsel %vm719, %v9743, 0
      %v9851 = vsel %vm719, %v9744, 0
      %v9854 = vsel %vm719, %v9745, 0
      %v9857 = vsel %vm719, %v9746, 0
      %v9860 = vsel %vm719, %v9747, 0
      %9862 = vmatpush.bf16.msra.mxu0 0
      %9863 = vmatpush.bf16.msra.mxu0 0
      %9864 = vmatpush.bf16.msra.mxu0 0
      %9865 = vmatpush.bf16.msra.mxu0 0
      %9866 = vmatpush.bf16.msra.mxu0 0
      %9867 = vmatpush.bf16.msra.mxu0 0
      %9868 = vmatpush.bf16.msra.mxu0 %v9763
      %9869 = vmatpush.bf16.msra.mxu0 %v9762
      %9870 = vmatmul.bf16.gmra.mxu0 %v9767
      %v9871 = vpop.f32.mrf.mxu0
      %v9872 = vadd.f32 %v9753, %v9871
      %v9873 = vpop.f32.mrf.mxu0
      %v9874 = vadd.f32 %v9753, %v9873
      %9875 = vmatmul.bf16.gmra.mxu0 %v9770
      %v9876 = vpop.f32.mrf.mxu0
      %v9877 = vadd.f32 %v9753, %v9876
      %v9878 = vpop.f32.mrf.mxu0
      %v9879 = vadd.f32 %v9753, %v9878
      %9880 = vmatmul.bf16.gmra.mxu0 %v9773
      %v9881 = vpop.f32.mrf.mxu0
      %v9882 = vadd.f32 %v9753, %v9881
      %v9883 = vpop.f32.mrf.mxu0
      %v9884 = vadd.f32 %v9753, %v9883
      %9885 = vmatmul.bf16.gmra.mxu0 %v9776
      %v9886 = vpop.f32.mrf.mxu0
      %v9887 = vadd.f32 %v9753, %v9886
      %v9888 = vpop.f32.mrf.mxu0
      %v9889 = vadd.f32 %v9753, %v9888
      %9890 = vmatmul.bf16.gmra.mxu0 %v9779
      %v9891 = vpop.f32.mrf.mxu0
      %v9892 = vadd.f32 %v9753, %v9891
      %v9893 = vpop.f32.mrf.mxu0
      %v9894 = vadd.f32 %v9753, %v9893
      %9895 = vmatmul.bf16.gmra.mxu0 %v9782
      %v9896 = vpop.f32.mrf.mxu0
      %v9897 = vadd.f32 %v9753, %v9896
      %v9898 = vpop.f32.mrf.mxu0
      %v9899 = vadd.f32 %v9753, %v9898
      %9900 = vmatmul.bf16.gmra.mxu0 %v9785
      %v9901 = vpop.f32.mrf.mxu0
      %v9902 = vadd.f32 %v9753, %v9901
      %v9903 = vpop.f32.mrf.mxu0
      %v9904 = vadd.f32 %v9753, %v9903
      %9905 = vmatmul.bf16.gmra.mxu0 %v9788
      %v9906 = vpop.f32.mrf.mxu0
      %v9907 = vadd.f32 %v9753, %v9906
      %v9908 = vpop.f32.mrf.mxu0
      %v9909 = vadd.f32 %v9753, %v9908
      %9910 = vmatmul.bf16.gmra.mxu0 %v9791
      %v9911 = vpop.f32.mrf.mxu0
      %v9912 = vadd.f32 %v9753, %v9911
      %v9913 = vpop.f32.mrf.mxu0
      %v9914 = vadd.f32 %v9753, %v9913
      %9915 = vmatmul.bf16.gmra.mxu0 %v9794
      %v9916 = vpop.f32.mrf.mxu0
      %v9917 = vadd.f32 %v9753, %v9916
      %v9918 = vpop.f32.mrf.mxu0
      %v9919 = vadd.f32 %v9753, %v9918
      %9920 = vmatmul.bf16.gmra.mxu0 %v9797
      %v9921 = vpop.f32.mrf.mxu0
      %v9922 = vadd.f32 %v9753, %v9921
      %v9923 = vpop.f32.mrf.mxu0
      %v9924 = vadd.f32 %v9753, %v9923
      %9925 = vmatmul.bf16.gmra.mxu0 %v9800
      %v9926 = vpop.f32.mrf.mxu0
      %v9927 = vadd.f32 %v9753, %v9926
      %v9928 = vpop.f32.mrf.mxu0
      %v9929 = vadd.f32 %v9753, %v9928
      %9930 = vmatmul.bf16.gmra.mxu0 %v9803
      %v9931 = vpop.f32.mrf.mxu0
      %v9932 = vadd.f32 %v9753, %v9931
      %v9933 = vpop.f32.mrf.mxu0
      %v9934 = vadd.f32 %v9753, %v9933
      %9935 = vmatmul.bf16.gmra.mxu0 %v9806
      %v9936 = vpop.f32.mrf.mxu0
      %v9937 = vadd.f32 %v9753, %v9936
      %v9938 = vpop.f32.mrf.mxu0
      %v9939 = vadd.f32 %v9753, %v9938
      %9940 = vmatmul.bf16.gmra.mxu0 %v9809
      %v9941 = vpop.f32.mrf.mxu0
      %v9942 = vadd.f32 %v9753, %v9941
      %v9943 = vpop.f32.mrf.mxu0
      %v9944 = vadd.f32 %v9753, %v9943
      %9945 = vmatmul.bf16.gmra.mxu0 %v9812
      %v9946 = vpop.f32.mrf.mxu0
      %v9947 = vadd.f32 %v9753, %v9946
      %v9948 = vpop.f32.mrf.mxu0
      %v9949 = vadd.f32 %v9753, %v9948
      %9950 = vmatmul.bf16.gmra.mxu0 %v9815
      %v9951 = vpop.f32.mrf.mxu0
      %v9952 = vadd.f32 %v9753, %v9951
      %v9953 = vpop.f32.mrf.mxu0
      %v9954 = vadd.f32 %v9753, %v9953
      %9955 = vmatmul.bf16.gmra.mxu0 %v9818
      %v9956 = vpop.f32.mrf.mxu0
      %v9957 = vadd.f32 %v9753, %v9956
      %v9958 = vpop.f32.mrf.mxu0
      %v9959 = vadd.f32 %v9753, %v9958
      %9960 = vmatmul.bf16.gmra.mxu0 %v9821
      %v9961 = vpop.f32.mrf.mxu0
      %v9962 = vadd.f32 %v9753, %v9961
      %v9963 = vpop.f32.mrf.mxu0
      %v9964 = vadd.f32 %v9753, %v9963
      %9965 = vmatmul.bf16.gmra.mxu0 %v9824
      %v9966 = vpop.f32.mrf.mxu0
      %v9967 = vadd.f32 %v9753, %v9966
      %v9968 = vpop.f32.mrf.mxu0
      %v9969 = vadd.f32 %v9753, %v9968
      %9970 = vmatmul.bf16.gmra.mxu0 %v9827
      %v9971 = vpop.f32.mrf.mxu0
      %v9972 = vadd.f32 %v9753, %v9971
      %v9973 = vpop.f32.mrf.mxu0
      %v9974 = vadd.f32 %v9753, %v9973
      %9975 = vmatmul.bf16.gmra.mxu0 %v9830
      %v9976 = vpop.f32.mrf.mxu0
      %v9977 = vadd.f32 %v9753, %v9976
      %v9978 = vpop.f32.mrf.mxu0
      %v9979 = vadd.f32 %v9753, %v9978
      %9980 = vmatmul.bf16.gmra.mxu0 %v9833
      %v9981 = vpop.f32.mrf.mxu0
      %v9982 = vadd.f32 %v9753, %v9981
      %v9983 = vpop.f32.mrf.mxu0
      %v9984 = vadd.f32 %v9753, %v9983
      %9985 = vmatmul.bf16.gmra.mxu0 %v9836
      %v9986 = vpop.f32.mrf.mxu0
      %v9987 = vadd.f32 %v9753, %v9986
      %v9988 = vpop.f32.mrf.mxu0
      %v9989 = vadd.f32 %v9753, %v9988
      %9990 = vmatmul.bf16.gmra.mxu0 %v9839
      %v9991 = vpop.f32.mrf.mxu0
      %v9992 = vadd.f32 %v9753, %v9991
      %v9993 = vpop.f32.mrf.mxu0
      %v9994 = vadd.f32 %v9753, %v9993
      %9995 = vmatmul.bf16.gmra.mxu0 %v9842
      %v9996 = vpop.f32.mrf.mxu0
      %v9997 = vadd.f32 %v9753, %v9996
      %v9998 = vpop.f32.mrf.mxu0
      %v9999 = vadd.f32 %v9753, %v9998
      %10000 = vmatmul.bf16.gmra.mxu0 %v9845
      %v10001 = vpop.f32.mrf.mxu0
      %v10002 = vadd.f32 %v9753, %v10001
      %v10003 = vpop.f32.mrf.mxu0
      %v10004 = vadd.f32 %v9753, %v10003
      %10005 = vmatmul.bf16.gmra.mxu0 %v9848
      %v10006 = vpop.f32.mrf.mxu0
      %v10007 = vadd.f32 %v9753, %v10006
      %v10008 = vpop.f32.mrf.mxu0
      %v10009 = vadd.f32 %v9753, %v10008
      %10010 = vmatmul.bf16.gmra.mxu0 %v9851
      %v10011 = vpop.f32.mrf.mxu0
      %v10012 = vadd.f32 %v9753, %v10011
      %v10013 = vpop.f32.mrf.mxu0
      %v10014 = vadd.f32 %v9753, %v10013
      %10015 = vmatmul.bf16.gmra.mxu0 %v9854
      %v10016 = vpop.f32.mrf.mxu0
      %v10017 = vadd.f32 %v9753, %v10016
      %v10018 = vpop.f32.mrf.mxu0
      %v10019 = vadd.f32 %v9753, %v10018
      %10020 = vmatmul.bf16.gmra.mxu0 %v9857
      %v10021 = vpop.f32.mrf.mxu0
      %v10022 = vadd.f32 %v9753, %v10021
      %v10023 = vpop.f32.mrf.mxu0
      %v10024 = vadd.f32 %v9753, %v10023
      %10025 = vmatmul.bf16.gmra.mxu0 %v9860
      %v10026 = vpop.f32.mrf.mxu0
      %v10027 = vadd.f32 %v9753, %v10026
      %v10028 = vpop.f32.mrf.mxu0
      %v10029 = vadd.f32 %v9753, %v10028
      %10030 = vdwg.mxu0
      %v10031 = vmax.f32 %v9872, 0.0
      %v10032 = vmax.f32 %v9874, 0.0
      %v10033 = vmax.f32 %v9877, 0.0
      %v10034 = vmax.f32 %v9879, 0.0
      %v10035 = vmax.f32 %v9882, 0.0
      %v10036 = vmax.f32 %v9884, 0.0
      %v10037 = vmax.f32 %v9887, 0.0
      %v10038 = vmax.f32 %v9889, 0.0
      %v10039 = vmax.f32 %v9892, 0.0
      %v10040 = vmax.f32 %v9894, 0.0
      %v10041 = vmax.f32 %v9897, 0.0
      %v10042 = vmax.f32 %v9899, 0.0
      %v10043 = vmax.f32 %v9902, 0.0
      %v10044 = vmax.f32 %v9904, 0.0
      %v10045 = vmax.f32 %v9907, 0.0
      %v10046 = vmax.f32 %v9909, 0.0
      %v10047 = vmax.f32 %v9912, 0.0
      %v10048 = vmax.f32 %v9914, 0.0
      %v10049 = vmax.f32 %v9917, 0.0
      %v10050 = vmax.f32 %v9919, 0.0
      %v10051 = vmax.f32 %v9922, 0.0
      %v10052 = vmax.f32 %v9924, 0.0
      %v10053 = vmax.f32 %v9927, 0.0
      %v10054 = vmax.f32 %v9929, 0.0
      %v10055 = vmax.f32 %v9932, 0.0
      %v10056 = vmax.f32 %v9934, 0.0
      %v10057 = vmax.f32 %v9937, 0.0
      %v10058 = vmax.f32 %v9939, 0.0
      %v10059 = vmax.f32 %v9942, 0.0
      %v10060 = vmax.f32 %v9944, 0.0
      %v10061 = vmax.f32 %v9947, 0.0
      %v10062 = vmax.f32 %v9949, 0.0
      %v10063 = vmax.f32 %v9952, 0.0
      %v10064 = vmax.f32 %v9954, 0.0
      %v10065 = vmax.f32 %v9957, 0.0
      %v10066 = vmax.f32 %v9959, 0.0
      %v10067 = vmax.f32 %v9962, 0.0
      %v10068 = vmax.f32 %v9964, 0.0
      %v10069 = vmax.f32 %v9967, 0.0
      %v10070 = vmax.f32 %v9969, 0.0
      %v10071 = vmax.f32 %v9972, 0.0
      %v10072 = vmax.f32 %v9974, 0.0
      %v10073 = vmax.f32 %v9977, 0.0
      %v10074 = vmax.f32 %v9979, 0.0
      %v10075 = vmax.f32 %v9982, 0.0
      %v10076 = vmax.f32 %v9984, 0.0
      %v10077 = vmax.f32 %v9987, 0.0
      %v10078 = vmax.f32 %v9989, 0.0
      %v10079 = vmax.f32 %v9992, 0.0
      %v10080 = vmax.f32 %v9994, 0.0
      %v10081 = vmax.f32 %v9997, 0.0
      %v10082 = vmax.f32 %v9999, 0.0
      %v10083 = vmax.f32 %v10002, 0.0
      %v10084 = vmax.f32 %v10004, 0.0
      %v10085 = vmax.f32 %v10007, 0.0
      %v10086 = vmax.f32 %v10009, 0.0
      %v10087 = vmax.f32 %v10012, 0.0
      %v10088 = vmax.f32 %v10014, 0.0
      %v10089 = vmax.f32 %v10017, 0.0
      %v10090 = vmax.f32 %v10019, 0.0
      %v10091 = vmax.f32 %v10022, 0.0
      %v10092 = vmax.f32 %v10024, 0.0
      %v10093 = vmax.f32 %v10027, 0.0
      %v10094 = vmax.f32 %v10029, 0.0
      %v10095 = vld [vmem:[%s5 + $0x7] sm:$0x1]
      %v10096 = vperm.slane %v10095, 0
      %v10097 = vmul.f32 %v10031, %v10096
      %v10098 = vmul.f32 %v10032, %v10096
      %v10099 = vmul.f32 %v10033, %v10096
      %v10100 = vmul.f32 %v10034, %v10096
      %v10101 = vmul.f32 %v10035, %v10096
      %v10102 = vmul.f32 %v10036, %v10096
      %v10103 = vmul.f32 %v10037, %v10096
      %v10104 = vmul.f32 %v10038, %v10096
      %v10105 = vmul.f32 %v10039, %v10096
      %v10106 = vmul.f32 %v10040, %v10096
      %v10107 = vmul.f32 %v10041, %v10096
      %v10108 = vmul.f32 %v10042, %v10096
      %v10109 = vmul.f32 %v10043, %v10096
      %v10110 = vmul.f32 %v10044, %v10096
      %v10111 = vmul.f32 %v10045, %v10096
      %v10112 = vmul.f32 %v10046, %v10096
      %v10113 = vmul.f32 %v10047, %v10096
      %v10114 = vmul.f32 %v10048, %v10096
      %v10115 = vmul.f32 %v10049, %v10096
      %v10116 = vmul.f32 %v10050, %v10096
      %v10117 = vmul.f32 %v10051, %v10096
      %v10118 = vmul.f32 %v10052, %v10096
      %v10119 = vmul.f32 %v10053, %v10096
      %v10120 = vmul.f32 %v10054, %v10096
      %v10121 = vmul.f32 %v10055, %v10096
      %v10122 = vmul.f32 %v10056, %v10096
      %v10123 = vmul.f32 %v10057, %v10096
      %v10124 = vmul.f32 %v10058, %v10096
      %v10125 = vmul.f32 %v10059, %v10096
      %v10126 = vmul.f32 %v10060, %v10096
      %v10127 = vmul.f32 %v10061, %v10096
      %v10128 = vmul.f32 %v10062, %v10096
      %v10129 = vmul.f32 %v10063, %v10096
      %v10130 = vmul.f32 %v10064, %v10096
      %v10131 = vmul.f32 %v10065, %v10096
      %v10132 = vmul.f32 %v10066, %v10096
      %v10133 = vmul.f32 %v10067, %v10096
      %v10134 = vmul.f32 %v10068, %v10096
      %v10135 = vmul.f32 %v10069, %v10096
      %v10136 = vmul.f32 %v10070, %v10096
      %v10137 = vmul.f32 %v10071, %v10096
      %v10138 = vmul.f32 %v10072, %v10096
      %v10139 = vmul.f32 %v10073, %v10096
      %v10140 = vmul.f32 %v10074, %v10096
      %v10141 = vmul.f32 %v10075, %v10096
      %v10142 = vmul.f32 %v10076, %v10096
      %v10143 = vmul.f32 %v10077, %v10096
      %v10144 = vmul.f32 %v10078, %v10096
      %v10145 = vmul.f32 %v10079, %v10096
      %v10146 = vmul.f32 %v10080, %v10096
      %v10147 = vmul.f32 %v10081, %v10096
      %v10148 = vmul.f32 %v10082, %v10096
      %v10149 = vmul.f32 %v10083, %v10096
      %v10150 = vmul.f32 %v10084, %v10096
      %v10151 = vmul.f32 %v10085, %v10096
      %v10152 = vmul.f32 %v10086, %v10096
      %v10153 = vmul.f32 %v10087, %v10096
      %v10154 = vmul.f32 %v10088, %v10096
      %v10155 = vmul.f32 %v10089, %v10096
      %v10156 = vmul.f32 %v10090, %v10096
      %v10157 = vmul.f32 %v10091, %v10096
      %v10158 = vmul.f32 %v10092, %v10096
      %v10159 = vmul.f32 %v10093, %v10096
      %v10160 = vmul.f32 %v10094, %v10096
      %v10161 = vsel %vm719, %v10097, 0.0
      %10162 = vadd.xlane.f32.xlu0 %v10161
      %v10163 = vpop.xlane.xlu0 %10162
      %v10164 = vsel %vm719, %v10098, 0.0
      %10165 = vadd.xlane.f32.xlu0 %v10164
      %v10166 = vpop.xlane.xlu0 %10165
      %v10167 = vsel %vm719, %v10099, 0.0
      %10168 = vadd.xlane.f32.xlu0 %v10167
      %v10169 = vpop.xlane.xlu0 %10168
      %v10170 = vsel %vm719, %v10100, 0.0
      %10171 = vadd.xlane.f32.xlu0 %v10170
      %v10172 = vpop.xlane.xlu0 %10171
      %v10173 = vsel %vm719, %v10101, 0.0
      %10174 = vadd.xlane.f32.xlu0 %v10173
      %v10175 = vpop.xlane.xlu0 %10174
      %v10176 = vsel %vm719, %v10102, 0.0
      %10177 = vadd.xlane.f32.xlu0 %v10176
      %v10178 = vpop.xlane.xlu0 %10177
      %v10179 = vsel %vm719, %v10103, 0.0
      %10180 = vadd.xlane.f32.xlu0 %v10179
      %v10181 = vpop.xlane.xlu0 %10180
      %v10182 = vsel %vm719, %v10104, 0.0
      %10183 = vadd.xlane.f32.xlu0 %v10182
      %v10184 = vpop.xlane.xlu0 %10183
      %v10185 = vsel %vm719, %v10105, 0.0
      %10186 = vadd.xlane.f32.xlu0 %v10185
      %v10187 = vpop.xlane.xlu0 %10186
      %v10188 = vsel %vm719, %v10106, 0.0
      %10189 = vadd.xlane.f32.xlu0 %v10188
      %v10190 = vpop.xlane.xlu0 %10189
      %v10191 = vsel %vm719, %v10107, 0.0
      %10192 = vadd.xlane.f32.xlu0 %v10191
      %v10193 = vpop.xlane.xlu0 %10192
      %v10194 = vsel %vm719, %v10108, 0.0
      %10195 = vadd.xlane.f32.xlu0 %v10194
      %v10196 = vpop.xlane.xlu0 %10195
      %v10197 = vsel %vm719, %v10109, 0.0
      %10198 = vadd.xlane.f32.xlu0 %v10197
      %v10199 = vpop.xlane.xlu0 %10198
      %v10200 = vsel %vm719, %v10110, 0.0
      %10201 = vadd.xlane.f32.xlu0 %v10200
      %v10202 = vpop.xlane.xlu0 %10201
      %v10203 = vsel %vm719, %v10111, 0.0
      %10204 = vadd.xlane.f32.xlu0 %v10203
      %v10205 = vpop.xlane.xlu0 %10204
      %v10206 = vsel %vm719, %v10112, 0.0
      %10207 = vadd.xlane.f32.xlu0 %v10206
      %v10208 = vpop.xlane.xlu0 %10207
      %v10209 = vsel %vm719, %v10113, 0.0
      %10210 = vadd.xlane.f32.xlu0 %v10209
      %v10211 = vpop.xlane.xlu0 %10210
      %v10212 = vsel %vm719, %v10114, 0.0
      %10213 = vadd.xlane.f32.xlu0 %v10212
      %v10214 = vpop.xlane.xlu0 %10213
      %v10215 = vsel %vm719, %v10115, 0.0
      %10216 = vadd.xlane.f32.xlu0 %v10215
      %v10217 = vpop.xlane.xlu0 %10216
      %v10218 = vsel %vm719, %v10116, 0.0
      %10219 = vadd.xlane.f32.xlu0 %v10218
      %v10220 = vpop.xlane.xlu0 %10219
      %v10221 = vsel %vm719, %v10117, 0.0
      %10222 = vadd.xlane.f32.xlu0 %v10221
      %v10223 = vpop.xlane.xlu0 %10222
      %v10224 = vsel %vm719, %v10118, 0.0
      %10225 = vadd.xlane.f32.xlu0 %v10224
      %v10226 = vpop.xlane.xlu0 %10225
      %v10227 = vsel %vm719, %v10119, 0.0
      %10228 = vadd.xlane.f32.xlu0 %v10227
      %v10229 = vpop.xlane.xlu0 %10228
      %v10230 = vsel %vm719, %v10120, 0.0
      %10231 = vadd.xlane.f32.xlu0 %v10230
      %v10232 = vpop.xlane.xlu0 %10231
      %v10233 = vsel %vm719, %v10121, 0.0
      %10234 = vadd.xlane.f32.xlu0 %v10233
      %v10235 = vpop.xlane.xlu0 %10234
      %v10236 = vsel %vm719, %v10122, 0.0
      %10237 = vadd.xlane.f32.xlu0 %v10236
      %v10238 = vpop.xlane.xlu0 %10237
      %v10239 = vsel %vm719, %v10123, 0.0
      %10240 = vadd.xlane.f32.xlu0 %v10239
      %v10241 = vpop.xlane.xlu0 %10240
      %v10242 = vsel %vm719, %v10124, 0.0
      %10243 = vadd.xlane.f32.xlu0 %v10242
      %v10244 = vpop.xlane.xlu0 %10243
      %v10245 = vsel %vm719, %v10125, 0.0
      %10246 = vadd.xlane.f32.xlu0 %v10245
      %v10247 = vpop.xlane.xlu0 %10246
      %v10248 = vsel %vm719, %v10126, 0.0
      %10249 = vadd.xlane.f32.xlu0 %v10248
      %v10250 = vpop.xlane.xlu0 %10249
      %v10251 = vsel %vm719, %v10127, 0.0
      %10252 = vadd.xlane.f32.xlu0 %v10251
      %v10253 = vpop.xlane.xlu0 %10252
      %v10254 = vsel %vm719, %v10128, 0.0
      %10255 = vadd.xlane.f32.xlu0 %v10254
      %v10256 = vpop.xlane.xlu0 %10255
      %v10257 = vsel %vm719, %v10129, 0.0
      %10258 = vadd.xlane.f32.xlu0 %v10257
      %v10259 = vpop.xlane.xlu0 %10258
      %v10260 = vsel %vm719, %v10130, 0.0
      %10261 = vadd.xlane.f32.xlu0 %v10260
      %v10262 = vpop.xlane.xlu0 %10261
      %v10263 = vsel %vm719, %v10131, 0.0
      %10264 = vadd.xlane.f32.xlu0 %v10263
      %v10265 = vpop.xlane.xlu0 %10264
      %v10266 = vsel %vm719, %v10132, 0.0
      %10267 = vadd.xlane.f32.xlu0 %v10266
      %v10268 = vpop.xlane.xlu0 %10267
      %v10269 = vsel %vm719, %v10133, 0.0
      %10270 = vadd.xlane.f32.xlu0 %v10269
      %v10271 = vpop.xlane.xlu0 %10270
      %v10272 = vsel %vm719, %v10134, 0.0
      %10273 = vadd.xlane.f32.xlu0 %v10272
      %v10274 = vpop.xlane.xlu0 %10273
      %v10275 = vsel %vm719, %v10135, 0.0
      %10276 = vadd.xlane.f32.xlu0 %v10275
      %v10277 = vpop.xlane.xlu0 %10276
      %v10278 = vsel %vm719, %v10136, 0.0
      %10279 = vadd.xlane.f32.xlu0 %v10278
      %v10280 = vpop.xlane.xlu0 %10279
      %v10281 = vsel %vm719, %v10137, 0.0
      %10282 = vadd.xlane.f32.xlu0 %v10281
      %v10283 = vpop.xlane.xlu0 %10282
      %v10284 = vsel %vm719, %v10138, 0.0
      %10285 = vadd.xlane.f32.xlu0 %v10284
      %v10286 = vpop.xlane.xlu0 %10285
      %v10287 = vsel %vm719, %v10139, 0.0
      %10288 = vadd.xlane.f32.xlu0 %v10287
      %v10289 = vpop.xlane.xlu0 %10288
      %v10290 = vsel %vm719, %v10140, 0.0
      %10291 = vadd.xlane.f32.xlu0 %v10290
      %v10292 = vpop.xlane.xlu0 %10291
      %v10293 = vsel %vm719, %v10141, 0.0
      %10294 = vadd.xlane.f32.xlu0 %v10293
      %v10295 = vpop.xlane.xlu0 %10294
      %v10296 = vsel %vm719, %v10142, 0.0
      %10297 = vadd.xlane.f32.xlu0 %v10296
      %v10298 = vpop.xlane.xlu0 %10297
      %v10299 = vsel %vm719, %v10143, 0.0
      %10300 = vadd.xlane.f32.xlu0 %v10299
      %v10301 = vpop.xlane.xlu0 %10300
      %v10302 = vsel %vm719, %v10144, 0.0
      %10303 = vadd.xlane.f32.xlu0 %v10302
      %v10304 = vpop.xlane.xlu0 %10303
      %v10305 = vsel %vm719, %v10145, 0.0
      %10306 = vadd.xlane.f32.xlu0 %v10305
      %v10307 = vpop.xlane.xlu0 %10306
      %v10308 = vsel %vm719, %v10146, 0.0
      %10309 = vadd.xlane.f32.xlu0 %v10308
      %v10310 = vpop.xlane.xlu0 %10309
      %v10311 = vsel %vm719, %v10147, 0.0
      %10312 = vadd.xlane.f32.xlu0 %v10311
      %v10313 = vpop.xlane.xlu0 %10312
      %v10314 = vsel %vm719, %v10148, 0.0
      %10315 = vadd.xlane.f32.xlu0 %v10314
      %v10316 = vpop.xlane.xlu0 %10315
      %v10317 = vsel %vm719, %v10149, 0.0
      %10318 = vadd.xlane.f32.xlu0 %v10317
      %v10319 = vpop.xlane.xlu0 %10318
      %v10320 = vsel %vm719, %v10150, 0.0
      %10321 = vadd.xlane.f32.xlu0 %v10320
      %v10322 = vpop.xlane.xlu0 %10321
      %v10323 = vsel %vm719, %v10151, 0.0
      %10324 = vadd.xlane.f32.xlu0 %v10323
      %v10325 = vpop.xlane.xlu0 %10324
      %v10326 = vsel %vm719, %v10152, 0.0
      %10327 = vadd.xlane.f32.xlu0 %v10326
      %v10328 = vpop.xlane.xlu0 %10327
      %v10329 = vsel %vm719, %v10153, 0.0
      %10330 = vadd.xlane.f32.xlu0 %v10329
      %v10331 = vpop.xlane.xlu0 %10330
      %v10332 = vsel %vm719, %v10154, 0.0
      %10333 = vadd.xlane.f32.xlu0 %v10332
      %v10334 = vpop.xlane.xlu0 %10333
      %v10335 = vsel %vm719, %v10155, 0.0
      %10336 = vadd.xlane.f32.xlu0 %v10335
      %v10337 = vpop.xlane.xlu0 %10336
      %v10338 = vsel %vm719, %v10156, 0.0
      %10339 = vadd.xlane.f32.xlu0 %v10338
      %v10340 = vpop.xlane.xlu0 %10339
      %v10341 = vsel %vm719, %v10157, 0.0
      %10342 = vadd.xlane.f32.xlu0 %v10341
      %v10343 = vpop.xlane.xlu0 %10342
      %v10344 = vsel %vm719, %v10158, 0.0
      %10345 = vadd.xlane.f32.xlu0 %v10344
      %v10346 = vpop.xlane.xlu0 %10345
      %v10347 = vsel %vm719, %v10159, 0.0
      %10348 = vadd.xlane.f32.xlu0 %v10347
      %v10349 = vpop.xlane.xlu0 %10348
      %v10350 = vsel %vm719, %v10160, 0.0
      %10351 = vadd.xlane.f32.xlu0 %v10350
      %v10352 = vpop.xlane.xlu0 %10351
      %v10353 = vld [vmem:[%s5 + $0x8] sm:$0x1]
      %s10355 = vtos %v10353
      %v10356 = vstv %s10355
      %v10358 = vadd.f32 %v10163, %v10356
      %v10359 = vadd.f32 %v10166, %v10356
      %v10360 = vadd.f32 %v10169, %v10356
      %v10361 = vadd.f32 %v10172, %v10356
      %v10362 = vadd.f32 %v10175, %v10356
      %v10363 = vadd.f32 %v10178, %v10356
      %v10364 = vadd.f32 %v10181, %v10356
      %v10365 = vadd.f32 %v10184, %v10356
      %v10366 = vadd.f32 %v10187, %v10356
      %v10367 = vadd.f32 %v10190, %v10356
      %v10368 = vadd.f32 %v10193, %v10356
      %v10369 = vadd.f32 %v10196, %v10356
      %v10370 = vadd.f32 %v10199, %v10356
      %v10371 = vadd.f32 %v10202, %v10356
      %v10372 = vadd.f32 %v10205, %v10356
      %v10373 = vadd.f32 %v10208, %v10356
      %v10374 = vadd.f32 %v10211, %v10356
      %v10375 = vadd.f32 %v10214, %v10356
      %v10376 = vadd.f32 %v10217, %v10356
      %v10377 = vadd.f32 %v10220, %v10356
      %v10378 = vadd.f32 %v10223, %v10356
      %v10379 = vadd.f32 %v10226, %v10356
      %v10380 = vadd.f32 %v10229, %v10356
      %v10381 = vadd.f32 %v10232, %v10356
      %v10382 = vadd.f32 %v10235, %v10356
      %v10383 = vadd.f32 %v10238, %v10356
      %v10384 = vadd.f32 %v10241, %v10356
      %v10385 = vadd.f32 %v10244, %v10356
      %v10386 = vadd.f32 %v10247, %v10356
      %v10387 = vadd.f32 %v10250, %v10356
      %v10388 = vadd.f32 %v10253, %v10356
      %v10389 = vadd.f32 %v10256, %v10356
      %v10390 = vadd.f32 %v10259, %v10356
      %v10391 = vadd.f32 %v10262, %v10356
      %v10392 = vadd.f32 %v10265, %v10356
      %v10393 = vadd.f32 %v10268, %v10356
      %v10394 = vadd.f32 %v10271, %v10356
      %v10395 = vadd.f32 %v10274, %v10356
      %v10396 = vadd.f32 %v10277, %v10356
      %v10397 = vadd.f32 %v10280, %v10356
      %v10398 = vadd.f32 %v10283, %v10356
      %v10399 = vadd.f32 %v10286, %v10356
      %v10400 = vadd.f32 %v10289, %v10356
      %v10401 = vadd.f32 %v10292, %v10356
      %v10402 = vadd.f32 %v10295, %v10356
      %v10403 = vadd.f32 %v10298, %v10356
      %v10404 = vadd.f32 %v10301, %v10356
      %v10405 = vadd.f32 %v10304, %v10356
      %v10406 = vadd.f32 %v10307, %v10356
      %v10407 = vadd.f32 %v10310, %v10356
      %v10408 = vadd.f32 %v10313, %v10356
      %v10409 = vadd.f32 %v10316, %v10356
      %v10410 = vadd.f32 %v10319, %v10356
      %v10411 = vadd.f32 %v10322, %v10356
      %v10412 = vadd.f32 %v10325, %v10356
      %v10413 = vadd.f32 %v10328, %v10356
      %v10414 = vadd.f32 %v10331, %v10356
      %v10415 = vadd.f32 %v10334, %v10356
      %v10416 = vadd.f32 %v10337, %v10356
      %v10417 = vadd.f32 %v10340, %v10356
      %v10418 = vadd.f32 %v10343, %v10356
      %v10419 = vadd.f32 %v10346, %v10356
      %v10420 = vadd.f32 %v10349, %v10356
      %v10421 = vadd.f32 %v10352, %v10356
      %v10486 = vperm.slane %v10358, %v342
      %v10487 = vadd.s32 %v342, 4294967288
      %v10488 = vperm.slane %v10359, %v10487
      %vm10489 = vcmask 130112
      %v10490 = vsel %vm10489, %v10488, %v10486
      %v10491 = vperm.slane %v10360, %v342
      %v10492 = vperm.slane %v10361, %v10487
      %v10493 = vsel %vm10489, %v10492, %v10491
      %v10494 = vperm.slane %v10362, %v342
      %v10495 = vperm.slane %v10363, %v10487
      %v10496 = vsel %vm10489, %v10495, %v10494
      %v10497 = vperm.slane %v10364, %v342
      %v10498 = vperm.slane %v10365, %v10487
      %v10499 = vsel %vm10489, %v10498, %v10497
      %v10500 = vperm.slane %v10366, %v342
      %v10501 = vperm.slane %v10367, %v10487
      %v10502 = vsel %vm10489, %v10501, %v10500
      %v10503 = vperm.slane %v10368, %v342
      %v10504 = vperm.slane %v10369, %v10487
      %v10505 = vsel %vm10489, %v10504, %v10503
      %v10506 = vperm.slane %v10370, %v342
      %v10507 = vperm.slane %v10371, %v10487
      %v10508 = vsel %vm10489, %v10507, %v10506
      %v10509 = vperm.slane %v10372, %v342
      %v10510 = vperm.slane %v10373, %v10487
      %v10511 = vsel %vm10489, %v10510, %v10509
      %v10512 = vperm.slane %v10374, %v342
      %v10513 = vperm.slane %v10375, %v10487
      %v10514 = vsel %vm10489, %v10513, %v10512
      %v10515 = vperm.slane %v10376, %v342
      %v10516 = vperm.slane %v10377, %v10487
      %v10517 = vsel %vm10489, %v10516, %v10515
      %v10518 = vperm.slane %v10378, %v342
      %v10519 = vperm.slane %v10379, %v10487
      %v10520 = vsel %vm10489, %v10519, %v10518
      %v10521 = vperm.slane %v10380, %v342
      %v10522 = vperm.slane %v10381, %v10487
      %v10523 = vsel %vm10489, %v10522, %v10521
      %v10524 = vperm.slane %v10382, %v342
      %v10525 = vperm.slane %v10383, %v10487
      %v10526 = vsel %vm10489, %v10525, %v10524
      %v10527 = vperm.slane %v10384, %v342
      %v10528 = vperm.slane %v10385, %v10487
      %v10529 = vsel %vm10489, %v10528, %v10527
      %v10530 = vperm.slane %v10386, %v342
      %v10531 = vperm.slane %v10387, %v10487
      %v10532 = vsel %vm10489, %v10531, %v10530
      %v10533 = vperm.slane %v10388, %v342
      %v10534 = vperm.slane %v10389, %v10487
      %v10535 = vsel %vm10489, %v10534, %v10533
      %v10536 = vperm.slane %v10390, %v342
      %v10537 = vperm.slane %v10391, %v10487
      %v10538 = vsel %vm10489, %v10537, %v10536
      %v10539 = vperm.slane %v10392, %v342
      %v10540 = vperm.slane %v10393, %v10487
      %v10541 = vsel %vm10489, %v10540, %v10539
      %v10542 = vperm.slane %v10394, %v342
      %v10543 = vperm.slane %v10395, %v10487
      %v10544 = vsel %vm10489, %v10543, %v10542
      %v10545 = vperm.slane %v10396, %v342
      %v10546 = vperm.slane %v10397, %v10487
      %v10547 = vsel %vm10489, %v10546, %v10545
      %v10548 = vperm.slane %v10398, %v342
      %v10549 = vperm.slane %v10399, %v10487
      %v10550 = vsel %vm10489, %v10549, %v10548
      %v10551 = vperm.slane %v10400, %v342
      %v10552 = vperm.slane %v10401, %v10487
      %v10553 = vsel %vm10489, %v10552, %v10551
      %v10554 = vperm.slane %v10402, %v342
      %v10555 = vperm.slane %v10403, %v10487
      %v10556 = vsel %vm10489, %v10555, %v10554
      %v10557 = vperm.slane %v10404, %v342
      %v10558 = vperm.slane %v10405, %v10487
      %v10559 = vsel %vm10489, %v10558, %v10557
      %v10560 = vperm.slane %v10406, %v342
      %v10561 = vperm.slane %v10407, %v10487
      %v10562 = vsel %vm10489, %v10561, %v10560
      %v10563 = vperm.slane %v10408, %v342
      %v10564 = vperm.slane %v10409, %v10487
      %v10565 = vsel %vm10489, %v10564, %v10563
      %v10566 = vperm.slane %v10410, %v342
      %v10567 = vperm.slane %v10411, %v10487
      %v10568 = vsel %vm10489, %v10567, %v10566
      %v10569 = vperm.slane %v10412, %v342
      %v10570 = vperm.slane %v10413, %v10487
      %v10571 = vsel %vm10489, %v10570, %v10569
      %v10572 = vperm.slane %v10414, %v342
      %v10573 = vperm.slane %v10415, %v10487
      %v10574 = vsel %vm10489, %v10573, %v10572
      %v10575 = vperm.slane %v10416, %v342
      %v10576 = vperm.slane %v10417, %v10487
      %v10577 = vsel %vm10489, %v10576, %v10575
      %v10578 = vperm.slane %v10418, %v342
      %v10579 = vperm.slane %v10419, %v10487
      %v10580 = vsel %vm10489, %v10579, %v10578
      %v10581 = vperm.slane %v10420, %v342
      %v10582 = vperm.slane %v10421, %v10487
      %v10583 = vsel %vm10489, %v10582, %v10581
      %v10584 = vsel %vm4858, %v10493, %v10490
      %v10585 = vsel %vm4861, %v10496, %v10584
      %v10586 = vsel %vm4864, %v10499, %v10585
      %v10587 = vsel %vm4867, %v10502, %v10586
      %v10588 = vsel %vm4870, %v10505, %v10587
      %v10589 = vsel %vm4873, %v10508, %v10588
      %v10590 = vsel %vm4876, %v10511, %v10589
      %v10591 = vsel %vm4858, %v10517, %v10514
      %v10592 = vsel %vm4861, %v10520, %v10591
      %v10593 = vsel %vm4864, %v10523, %v10592
      %v10594 = vsel %vm4867, %v10526, %v10593
      %v10595 = vsel %vm4870, %v10529, %v10594
      %v10596 = vsel %vm4873, %v10532, %v10595
      %v10597 = vsel %vm4876, %v10535, %v10596
      %v10598 = vsel %vm4858, %v10541, %v10538
      %v10599 = vsel %vm4861, %v10544, %v10598
      %v10600 = vsel %vm4864, %v10547, %v10599
      %v10601 = vsel %vm4867, %v10550, %v10600
      %v10602 = vsel %vm4870, %v10553, %v10601
      %v10603 = vsel %vm4873, %v10556, %v10602
      %v10604 = vsel %vm4876, %v10559, %v10603
      %v10605 = vsel %vm4858, %v10565, %v10562
      %v10606 = vsel %vm4861, %v10568, %v10605
      %v10607 = vsel %vm4864, %v10571, %v10606
      %v10608 = vsel %vm4867, %v10574, %v10607
      %v10609 = vsel %vm4870, %v10577, %v10608
      %v10610 = vsel %vm4873, %v10580, %v10609
      %v10611 = vsel %vm4876, %v10583, %v10610
      %10616 = vst.msk [vmem:[%s332] sm:$0xff] %vm440, %v10590
      %10617 = vst.msk [vmem:[%s332 + $0x8] sm:$0xff] %vm440, %v10597
      %10618 = vst.msk [vmem:[%s332 + $0x10] sm:$0xff] %vm440, %v10604
      %10619 = vst.msk [vmem:[%s332 + $0x18] sm:$0xff] %vm440, %v10611
      %s10620 = smul.u32 4, %s19
      %p10621 = scmp.lt.s32.totalorder %s10620, 7
      %s10622 = scalar_select %p10621, %s10620, 7
      %s10623 = smul.addr %s10622, 8
      %s10624 = scalar_lea.vmem %s6, %s10623
      %s10625 = smul.u32 4, %s19
      %p10626 = scmp.lt.s32.totalorder %s10625, 7
      %s10627 = scalar_select %p10626, %s10625, 7
      %s10628 = smul.addr %s10627, 8
      %s10629 = scalar_lea.vmem %s7, %s10628
      // Predicated region
      $region45: #{tpu_custom_call.1} parent=43 // pred_check
        %p10630 = pneg %p178
      $region46: #{tpu_custom_call.1} parent=43 // pred_check_branch
        %10632 = sbr.rel (%p10630) target = $region48
      $region47: #{tpu_custom_call.1} parent=43 // pred_region
        %s10633 = smul.u32 4, %s19
      $region48: #{tpu_custom_call.1} parent=43 // pred_fallthru
        _
      // Predicated region
      $region49: #{tpu_custom_call.1} parent=43 // pred_check
        %p10634 = pneg %p204
      $region50: #{tpu_custom_call.1} parent=43 // pred_check_branch
        %10636 = sbr.rel (%p10634) target = $region52
      $region51: #{tpu_custom_call.1} parent=43 // pred_region
        %s10637 = smul.u32 4, %s19
      $region52: #{tpu_custom_call.1} parent=43 // pred_fallthru
        _
    $region44: #{tpu_custom_call.1} parent=5 // pred_fallthru
      _
    %p10638 = scmp.le.s32.totalorder 2, %s14
    // Predicated region
    $region53: #{tpu_custom_call.1} parent=5 // pred_check
      %p10639 = pneg %p10638
    $region54: #{tpu_custom_call.1} parent=5 // pred_check_branch
      %10641 = sbr.rel (%p10639) target = $region56
    $region55: #{tpu_custom_call.1} parent=5 // pred_region
      %s10642 = ssub.s32 %s14, 2
      // Predicated region
      $region57: #{tpu_custom_call.1} parent=55 // pred_check
        %p10643 = pneg %p184
      $region58: #{tpu_custom_call.1} parent=55 // pred_check_branch
        %10645 = sbr.rel (%p10643) target = $region60
      $region59: #{tpu_custom_call.1} parent=55 // pred_region
        %s10646 = smul.u32 4, %s20
        %p10647 = scmp.lt.s32.totalorder %s10646, 7
        %s10648 = scalar_select %p10647, %s10646, 7
        %s10649 = smul.addr %s10648, 8
        %s10650 = scalar_lea.vmem %s6, %s10649
      $region60: #{tpu_custom_call.1} parent=55 // pred_fallthru
        _
      // Predicated region
      $region61: #{tpu_custom_call.1} parent=55 // pred_check
        %p10651 = pneg %p210
      $region62: #{tpu_custom_call.1} parent=55 // pred_check_branch
        %10653 = sbr.rel (%p10651) target = $region64
      $region63: #{tpu_custom_call.1} parent=55 // pred_region
        %s10654 = smul.u32 4, %s20
        %p10655 = scmp.lt.s32.totalorder %s10654, 7
        %s10656 = scalar_select %p10655, %s10654, 7
        %s10657 = smul.addr %s10656, 8
        %s10658 = scalar_lea.vmem %s7, %s10657
      $region64: #{tpu_custom_call.1} parent=55 // pred_fallthru
        _
    $region56: #{tpu_custom_call.1} parent=5 // pred_fallthru
      _
  $region6: #{tpu_custom_call.1} parent=0 // loop_footer
    %s18 = sadd.s32 1, %s14
  $region7: #{tpu_custom_call.1} parent=0 // loop_footer_branch
    %13 = sbr.rel target = $region3
  $region8: #{tpu_custom_call.1} parent=0 // loop_exit
    _

</llo_original>
